<compile_context>
chip_gen: v6e
topology: v6e:2x2x1
jax: 0.10.0
libtpu: 0.0.40
codegen_flags: <defaults>
</compile_context>

<pallas_src>
from functools import partial

import jax
import jax.numpy as jnp
import numpy as np
from jax.experimental import pallas as pl
from jax.experimental.pallas import tpu as pltpu


# ----------------------------------------------------------------------------
# Conv3d (3x3x3, pad=1): 9 grid taps x 3 in-kernel kd matmuls + fused BN stats
# ----------------------------------------------------------------------------
def _conv_tap_kernel(xs_ref, w_ref, b_ref, y_ref, s1_ref, s2_ref, acc_ref, *,
                     dhw, hw):
    """One (batch b, tap t=(kh*3+kw)) grid step.

    xs_ref : (1, 1, Dp*HW, Cin) bf16  (kh,kw)-shifted activation slab
    w_ref  : (1, 3, Cin, Cout)  bf16  3 kd weight slabs for this (kh,kw)
    b_ref  : (1, Cout)          f32   conv bias
    y_ref  : (1, DHW, Cout)     bf16  conv output for batch b
    s1_ref : (1, 1, Cout)       f32   per-batch per-channel sum(y)
    s2_ref : (1, 1, Cout)       f32   per-batch per-channel sum(y*y)
    acc_ref: (DHW, Cout)        f32   VMEM accumulator (resident across taps)
    """
    t = pl.program_id(1)

    @pl.when(t == 0)
    def _init():
        # Initialize the accumulator with the conv bias (saves a finalize add).
        acc_ref[...] = jnp.broadcast_to(b_ref[...], acc_ref.shape)

    # Three kd taps folded into this grid step: static, HW-aligned row slices
    # of the (kh,kw)-shifted slab; accumulate in registers, touch VMEM once.
    acc = acc_ref[...]
    for kd in range(3):
        x = xs_ref[0, 0, pl.ds(kd * hw, dhw), :]             # (DHW, Cin) bf16
        acc = acc + jnp.dot(x, w_ref[0, kd],
                            preferred_element_type=jnp.float32)
    acc_ref[...] = acc

    @pl.when(t == pl.num_programs(1) - 1)
    def _finalize():
        y_ref[0] = acc.astype(y_ref.dtype)                   # bf16 writeback
        s1_ref[0] = jnp.sum(acc, axis=0, keepdims=True)      # f32 stats
        s2_ref[0] = jnp.sum(acc * acc, axis=0, keepdims=True)


def conv3d_pallas(x, w, b):
    """3x3x3 conv, padding=1, stride=1.

    x: (B, D, H, W, Cin) channels-last
    w: (Cout, Cin, 3, 3, 3)  (PyTorch Conv3d layout)
    b: (Cout,)
    Returns:
      y  : (B, D*H*W, Cout) bf16  conv output (channels lane-dense)
      s1 : (B, 1, Cout)     f32   per-batch channel sums of y
      s2 : (B, 1, Cout)     f32   per-batch channel sums of y*y
    """
    B, D, H, W, Cin = x.shape
    Cout = w.shape[0]
    HW, DHW, Dp = H * W, D * H * W, D + 2
    assert Cin % 128 == 0 and Cout % 128 == 0, "channels must be lane-aligned"
    assert HW % 8 == 0, "H*W must be a multiple of the sublane tile (8)"

    # Pad spatial dims once; build the 9 (kh,kw)-shifted copies with (Dp,H,W)
    # flattened to Dp*HW rows so the in-kernel kd shift is a contiguous,
    # tile-aligned static row slice.  bf16 halves DMA traffic, feeds the MXU.
    xp = jnp.pad(x, ((0, 0), (1, 1), (1, 1), (1, 1), (0, 0)))
    shifts = [
        xp[:, :, kh:kh + H, kw:kw + W, :].reshape(B, Dp * HW, Cin)
        for kh in range(3) for kw in range(3)
    ]
    xs = jnp.stack(shifts, axis=0).astype(jnp.bfloat16)      # (9, B, Dp*HW, Cin)

    # Weights: (Cout, Cin, kd, kh, kw) -> (kh, kw, kd, Cin, Cout) -> (9,3,Cin,Cout)
    wr = jnp.transpose(w, (3, 4, 2, 1, 0)).reshape(9, 3, Cin, Cout)
    wr = wr.astype(jnp.bfloat16)
    b2 = b.reshape(1, Cout).astype(jnp.float32)

    # Scoped-VMEM budget from double-buffered block sizes (+ headroom).
    blk_bytes = (2 * Dp * HW * Cin * 2        # activation blocks (bf16)
                 + 2 * 3 * Cin * Cout * 2     # weight blocks (bf16)
                 + 2 * DHW * Cout * 2         # y output blocks (bf16)
                 + DHW * Cout * 4             # f32 accumulator scratch
                 + 4 * 2 * Cout * 4           # stats blocks
                 + 2 * Cout * 4)              # bias blocks
    vmem_limit = int(min(100 * 2**20, max(32 * 2**20, 1.5 * blk_bytes)))

    kernel = partial(_conv_tap_kernel, dhw=DHW, hw=HW)
    y, s1, s2 = pl.pallas_call(
        kernel,
        out_shape=(
            jax.ShapeDtypeStruct((B, DHW, Cout), jnp.bfloat16),
            jax.ShapeDtypeStruct((B, 1, Cout), jnp.float32),
            jax.ShapeDtypeStruct((B, 1, Cout), jnp.float32),
        ),
        grid=(B, 9),
        in_specs=[
            pl.BlockSpec((1, 1, Dp * HW, Cin), lambda bb, t: (t, bb, 0, 0)),
            pl.BlockSpec((1, 3, Cin, Cout), lambda bb, t: (t, 0, 0, 0)),
            pl.BlockSpec((1, Cout), lambda bb, t: (0, 0)),
        ],
        out_specs=(
            pl.BlockSpec((1, DHW, Cout), lambda bb, t: (bb, 0, 0)),
            pl.BlockSpec((1, 1, Cout), lambda bb, t: (bb, 0, 0)),
            pl.BlockSpec((1, 1, Cout), lambda bb, t: (bb, 0, 0)),
        ),
        scratch_shapes=[pltpu.VMEM((DHW, Cout), jnp.float32)],
        compiler_params=pltpu.CompilerParams(
            dimension_semantics=("parallel", "arbitrary"),
            vmem_limit_bytes=vmem_limit),
    )(xs, wr, b2)
    return y, s1, s2


# ----------------------------------------------------------------------------
# Fused BatchNorm (precomputed per-channel scale/shift) + activation [+ sigmoid]
# ----------------------------------------------------------------------------
def _bn_act_kernel(y_ref, sc_ref, sh_ref, o_ref, *, act, apply_sigmoid):
    z = y_ref[...].astype(jnp.float32) * sc_ref[...] + sh_ref[...]
    if act == 'relu':
        z = jnp.maximum(z, 0.0)
    elif act == 'elu':
        z = jnp.where(z > 0, z, jnp.exp(jnp.minimum(z, 0.0)) - 1.0)
    else:
        raise NotImplementedError(act)   # TODO(synk): 'prelu'
    if apply_sigmoid:
        z = 1.0 / (1.0 + jnp.exp(-z))    # exact sigmoid (module output)
    o_ref[...] = z.astype(o_ref.dtype)


def bn_act_pallas(y2d, scale, shift, *, act, apply_sigmoid, out_dtype):
    """out = [sigmoid]( act( y2d * scale + shift ) ).  y2d: (R, C), lane-dense C."""
    R, C = y2d.shape
    assert R % 8 == 0 and C % 128 == 0
    tr = min(512, R)                                  # fixed 512-row tiles
    grid = (pl.cdiv(R, tr),)
    blk_bytes = (2 * tr * C * y2d.dtype.itemsize
                 + 2 * tr * C * jnp.dtype(out_dtype).itemsize + 8 * C * 4)
    vmem_limit = int(min(100 * 2**20, max(32 * 2**20, 2 * blk_bytes)))
    kernel = partial(_bn_act_kernel, act=act, apply_sigmoid=apply_sigmoid)
    return pl.pallas_call(
        kernel,
        out_shape=jax.ShapeDtypeStruct((R, C), out_dtype),
        grid=grid,
        in_specs=[
            pl.BlockSpec((tr, C), lambda i: (i, 0)),
            pl.BlockSpec((1, C), lambda i: (0, 0)),
            pl.BlockSpec((1, C), lambda i: (0, 0)),
        ],
        out_specs=pl.BlockSpec((tr, C), lambda i: (i, 0)),
        compiler_params=pltpu.CompilerParams(
            dimension_semantics=("parallel",),
            vmem_limit_bytes=vmem_limit),
    )(y2d, scale, shift)


def _bn_affine(s1, s2, count, gamma, beta, eps=1e-5):
    """Fold batch statistics + affine params into per-channel scale/shift."""
    # NOTE: var = E[y^2] - E[y]^2 in f32 can cancel for huge counts; acceptable
    # at these sizes (documented correctness concern).
    mean = jnp.sum(s1[:, 0, :], axis=0) / count
    var = jnp.sum(s2[:, 0, :], axis=0) / count - mean * mean   # biased (training=True)
    scale = gamma / jnp.sqrt(var + eps)
    shift = beta - mean * scale
    return (scale.reshape(1, -1).astype(jnp.float32),
            shift.reshape(1, -1).astype(jnp.float32))


# ----------------------------------------------------------------------------
# Full FusionLayer forward
# ----------------------------------------------------------------------------
def fusion_layer_forward(x1, x2, params, *, act='relu', eps=1e-5):
    """x1, x2: (B, 512, D, H, W) NCDHW -> out: (B, 512, D, H, W)."""
    # Channels-last per half, concat on the lane (channel) axis.
    x = jnp.concatenate(
        [jnp.transpose(x1, (0, 2, 3, 4, 1)), jnp.transpose(x2, (0, 2, 3, 4, 1))],
        axis=-1)                                             # (B, D, H, W, 1024)
    B, D, H, W, _ = x.shape
    n = D * H * W

    # layer1: Conv3d(1024->512) + BN(batch stats) + act
    y1, s1, q1 = conv3d_pallas(x, params['w1'], params['b1'])
    sc1, sh1 = _bn_affine(s1, q1, B * n, params['bn1_w'], params['bn1_b'], eps)
    a1 = bn_act_pallas(y1.reshape(B * n, -1), sc1, sh1,
                       act=act, apply_sigmoid=False, out_dtype=jnp.bfloat16)
    a1 = a1.reshape(B, D, H, W, -1)

    # layer2: Conv3d(512->512) + BN + act, then the module-level sigmoid,
    # fused into one elementwise kernel.
    y2, s2_, q2 = conv3d_pallas(a1, params['w2'], params['b2'])
    sc2, sh2 = _bn_affine(s2_, q2, B * n, params['bn2_w'], params['bn2_b'], eps)
    out = bn_act_pallas(y2.reshape(B * n, -1), sc2, sh2,
                        act=act, apply_sigmoid=True, out_dtype=jnp.float32)

    return out.reshape(B, D, H, W, -1).transpose(0, 4, 1, 2, 3)  # back to NCDHW


# ----------------------------------------------------------------------------
# Pure-JAX f32 reference mirroring the PyTorch forward
# ----------------------------------------------------------------------------
def fusion_layer_ref(x1, x2, params, *, act='relu', eps=1e-5):
    x = jnp.concatenate([x1, x2], axis=1)

    def conv(h, w, b):
        y = jax.lax.conv_general_dilated(
            h, w, window_strides=(1, 1, 1),
            padding=((1, 1), (1, 1), (1, 1)),
            dimension_numbers=('NCDHW', 'OIDHW', 'NCDHW'))
        return y + b[None, :, None, None, None]

    def bn(y, g, be):
        m = jnp.mean(y, axis=(0, 2, 3, 4), keepdims=True)
        v = jnp.var(y, axis=(0, 2, 3, 4), keepdims=True)   # biased (training=True)
        return ((y - m) / jnp.sqrt(v + eps) * g[None, :, None, None, None]
                + be[None, :, None, None, None])

    def activation(z):
        if act == 'relu':
            return jax.nn.relu(z)
        if act == 'elu':
            return jnp.where(z > 0, z, jnp.expm1(z))
        raise NotImplementedError(act)

    h = activation(bn(conv(x, params['w1'], params['b1']),
                      params['bn1_w'], params['bn1_b']))
    h = activation(bn(conv(h, params['w2'], params['b2']),
                      params['bn2_w'], params['bn2_b']))
    return jax.nn.sigmoid(h)


# ----------------------------------------------------------------------------
if __name__ == "__main__":
    # Channel counts are fixed by the module (layer1 is hard-coded 1024->512),
    # so x1 and x2 each carry 512 channels; spatial kept small.
    B, D, H, W = 2, 4, 4, 4
    C_half = 512

    key = jax.random.PRNGKey(0)
    ks = jax.random.split(key, 10)
    x1 = jax.random.normal(ks[0], (B, C_half, D, H, W), jnp.float32)
    x2 = jax.random.normal(ks[1], (B, C_half, D, H, W), jnp.float32)
    params = {
        'w1': 0.02 * jax.random.normal(ks[2], (512, 1024, 3, 3, 3), jnp.float32),
        'b1': 0.02 * jax.random.normal(ks[3], (512,), jnp.float32),
        'bn1_w': 1.0 + 0.1 * jax.random.normal(ks[4], (512,), jnp.float32),
        'bn1_b': 0.1 * jax.random.normal(ks[5], (512,), jnp.float32),
        'w2': 0.02 * jax.random.normal(ks[6], (512, 512, 3, 3, 3), jnp.float32),
        'b2': 0.02 * jax.random.normal(ks[7], (512,), jnp.float32),
        'bn2_w': 1.0 + 0.1 * jax.random.normal(ks[8], (512,), jnp.float32),
        'bn2_b': 0.1 * jax.random.normal(ks[9], (512,), jnp.float32),
    }

    fwd = jax.jit(lambda a, b, p: fusion_layer_forward(a, b, p, act='relu'))
    out = jax.block_until_ready(fwd(x1, x2, params))

    ref = fusion_layer_ref(x1, x2, params, act='relu')
    # bf16 MXU inputs / bf16 conv output dominate the error budget after
    # batch-norm + sigmoid.
    np.testing.assert_allclose(np.asarray(out), np.asarray(ref),
                               atol=3e-2, rtol=3e-2)

    print("KERNEL_OK")
</pallas_src>

<mosaic_0001>
module attributes {stable_mosaic.version = 11 : i64} {
  func.func @_conv_tap_kernel(%arg0: i32, %arg1: i32, %arg2: memref<1x1x96x1024xbf16, #tpu.memory_space<vmem>>, %arg3: memref<1x3x1024x512xbf16, #tpu.memory_space<vmem>>, %arg4: memref<1x512xf32, #tpu.memory_space<vmem>>, %arg5: memref<1x64x512xbf16, #tpu.memory_space<vmem>>, %arg6: memref<1x1x512xf32, #tpu.memory_space<vmem>>, %arg7: memref<1x1x512xf32, #tpu.memory_space<vmem>>, %arg8: memref<64x512xf32, #tpu.memory_space<vmem>>) attributes {dimension_semantics = [#tpu.dimension_semantics<parallel>, #tpu.dimension_semantics<arbitrary>], iteration_bounds = array<i64: 2, 9>, scalar_prefetch = 0 : i64, scratch_operands = 1 : i64, tpu.core_type = #tpu.core_type<tc>, window_params = [{transform_indices = @transform_0, window_bounds = array<i64: 1, 1, 96, 1024>}, {transform_indices = @transform_1, window_bounds = array<i64: 1, 3, 1024, 512>}, {pipeline_mode = #tpu.pipeline_mode<synchronous>, transform_indices = @transform_2, window_bounds = array<i64: 1, 512>}, {transform_indices = @transform_3, window_bounds = array<i64: 1, 64, 512>}, {transform_indices = @transform_4, window_bounds = array<i64: 1, 1, 512>}, {transform_indices = @transform_5, window_bounds = array<i64: 1, 1, 512>}]} {
    %c0_i32 = arith.constant 0 : i32
    %0 = arith.cmpi eq, %arg1, %c0_i32 : i32
    %1 = arith.extui %0 : i1 to i32
    %c0_i32_0 = arith.constant 0 : i32
    %2 = arith.cmpi ne, %1, %c0_i32_0 : i32
    scf.if %2 {
      %c0_27 = arith.constant 0 : index
      %c0_28 = arith.constant 0 : index
      %26 = vector.load %arg4[%c0_27, %c0_28] : memref<1x512xf32, #tpu.memory_space<vmem>>, vector<1x512xf32>
      %27 = vector.shape_cast %26 : vector<1x512xf32> to vector<1x512xf32>
      %28 = vector.broadcast %27 : vector<1x512xf32> to vector<64x512xf32>
      %c0_29 = arith.constant 0 : index
      %c0_30 = arith.constant 0 : index
      %29 = vector.load %arg8[%c0_29, %c0_30] : memref<64x512xf32, #tpu.memory_space<vmem>>, vector<64x512xf32>
      tpu.vector_store %arg8[%c0_29, %c0_30], %28 {strides = array<i32>} : memref<64x512xf32, #tpu.memory_space<vmem>>, vector<64x512xf32>,
    } else {
    }
    %c0 = arith.constant 0 : index
    %c0_1 = arith.constant 0 : index
    %3 = vector.load %arg8[%c0, %c0_1] : memref<64x512xf32, #tpu.memory_space<vmem>>, vector<64x512xf32>
    %c0_2 = arith.constant 0 : index
    %c0_3 = arith.constant 0 : index
    %c0_4 = arith.constant 0 : index
    %c0_5 = arith.constant 0 : index
    %4 = vector.load %arg2[%c0_2, %c0_3, %c0_4, %c0_5] : memref<1x1x96x1024xbf16, #tpu.memory_space<vmem>>, vector<1x1x64x1024xbf16>
    %5 = vector.shape_cast %4 : vector<1x1x64x1024xbf16> to vector<64x1024xbf16>
    %c0_6 = arith.constant 0 : index
    %c0_7 = arith.constant 0 : index
    %c0_8 = arith.constant 0 : index
    %c0_9 = arith.constant 0 : index
    %6 = vector.load %arg3[%c0_6, %c0_7, %c0_8, %c0_9] : memref<1x3x1024x512xbf16, #tpu.memory_space<vmem>>, vector<1x1x1024x512xbf16>
    %7 = vector.shape_cast %6 : vector<1x1x1024x512xbf16> to vector<1024x512xbf16>
    %cst = arith.constant dense<0.000000e+00> : vector<64x512xf32>
    %8 = tpu.matmul %5, %7, %cst {dimension_numbers = #tpu.dot_dimension_numbers<[1], [0], [0], [1], [0, 0, 1, 1], [], []>} : vector<64x1024xbf16>, vector<1024x512xbf16>, vector<64x512xf32> -> vector<64x512xf32>
    %9 = arith.addf %3, %8 : vector<64x512xf32>
    %c0_10 = arith.constant 0 : index
    %c0_11 = arith.constant 0 : index
    %c16 = arith.constant 16 : index
    %c0_12 = arith.constant 0 : index
    %10 = vector.load %arg2[%c0_10, %c0_11, %c16, %c0_12] : memref<1x1x96x1024xbf16, #tpu.memory_space<vmem>>, vector<1x1x64x1024xbf16>
    %11 = vector.shape_cast %10 : vector<1x1x64x1024xbf16> to vector<64x1024xbf16>
    %c0_13 = arith.constant 0 : index
    %c1 = arith.constant 1 : index
    %c0_14 = arith.constant 0 : index
    %c0_15 = arith.constant 0 : index
    %12 = vector.load %arg3[%c0_13, %c1, %c0_14, %c0_15] : memref<1x3x1024x512xbf16, #tpu.memory_space<vmem>>, vector<1x1x1024x512xbf16>
    %13 = vector.shape_cast %12 : vector<1x1x1024x512xbf16> to vector<1024x512xbf16>
    %cst_16 = arith.constant dense<0.000000e+00> : vector<64x512xf32>
    %14 = tpu.matmul %11, %13, %cst_16 {dimension_numbers = #tpu.dot_dimension_numbers<[1], [0], [0], [1], [0, 0, 1, 1], [], []>} : vector<64x1024xbf16>, vector<1024x512xbf16>, vector<64x512xf32> -> vector<64x512xf32>
    %15 = arith.addf %9, %14 : vector<64x512xf32>
    %c0_17 = arith.constant 0 : index
    %c0_18 = arith.constant 0 : index
    %c32 = arith.constant 32 : index
    %c0_19 = arith.constant 0 : index
    %16 = vector.load %arg2[%c0_17, %c0_18, %c32, %c0_19] : memref<1x1x96x1024xbf16, #tpu.memory_space<vmem>>, vector<1x1x64x1024xbf16>
    %17 = vector.shape_cast %16 : vector<1x1x64x1024xbf16> to vector<64x1024xbf16>
    %c0_20 = arith.constant 0 : index
    %c2 = arith.constant 2 : index
    %c0_21 = arith.constant 0 : index
    %c0_22 = arith.constant 0 : index
    %18 = vector.load %arg3[%c0_20, %c2, %c0_21, %c0_22] : memref<1x3x1024x512xbf16, #tpu.memory_space<vmem>>, vector<1x1x1024x512xbf16>
    %19 = vector.shape_cast %18 : vector<1x1x1024x512xbf16> to vector<1024x512xbf16>
    %cst_23 = arith.constant dense<0.000000e+00> : vector<64x512xf32>
    %20 = tpu.matmul %17, %19, %cst_23 {dimension_numbers = #tpu.dot_dimension_numbers<[1], [0], [0], [1], [0, 0, 1, 1], [], []>} : vector<64x1024xbf16>, vector<1024x512xbf16>, vector<64x512xf32> -> vector<64x512xf32>
    %21 = arith.addf %15, %20 : vector<64x512xf32>
    %c0_24 = arith.constant 0 : index
    %c0_25 = arith.constant 0 : index
    %22 = vector.load %arg8[%c0_24, %c0_25] : memref<64x512xf32, #tpu.memory_space<vmem>>, vector<64x512xf32>
    tpu.vector_store %arg8[%c0_24, %c0_25], %21 {strides = array<i32>} : memref<64x512xf32, #tpu.memory_space<vmem>>, vector<64x512xf32>,
    %c8_i32 = arith.constant 8 : i32
    %23 = arith.cmpi eq, %arg1, %c8_i32 : i32
    %24 = arith.extui %23 : i1 to i32
    %c0_i32_26 = arith.constant 0 : i32
    %25 = arith.cmpi ne, %24, %c0_i32_26 : i32
    scf.if %25 {
      %26 = arith.truncf %21 : vector<64x512xf32> to vector<64x512xbf16>
      %c0_27 = arith.constant 0 : index
      %c0_28 = arith.constant 0 : index
      %c0_29 = arith.constant 0 : index
      %27 = vector.load %arg5[%c0_27, %c0_28, %c0_29] : memref<1x64x512xbf16, #tpu.memory_space<vmem>>, vector<1x64x512xbf16>
      %28 = vector.shape_cast %27 : vector<1x64x512xbf16> to vector<64x512xbf16>
      %29 = vector.shape_cast %26 : vector<64x512xbf16> to vector<1x64x512xbf16>
      tpu.vector_store %arg5[%c0_27, %c0_28, %c0_29], %29 {strides = array<i32>} : memref<1x64x512xbf16, #tpu.memory_space<vmem>>, vector<1x64x512xbf16>,
      %cst_30 = arith.constant dense<0.000000e+00> : vector<512xf32>
      %30 = vector.multi_reduction <add>, %21, %cst_30 [0] : vector<64x512xf32> to vector<512xf32>
      %31 = vector.shape_cast %30 : vector<512xf32> to vector<1x512xf32>
      %c0_31 = arith.constant 0 : index
      %c0_32 = arith.constant 0 : index
      %c0_33 = arith.constant 0 : index
      %32 = vector.load %arg6[%c0_31, %c0_32, %c0_33] : memref<1x1x512xf32, #tpu.memory_space<vmem>>, vector<1x1x512xf32>
      %33 = vector.shape_cast %32 : vector<1x1x512xf32> to vector<1x512xf32>
      %34 = vector.shape_cast %31 : vector<1x512xf32> to vector<1x1x512xf32>
      tpu.vector_store %arg6[%c0_31, %c0_32, %c0_33], %34 {strides = array<i32>} : memref<1x1x512xf32, #tpu.memory_space<vmem>>, vector<1x1x512xf32>,
      %35 = arith.mulf %21, %21 : vector<64x512xf32>
      %cst_34 = arith.constant dense<0.000000e+00> : vector<512xf32>
      %36 = vector.multi_reduction <add>, %35, %cst_34 [0] : vector<64x512xf32> to vector<512xf32>
      %37 = vector.shape_cast %36 : vector<512xf32> to vector<1x512xf32>
      %c0_35 = arith.constant 0 : index
      %c0_36 = arith.constant 0 : index
      %c0_37 = arith.constant 0 : index
      %38 = vector.load %arg7[%c0_35, %c0_36, %c0_37] : memref<1x1x512xf32, #tpu.memory_space<vmem>>, vector<1x1x512xf32>
      %39 = vector.shape_cast %38 : vector<1x1x512xf32> to vector<1x512xf32>
      %40 = vector.shape_cast %37 : vector<1x512xf32> to vector<1x1x512xf32>
      tpu.vector_store %arg7[%c0_35, %c0_36, %c0_37], %40 {strides = array<i32>} : memref<1x1x512xf32, #tpu.memory_space<vmem>>, vector<1x1x512xf32>,
    } else {
    }
    return
  }
  func.func @transform_0(%arg0: i32, %arg1: i32) -> (i32, i32, i32, i32) {
    %c0_i32 = arith.constant 0 : i32
    %c0_i32_0 = arith.constant 0 : i32
    %c0_i32_1 = arith.constant 0 : i32
    return %arg1, %arg0, %c0_i32, %c0_i32_0 : i32, i32, i32, i32
  }
  func.func @transform_1(%arg0: i32, %arg1: i32) -> (i32, i32, i32, i32) {
    %c0_i32 = arith.constant 0 : i32
    %c0_i32_0 = arith.constant 0 : i32
    %c0_i32_1 = arith.constant 0 : i32
    %c0_i32_2 = arith.constant 0 : i32
    return %arg1, %c0_i32, %c0_i32_0, %c0_i32_1 : i32, i32, i32, i32
  }
  func.func @transform_2(%arg0: i32, %arg1: i32) -> (i32, i32) {
    %c0_i32 = arith.constant 0 : i32
    %c0_i32_0 = arith.constant 0 : i32
    %c0_i32_1 = arith.constant 0 : i32
    return %c0_i32, %c0_i32_0 : i32, i32
  }
  func.func @transform_3(%arg0: i32, %arg1: i32) -> (i32, i32, i32) {
    %c0_i32 = arith.constant 0 : i32
    %c0_i32_0 = arith.constant 0 : i32
    %c0_i32_1 = arith.constant 0 : i32
    return %arg0, %c0_i32, %c0_i32_0 : i32, i32, i32
  }
  func.func @transform_4(%arg0: i32, %arg1: i32) -> (i32, i32, i32) {
    %c0_i32 = arith.constant 0 : i32
    %c0_i32_0 = arith.constant 0 : i32
    %c0_i32_1 = arith.constant 0 : i32
    return %arg0, %c0_i32, %c0_i32_0 : i32, i32, i32
  }
  func.func @transform_5(%arg0: i32, %arg1: i32) -> (i32, i32, i32) {
    %c0_i32 = arith.constant 0 : i32
    %c0_i32_0 = arith.constant 0 : i32
    %c0_i32_1 = arith.constant 0 : i32
    return %arg0, %c0_i32, %c0_i32_0 : i32, i32, i32
  }
}

module attributes {stable_mosaic.version = 11 : i64} {
  func.func @_bn_act_kernel(%arg0: i32, %arg1: memref<128x512xbf16, #tpu.memory_space<vmem>>, %arg2: memref<1x512xf32, #tpu.memory_space<vmem>>, %arg3: memref<1x512xf32, #tpu.memory_space<vmem>>, %arg4: memref<128x512xbf16, #tpu.memory_space<vmem>>) attributes {dimension_semantics = [#tpu.dimension_semantics<parallel>], iteration_bounds = array<i64: 1>, scalar_prefetch = 0 : i64, scratch_operands = 0 : i64, tpu.core_type = #tpu.core_type<tc>, window_params = [{transform_indices = @transform_0, window_bounds = array<i64: 128, 512>}, {pipeline_mode = #tpu.pipeline_mode<synchronous>, transform_indices = @transform_1, window_bounds = array<i64: 1, 512>}, {pipeline_mode = #tpu.pipeline_mode<synchronous>, transform_indices = @transform_2, window_bounds = array<i64: 1, 512>}, {transform_indices = @transform_3, window_bounds = array<i64: 128, 512>}]} {
    %c0 = arith.constant 0 : index
    %c0_0 = arith.constant 0 : index
    %0 = vector.load %arg1[%c0, %c0_0] : memref<128x512xbf16, #tpu.memory_space<vmem>>, vector<128x512xbf16>
    %1 = arith.extf %0 : vector<128x512xbf16> to vector<128x512xf32>
    %c0_1 = arith.constant 0 : index
    %c0_2 = arith.constant 0 : index
    %2 = vector.load %arg2[%c0_1, %c0_2] : memref<1x512xf32, #tpu.memory_space<vmem>>, vector<1x512xf32>
    %3 = vector.broadcast %2 : vector<1x512xf32> to vector<128x512xf32>
    %4 = arith.mulf %1, %3 : vector<128x512xf32>
    %c0_3 = arith.constant 0 : index
    %c0_4 = arith.constant 0 : index
    %5 = vector.load %arg3[%c0_3, %c0_4] : memref<1x512xf32, #tpu.memory_space<vmem>>, vector<1x512xf32>
    %6 = vector.broadcast %5 : vector<1x512xf32> to vector<128x512xf32>
    %7 = arith.addf %4, %6 : vector<128x512xf32>
    %cst = arith.constant 0.000000e+00 : f32
    %8 = vector.broadcast %cst : f32 to vector<128x512xf32>
    %9 = arith.maximumf %7, %8 : vector<128x512xf32>
    %10 = arith.truncf %9 : vector<128x512xf32> to vector<128x512xbf16>
    %c0_5 = arith.constant 0 : index
    %c0_6 = arith.constant 0 : index
    %11 = vector.load %arg4[%c0_5, %c0_6] : memref<128x512xbf16, #tpu.memory_space<vmem>>, vector<128x512xbf16>
    tpu.vector_store %arg4[%c0_5, %c0_6], %10 {strides = array<i32>} : memref<128x512xbf16, #tpu.memory_space<vmem>>, vector<128x512xbf16>,
    return
  }
  func.func @transform_0(%arg0: i32) -> (i32, i32) {
    %c0_i32 = arith.constant 0 : i32
    %c0_i32_0 = arith.constant 0 : i32
    return %arg0, %c0_i32 : i32, i32
  }
  func.func @transform_1(%arg0: i32) -> (i32, i32) {
    %c0_i32 = arith.constant 0 : i32
    %c0_i32_0 = arith.constant 0 : i32
    %c0_i32_1 = arith.constant 0 : i32
    return %c0_i32, %c0_i32_0 : i32, i32
  }
  func.func @transform_2(%arg0: i32) -> (i32, i32) {
    %c0_i32 = arith.constant 0 : i32
    %c0_i32_0 = arith.constant 0 : i32
    %c0_i32_1 = arith.constant 0 : i32
    return %c0_i32, %c0_i32_0 : i32, i32
  }
  func.func @transform_3(%arg0: i32) -> (i32, i32) {
    %c0_i32 = arith.constant 0 : i32
    %c0_i32_0 = arith.constant 0 : i32
    return %arg0, %c0_i32 : i32, i32
  }
}

module attributes {stable_mosaic.version = 11 : i64} {
  func.func @_conv_tap_kernel(%arg0: i32, %arg1: i32, %arg2: memref<1x1x96x512xbf16, #tpu.memory_space<vmem>>, %arg3: memref<1x3x512x512xbf16, #tpu.memory_space<vmem>>, %arg4: memref<1x512xf32, #tpu.memory_space<vmem>>, %arg5: memref<1x64x512xbf16, #tpu.memory_space<vmem>>, %arg6: memref<1x1x512xf32, #tpu.memory_space<vmem>>, %arg7: memref<1x1x512xf32, #tpu.memory_space<vmem>>, %arg8: memref<64x512xf32, #tpu.memory_space<vmem>>) attributes {dimension_semantics = [#tpu.dimension_semantics<parallel>, #tpu.dimension_semantics<arbitrary>], iteration_bounds = array<i64: 2, 9>, scalar_prefetch = 0 : i64, scratch_operands = 1 : i64, tpu.core_type = #tpu.core_type<tc>, window_params = [{transform_indices = @transform_0, window_bounds = array<i64: 1, 1, 96, 512>}, {transform_indices = @transform_1, window_bounds = array<i64: 1, 3, 512, 512>}, {pipeline_mode = #tpu.pipeline_mode<synchronous>, transform_indices = @transform_2, window_bounds = array<i64: 1, 512>}, {transform_indices = @transform_3, window_bounds = array<i64: 1, 64, 512>}, {transform_indices = @transform_4, window_bounds = array<i64: 1, 1, 512>}, {transform_indices = @transform_5, window_bounds = array<i64: 1, 1, 512>}]} {
    %c0_i32 = arith.constant 0 : i32
    %0 = arith.cmpi eq, %arg1, %c0_i32 : i32
    %1 = arith.extui %0 : i1 to i32
    %c0_i32_0 = arith.constant 0 : i32
    %2 = arith.cmpi ne, %1, %c0_i32_0 : i32
    scf.if %2 {
      %c0_27 = arith.constant 0 : index
      %c0_28 = arith.constant 0 : index
      %26 = vector.load %arg4[%c0_27, %c0_28] : memref<1x512xf32, #tpu.memory_space<vmem>>, vector<1x512xf32>
      %27 = vector.shape_cast %26 : vector<1x512xf32> to vector<1x512xf32>
      %28 = vector.broadcast %27 : vector<1x512xf32> to vector<64x512xf32>
      %c0_29 = arith.constant 0 : index
      %c0_30 = arith.constant 0 : index
      %29 = vector.load %arg8[%c0_29, %c0_30] : memref<64x512xf32, #tpu.memory_space<vmem>>, vector<64x512xf32>
      tpu.vector_store %arg8[%c0_29, %c0_30], %28 {strides = array<i32>} : memref<64x512xf32, #tpu.memory_space<vmem>>, vector<64x512xf32>,
    } else {
    }
    %c0 = arith.constant 0 : index
    %c0_1 = arith.constant 0 : index
    %3 = vector.load %arg8[%c0, %c0_1] : memref<64x512xf32, #tpu.memory_space<vmem>>, vector<64x512xf32>
    %c0_2 = arith.constant 0 : index
    %c0_3 = arith.constant 0 : index
    %c0_4 = arith.constant 0 : index
    %c0_5 = arith.constant 0 : index
    %4 = vector.load %arg2[%c0_2, %c0_3, %c0_4, %c0_5] : memref<1x1x96x512xbf16, #tpu.memory_space<vmem>>, vector<1x1x64x512xbf16>
    %5 = vector.shape_cast %4 : vector<1x1x64x512xbf16> to vector<64x512xbf16>
    %c0_6 = arith.constant 0 : index
    %c0_7 = arith.constant 0 : index
    %c0_8 = arith.constant 0 : index
    %c0_9 = arith.constant 0 : index
    %6 = vector.load %arg3[%c0_6, %c0_7, %c0_8, %c0_9] : memref<1x3x512x512xbf16, #tpu.memory_space<vmem>>, vector<1x1x512x512xbf16>
    %7 = vector.shape_cast %6 : vector<1x1x512x512xbf16> to vector<512x512xbf16>
    %cst = arith.constant dense<0.000000e+00> : vector<64x512xf32>
    %8 = tpu.matmul %5, %7, %cst {dimension_numbers = #tpu.dot_dimension_numbers<[1], [0], [0], [1], [0, 0, 1, 1], [], []>} : vector<64x512xbf16>, vector<512x512xbf16>, vector<64x512xf32> -> vector<64x512xf32>
    %9 = arith.addf %3, %8 : vector<64x512xf32>
    %c0_10 = arith.constant 0 : index
    %c0_11 = arith.constant 0 : index
    %c16 = arith.constant 16 : index
    %c0_12 = arith.constant 0 : index
    %10 = vector.load %arg2[%c0_10, %c0_11, %c16, %c0_12] : memref<1x1x96x512xbf16, #tpu.memory_space<vmem>>, vector<1x1x64x512xbf16>
    %11 = vector.shape_cast %10 : vector<1x1x64x512xbf16> to vector<64x512xbf16>
    %c0_13 = arith.constant 0 : index
    %c1 = arith.constant 1 : index
    %c0_14 = arith.constant 0 : index
    %c0_15 = arith.constant 0 : index
    %12 = vector.load %arg3[%c0_13, %c1, %c0_14, %c0_15] : memref<1x3x512x512xbf16, #tpu.memory_space<vmem>>, vector<1x1x512x512xbf16>
    %13 = vector.shape_cast %12 : vector<1x1x512x512xbf16> to vector<512x512xbf16>
    %cst_16 = arith.constant dense<0.000000e+00> : vector<64x512xf32>
    %14 = tpu.matmul %11, %13, %cst_16 {dimension_numbers = #tpu.dot_dimension_numbers<[1], [0], [0], [1], [0, 0, 1, 1], [], []>} : vector<64x512xbf16>, vector<512x512xbf16>, vector<64x512xf32> -> vector<64x512xf32>
    %15 = arith.addf %9, %14 : vector<64x512xf32>
    %c0_17 = arith.constant 0 : index
    %c0_18 = arith.constant 0 : index
    %c32 = arith.constant 32 : index
    %c0_19 = arith.constant 0 : index
    %16 = vector.load %arg2[%c0_17, %c0_18, %c32, %c0_19] : memref<1x1x96x512xbf16, #tpu.memory_space<vmem>>, vector<1x1x64x512xbf16>
    %17 = vector.shape_cast %16 : vector<1x1x64x512xbf16> to vector<64x512xbf16>
    %c0_20 = arith.constant 0 : index
    %c2 = arith.constant 2 : index
    %c0_21 = arith.constant 0 : index
    %c0_22 = arith.constant 0 : index
    %18 = vector.load %arg3[%c0_20, %c2, %c0_21, %c0_22] : memref<1x3x512x512xbf16, #tpu.memory_space<vmem>>, vector<1x1x512x512xbf16>
    %19 = vector.shape_cast %18 : vector<1x1x512x512xbf16> to vector<512x512xbf16>
    %cst_23 = arith.constant dense<0.000000e+00> : vector<64x512xf32>
    %20 = tpu.matmul %17, %19, %cst_23 {dimension_numbers = #tpu.dot_dimension_numbers<[1], [0], [0], [1], [0, 0, 1, 1], [], []>} : vector<64x512xbf16>, vector<512x512xbf16>, vector<64x512xf32> -> vector<64x512xf32>
    %21 = arith.addf %15, %20 : vector<64x512xf32>
    %c0_24 = arith.constant 0 : index
    %c0_25 = arith.constant 0 : index
    %22 = vector.load %arg8[%c0_24, %c0_25] : memref<64x512xf32, #tpu.memory_space<vmem>>, vector<64x512xf32>
    tpu.vector_store %arg8[%c0_24, %c0_25], %21 {strides = array<i32>} : memref<64x512xf32, #tpu.memory_space<vmem>>, vector<64x512xf32>,
    %c8_i32 = arith.constant 8 : i32
    %23 = arith.cmpi eq, %arg1, %c8_i32 : i32
    %24 = arith.extui %23 : i1 to i32
    %c0_i32_26 = arith.constant 0 : i32
    %25 = arith.cmpi ne, %24, %c0_i32_26 : i32
    scf.if %25 {
      %26 = arith.truncf %21 : vector<64x512xf32> to vector<64x512xbf16>
      %c0_27 = arith.constant 0 : index
      %c0_28 = arith.constant 0 : index
      %c0_29 = arith.constant 0 : index
      %27 = vector.load %arg5[%c0_27, %c0_28, %c0_29] : memref<1x64x512xbf16, #tpu.memory_space<vmem>>, vector<1x64x512xbf16>
      %28 = vector.shape_cast %27 : vector<1x64x512xbf16> to vector<64x512xbf16>
      %29 = vector.shape_cast %26 : vector<64x512xbf16> to vector<1x64x512xbf16>
      tpu.vector_store %arg5[%c0_27, %c0_28, %c0_29], %29 {strides = array<i32>} : memref<1x64x512xbf16, #tpu.memory_space<vmem>>, vector<1x64x512xbf16>,
      %cst_30 = arith.constant dense<0.000000e+00> : vector<512xf32>
      %30 = vector.multi_reduction <add>, %21, %cst_30 [0] : vector<64x512xf32> to vector<512xf32>
      %31 = vector.shape_cast %30 : vector<512xf32> to vector<1x512xf32>
      %c0_31 = arith.constant 0 : index
      %c0_32 = arith.constant 0 : index
      %c0_33 = arith.constant 0 : index
      %32 = vector.load %arg6[%c0_31, %c0_32, %c0_33] : memref<1x1x512xf32, #tpu.memory_space<vmem>>, vector<1x1x512xf32>
      %33 = vector.shape_cast %32 : vector<1x1x512xf32> to vector<1x512xf32>
      %34 = vector.shape_cast %31 : vector<1x512xf32> to vector<1x1x512xf32>
      tpu.vector_store %arg6[%c0_31, %c0_32, %c0_33], %34 {strides = array<i32>} : memref<1x1x512xf32, #tpu.memory_space<vmem>>, vector<1x1x512xf32>,
      %35 = arith.mulf %21, %21 : vector<64x512xf32>
      %cst_34 = arith.constant dense<0.000000e+00> : vector<512xf32>
      %36 = vector.multi_reduction <add>, %35, %cst_34 [0] : vector<64x512xf32> to vector<512xf32>
      %37 = vector.shape_cast %36 : vector<512xf32> to vector<1x512xf32>
      %c0_35 = arith.constant 0 : index
      %c0_36 = arith.constant 0 : index
      %c0_37 = arith.constant 0 : index
      %38 = vector.load %arg7[%c0_35, %c0_36, %c0_37] : memref<1x1x512xf32, #tpu.memory_space<vmem>>, vector<1x1x512xf32>
      %39 = vector.shape_cast %38 : vector<1x1x512xf32> to vector<1x512xf32>
      %40 = vector.shape_cast %37 : vector<1x512xf32> to vector<1x1x512xf32>
      tpu.vector_store %arg7[%c0_35, %c0_36, %c0_37], %40 {strides = array<i32>} : memref<1x1x512xf32, #tpu.memory_space<vmem>>, vector<1x1x512xf32>,
    } else {
    }
    return
  }
  func.func @transform_0(%arg0: i32, %arg1: i32) -> (i32, i32, i32, i32) {
    %c0_i32 = arith.constant 0 : i32
    %c0_i32_0 = arith.constant 0 : i32
    %c0_i32_1 = arith.constant 0 : i32
    return %arg1, %arg0, %c0_i32, %c0_i32_0 : i32, i32, i32, i32
  }
  func.func @transform_1(%arg0: i32, %arg1: i32) -> (i32, i32, i32, i32) {
    %c0_i32 = arith.constant 0 : i32
    %c0_i32_0 = arith.constant 0 : i32
    %c0_i32_1 = arith.constant 0 : i32
    %c0_i32_2 = arith.constant 0 : i32
    return %arg1, %c0_i32, %c0_i32_0, %c0_i32_1 : i32, i32, i32, i32
  }
  func.func @transform_2(%arg0: i32, %arg1: i32) -> (i32, i32) {
    %c0_i32 = arith.constant 0 : i32
    %c0_i32_0 = arith.constant 0 : i32
    %c0_i32_1 = arith.constant 0 : i32
    return %c0_i32, %c0_i32_0 : i32, i32
  }
  func.func @transform_3(%arg0: i32, %arg1: i32) -> (i32, i32, i32) {
    %c0_i32 = arith.constant 0 : i32
    %c0_i32_0 = arith.constant 0 : i32
    %c0_i32_1 = arith.constant 0 : i32
    return %arg0, %c0_i32, %c0_i32_0 : i32, i32, i32
  }
  func.func @transform_4(%arg0: i32, %arg1: i32) -> (i32, i32, i32) {
    %c0_i32 = arith.constant 0 : i32
    %c0_i32_0 = arith.constant 0 : i32
    %c0_i32_1 = arith.constant 0 : i32
    return %arg0, %c0_i32, %c0_i32_0 : i32, i32, i32
  }
  func.func @transform_5(%arg0: i32, %arg1: i32) -> (i32, i32, i32) {
    %c0_i32 = arith.constant 0 : i32
    %c0_i32_0 = arith.constant 0 : i32
    %c0_i32_1 = arith.constant 0 : i32
    return %arg0, %c0_i32, %c0_i32_0 : i32, i32, i32
  }
}

module attributes {stable_mosaic.version = 11 : i64} {
  func.func @_bn_act_kernel(%arg0: i32, %arg1: memref<128x512xbf16, #tpu.memory_space<vmem>>, %arg2: memref<1x512xf32, #tpu.memory_space<vmem>>, %arg3: memref<1x512xf32, #tpu.memory_space<vmem>>, %arg4: memref<128x512xf32, #tpu.memory_space<vmem>>) attributes {dimension_semantics = [#tpu.dimension_semantics<parallel>], iteration_bounds = array<i64: 1>, scalar_prefetch = 0 : i64, scratch_operands = 0 : i64, tpu.core_type = #tpu.core_type<tc>, window_params = [{transform_indices = @transform_0, window_bounds = array<i64: 128, 512>}, {pipeline_mode = #tpu.pipeline_mode<synchronous>, transform_indices = @transform_1, window_bounds = array<i64: 1, 512>}, {pipeline_mode = #tpu.pipeline_mode<synchronous>, transform_indices = @transform_2, window_bounds = array<i64: 1, 512>}, {transform_indices = @transform_3, window_bounds = array<i64: 128, 512>}]} {
    %c0 = arith.constant 0 : index
    %c0_0 = arith.constant 0 : index
    %0 = vector.load %arg1[%c0, %c0_0] : memref<128x512xbf16, #tpu.memory_space<vmem>>, vector<128x512xbf16>
    %1 = arith.extf %0 : vector<128x512xbf16> to vector<128x512xf32>
    %c0_1 = arith.constant 0 : index
    %c0_2 = arith.constant 0 : index
    %2 = vector.load %arg2[%c0_1, %c0_2] : memref<1x512xf32, #tpu.memory_space<vmem>>, vector<1x512xf32>
    %3 = vector.broadcast %2 : vector<1x512xf32> to vector<128x512xf32>
    %4 = arith.mulf %1, %3 : vector<128x512xf32>
    %c0_3 = arith.constant 0 : index
    %c0_4 = arith.constant 0 : index
    %5 = vector.load %arg3[%c0_3, %c0_4] : memref<1x512xf32, #tpu.memory_space<vmem>>, vector<1x512xf32>
    %6 = vector.broadcast %5 : vector<1x512xf32> to vector<128x512xf32>
    %7 = arith.addf %4, %6 : vector<128x512xf32>
    %cst = arith.constant 0.000000e+00 : f32
    %8 = vector.broadcast %cst : f32 to vector<128x512xf32>
    %9 = arith.maximumf %7, %8 : vector<128x512xf32>
    %cst_5 = arith.constant 0.000000e+00 : f32
    %10 = vector.broadcast %cst_5 : f32 to vector<128x512xf32>
    %11 = arith.subf %10, %9 : vector<128x512xf32>
    %12 = math.exp %11 : vector<128x512xf32>
    %cst_6 = arith.constant 1.000000e+00 : f32
    %13 = vector.broadcast %cst_6 : f32 to vector<128x512xf32>
    %14 = arith.addf %13, %12 : vector<128x512xf32>
    %cst_7 = arith.constant 1.000000e+00 : f32
    %15 = vector.broadcast %cst_7 : f32 to vector<128x512xf32>
    %16 = arith.divf %15, %14 : vector<128x512xf32>
    %c0_8 = arith.constant 0 : index
    %c0_9 = arith.constant 0 : index
    %17 = vector.load %arg4[%c0_8, %c0_9] : memref<128x512xf32, #tpu.memory_space<vmem>>, vector<128x512xf32>
    tpu.vector_store %arg4[%c0_8, %c0_9], %16 {strides = array<i32>} : memref<128x512xf32, #tpu.memory_space<vmem>>, vector<128x512xf32>,
    return
  }
  func.func @transform_0(%arg0: i32) -> (i32, i32) {
    %c0_i32 = arith.constant 0 : i32
    %c0_i32_0 = arith.constant 0 : i32
    return %arg0, %c0_i32 : i32, i32
  }
  func.func @transform_1(%arg0: i32) -> (i32, i32) {
    %c0_i32 = arith.constant 0 : i32
    %c0_i32_0 = arith.constant 0 : i32
    %c0_i32_1 = arith.constant 0 : i32
    return %c0_i32, %c0_i32_0 : i32, i32
  }
  func.func @transform_2(%arg0: i32) -> (i32, i32) {
    %c0_i32 = arith.constant 0 : i32
    %c0_i32_0 = arith.constant 0 : i32
    %c0_i32_1 = arith.constant 0 : i32
    return %c0_i32, %c0_i32_0 : i32, i32
  }
  func.func @transform_3(%arg0: i32) -> (i32, i32) {
    %c0_i32 = arith.constant 0 : i32
    %c0_i32_0 = arith.constant 0 : i32
    return %arg0, %c0_i32 : i32, i32
  }
}

</mosaic_0001>

<llo_original>
// kernel: _lambda_.4
$region0: #{_lambda_.4}
  #allocation0 [shape = 'u32[]', space=smem, size = 0x4, offset = 0x4, fixed_abs, tag = 'smem constant byte address 0x4 - core index']
  #allocation1 [shape = 'u32[144,128]{1,0:T(1,128)}', space=vmem, size = 0x12000, scoped, tag = 'internal scratch']
  #allocation2 [shape = 'f32[64,512]{1,0:T(8,128)}', space=vmem, size = 0x20000, scoped, tag = 'scratch operand']
  %s0 = inlined_call_operand.vmem [shape: bf16[9,2,96,1024], index: 0, kind: input, shape index: {}]
  %s1 = inlined_call_operand.vmem [shape: bf16[9,3,1024,512], index: 1, kind: input, shape index: {}]
  %s2 = inlined_call_operand.vmem [shape: f32[1,512], index: 2, kind: input, shape index: {}]
  %s3 = inlined_call_operand.vmem [shape: bf16[2,64,512], index: 3, kind: output, shape index: {0}]
  %s4 = inlined_call_operand.vmem [shape: f32[2,1,512], index: 4, kind: output, shape index: {1}]
  %s5 = inlined_call_operand.vmem [shape: f32[2,1,512], index: 5, kind: output, shape index: {2}]
  %6 = xla_tuple %s3, %s4, %s5
  %s7 = sld [smem:[#allocation0]]
  $region69: #{_lambda_.4} parent=0
    _
  %s9 = ssub.s32 1, %s7
  %s10 = scalar_select 0, %s9, %s7
  loop: start=0, step=1, limit=20
  $region2: #{_lambda_.4} parent=0 // loop_pre_header
    _
  $region3: #{_lambda_.4} parent=0 // loop_header
    %s12 = sphi 0, %s16
    %p13 = scmp.ge.s32.totalorder %s12, 20
    %s19 = sphi 0, %s31
    %s20 = sphi 0, %s27
    %s21 = sphi 0, %s19
    %s22 = sphi 0, %s20
    %s23 = sphi 0, %s21
    %s24 = sphi 0, %s22
    %s36 = sphi 0, %s38
    %s39 = sphi 0, %s36
    %s40 = sphi 0, %s39
    %s56 = sphi 0, %s40
    %s62 = sphi 0, %s64
    %s65 = sphi 0, %s62
    %s66 = sphi 0, %s65
    %s82 = sphi 0, %s66
    %s86 = sphi 0, %s86
    %s88 = sphi 0, %s86
    %s89 = sphi 0, %s88
    %s103 = sphi 0, %s89
    %s109 = sphi 0, %s111
    %s112 = sphi 0, %s109
    %s113 = sphi 0, %s112
    %s129 = sphi 0, %s113
    %s135 = sphi 0, %s137
    %s138 = sphi 0, %s135
    %s139 = sphi 0, %s138
    %s155 = sphi 0, %s139
    %s161 = sphi 0, %s163
    %s164 = sphi 0, %s161
    %s165 = sphi 0, %s164
    %s181 = sphi 0, %s165
  $region4: #{_lambda_.4} parent=0 // loop_header_branch
    %15 = sbr.rel (%p13) target = $region8
  $region5: #{_lambda_.4} parent=0 // loop_body
    %s17 = ssub.s32 %s12, 1
    %s18 = ssub.s32 %s12, 2
    %s25 = sadd.s32 1, %s20
    %p26 = scmp.ge.s32.totalorder %s25, 9
    %s27 = scalar_select %p26, 0, %s25
    %s28 = sadd.s32 1, %s19
    %s29 = scalar_select %p26, %s28, %s19
    %p30 = scmp.ge.s32.totalorder %s29, 2
    %s31 = scalar_select %p30, 0, %s29
    %s32 = ssub.s32 %s20, %s27
    %s33 = ssub.s32 %s19, %s31
    %s34 = sor.u32 %s32, %s33
    %p35 = scmp.eq.s32.totalorder %s34, 0
    %s37 = sadd.s32 %s36, 1
    %s38 = scalar_select %p35, %s36, %s37
    %p41 = pneg %p35
    %p42 = scmp.eq.s32.totalorder %s12, 17
    %p43 = por %p41, %p42
    %p44 = scmp.ne.s32.totalorder %s36, %s39
    %p45 = scmp.eq.s32.totalorder %s12, 0
    %p46 = por %p44, %p45
    %p47 = scmp.ne.s32.totalorder %s36, %s39
    %p48 = scmp.eq.s32.totalorder %s17, 17
    %p49 = por %p47, %p48
    %p50 = scmp.ne.s32.totalorder %s39, %s40
    %p51 = scmp.eq.s32.totalorder %s17, 0
    %p52 = por %p50, %p51
    %p53 = scmp.ne.s32.totalorder %s39, %s40
    %p54 = scmp.eq.s32.totalorder %s18, 17
    %p55 = por %p53, %p54
    %p57 = scmp.ne.s32.totalorder %s40, %s56
    %p58 = scmp.eq.s32.totalorder %s18, 0
    %p59 = por %p57, %p58
    %s60 = ssub.s32 %s20, %s27
    %p61 = scmp.eq.s32.totalorder %s60, 0
    %s63 = sadd.s32 %s62, 1
    %s64 = scalar_select %p61, %s62, %s63
    %p67 = pneg %p61
    %p68 = scmp.eq.s32.totalorder %s12, 17
    %p69 = por %p67, %p68
    %p70 = scmp.ne.s32.totalorder %s62, %s65
    %p71 = scmp.eq.s32.totalorder %s12, 0
    %p72 = por %p70, %p71
    %p73 = scmp.ne.s32.totalorder %s62, %s65
    %p74 = scmp.eq.s32.totalorder %s17, 17
    %p75 = por %p73, %p74
    %p76 = scmp.ne.s32.totalorder %s65, %s66
    %p77 = scmp.eq.s32.totalorder %s17, 0
    %p78 = por %p76, %p77
    %p79 = scmp.ne.s32.totalorder %s65, %s66
    %p80 = scmp.eq.s32.totalorder %s18, 17
    %p81 = por %p79, %p80
    %p83 = scmp.ne.s32.totalorder %s66, %s82
    %p84 = scmp.eq.s32.totalorder %s18, 0
    %p85 = por %p83, %p84
    %s87 = sadd.s32 %s86, 1
    %p90 = scmp.eq.s32.totalorder %s12, 17
    %p91 = scmp.ne.s32.totalorder %s86, %s88
    %p92 = scmp.eq.s32.totalorder %s12, 0
    %p93 = por %p91, %p92
    %p94 = scmp.ne.s32.totalorder %s86, %s88
    %p95 = scmp.eq.s32.totalorder %s17, 17
    %p96 = por %p94, %p95
    %p97 = scmp.ne.s32.totalorder %s88, %s89
    %p98 = scmp.eq.s32.totalorder %s17, 0
    %p99 = por %p97, %p98
    %p100 = scmp.ne.s32.totalorder %s88, %s89
    %p101 = scmp.eq.s32.totalorder %s18, 17
    %p102 = por %p100, %p101
    %p104 = scmp.ne.s32.totalorder %s89, %s103
    %p105 = scmp.eq.s32.totalorder %s18, 0
    %p106 = por %p104, %p105
    %s107 = ssub.s32 %s19, %s31
    %p108 = scmp.eq.s32.totalorder %s107, 0
    %s110 = sadd.s32 %s109, 1
    %s111 = scalar_select %p108, %s109, %s110
    %p114 = pneg %p108
    %p115 = scmp.eq.s32.totalorder %s12, 17
    %p116 = por %p114, %p115
    %p117 = scmp.ne.s32.totalorder %s109, %s112
    %p118 = scmp.eq.s32.totalorder %s12, 0
    %p119 = por %p117, %p118
    %p120 = scmp.ne.s32.totalorder %s109, %s112
    %p121 = scmp.eq.s32.totalorder %s17, 17
    %p122 = por %p120, %p121
    %p123 = scmp.ne.s32.totalorder %s112, %s113
    %p124 = scmp.eq.s32.totalorder %s17, 0
    %p125 = por %p123, %p124
    %p126 = scmp.ne.s32.totalorder %s112, %s113
    %p127 = scmp.eq.s32.totalorder %s18, 17
    %p128 = por %p126, %p127
    %p130 = scmp.ne.s32.totalorder %s113, %s129
    %p131 = scmp.eq.s32.totalorder %s18, 0
    %p132 = por %p130, %p131
    %s133 = ssub.s32 %s19, %s31
    %p134 = scmp.eq.s32.totalorder %s133, 0
    %s136 = sadd.s32 %s135, 1
    %s137 = scalar_select %p134, %s135, %s136
    %p140 = pneg %p134
    %p141 = scmp.eq.s32.totalorder %s12, 17
    %p142 = por %p140, %p141
    %p143 = scmp.ne.s32.totalorder %s135, %s138
    %p144 = scmp.eq.s32.totalorder %s12, 0
    %p145 = por %p143, %p144
    %p146 = scmp.ne.s32.totalorder %s135, %s138
    %p147 = scmp.eq.s32.totalorder %s17, 17
    %p148 = por %p146, %p147
    %p149 = scmp.ne.s32.totalorder %s138, %s139
    %p150 = scmp.eq.s32.totalorder %s17, 0
    %p151 = por %p149, %p150
    %p152 = scmp.ne.s32.totalorder %s138, %s139
    %p153 = scmp.eq.s32.totalorder %s18, 17
    %p154 = por %p152, %p153
    %p156 = scmp.ne.s32.totalorder %s139, %s155
    %p157 = scmp.eq.s32.totalorder %s18, 0
    %p158 = por %p156, %p157
    %s159 = ssub.s32 %s19, %s31
    %p160 = scmp.eq.s32.totalorder %s159, 0
    %s162 = sadd.s32 %s161, 1
    %s163 = scalar_select %p160, %s161, %s162
    %p166 = pneg %p160
    %p167 = scmp.eq.s32.totalorder %s12, 17
    %p168 = por %p166, %p167
    %p169 = scmp.ne.s32.totalorder %s161, %s164
    %p170 = scmp.eq.s32.totalorder %s12, 0
    %p171 = por %p169, %p170
    %p172 = scmp.ne.s32.totalorder %s161, %s164
    %p173 = scmp.eq.s32.totalorder %s17, 17
    %p174 = por %p172, %p173
    %p175 = scmp.ne.s32.totalorder %s164, %s165
    %p176 = scmp.eq.s32.totalorder %s17, 0
    %p177 = por %p175, %p176
    %p178 = scmp.ne.s32.totalorder %s164, %s165
    %p179 = scmp.eq.s32.totalorder %s18, 17
    %p180 = por %p178, %p179
    %p182 = scmp.ne.s32.totalorder %s165, %s181
    %p183 = scmp.eq.s32.totalorder %s18, 0
    %p184 = por %p182, %p183
    %p185 = scmp.le.s32.totalorder 1, %s12
    %p186 = scmp.lt.s32.totalorder %s12, 19
    %p187 = pnand %p185, %p186
    %p188 = pneg %p187
    // Predicated region
    $region9: #{_lambda_.4} parent=5 // pred_check
      _
    $region10: #{_lambda_.4} parent=5 // pred_check_branch
      %190 = sbr.rel (%p187) target = $region12
    $region11: #{_lambda_.4} parent=5 // pred_region
      %s191 = ssub.s32 %s12, 1
      // Predicated region
      $region13: #{_lambda_.4} parent=11 // pred_check
        %p192 = pneg %p99
      $region14: #{_lambda_.4} parent=11 // pred_check_branch
        %194 = sbr.rel (%p192) target = $region16
      $region15: #{_lambda_.4} parent=11 // pred_region
        _
      $region16: #{_lambda_.4} parent=11 // pred_fallthru
        _
    $region12: #{_lambda_.4} parent=5 // pred_fallthru
      _
    %p195 = scmp.lt.s32.totalorder %s12, 18
    // Predicated region
    $region17: #{_lambda_.4} parent=5 // pred_check
      %p196 = pneg %p195
    $region18: #{_lambda_.4} parent=5 // pred_check_branch
      %198 = sbr.rel (%p196) target = $region20
    $region19: #{_lambda_.4} parent=5 // pred_region
      // Predicated region
      $region21: #{_lambda_.4} parent=19 // pred_check
        %p199 = pneg %p46
      $region22: #{_lambda_.4} parent=19 // pred_check_branch
        %201 = sbr.rel (%p199) target = $region24
      $region23: #{_lambda_.4} parent=19 // pred_region
        %p202 = scmp.lt.s32.totalorder %s20, 8
        %s203 = scalar_select %p202, %s20, 8
        %p204 = scmp.lt.s32.totalorder %s19, 1
        %s205 = scalar_select %p204, %s19, 1
        %s206 = smul.addr %s205, 96
        %s207 = smul.addr %s203, 192
        %s208 = sadd.s32 %s206, %s207
        %s209 = smul.addr %s208, 4
        %s210 = scalar_lea.vmem %s0, %s209
      $region24: #{_lambda_.4} parent=19 // pred_fallthru
        _
      // Predicated region
      $region25: #{_lambda_.4} parent=19 // pred_check
        %p211 = pneg %p72
      $region26: #{_lambda_.4} parent=19 // pred_check_branch
        %213 = sbr.rel (%p211) target = $region28
      $region27: #{_lambda_.4} parent=19 // pred_region
        %p214 = scmp.lt.s32.totalorder %s20, 8
        %s215 = scalar_select %p214, %s20, 8
        %s216 = smul.addr %s215, 1536
        %s217 = smul.addr %s216, 4
        %s218 = scalar_lea.vmem %s1, %s217
      $region28: #{_lambda_.4} parent=19 // pred_fallthru
        _
    $region20: #{_lambda_.4} parent=5 // pred_fallthru
      _
    %p219 = scmp.le.s32.totalorder 1, %s12
    %p220 = scmp.lt.s32.totalorder %s12, 19
    %p221 = pnand %p219, %p220
    %p222 = pneg %p221
    // Predicated region
    $region29: #{_lambda_.4} parent=5 // pred_check
      _
    $region30: #{_lambda_.4} parent=5 // pred_check_branch
      %224 = sbr.rel (%p221) target = $region32
    $region31: #{_lambda_.4} parent=5 // pred_region
      %s225 = ssub.s32 %s12, 1
      %p226 = scmp.lt.s32.totalorder %s22, 8
      %s227 = scalar_select %p226, %s22, 8
      %p228 = scmp.lt.s32.totalorder %s21, 1
      %s229 = scalar_select %p228, %s21, 1
      %s230 = smul.addr %s229, 96
      %s231 = smul.addr %s227, 192
      %s232 = sadd.s32 %s230, %s231
      %s233 = smul.addr %s232, 4
      %s234 = scalar_lea.vmem %s0, %s233
      %p235 = pneg %p52
      %p236 = pneg %p49
      %p237 = scmp.lt.s32.totalorder %s22, 8
      %s238 = scalar_select %p237, %s22, 8
      %s239 = smul.addr %s238, 1536
      %s240 = smul.addr %s239, 4
      %s241 = scalar_lea.vmem %s1, %s240
      %p242 = pneg %p78
      %p243 = pneg %p75
      %p244 = pneg %p99
      %p245 = pneg %p96
      %p246 = pneg %p125
      %p247 = pneg %p122
      %p248 = scmp.lt.s32.totalorder %s21, 1
      %s249 = scalar_select %p248, %s21, 1
      %s250 = smul.addr %s249, 32
      %s251 = smul.addr %s250, 4
      %s252 = scalar_lea.vmem %s3, %s251
      %p253 = pneg %p151
      %p254 = pneg %p148
      %p255 = scmp.lt.s32.totalorder %s21, 1
      %s256 = scalar_select %p255, %s21, 1
      %s257 = smul.addr %s256, 4
      %s258 = scalar_lea.vmem %s4, %s257
      %p259 = pneg %p177
      %p260 = pneg %p174
      %p261 = scmp.lt.s32.totalorder %s21, 1
      %s262 = scalar_select %p261, %s21, 1
      %s263 = smul.addr %s262, 4
      %s264 = scalar_lea.vmem %s5, %s263
      %p265 = scmp.lt.s32.totalorder %s22, 8
      %s266 = scalar_select %p265, %s22, 8
      %p267 = scmp.lt.s32.totalorder %s21, 1
      %s268 = scalar_select %p267, %s21, 1
      %s269 = smul.addr %s268, 96
      %s270 = smul.addr %s266, 192
      %s271 = sadd.s32 %s269, %s270
      %s272 = smul.addr %s271, 4
      %s273 = scalar_lea.vmem %s0, %s272
      %p274 = scmp.lt.s32.totalorder %s22, 8
      %s275 = scalar_select %p274, %s22, 8
      %s276 = smul.addr %s275, 1536
      %s277 = smul.addr %s276, 4
      %s278 = scalar_lea.vmem %s1, %s277
      %p279 = scmp.lt.s32.totalorder %s21, 1
      %s280 = scalar_select %p279, %s21, 1
      %s281 = smul.addr %s280, 32
      %s282 = smul.addr %s281, 4
      %s283 = scalar_lea.vmem %s3, %s282
      %p284 = scmp.lt.s32.totalorder %s21, 1
      %s285 = scalar_select %p284, %s21, 1
      %s286 = smul.addr %s285, 4
      %s287 = scalar_lea.vmem %s4, %s286
      %p288 = scmp.lt.s32.totalorder %s21, 1
      %s289 = scalar_select %p288, %s21, 1
      %s290 = smul.addr %s289, 4
      %s291 = scalar_lea.vmem %s5, %s290
      %p292 = scmp.eq.s32.totalorder %s22, 0
      // Predicated region
      $region33: #{_lambda_.4} parent=31 // pred_check
        %p293 = pneg %p292
      $region34: #{_lambda_.4} parent=31 // pred_check_branch
        %295 = sbr.rel (%p293) target = $region36
      $region35: #{_lambda_.4} parent=31 // pred_region
        %v296 = vld [vmem:[%s2] sm:$0xf]
        %v298 = vlaneseq
        %v299 = vshrl.u32 %v298, 7
        %v300 = vsub.s32 0, %v299
        %v301 = vrot.slane %v296, %v300
        %v302 = vlaneseq
        %v303 = vshrl.u32 %v302, 7
        %v304 = vsub.s32 1, %v303
        %v305 = vrot.slane %v296, %v304
        %v306 = vlaneseq
        %v307 = vshrl.u32 %v306, 7
        %v308 = vsub.s32 2, %v307
        %v309 = vrot.slane %v296, %v308
        %v310 = vlaneseq
        %v311 = vshrl.u32 %v310, 7
        %v312 = vsub.s32 3, %v311
        %v313 = vrot.slane %v296, %v312
        %318 = vst [vmem:[#allocation2] sm:$0xff] %v301
        %319 = vst [vmem:[#allocation2 + $0x8] sm:$0xff] %v305
        %320 = vst [vmem:[#allocation2 + $0x10] sm:$0xff] %v309
        %321 = vst [vmem:[#allocation2 + $0x18] sm:$0xff] %v313
        %322 = vst [vmem:[#allocation2 + $0x20] sm:$0xff] %v301
        %323 = vst [vmem:[#allocation2 + $0x28] sm:$0xff] %v305
        %324 = vst [vmem:[#allocation2 + $0x30] sm:$0xff] %v309
        %325 = vst [vmem:[#allocation2 + $0x38] sm:$0xff] %v313
        %326 = vst [vmem:[#allocation2 + $0x40] sm:$0xff] %v301
        %327 = vst [vmem:[#allocation2 + $0x48] sm:$0xff] %v305
        %328 = vst [vmem:[#allocation2 + $0x50] sm:$0xff] %v309
        %329 = vst [vmem:[#allocation2 + $0x58] sm:$0xff] %v313
        %330 = vst [vmem:[#allocation2 + $0x60] sm:$0xff] %v301
        %331 = vst [vmem:[#allocation2 + $0x68] sm:$0xff] %v305
        %332 = vst [vmem:[#allocation2 + $0x70] sm:$0xff] %v309
        %333 = vst [vmem:[#allocation2 + $0x78] sm:$0xff] %v313
        %334 = vst [vmem:[#allocation2 + $0x80] sm:$0xff] %v301
        %335 = vst [vmem:[#allocation2 + $0x88] sm:$0xff] %v305
        %336 = vst [vmem:[#allocation2 + $0x90] sm:$0xff] %v309
        %337 = vst [vmem:[#allocation2 + $0x98] sm:$0xff] %v313
        %338 = vst [vmem:[#allocation2 + $0xa0] sm:$0xff] %v301
        %339 = vst [vmem:[#allocation2 + $0xa8] sm:$0xff] %v305
        %340 = vst [vmem:[#allocation2 + $0xb0] sm:$0xff] %v309
        %341 = vst [vmem:[#allocation2 + $0xb8] sm:$0xff] %v313
        %342 = vst [vmem:[#allocation2 + $0xc0] sm:$0xff] %v301
        %343 = vst [vmem:[#allocation2 + $0xc8] sm:$0xff] %v305
        %344 = vst [vmem:[#allocation2 + $0xd0] sm:$0xff] %v309
        %345 = vst [vmem:[#allocation2 + $0xd8] sm:$0xff] %v313
        %346 = vst [vmem:[#allocation2 + $0xe0] sm:$0xff] %v301
        %347 = vst [vmem:[#allocation2 + $0xe8] sm:$0xff] %v305
        %348 = vst [vmem:[#allocation2 + $0xf0] sm:$0xff] %v309
        %349 = vst [vmem:[#allocation2 + $0xf8] sm:$0xff] %v313
      $region36: #{_lambda_.4} parent=31 // pred_fallthru
        _
      %v350 = vld [vmem:[#allocation2] sm:$0xff]
      %v351 = vld [vmem:[#allocation2 + $0x8] sm:$0xff]
      %v352 = vld [vmem:[#allocation2 + $0x10] sm:$0xff]
      %v353 = vld [vmem:[#allocation2 + $0x18] sm:$0xff]
      %v354 = vld [vmem:[#allocation2 + $0x20] sm:$0xff]
      %v355 = vld [vmem:[#allocation2 + $0x28] sm:$0xff]
      %v356 = vld [vmem:[#allocation2 + $0x30] sm:$0xff]
      %v357 = vld [vmem:[#allocation2 + $0x38] sm:$0xff]
      %v358 = vld [vmem:[#allocation2 + $0x40] sm:$0xff]
      %v359 = vld [vmem:[#allocation2 + $0x48] sm:$0xff]
      %v360 = vld [vmem:[#allocation2 + $0x50] sm:$0xff]
      %v361 = vld [vmem:[#allocation2 + $0x58] sm:$0xff]
      %v362 = vld [vmem:[#allocation2 + $0x60] sm:$0xff]
      %v363 = vld [vmem:[#allocation2 + $0x68] sm:$0xff]
      %v364 = vld [vmem:[#allocation2 + $0x70] sm:$0xff]
      %v365 = vld [vmem:[#allocation2 + $0x78] sm:$0xff]
      %v366 = vld [vmem:[#allocation2 + $0x80] sm:$0xff]
      %v367 = vld [vmem:[#allocation2 + $0x88] sm:$0xff]
      %v368 = vld [vmem:[#allocation2 + $0x90] sm:$0xff]
      %v369 = vld [vmem:[#allocation2 + $0x98] sm:$0xff]
      %v370 = vld [vmem:[#allocation2 + $0xa0] sm:$0xff]
      %v371 = vld [vmem:[#allocation2 + $0xa8] sm:$0xff]
      %v372 = vld [vmem:[#allocation2 + $0xb0] sm:$0xff]
      %v373 = vld [vmem:[#allocation2 + $0xb8] sm:$0xff]
      %v374 = vld [vmem:[#allocation2 + $0xc0] sm:$0xff]
      %v375 = vld [vmem:[#allocation2 + $0xc8] sm:$0xff]
      %v376 = vld [vmem:[#allocation2 + $0xd0] sm:$0xff]
      %v377 = vld [vmem:[#allocation2 + $0xd8] sm:$0xff]
      %v378 = vld [vmem:[#allocation2 + $0xe0] sm:$0xff]
      %v379 = vld [vmem:[#allocation2 + $0xe8] sm:$0xff]
      %v380 = vld [vmem:[#allocation2 + $0xf0] sm:$0xff]
      %v381 = vld [vmem:[#allocation2 + $0xf8] sm:$0xff]
      %v382 = vld [vmem:[%s273] sm:$0xff]
      %v383 = vld [vmem:[%s273 + $0x8] sm:$0xff]
      %v384 = vld [vmem:[%s273 + $0x10] sm:$0xff]
      %v385 = vld [vmem:[%s273 + $0x18] sm:$0xff]
      %v386 = vld [vmem:[%s273 + $0x20] sm:$0xff]
      %v387 = vld [vmem:[%s273 + $0x28] sm:$0xff]
      %v388 = vld [vmem:[%s273 + $0x30] sm:$0xff]
      %v389 = vld [vmem:[%s273 + $0x38] sm:$0xff]
      %v390 = vld [vmem:[%s273 + $0x40] sm:$0xff]
      %v391 = vld [vmem:[%s273 + $0x48] sm:$0xff]
      %v392 = vld [vmem:[%s273 + $0x50] sm:$0xff]
      %v393 = vld [vmem:[%s273 + $0x58] sm:$0xff]
      %v394 = vld [vmem:[%s273 + $0x60] sm:$0xff]
      %v395 = vld [vmem:[%s273 + $0x68] sm:$0xff]
      %v396 = vld [vmem:[%s273 + $0x70] sm:$0xff]
      %v397 = vld [vmem:[%s273 + $0x78] sm:$0xff]
      %v398 = vld [vmem:[%s273 + $0x80] sm:$0xff]
      %v399 = vld [vmem:[%s273 + $0x88] sm:$0xff]
      %v400 = vld [vmem:[%s273 + $0x90] sm:$0xff]
      %v401 = vld [vmem:[%s273 + $0x98] sm:$0xff]
      %v402 = vld [vmem:[%s273 + $0xa0] sm:$0xff]
      %v403 = vld [vmem:[%s273 + $0xa8] sm:$0xff]
      %v404 = vld [vmem:[%s273 + $0xb0] sm:$0xff]
      %v405 = vld [vmem:[%s273 + $0xb8] sm:$0xff]
      %v406 = vld [vmem:[%s273 + $0xc0] sm:$0xff]
      %v407 = vld [vmem:[%s273 + $0xc8] sm:$0xff]
      %v408 = vld [vmem:[%s273 + $0xd0] sm:$0xff]
      %v409 = vld [vmem:[%s273 + $0xd8] sm:$0xff]
      %v410 = vld [vmem:[%s273 + $0xe0] sm:$0xff]
      %v411 = vld [vmem:[%s273 + $0xe8] sm:$0xff]
      %v412 = vld [vmem:[%s273 + $0xf0] sm:$0xff]
      %v413 = vld [vmem:[%s273 + $0xf8] sm:$0xff]
      %v414 = vld [vmem:[%s278] sm:$0xff]
      %v415 = vld [vmem:[%s278 + $0x8] sm:$0xff]
      %v416 = vld [vmem:[%s278 + $0x10] sm:$0xff]
      %v417 = vld [vmem:[%s278 + $0x18] sm:$0xff]
      %v418 = vld [vmem:[%s278 + $0x20] sm:$0xff]
      %v419 = vld [vmem:[%s278 + $0x28] sm:$0xff]
      %v420 = vld [vmem:[%s278 + $0x30] sm:$0xff]
      %v421 = vld [vmem:[%s278 + $0x38] sm:$0xff]
      %v422 = vld [vmem:[%s278 + $0x40] sm:$0xff]
      %v423 = vld [vmem:[%s278 + $0x48] sm:$0xff]
      %v424 = vld [vmem:[%s278 + $0x50] sm:$0xff]
      %v425 = vld [vmem:[%s278 + $0x58] sm:$0xff]
      %v426 = vld [vmem:[%s278 + $0x60] sm:$0xff]
      %v427 = vld [vmem:[%s278 + $0x68] sm:$0xff]
      %v428 = vld [vmem:[%s278 + $0x70] sm:$0xff]
      %v429 = vld [vmem:[%s278 + $0x78] sm:$0xff]
      %v430 = vld [vmem:[%s278 + $0x80] sm:$0xff]
      %v431 = vld [vmem:[%s278 + $0x88] sm:$0xff]
      %v432 = vld [vmem:[%s278 + $0x90] sm:$0xff]
      %v433 = vld [vmem:[%s278 + $0x98] sm:$0xff]
      %v434 = vld [vmem:[%s278 + $0xa0] sm:$0xff]
      %v435 = vld [vmem:[%s278 + $0xa8] sm:$0xff]
      %v436 = vld [vmem:[%s278 + $0xb0] sm:$0xff]
      %v437 = vld [vmem:[%s278 + $0xb8] sm:$0xff]
      %v438 = vld [vmem:[%s278 + $0xc0] sm:$0xff]
      %v439 = vld [vmem:[%s278 + $0xc8] sm:$0xff]
      %v440 = vld [vmem:[%s278 + $0xd0] sm:$0xff]
      %v441 = vld [vmem:[%s278 + $0xd8] sm:$0xff]
      %v442 = vld [vmem:[%s278 + $0xe0] sm:$0xff]
      %v443 = vld [vmem:[%s278 + $0xe8] sm:$0xff]
      %v444 = vld [vmem:[%s278 + $0xf0] sm:$0xff]
      %v445 = vld [vmem:[%s278 + $0xf8] sm:$0xff]
      %v446 = vld [vmem:[%s278 + $0x100] sm:$0xff]
      %v447 = vld [vmem:[%s278 + $0x108] sm:$0xff]
      %v448 = vld [vmem:[%s278 + $0x110] sm:$0xff]
      %v449 = vld [vmem:[%s278 + $0x118] sm:$0xff]
      %v450 = vld [vmem:[%s278 + $0x120] sm:$0xff]
      %v451 = vld [vmem:[%s278 + $0x128] sm:$0xff]
      %v452 = vld [vmem:[%s278 + $0x130] sm:$0xff]
      %v453 = vld [vmem:[%s278 + $0x138] sm:$0xff]
      %v454 = vld [vmem:[%s278 + $0x140] sm:$0xff]
      %v455 = vld [vmem:[%s278 + $0x148] sm:$0xff]
      %v456 = vld [vmem:[%s278 + $0x150] sm:$0xff]
      %v457 = vld [vmem:[%s278 + $0x158] sm:$0xff]
      %v458 = vld [vmem:[%s278 + $0x160] sm:$0xff]
      %v459 = vld [vmem:[%s278 + $0x168] sm:$0xff]
      %v460 = vld [vmem:[%s278 + $0x170] sm:$0xff]
      %v461 = vld [vmem:[%s278 + $0x178] sm:$0xff]
      %v462 = vld [vmem:[%s278 + $0x180] sm:$0xff]
      %v463 = vld [vmem:[%s278 + $0x188] sm:$0xff]
      %v464 = vld [vmem:[%s278 + $0x190] sm:$0xff]
      %v465 = vld [vmem:[%s278 + $0x198] sm:$0xff]
      %v466 = vld [vmem:[%s278 + $0x1a0] sm:$0xff]
      %v467 = vld [vmem:[%s278 + $0x1a8] sm:$0xff]
      %v468 = vld [vmem:[%s278 + $0x1b0] sm:$0xff]
      %v469 = vld [vmem:[%s278 + $0x1b8] sm:$0xff]
      %v470 = vld [vmem:[%s278 + $0x1c0] sm:$0xff]
      %v471 = vld [vmem:[%s278 + $0x1c8] sm:$0xff]
      %v472 = vld [vmem:[%s278 + $0x1d0] sm:$0xff]
      %v473 = vld [vmem:[%s278 + $0x1d8] sm:$0xff]
      %v474 = vld [vmem:[%s278 + $0x1e0] sm:$0xff]
      %v475 = vld [vmem:[%s278 + $0x1e8] sm:$0xff]
      %v476 = vld [vmem:[%s278 + $0x1f0] sm:$0xff]
      %v477 = vld [vmem:[%s278 + $0x1f8] sm:$0xff]
      %v478 = vld [vmem:[%s278 + $0x200] sm:$0xff]
      %v479 = vld [vmem:[%s278 + $0x208] sm:$0xff]
      %v480 = vld [vmem:[%s278 + $0x210] sm:$0xff]
      %v481 = vld [vmem:[%s278 + $0x218] sm:$0xff]
      %v482 = vld [vmem:[%s278 + $0x220] sm:$0xff]
      %v483 = vld [vmem:[%s278 + $0x228] sm:$0xff]
      %v484 = vld [vmem:[%s278 + $0x230] sm:$0xff]
      %v485 = vld [vmem:[%s278 + $0x238] sm:$0xff]
      %v486 = vld [vmem:[%s278 + $0x240] sm:$0xff]
      %v487 = vld [vmem:[%s278 + $0x248] sm:$0xff]
      %v488 = vld [vmem:[%s278 + $0x250] sm:$0xff]
      %v489 = vld [vmem:[%s278 + $0x258] sm:$0xff]
      %v490 = vld [vmem:[%s278 + $0x260] sm:$0xff]
      %v491 = vld [vmem:[%s278 + $0x268] sm:$0xff]
      %v492 = vld [vmem:[%s278 + $0x270] sm:$0xff]
      %v493 = vld [vmem:[%s278 + $0x278] sm:$0xff]
      %v494 = vld [vmem:[%s278 + $0x280] sm:$0xff]
      %v495 = vld [vmem:[%s278 + $0x288] sm:$0xff]
      %v496 = vld [vmem:[%s278 + $0x290] sm:$0xff]
      %v497 = vld [vmem:[%s278 + $0x298] sm:$0xff]
      %v498 = vld [vmem:[%s278 + $0x2a0] sm:$0xff]
      %v499 = vld [vmem:[%s278 + $0x2a8] sm:$0xff]
      %v500 = vld [vmem:[%s278 + $0x2b0] sm:$0xff]
      %v501 = vld [vmem:[%s278 + $0x2b8] sm:$0xff]
      %v502 = vld [vmem:[%s278 + $0x2c0] sm:$0xff]
      %v503 = vld [vmem:[%s278 + $0x2c8] sm:$0xff]
      %v504 = vld [vmem:[%s278 + $0x2d0] sm:$0xff]
      %v505 = vld [vmem:[%s278 + $0x2d8] sm:$0xff]
      %v506 = vld [vmem:[%s278 + $0x2e0] sm:$0xff]
      %v507 = vld [vmem:[%s278 + $0x2e8] sm:$0xff]
      %v508 = vld [vmem:[%s278 + $0x2f0] sm:$0xff]
      %v509 = vld [vmem:[%s278 + $0x2f8] sm:$0xff]
      %v510 = vld [vmem:[%s278 + $0x300] sm:$0xff]
      %v511 = vld [vmem:[%s278 + $0x308] sm:$0xff]
      %v512 = vld [vmem:[%s278 + $0x310] sm:$0xff]
      %v513 = vld [vmem:[%s278 + $0x318] sm:$0xff]
      %v514 = vld [vmem:[%s278 + $0x320] sm:$0xff]
      %v515 = vld [vmem:[%s278 + $0x328] sm:$0xff]
      %v516 = vld [vmem:[%s278 + $0x330] sm:$0xff]
      %v517 = vld [vmem:[%s278 + $0x338] sm:$0xff]
      %v518 = vld [vmem:[%s278 + $0x340] sm:$0xff]
      %v519 = vld [vmem:[%s278 + $0x348] sm:$0xff]
      %v520 = vld [vmem:[%s278 + $0x350] sm:$0xff]
      %v521 = vld [vmem:[%s278 + $0x358] sm:$0xff]
      %v522 = vld [vmem:[%s278 + $0x360] sm:$0xff]
      %v523 = vld [vmem:[%s278 + $0x368] sm:$0xff]
      %v524 = vld [vmem:[%s278 + $0x370] sm:$0xff]
      %v525 = vld [vmem:[%s278 + $0x378] sm:$0xff]
      %v526 = vld [vmem:[%s278 + $0x380] sm:$0xff]
      %v527 = vld [vmem:[%s278 + $0x388] sm:$0xff]
      %v528 = vld [vmem:[%s278 + $0x390] sm:$0xff]
      %v529 = vld [vmem:[%s278 + $0x398] sm:$0xff]
      %v530 = vld [vmem:[%s278 + $0x3a0] sm:$0xff]
      %v531 = vld [vmem:[%s278 + $0x3a8] sm:$0xff]
      %v532 = vld [vmem:[%s278 + $0x3b0] sm:$0xff]
      %v533 = vld [vmem:[%s278 + $0x3b8] sm:$0xff]
      %v534 = vld [vmem:[%s278 + $0x3c0] sm:$0xff]
      %v535 = vld [vmem:[%s278 + $0x3c8] sm:$0xff]
      %v536 = vld [vmem:[%s278 + $0x3d0] sm:$0xff]
      %v537 = vld [vmem:[%s278 + $0x3d8] sm:$0xff]
      %v538 = vld [vmem:[%s278 + $0x3e0] sm:$0xff]
      %v539 = vld [vmem:[%s278 + $0x3e8] sm:$0xff]
      %v540 = vld [vmem:[%s278 + $0x3f0] sm:$0xff]
      %v541 = vld [vmem:[%s278 + $0x3f8] sm:$0xff]
      %v542 = vld [vmem:[%s278 + $0x400] sm:$0xff]
      %v543 = vld [vmem:[%s278 + $0x408] sm:$0xff]
      %v544 = vld [vmem:[%s278 + $0x410] sm:$0xff]
      %v545 = vld [vmem:[%s278 + $0x418] sm:$0xff]
      %v546 = vld [vmem:[%s278 + $0x420] sm:$0xff]
      %v547 = vld [vmem:[%s278 + $0x428] sm:$0xff]
      %v548 = vld [vmem:[%s278 + $0x430] sm:$0xff]
      %v549 = vld [vmem:[%s278 + $0x438] sm:$0xff]
      %v550 = vld [vmem:[%s278 + $0x440] sm:$0xff]
      %v551 = vld [vmem:[%s278 + $0x448] sm:$0xff]
      %v552 = vld [vmem:[%s278 + $0x450] sm:$0xff]
      %v553 = vld [vmem:[%s278 + $0x458] sm:$0xff]
      %v554 = vld [vmem:[%s278 + $0x460] sm:$0xff]
      %v555 = vld [vmem:[%s278 + $0x468] sm:$0xff]
      %v556 = vld [vmem:[%s278 + $0x470] sm:$0xff]
      %v557 = vld [vmem:[%s278 + $0x478] sm:$0xff]
      %v558 = vld [vmem:[%s278 + $0x480] sm:$0xff]
      %v559 = vld [vmem:[%s278 + $0x488] sm:$0xff]
      %v560 = vld [vmem:[%s278 + $0x490] sm:$0xff]
      %v561 = vld [vmem:[%s278 + $0x498] sm:$0xff]
      %v562 = vld [vmem:[%s278 + $0x4a0] sm:$0xff]
      %v563 = vld [vmem:[%s278 + $0x4a8] sm:$0xff]
      %v564 = vld [vmem:[%s278 + $0x4b0] sm:$0xff]
      %v565 = vld [vmem:[%s278 + $0x4b8] sm:$0xff]
      %v566 = vld [vmem:[%s278 + $0x4c0] sm:$0xff]
      %v567 = vld [vmem:[%s278 + $0x4c8] sm:$0xff]
      %v568 = vld [vmem:[%s278 + $0x4d0] sm:$0xff]
      %v569 = vld [vmem:[%s278 + $0x4d8] sm:$0xff]
      %v570 = vld [vmem:[%s278 + $0x4e0] sm:$0xff]
      %v571 = vld [vmem:[%s278 + $0x4e8] sm:$0xff]
      %v572 = vld [vmem:[%s278 + $0x4f0] sm:$0xff]
      %v573 = vld [vmem:[%s278 + $0x4f8] sm:$0xff]
      %v574 = vld [vmem:[%s278 + $0x500] sm:$0xff]
      %v575 = vld [vmem:[%s278 + $0x508] sm:$0xff]
      %v576 = vld [vmem:[%s278 + $0x510] sm:$0xff]
      %v577 = vld [vmem:[%s278 + $0x518] sm:$0xff]
      %v578 = vld [vmem:[%s278 + $0x520] sm:$0xff]
      %v579 = vld [vmem:[%s278 + $0x528] sm:$0xff]
      %v580 = vld [vmem:[%s278 + $0x530] sm:$0xff]
      %v581 = vld [vmem:[%s278 + $0x538] sm:$0xff]
      %v582 = vld [vmem:[%s278 + $0x540] sm:$0xff]
      %v583 = vld [vmem:[%s278 + $0x548] sm:$0xff]
      %v584 = vld [vmem:[%s278 + $0x550] sm:$0xff]
      %v585 = vld [vmem:[%s278 + $0x558] sm:$0xff]
      %v586 = vld [vmem:[%s278 + $0x560] sm:$0xff]
      %v587 = vld [vmem:[%s278 + $0x568] sm:$0xff]
      %v588 = vld [vmem:[%s278 + $0x570] sm:$0xff]
      %v589 = vld [vmem:[%s278 + $0x578] sm:$0xff]
      %v590 = vld [vmem:[%s278 + $0x580] sm:$0xff]
      %v591 = vld [vmem:[%s278 + $0x588] sm:$0xff]
      %v592 = vld [vmem:[%s278 + $0x590] sm:$0xff]
      %v593 = vld [vmem:[%s278 + $0x598] sm:$0xff]
      %v594 = vld [vmem:[%s278 + $0x5a0] sm:$0xff]
      %v595 = vld [vmem:[%s278 + $0x5a8] sm:$0xff]
      %v596 = vld [vmem:[%s278 + $0x5b0] sm:$0xff]
      %v597 = vld [vmem:[%s278 + $0x5b8] sm:$0xff]
      %v598 = vld [vmem:[%s278 + $0x5c0] sm:$0xff]
      %v599 = vld [vmem:[%s278 + $0x5c8] sm:$0xff]
      %v600 = vld [vmem:[%s278 + $0x5d0] sm:$0xff]
      %v601 = vld [vmem:[%s278 + $0x5d8] sm:$0xff]
      %v602 = vld [vmem:[%s278 + $0x5e0] sm:$0xff]
      %v603 = vld [vmem:[%s278 + $0x5e8] sm:$0xff]
      %v604 = vld [vmem:[%s278 + $0x5f0] sm:$0xff]
      %v605 = vld [vmem:[%s278 + $0x5f8] sm:$0xff]
      %v606 = vld [vmem:[%s278 + $0x600] sm:$0xff]
      %v607 = vld [vmem:[%s278 + $0x608] sm:$0xff]
      %v608 = vld [vmem:[%s278 + $0x610] sm:$0xff]
      %v609 = vld [vmem:[%s278 + $0x618] sm:$0xff]
      %v610 = vld [vmem:[%s278 + $0x620] sm:$0xff]
      %v611 = vld [vmem:[%s278 + $0x628] sm:$0xff]
      %v612 = vld [vmem:[%s278 + $0x630] sm:$0xff]
      %v613 = vld [vmem:[%s278 + $0x638] sm:$0xff]
      %v614 = vld [vmem:[%s278 + $0x640] sm:$0xff]
      %v615 = vld [vmem:[%s278 + $0x648] sm:$0xff]
      %v616 = vld [vmem:[%s278 + $0x650] sm:$0xff]
      %v617 = vld [vmem:[%s278 + $0x658] sm:$0xff]
      %v618 = vld [vmem:[%s278 + $0x660] sm:$0xff]
      %v619 = vld [vmem:[%s278 + $0x668] sm:$0xff]
      %v620 = vld [vmem:[%s278 + $0x670] sm:$0xff]
      %v621 = vld [vmem:[%s278 + $0x678] sm:$0xff]
      %v622 = vld [vmem:[%s278 + $0x680] sm:$0xff]
      %v623 = vld [vmem:[%s278 + $0x688] sm:$0xff]
      %v624 = vld [vmem:[%s278 + $0x690] sm:$0xff]
      %v625 = vld [vmem:[%s278 + $0x698] sm:$0xff]
      %v626 = vld [vmem:[%s278 + $0x6a0] sm:$0xff]
      %v627 = vld [vmem:[%s278 + $0x6a8] sm:$0xff]
      %v628 = vld [vmem:[%s278 + $0x6b0] sm:$0xff]
      %v629 = vld [vmem:[%s278 + $0x6b8] sm:$0xff]
      %v630 = vld [vmem:[%s278 + $0x6c0] sm:$0xff]
      %v631 = vld [vmem:[%s278 + $0x6c8] sm:$0xff]
      %v632 = vld [vmem:[%s278 + $0x6d0] sm:$0xff]
      %v633 = vld [vmem:[%s278 + $0x6d8] sm:$0xff]
      %v634 = vld [vmem:[%s278 + $0x6e0] sm:$0xff]
      %v635 = vld [vmem:[%s278 + $0x6e8] sm:$0xff]
      %v636 = vld [vmem:[%s278 + $0x6f0] sm:$0xff]
      %v637 = vld [vmem:[%s278 + $0x6f8] sm:$0xff]
      %v638 = vld [vmem:[%s278 + $0x700] sm:$0xff]
      %v639 = vld [vmem:[%s278 + $0x708] sm:$0xff]
      %v640 = vld [vmem:[%s278 + $0x710] sm:$0xff]
      %v641 = vld [vmem:[%s278 + $0x718] sm:$0xff]
      %v642 = vld [vmem:[%s278 + $0x720] sm:$0xff]
      %v643 = vld [vmem:[%s278 + $0x728] sm:$0xff]
      %v644 = vld [vmem:[%s278 + $0x730] sm:$0xff]
      %v645 = vld [vmem:[%s278 + $0x738] sm:$0xff]
      %v646 = vld [vmem:[%s278 + $0x740] sm:$0xff]
      %v647 = vld [vmem:[%s278 + $0x748] sm:$0xff]
      %v648 = vld [vmem:[%s278 + $0x750] sm:$0xff]
      %v649 = vld [vmem:[%s278 + $0x758] sm:$0xff]
      %v650 = vld [vmem:[%s278 + $0x760] sm:$0xff]
      %v651 = vld [vmem:[%s278 + $0x768] sm:$0xff]
      %v652 = vld [vmem:[%s278 + $0x770] sm:$0xff]
      %v653 = vld [vmem:[%s278 + $0x778] sm:$0xff]
      %v654 = vld [vmem:[%s278 + $0x780] sm:$0xff]
      %v655 = vld [vmem:[%s278 + $0x788] sm:$0xff]
      %v656 = vld [vmem:[%s278 + $0x790] sm:$0xff]
      %v657 = vld [vmem:[%s278 + $0x798] sm:$0xff]
      %v658 = vld [vmem:[%s278 + $0x7a0] sm:$0xff]
      %v659 = vld [vmem:[%s278 + $0x7a8] sm:$0xff]
      %v660 = vld [vmem:[%s278 + $0x7b0] sm:$0xff]
      %v661 = vld [vmem:[%s278 + $0x7b8] sm:$0xff]
      %v662 = vld [vmem:[%s278 + $0x7c0] sm:$0xff]
      %v663 = vld [vmem:[%s278 + $0x7c8] sm:$0xff]
      %v664 = vld [vmem:[%s278 + $0x7d0] sm:$0xff]
      %v665 = vld [vmem:[%s278 + $0x7d8] sm:$0xff]
      %v666 = vld [vmem:[%s278 + $0x7e0] sm:$0xff]
      %v667 = vld [vmem:[%s278 + $0x7e8] sm:$0xff]
      %v668 = vld [vmem:[%s278 + $0x7f0] sm:$0xff]
      %v669 = vld [vmem:[%s278 + $0x7f8] sm:$0xff]
      %v702 = vunpack.c.l.b16 %v382
      %v703 = vunpack.c.h.b16 %v382
      %v704 = vunpack.c.l.b16 %v383
      %v705 = vunpack.c.h.b16 %v383
      %v706 = vunpack.c.l.b16 %v384
      %v707 = vunpack.c.h.b16 %v384
      %v708 = vunpack.c.l.b16 %v385
      %v709 = vunpack.c.h.b16 %v385
      %v710 = vunpack.c.l.b16 %v386
      %v711 = vunpack.c.h.b16 %v386
      %v712 = vunpack.c.l.b16 %v387
      %v713 = vunpack.c.h.b16 %v387
      %v714 = vunpack.c.l.b16 %v388
      %v715 = vunpack.c.h.b16 %v388
      %v716 = vunpack.c.l.b16 %v389
      %v717 = vunpack.c.h.b16 %v389
      %v718 = vunpack.c.l.b16 %v390
      %v719 = vunpack.c.h.b16 %v390
      %v720 = vunpack.c.l.b16 %v391
      %v721 = vunpack.c.h.b16 %v391
      %v722 = vunpack.c.l.b16 %v392
      %v723 = vunpack.c.h.b16 %v392
      %v724 = vunpack.c.l.b16 %v393
      %v725 = vunpack.c.h.b16 %v393
      %v726 = vunpack.c.l.b16 %v394
      %v727 = vunpack.c.h.b16 %v394
      %v728 = vunpack.c.l.b16 %v395
      %v729 = vunpack.c.h.b16 %v395
      %v730 = vunpack.c.l.b16 %v396
      %v731 = vunpack.c.h.b16 %v396
      %v732 = vunpack.c.l.b16 %v397
      %v733 = vunpack.c.h.b16 %v397
      %v734 = vunpack.c.l.b16 %v398
      %v735 = vunpack.c.h.b16 %v398
      %v736 = vunpack.c.l.b16 %v399
      %v737 = vunpack.c.h.b16 %v399
      %v738 = vunpack.c.l.b16 %v400
      %v739 = vunpack.c.h.b16 %v400
      %v740 = vunpack.c.l.b16 %v401
      %v741 = vunpack.c.h.b16 %v401
      %v742 = vunpack.c.l.b16 %v402
      %v743 = vunpack.c.h.b16 %v402
      %v744 = vunpack.c.l.b16 %v403
      %v745 = vunpack.c.h.b16 %v403
      %v746 = vunpack.c.l.b16 %v404
      %v747 = vunpack.c.h.b16 %v404
      %v748 = vunpack.c.l.b16 %v405
      %v749 = vunpack.c.h.b16 %v405
      %v750 = vunpack.c.l.b16 %v406
      %v751 = vunpack.c.h.b16 %v406
      %v752 = vunpack.c.l.b16 %v407
      %v753 = vunpack.c.h.b16 %v407
      %v754 = vunpack.c.l.b16 %v408
      %v755 = vunpack.c.h.b16 %v408
      %v756 = vunpack.c.l.b16 %v409
      %v757 = vunpack.c.h.b16 %v409
      %v758 = vunpack.c.l.b16 %v410
      %v759 = vunpack.c.h.b16 %v410
      %v760 = vunpack.c.l.b16 %v411
      %v761 = vunpack.c.h.b16 %v411
      %v762 = vunpack.c.l.b16 %v412
      %v763 = vunpack.c.h.b16 %v412
      %v764 = vunpack.c.l.b16 %v413
      %v765 = vunpack.c.h.b16 %v413
      %v766 = vpack.c.b16 %v710, %v702
      %v767 = vpack.c.b16 %v711, %v703
      %v768 = vpack.c.b16 %v712, %v704
      %v769 = vpack.c.b16 %v713, %v705
      %v770 = vpack.c.b16 %v714, %v706
      %v771 = vpack.c.b16 %v715, %v707
      %v772 = vpack.c.b16 %v716, %v708
      %v773 = vpack.c.b16 %v717, %v709
      %v774 = vpack.c.b16 %v726, %v718
      %v775 = vpack.c.b16 %v727, %v719
      %v776 = vpack.c.b16 %v728, %v720
      %v777 = vpack.c.b16 %v729, %v721
      %v778 = vpack.c.b16 %v730, %v722
      %v779 = vpack.c.b16 %v731, %v723
      %v780 = vpack.c.b16 %v732, %v724
      %v781 = vpack.c.b16 %v733, %v725
      %v782 = vpack.c.b16 %v742, %v734
      %v783 = vpack.c.b16 %v743, %v735
      %v784 = vpack.c.b16 %v744, %v736
      %v785 = vpack.c.b16 %v745, %v737
      %v786 = vpack.c.b16 %v746, %v738
      %v787 = vpack.c.b16 %v747, %v739
      %v788 = vpack.c.b16 %v748, %v740
      %v789 = vpack.c.b16 %v749, %v741
      %v790 = vpack.c.b16 %v758, %v750
      %v791 = vpack.c.b16 %v759, %v751
      %v792 = vpack.c.b16 %v760, %v752
      %v793 = vpack.c.b16 %v761, %v753
      %v794 = vpack.c.b16 %v762, %v754
      %v795 = vpack.c.b16 %v763, %v755
      %v796 = vpack.c.b16 %v764, %v756
      %v797 = vpack.c.b16 %v765, %v757
      %v1086 = vunpack.c.l.b16 %v414
      %v1087 = vunpack.c.h.b16 %v414
      %v1088 = vunpack.c.l.b16 %v415
      %v1089 = vunpack.c.h.b16 %v415
      %v1090 = vunpack.c.l.b16 %v416
      %v1091 = vunpack.c.h.b16 %v416
      %v1092 = vunpack.c.l.b16 %v417
      %v1093 = vunpack.c.h.b16 %v417
      %v1094 = vunpack.c.l.b16 %v418
      %v1095 = vunpack.c.h.b16 %v418
      %v1096 = vunpack.c.l.b16 %v419
      %v1097 = vunpack.c.h.b16 %v419
      %v1098 = vunpack.c.l.b16 %v420
      %v1099 = vunpack.c.h.b16 %v420
      %v1100 = vunpack.c.l.b16 %v421
      %v1101 = vunpack.c.h.b16 %v421
      %v1102 = vunpack.c.l.b16 %v422
      %v1103 = vunpack.c.h.b16 %v422
      %v1104 = vunpack.c.l.b16 %v423
      %v1105 = vunpack.c.h.b16 %v423
      %v1106 = vunpack.c.l.b16 %v424
      %v1107 = vunpack.c.h.b16 %v424
      %v1108 = vunpack.c.l.b16 %v425
      %v1109 = vunpack.c.h.b16 %v425
      %v1110 = vunpack.c.l.b16 %v426
      %v1111 = vunpack.c.h.b16 %v426
      %v1112 = vunpack.c.l.b16 %v427
      %v1113 = vunpack.c.h.b16 %v427
      %v1114 = vunpack.c.l.b16 %v428
      %v1115 = vunpack.c.h.b16 %v428
      %v1116 = vunpack.c.l.b16 %v429
      %v1117 = vunpack.c.h.b16 %v429
      %v1118 = vunpack.c.l.b16 %v430
      %v1119 = vunpack.c.h.b16 %v430
      %v1120 = vunpack.c.l.b16 %v431
      %v1121 = vunpack.c.h.b16 %v431
      %v1122 = vunpack.c.l.b16 %v432
      %v1123 = vunpack.c.h.b16 %v432
      %v1124 = vunpack.c.l.b16 %v433
      %v1125 = vunpack.c.h.b16 %v433
      %v1126 = vunpack.c.l.b16 %v434
      %v1127 = vunpack.c.h.b16 %v434
      %v1128 = vunpack.c.l.b16 %v435
      %v1129 = vunpack.c.h.b16 %v435
      %v1130 = vunpack.c.l.b16 %v436
      %v1131 = vunpack.c.h.b16 %v436
      %v1132 = vunpack.c.l.b16 %v437
      %v1133 = vunpack.c.h.b16 %v437
      %v1134 = vunpack.c.l.b16 %v438
      %v1135 = vunpack.c.h.b16 %v438
      %v1136 = vunpack.c.l.b16 %v439
      %v1137 = vunpack.c.h.b16 %v439
      %v1138 = vunpack.c.l.b16 %v440
      %v1139 = vunpack.c.h.b16 %v440
      %v1140 = vunpack.c.l.b16 %v441
      %v1141 = vunpack.c.h.b16 %v441
      %v1142 = vunpack.c.l.b16 %v442
      %v1143 = vunpack.c.h.b16 %v442
      %v1144 = vunpack.c.l.b16 %v443
      %v1145 = vunpack.c.h.b16 %v443
      %v1146 = vunpack.c.l.b16 %v444
      %v1147 = vunpack.c.h.b16 %v444
      %v1148 = vunpack.c.l.b16 %v445
      %v1149 = vunpack.c.h.b16 %v445
      %v1150 = vunpack.c.l.b16 %v446
      %v1151 = vunpack.c.h.b16 %v446
      %v1152 = vunpack.c.l.b16 %v447
      %v1153 = vunpack.c.h.b16 %v447
      %v1154 = vunpack.c.l.b16 %v448
      %v1155 = vunpack.c.h.b16 %v448
      %v1156 = vunpack.c.l.b16 %v449
      %v1157 = vunpack.c.h.b16 %v449
      %v1158 = vunpack.c.l.b16 %v450
      %v1159 = vunpack.c.h.b16 %v450
      %v1160 = vunpack.c.l.b16 %v451
      %v1161 = vunpack.c.h.b16 %v451
      %v1162 = vunpack.c.l.b16 %v452
      %v1163 = vunpack.c.h.b16 %v452
      %v1164 = vunpack.c.l.b16 %v453
      %v1165 = vunpack.c.h.b16 %v453
      %v1166 = vunpack.c.l.b16 %v454
      %v1167 = vunpack.c.h.b16 %v454
      %v1168 = vunpack.c.l.b16 %v455
      %v1169 = vunpack.c.h.b16 %v455
      %v1170 = vunpack.c.l.b16 %v456
      %v1171 = vunpack.c.h.b16 %v456
      %v1172 = vunpack.c.l.b16 %v457
      %v1173 = vunpack.c.h.b16 %v457
      %v1174 = vunpack.c.l.b16 %v458
      %v1175 = vunpack.c.h.b16 %v458
      %v1176 = vunpack.c.l.b16 %v459
      %v1177 = vunpack.c.h.b16 %v459
      %v1178 = vunpack.c.l.b16 %v460
      %v1179 = vunpack.c.h.b16 %v460
      %v1180 = vunpack.c.l.b16 %v461
      %v1181 = vunpack.c.h.b16 %v461
      %v1182 = vunpack.c.l.b16 %v462
      %v1183 = vunpack.c.h.b16 %v462
      %v1184 = vunpack.c.l.b16 %v463
      %v1185 = vunpack.c.h.b16 %v463
      %v1186 = vunpack.c.l.b16 %v464
      %v1187 = vunpack.c.h.b16 %v464
      %v1188 = vunpack.c.l.b16 %v465
      %v1189 = vunpack.c.h.b16 %v465
      %v1190 = vunpack.c.l.b16 %v466
      %v1191 = vunpack.c.h.b16 %v466
      %v1192 = vunpack.c.l.b16 %v467
      %v1193 = vunpack.c.h.b16 %v467
      %v1194 = vunpack.c.l.b16 %v468
      %v1195 = vunpack.c.h.b16 %v468
      %v1196 = vunpack.c.l.b16 %v469
      %v1197 = vunpack.c.h.b16 %v469
      %v1198 = vunpack.c.l.b16 %v470
      %v1199 = vunpack.c.h.b16 %v470
      %v1200 = vunpack.c.l.b16 %v471
      %v1201 = vunpack.c.h.b16 %v471
      %v1202 = vunpack.c.l.b16 %v472
      %v1203 = vunpack.c.h.b16 %v472
      %v1204 = vunpack.c.l.b16 %v473
      %v1205 = vunpack.c.h.b16 %v473
      %v1206 = vunpack.c.l.b16 %v474
      %v1207 = vunpack.c.h.b16 %v474
      %v1208 = vunpack.c.l.b16 %v475
      %v1209 = vunpack.c.h.b16 %v475
      %v1210 = vunpack.c.l.b16 %v476
      %v1211 = vunpack.c.h.b16 %v476
      %v1212 = vunpack.c.l.b16 %v477
      %v1213 = vunpack.c.h.b16 %v477
      %v1214 = vunpack.c.l.b16 %v478
      %v1215 = vunpack.c.h.b16 %v478
      %v1216 = vunpack.c.l.b16 %v479
      %v1217 = vunpack.c.h.b16 %v479
      %v1218 = vunpack.c.l.b16 %v480
      %v1219 = vunpack.c.h.b16 %v480
      %v1220 = vunpack.c.l.b16 %v481
      %v1221 = vunpack.c.h.b16 %v481
      %v1222 = vunpack.c.l.b16 %v482
      %v1223 = vunpack.c.h.b16 %v482
      %v1224 = vunpack.c.l.b16 %v483
      %v1225 = vunpack.c.h.b16 %v483
      %v1226 = vunpack.c.l.b16 %v484
      %v1227 = vunpack.c.h.b16 %v484
      %v1228 = vunpack.c.l.b16 %v485
      %v1229 = vunpack.c.h.b16 %v485
      %v1230 = vunpack.c.l.b16 %v486
      %v1231 = vunpack.c.h.b16 %v486
      %v1232 = vunpack.c.l.b16 %v487
      %v1233 = vunpack.c.h.b16 %v487
      %v1234 = vunpack.c.l.b16 %v488
      %v1235 = vunpack.c.h.b16 %v488
      %v1236 = vunpack.c.l.b16 %v489
      %v1237 = vunpack.c.h.b16 %v489
      %v1238 = vunpack.c.l.b16 %v490
      %v1239 = vunpack.c.h.b16 %v490
      %v1240 = vunpack.c.l.b16 %v491
      %v1241 = vunpack.c.h.b16 %v491
      %v1242 = vunpack.c.l.b16 %v492
      %v1243 = vunpack.c.h.b16 %v492
      %v1244 = vunpack.c.l.b16 %v493
      %v1245 = vunpack.c.h.b16 %v493
      %v1246 = vunpack.c.l.b16 %v494
      %v1247 = vunpack.c.h.b16 %v494
      %v1248 = vunpack.c.l.b16 %v495
      %v1249 = vunpack.c.h.b16 %v495
      %v1250 = vunpack.c.l.b16 %v496
      %v1251 = vunpack.c.h.b16 %v496
      %v1252 = vunpack.c.l.b16 %v497
      %v1253 = vunpack.c.h.b16 %v497
      %v1254 = vunpack.c.l.b16 %v498
      %v1255 = vunpack.c.h.b16 %v498
      %v1256 = vunpack.c.l.b16 %v499
      %v1257 = vunpack.c.h.b16 %v499
      %v1258 = vunpack.c.l.b16 %v500
      %v1259 = vunpack.c.h.b16 %v500
      %v1260 = vunpack.c.l.b16 %v501
      %v1261 = vunpack.c.h.b16 %v501
      %v1262 = vunpack.c.l.b16 %v502
      %v1263 = vunpack.c.h.b16 %v502
      %v1264 = vunpack.c.l.b16 %v503
      %v1265 = vunpack.c.h.b16 %v503
      %v1266 = vunpack.c.l.b16 %v504
      %v1267 = vunpack.c.h.b16 %v504
      %v1268 = vunpack.c.l.b16 %v505
      %v1269 = vunpack.c.h.b16 %v505
      %v1270 = vunpack.c.l.b16 %v506
      %v1271 = vunpack.c.h.b16 %v506
      %v1272 = vunpack.c.l.b16 %v507
      %v1273 = vunpack.c.h.b16 %v507
      %v1274 = vunpack.c.l.b16 %v508
      %v1275 = vunpack.c.h.b16 %v508
      %v1276 = vunpack.c.l.b16 %v509
      %v1277 = vunpack.c.h.b16 %v509
      %v1278 = vunpack.c.l.b16 %v510
      %v1279 = vunpack.c.h.b16 %v510
      %v1280 = vunpack.c.l.b16 %v511
      %v1281 = vunpack.c.h.b16 %v511
      %v1282 = vunpack.c.l.b16 %v512
      %v1283 = vunpack.c.h.b16 %v512
      %v1284 = vunpack.c.l.b16 %v513
      %v1285 = vunpack.c.h.b16 %v513
      %v1286 = vunpack.c.l.b16 %v514
      %v1287 = vunpack.c.h.b16 %v514
      %v1288 = vunpack.c.l.b16 %v515
      %v1289 = vunpack.c.h.b16 %v515
      %v1290 = vunpack.c.l.b16 %v516
      %v1291 = vunpack.c.h.b16 %v516
      %v1292 = vunpack.c.l.b16 %v517
      %v1293 = vunpack.c.h.b16 %v517
      %v1294 = vunpack.c.l.b16 %v518
      %v1295 = vunpack.c.h.b16 %v518
      %v1296 = vunpack.c.l.b16 %v519
      %v1297 = vunpack.c.h.b16 %v519
      %v1298 = vunpack.c.l.b16 %v520
      %v1299 = vunpack.c.h.b16 %v520
      %v1300 = vunpack.c.l.b16 %v521
      %v1301 = vunpack.c.h.b16 %v521
      %v1302 = vunpack.c.l.b16 %v522
      %v1303 = vunpack.c.h.b16 %v522
      %v1304 = vunpack.c.l.b16 %v523
      %v1305 = vunpack.c.h.b16 %v523
      %v1306 = vunpack.c.l.b16 %v524
      %v1307 = vunpack.c.h.b16 %v524
      %v1308 = vunpack.c.l.b16 %v525
      %v1309 = vunpack.c.h.b16 %v525
      %v1310 = vunpack.c.l.b16 %v526
      %v1311 = vunpack.c.h.b16 %v526
      %v1312 = vunpack.c.l.b16 %v527
      %v1313 = vunpack.c.h.b16 %v527
      %v1314 = vunpack.c.l.b16 %v528
      %v1315 = vunpack.c.h.b16 %v528
      %v1316 = vunpack.c.l.b16 %v529
      %v1317 = vunpack.c.h.b16 %v529
      %v1318 = vunpack.c.l.b16 %v530
      %v1319 = vunpack.c.h.b16 %v530
      %v1320 = vunpack.c.l.b16 %v531
      %v1321 = vunpack.c.h.b16 %v531
      %v1322 = vunpack.c.l.b16 %v532
      %v1323 = vunpack.c.h.b16 %v532
      %v1324 = vunpack.c.l.b16 %v533
      %v1325 = vunpack.c.h.b16 %v533
      %v1326 = vunpack.c.l.b16 %v534
      %v1327 = vunpack.c.h.b16 %v534
      %v1328 = vunpack.c.l.b16 %v535
      %v1329 = vunpack.c.h.b16 %v535
      %v1330 = vunpack.c.l.b16 %v536
      %v1331 = vunpack.c.h.b16 %v536
      %v1332 = vunpack.c.l.b16 %v537
      %v1333 = vunpack.c.h.b16 %v537
      %v1334 = vunpack.c.l.b16 %v538
      %v1335 = vunpack.c.h.b16 %v538
      %v1336 = vunpack.c.l.b16 %v539
      %v1337 = vunpack.c.h.b16 %v539
      %v1338 = vunpack.c.l.b16 %v540
      %v1339 = vunpack.c.h.b16 %v540
      %v1340 = vunpack.c.l.b16 %v541
      %v1341 = vunpack.c.h.b16 %v541
      %v1342 = vunpack.c.l.b16 %v542
      %v1343 = vunpack.c.h.b16 %v542
      %v1344 = vunpack.c.l.b16 %v543
      %v1345 = vunpack.c.h.b16 %v543
      %v1346 = vunpack.c.l.b16 %v544
      %v1347 = vunpack.c.h.b16 %v544
      %v1348 = vunpack.c.l.b16 %v545
      %v1349 = vunpack.c.h.b16 %v545
      %v1350 = vunpack.c.l.b16 %v546
      %v1351 = vunpack.c.h.b16 %v546
      %v1352 = vunpack.c.l.b16 %v547
      %v1353 = vunpack.c.h.b16 %v547
      %v1354 = vunpack.c.l.b16 %v548
      %v1355 = vunpack.c.h.b16 %v548
      %v1356 = vunpack.c.l.b16 %v549
      %v1357 = vunpack.c.h.b16 %v549
      %v1358 = vunpack.c.l.b16 %v550
      %v1359 = vunpack.c.h.b16 %v550
      %v1360 = vunpack.c.l.b16 %v551
      %v1361 = vunpack.c.h.b16 %v551
      %v1362 = vunpack.c.l.b16 %v552
      %v1363 = vunpack.c.h.b16 %v552
      %v1364 = vunpack.c.l.b16 %v553
      %v1365 = vunpack.c.h.b16 %v553
      %v1366 = vunpack.c.l.b16 %v554
      %v1367 = vunpack.c.h.b16 %v554
      %v1368 = vunpack.c.l.b16 %v555
      %v1369 = vunpack.c.h.b16 %v555
      %v1370 = vunpack.c.l.b16 %v556
      %v1371 = vunpack.c.h.b16 %v556
      %v1372 = vunpack.c.l.b16 %v557
      %v1373 = vunpack.c.h.b16 %v557
      %v1374 = vunpack.c.l.b16 %v558
      %v1375 = vunpack.c.h.b16 %v558
      %v1376 = vunpack.c.l.b16 %v559
      %v1377 = vunpack.c.h.b16 %v559
      %v1378 = vunpack.c.l.b16 %v560
      %v1379 = vunpack.c.h.b16 %v560
      %v1380 = vunpack.c.l.b16 %v561
      %v1381 = vunpack.c.h.b16 %v561
      %v1382 = vunpack.c.l.b16 %v562
      %v1383 = vunpack.c.h.b16 %v562
      %v1384 = vunpack.c.l.b16 %v563
      %v1385 = vunpack.c.h.b16 %v563
      %v1386 = vunpack.c.l.b16 %v564
      %v1387 = vunpack.c.h.b16 %v564
      %v1388 = vunpack.c.l.b16 %v565
      %v1389 = vunpack.c.h.b16 %v565
      %v1390 = vunpack.c.l.b16 %v566
      %v1391 = vunpack.c.h.b16 %v566
      %v1392 = vunpack.c.l.b16 %v567
      %v1393 = vunpack.c.h.b16 %v567
      %v1394 = vunpack.c.l.b16 %v568
      %v1395 = vunpack.c.h.b16 %v568
      %v1396 = vunpack.c.l.b16 %v569
      %v1397 = vunpack.c.h.b16 %v569
      %v1398 = vunpack.c.l.b16 %v570
      %v1399 = vunpack.c.h.b16 %v570
      %v1400 = vunpack.c.l.b16 %v571
      %v1401 = vunpack.c.h.b16 %v571
      %v1402 = vunpack.c.l.b16 %v572
      %v1403 = vunpack.c.h.b16 %v572
      %v1404 = vunpack.c.l.b16 %v573
      %v1405 = vunpack.c.h.b16 %v573
      %v1406 = vunpack.c.l.b16 %v574
      %v1407 = vunpack.c.h.b16 %v574
      %v1408 = vunpack.c.l.b16 %v575
      %v1409 = vunpack.c.h.b16 %v575
      %v1410 = vunpack.c.l.b16 %v576
      %v1411 = vunpack.c.h.b16 %v576
      %v1412 = vunpack.c.l.b16 %v577
      %v1413 = vunpack.c.h.b16 %v577
      %v1414 = vunpack.c.l.b16 %v578
      %v1415 = vunpack.c.h.b16 %v578
      %v1416 = vunpack.c.l.b16 %v579
      %v1417 = vunpack.c.h.b16 %v579
      %v1418 = vunpack.c.l.b16 %v580
      %v1419 = vunpack.c.h.b16 %v580
      %v1420 = vunpack.c.l.b16 %v581
      %v1421 = vunpack.c.h.b16 %v581
      %v1422 = vunpack.c.l.b16 %v582
      %v1423 = vunpack.c.h.b16 %v582
      %v1424 = vunpack.c.l.b16 %v583
      %v1425 = vunpack.c.h.b16 %v583
      %v1426 = vunpack.c.l.b16 %v584
      %v1427 = vunpack.c.h.b16 %v584
      %v1428 = vunpack.c.l.b16 %v585
      %v1429 = vunpack.c.h.b16 %v585
      %v1430 = vunpack.c.l.b16 %v586
      %v1431 = vunpack.c.h.b16 %v586
      %v1432 = vunpack.c.l.b16 %v587
      %v1433 = vunpack.c.h.b16 %v587
      %v1434 = vunpack.c.l.b16 %v588
      %v1435 = vunpack.c.h.b16 %v588
      %v1436 = vunpack.c.l.b16 %v589
      %v1437 = vunpack.c.h.b16 %v589
      %v1438 = vunpack.c.l.b16 %v590
      %v1439 = vunpack.c.h.b16 %v590
      %v1440 = vunpack.c.l.b16 %v591
      %v1441 = vunpack.c.h.b16 %v591
      %v1442 = vunpack.c.l.b16 %v592
      %v1443 = vunpack.c.h.b16 %v592
      %v1444 = vunpack.c.l.b16 %v593
      %v1445 = vunpack.c.h.b16 %v593
      %v1446 = vunpack.c.l.b16 %v594
      %v1447 = vunpack.c.h.b16 %v594
      %v1448 = vunpack.c.l.b16 %v595
      %v1449 = vunpack.c.h.b16 %v595
      %v1450 = vunpack.c.l.b16 %v596
      %v1451 = vunpack.c.h.b16 %v596
      %v1452 = vunpack.c.l.b16 %v597
      %v1453 = vunpack.c.h.b16 %v597
      %v1454 = vunpack.c.l.b16 %v598
      %v1455 = vunpack.c.h.b16 %v598
      %v1456 = vunpack.c.l.b16 %v599
      %v1457 = vunpack.c.h.b16 %v599
      %v1458 = vunpack.c.l.b16 %v600
      %v1459 = vunpack.c.h.b16 %v600
      %v1460 = vunpack.c.l.b16 %v601
      %v1461 = vunpack.c.h.b16 %v601
      %v1462 = vunpack.c.l.b16 %v602
      %v1463 = vunpack.c.h.b16 %v602
      %v1464 = vunpack.c.l.b16 %v603
      %v1465 = vunpack.c.h.b16 %v603
      %v1466 = vunpack.c.l.b16 %v604
      %v1467 = vunpack.c.h.b16 %v604
      %v1468 = vunpack.c.l.b16 %v605
      %v1469 = vunpack.c.h.b16 %v605
      %v1470 = vunpack.c.l.b16 %v606
      %v1471 = vunpack.c.h.b16 %v606
      %v1472 = vunpack.c.l.b16 %v607
      %v1473 = vunpack.c.h.b16 %v607
      %v1474 = vunpack.c.l.b16 %v608
      %v1475 = vunpack.c.h.b16 %v608
      %v1476 = vunpack.c.l.b16 %v609
      %v1477 = vunpack.c.h.b16 %v609
      %v1478 = vunpack.c.l.b16 %v610
      %v1479 = vunpack.c.h.b16 %v610
      %v1480 = vunpack.c.l.b16 %v611
      %v1481 = vunpack.c.h.b16 %v611
      %v1482 = vunpack.c.l.b16 %v612
      %v1483 = vunpack.c.h.b16 %v612
      %v1484 = vunpack.c.l.b16 %v613
      %v1485 = vunpack.c.h.b16 %v613
      %v1486 = vunpack.c.l.b16 %v614
      %v1487 = vunpack.c.h.b16 %v614
      %v1488 = vunpack.c.l.b16 %v615
      %v1489 = vunpack.c.h.b16 %v615
      %v1490 = vunpack.c.l.b16 %v616
      %v1491 = vunpack.c.h.b16 %v616
      %v1492 = vunpack.c.l.b16 %v617
      %v1493 = vunpack.c.h.b16 %v617
      %v1494 = vunpack.c.l.b16 %v618
      %v1495 = vunpack.c.h.b16 %v618
      %v1496 = vunpack.c.l.b16 %v619
      %v1497 = vunpack.c.h.b16 %v619
      %v1498 = vunpack.c.l.b16 %v620
      %v1499 = vunpack.c.h.b16 %v620
      %v1500 = vunpack.c.l.b16 %v621
      %v1501 = vunpack.c.h.b16 %v621
      %v1502 = vunpack.c.l.b16 %v622
      %v1503 = vunpack.c.h.b16 %v622
      %v1504 = vunpack.c.l.b16 %v623
      %v1505 = vunpack.c.h.b16 %v623
      %v1506 = vunpack.c.l.b16 %v624
      %v1507 = vunpack.c.h.b16 %v624
      %v1508 = vunpack.c.l.b16 %v625
      %v1509 = vunpack.c.h.b16 %v625
      %v1510 = vunpack.c.l.b16 %v626
      %v1511 = vunpack.c.h.b16 %v626
      %v1512 = vunpack.c.l.b16 %v627
      %v1513 = vunpack.c.h.b16 %v627
      %v1514 = vunpack.c.l.b16 %v628
      %v1515 = vunpack.c.h.b16 %v628
      %v1516 = vunpack.c.l.b16 %v629
      %v1517 = vunpack.c.h.b16 %v629
      %v1518 = vunpack.c.l.b16 %v630
      %v1519 = vunpack.c.h.b16 %v630
      %v1520 = vunpack.c.l.b16 %v631
      %v1521 = vunpack.c.h.b16 %v631
      %v1522 = vunpack.c.l.b16 %v632
      %v1523 = vunpack.c.h.b16 %v632
      %v1524 = vunpack.c.l.b16 %v633
      %v1525 = vunpack.c.h.b16 %v633
      %v1526 = vunpack.c.l.b16 %v634
      %v1527 = vunpack.c.h.b16 %v634
      %v1528 = vunpack.c.l.b16 %v635
      %v1529 = vunpack.c.h.b16 %v635
      %v1530 = vunpack.c.l.b16 %v636
      %v1531 = vunpack.c.h.b16 %v636
      %v1532 = vunpack.c.l.b16 %v637
      %v1533 = vunpack.c.h.b16 %v637
      %v1534 = vunpack.c.l.b16 %v638
      %v1535 = vunpack.c.h.b16 %v638
      %v1536 = vunpack.c.l.b16 %v639
      %v1537 = vunpack.c.h.b16 %v639
      %v1538 = vunpack.c.l.b16 %v640
      %v1539 = vunpack.c.h.b16 %v640
      %v1540 = vunpack.c.l.b16 %v641
      %v1541 = vunpack.c.h.b16 %v641
      %v1542 = vunpack.c.l.b16 %v642
      %v1543 = vunpack.c.h.b16 %v642
      %v1544 = vunpack.c.l.b16 %v643
      %v1545 = vunpack.c.h.b16 %v643
      %v1546 = vunpack.c.l.b16 %v644
      %v1547 = vunpack.c.h.b16 %v644
      %v1548 = vunpack.c.l.b16 %v645
      %v1549 = vunpack.c.h.b16 %v645
      %v1550 = vunpack.c.l.b16 %v646
      %v1551 = vunpack.c.h.b16 %v646
      %v1552 = vunpack.c.l.b16 %v647
      %v1553 = vunpack.c.h.b16 %v647
      %v1554 = vunpack.c.l.b16 %v648
      %v1555 = vunpack.c.h.b16 %v648
      %v1556 = vunpack.c.l.b16 %v649
      %v1557 = vunpack.c.h.b16 %v649
      %v1558 = vunpack.c.l.b16 %v650
      %v1559 = vunpack.c.h.b16 %v650
      %v1560 = vunpack.c.l.b16 %v651
      %v1561 = vunpack.c.h.b16 %v651
      %v1562 = vunpack.c.l.b16 %v652
      %v1563 = vunpack.c.h.b16 %v652
      %v1564 = vunpack.c.l.b16 %v653
      %v1565 = vunpack.c.h.b16 %v653
      %v1566 = vunpack.c.l.b16 %v654
      %v1567 = vunpack.c.h.b16 %v654
      %v1568 = vunpack.c.l.b16 %v655
      %v1569 = vunpack.c.h.b16 %v655
      %v1570 = vunpack.c.l.b16 %v656
      %v1571 = vunpack.c.h.b16 %v656
      %v1572 = vunpack.c.l.b16 %v657
      %v1573 = vunpack.c.h.b16 %v657
      %v1574 = vunpack.c.l.b16 %v658
      %v1575 = vunpack.c.h.b16 %v658
      %v1576 = vunpack.c.l.b16 %v659
      %v1577 = vunpack.c.h.b16 %v659
      %v1578 = vunpack.c.l.b16 %v660
      %v1579 = vunpack.c.h.b16 %v660
      %v1580 = vunpack.c.l.b16 %v661
      %v1581 = vunpack.c.h.b16 %v661
      %v1582 = vunpack.c.l.b16 %v662
      %v1583 = vunpack.c.h.b16 %v662
      %v1584 = vunpack.c.l.b16 %v663
      %v1585 = vunpack.c.h.b16 %v663
      %v1586 = vunpack.c.l.b16 %v664
      %v1587 = vunpack.c.h.b16 %v664
      %v1588 = vunpack.c.l.b16 %v665
      %v1589 = vunpack.c.h.b16 %v665
      %v1590 = vunpack.c.l.b16 %v666
      %v1591 = vunpack.c.h.b16 %v666
      %v1592 = vunpack.c.l.b16 %v667
      %v1593 = vunpack.c.h.b16 %v667
      %v1594 = vunpack.c.l.b16 %v668
      %v1595 = vunpack.c.h.b16 %v668
      %v1596 = vunpack.c.l.b16 %v669
      %v1597 = vunpack.c.h.b16 %v669
      %v1598 = vpack.c.b16 %v1090, %v1086
      %v1599 = vpack.c.b16 %v1091, %v1087
      %v1600 = vpack.c.b16 %v1092, %v1088
      %v1601 = vpack.c.b16 %v1093, %v1089
      %v1602 = vpack.c.b16 %v1098, %v1094
      %v1603 = vpack.c.b16 %v1099, %v1095
      %v1604 = vpack.c.b16 %v1100, %v1096
      %v1605 = vpack.c.b16 %v1101, %v1097
      %v1606 = vpack.c.b16 %v1106, %v1102
      %v1607 = vpack.c.b16 %v1107, %v1103
      %v1608 = vpack.c.b16 %v1108, %v1104
      %v1609 = vpack.c.b16 %v1109, %v1105
      %v1610 = vpack.c.b16 %v1114, %v1110
      %v1611 = vpack.c.b16 %v1115, %v1111
      %v1612 = vpack.c.b16 %v1116, %v1112
      %v1613 = vpack.c.b16 %v1117, %v1113
      %v1614 = vpack.c.b16 %v1122, %v1118
      %v1615 = vpack.c.b16 %v1123, %v1119
      %v1616 = vpack.c.b16 %v1124, %v1120
      %v1617 = vpack.c.b16 %v1125, %v1121
      %v1618 = vpack.c.b16 %v1130, %v1126
      %v1619 = vpack.c.b16 %v1131, %v1127
      %v1620 = vpack.c.b16 %v1132, %v1128
      %v1621 = vpack.c.b16 %v1133, %v1129
      %v1622 = vpack.c.b16 %v1138, %v1134
      %v1623 = vpack.c.b16 %v1139, %v1135
      %v1624 = vpack.c.b16 %v1140, %v1136
      %v1625 = vpack.c.b16 %v1141, %v1137
      %v1626 = vpack.c.b16 %v1146, %v1142
      %v1627 = vpack.c.b16 %v1147, %v1143
      %v1628 = vpack.c.b16 %v1148, %v1144
      %v1629 = vpack.c.b16 %v1149, %v1145
      %v1630 = vpack.c.b16 %v1154, %v1150
      %v1631 = vpack.c.b16 %v1155, %v1151
      %v1632 = vpack.c.b16 %v1156, %v1152
      %v1633 = vpack.c.b16 %v1157, %v1153
      %v1634 = vpack.c.b16 %v1162, %v1158
      %v1635 = vpack.c.b16 %v1163, %v1159
      %v1636 = vpack.c.b16 %v1164, %v1160
      %v1637 = vpack.c.b16 %v1165, %v1161
      %v1638 = vpack.c.b16 %v1170, %v1166
      %v1639 = vpack.c.b16 %v1171, %v1167
      %v1640 = vpack.c.b16 %v1172, %v1168
      %v1641 = vpack.c.b16 %v1173, %v1169
      %v1642 = vpack.c.b16 %v1178, %v1174
      %v1643 = vpack.c.b16 %v1179, %v1175
      %v1644 = vpack.c.b16 %v1180, %v1176
      %v1645 = vpack.c.b16 %v1181, %v1177
      %v1646 = vpack.c.b16 %v1186, %v1182
      %v1647 = vpack.c.b16 %v1187, %v1183
      %v1648 = vpack.c.b16 %v1188, %v1184
      %v1649 = vpack.c.b16 %v1189, %v1185
      %v1650 = vpack.c.b16 %v1194, %v1190
      %v1651 = vpack.c.b16 %v1195, %v1191
      %v1652 = vpack.c.b16 %v1196, %v1192
      %v1653 = vpack.c.b16 %v1197, %v1193
      %v1654 = vpack.c.b16 %v1202, %v1198
      %v1655 = vpack.c.b16 %v1203, %v1199
      %v1656 = vpack.c.b16 %v1204, %v1200
      %v1657 = vpack.c.b16 %v1205, %v1201
      %v1658 = vpack.c.b16 %v1210, %v1206
      %v1659 = vpack.c.b16 %v1211, %v1207
      %v1660 = vpack.c.b16 %v1212, %v1208
      %v1661 = vpack.c.b16 %v1213, %v1209
      %v1662 = vpack.c.b16 %v1218, %v1214
      %v1663 = vpack.c.b16 %v1219, %v1215
      %v1664 = vpack.c.b16 %v1220, %v1216
      %v1665 = vpack.c.b16 %v1221, %v1217
      %v1666 = vpack.c.b16 %v1226, %v1222
      %v1667 = vpack.c.b16 %v1227, %v1223
      %v1668 = vpack.c.b16 %v1228, %v1224
      %v1669 = vpack.c.b16 %v1229, %v1225
      %v1670 = vpack.c.b16 %v1234, %v1230
      %v1671 = vpack.c.b16 %v1235, %v1231
      %v1672 = vpack.c.b16 %v1236, %v1232
      %v1673 = vpack.c.b16 %v1237, %v1233
      %v1674 = vpack.c.b16 %v1242, %v1238
      %v1675 = vpack.c.b16 %v1243, %v1239
      %v1676 = vpack.c.b16 %v1244, %v1240
      %v1677 = vpack.c.b16 %v1245, %v1241
      %v1678 = vpack.c.b16 %v1250, %v1246
      %v1679 = vpack.c.b16 %v1251, %v1247
      %v1680 = vpack.c.b16 %v1252, %v1248
      %v1681 = vpack.c.b16 %v1253, %v1249
      %v1682 = vpack.c.b16 %v1258, %v1254
      %v1683 = vpack.c.b16 %v1259, %v1255
      %v1684 = vpack.c.b16 %v1260, %v1256
      %v1685 = vpack.c.b16 %v1261, %v1257
      %v1686 = vpack.c.b16 %v1266, %v1262
      %v1687 = vpack.c.b16 %v1267, %v1263
      %v1688 = vpack.c.b16 %v1268, %v1264
      %v1689 = vpack.c.b16 %v1269, %v1265
      %v1690 = vpack.c.b16 %v1274, %v1270
      %v1691 = vpack.c.b16 %v1275, %v1271
      %v1692 = vpack.c.b16 %v1276, %v1272
      %v1693 = vpack.c.b16 %v1277, %v1273
      %v1694 = vpack.c.b16 %v1282, %v1278
      %v1695 = vpack.c.b16 %v1283, %v1279
      %v1696 = vpack.c.b16 %v1284, %v1280
      %v1697 = vpack.c.b16 %v1285, %v1281
      %v1698 = vpack.c.b16 %v1290, %v1286
      %v1699 = vpack.c.b16 %v1291, %v1287
      %v1700 = vpack.c.b16 %v1292, %v1288
      %v1701 = vpack.c.b16 %v1293, %v1289
      %v1702 = vpack.c.b16 %v1298, %v1294
      %v1703 = vpack.c.b16 %v1299, %v1295
      %v1704 = vpack.c.b16 %v1300, %v1296
      %v1705 = vpack.c.b16 %v1301, %v1297
      %v1706 = vpack.c.b16 %v1306, %v1302
      %v1707 = vpack.c.b16 %v1307, %v1303
      %v1708 = vpack.c.b16 %v1308, %v1304
      %v1709 = vpack.c.b16 %v1309, %v1305
      %v1710 = vpack.c.b16 %v1314, %v1310
      %v1711 = vpack.c.b16 %v1315, %v1311
      %v1712 = vpack.c.b16 %v1316, %v1312
      %v1713 = vpack.c.b16 %v1317, %v1313
      %v1714 = vpack.c.b16 %v1322, %v1318
      %v1715 = vpack.c.b16 %v1323, %v1319
      %v1716 = vpack.c.b16 %v1324, %v1320
      %v1717 = vpack.c.b16 %v1325, %v1321
      %v1718 = vpack.c.b16 %v1330, %v1326
      %v1719 = vpack.c.b16 %v1331, %v1327
      %v1720 = vpack.c.b16 %v1332, %v1328
      %v1721 = vpack.c.b16 %v1333, %v1329
      %v1722 = vpack.c.b16 %v1338, %v1334
      %v1723 = vpack.c.b16 %v1339, %v1335
      %v1724 = vpack.c.b16 %v1340, %v1336
      %v1725 = vpack.c.b16 %v1341, %v1337
      %v1726 = vpack.c.b16 %v1346, %v1342
      %v1727 = vpack.c.b16 %v1347, %v1343
      %v1728 = vpack.c.b16 %v1348, %v1344
      %v1729 = vpack.c.b16 %v1349, %v1345
      %v1730 = vpack.c.b16 %v1354, %v1350
      %v1731 = vpack.c.b16 %v1355, %v1351
      %v1732 = vpack.c.b16 %v1356, %v1352
      %v1733 = vpack.c.b16 %v1357, %v1353
      %v1734 = vpack.c.b16 %v1362, %v1358
      %v1735 = vpack.c.b16 %v1363, %v1359
      %v1736 = vpack.c.b16 %v1364, %v1360
      %v1737 = vpack.c.b16 %v1365, %v1361
      %v1738 = vpack.c.b16 %v1370, %v1366
      %v1739 = vpack.c.b16 %v1371, %v1367
      %v1740 = vpack.c.b16 %v1372, %v1368
      %v1741 = vpack.c.b16 %v1373, %v1369
      %v1742 = vpack.c.b16 %v1378, %v1374
      %v1743 = vpack.c.b16 %v1379, %v1375
      %v1744 = vpack.c.b16 %v1380, %v1376
      %v1745 = vpack.c.b16 %v1381, %v1377
      %v1746 = vpack.c.b16 %v1386, %v1382
      %v1747 = vpack.c.b16 %v1387, %v1383
      %v1748 = vpack.c.b16 %v1388, %v1384
      %v1749 = vpack.c.b16 %v1389, %v1385
      %v1750 = vpack.c.b16 %v1394, %v1390
      %v1751 = vpack.c.b16 %v1395, %v1391
      %v1752 = vpack.c.b16 %v1396, %v1392
      %v1753 = vpack.c.b16 %v1397, %v1393
      %v1754 = vpack.c.b16 %v1402, %v1398
      %v1755 = vpack.c.b16 %v1403, %v1399
      %v1756 = vpack.c.b16 %v1404, %v1400
      %v1757 = vpack.c.b16 %v1405, %v1401
      %v1758 = vpack.c.b16 %v1410, %v1406
      %v1759 = vpack.c.b16 %v1411, %v1407
      %v1760 = vpack.c.b16 %v1412, %v1408
      %v1761 = vpack.c.b16 %v1413, %v1409
      %v1762 = vpack.c.b16 %v1418, %v1414
      %v1763 = vpack.c.b16 %v1419, %v1415
      %v1764 = vpack.c.b16 %v1420, %v1416
      %v1765 = vpack.c.b16 %v1421, %v1417
      %v1766 = vpack.c.b16 %v1426, %v1422
      %v1767 = vpack.c.b16 %v1427, %v1423
      %v1768 = vpack.c.b16 %v1428, %v1424
      %v1769 = vpack.c.b16 %v1429, %v1425
      %v1770 = vpack.c.b16 %v1434, %v1430
      %v1771 = vpack.c.b16 %v1435, %v1431
      %v1772 = vpack.c.b16 %v1436, %v1432
      %v1773 = vpack.c.b16 %v1437, %v1433
      %v1774 = vpack.c.b16 %v1442, %v1438
      %v1775 = vpack.c.b16 %v1443, %v1439
      %v1776 = vpack.c.b16 %v1444, %v1440
      %v1777 = vpack.c.b16 %v1445, %v1441
      %v1778 = vpack.c.b16 %v1450, %v1446
      %v1779 = vpack.c.b16 %v1451, %v1447
      %v1780 = vpack.c.b16 %v1452, %v1448
      %v1781 = vpack.c.b16 %v1453, %v1449
      %v1782 = vpack.c.b16 %v1458, %v1454
      %v1783 = vpack.c.b16 %v1459, %v1455
      %v1784 = vpack.c.b16 %v1460, %v1456
      %v1785 = vpack.c.b16 %v1461, %v1457
      %v1786 = vpack.c.b16 %v1466, %v1462
      %v1787 = vpack.c.b16 %v1467, %v1463
      %v1788 = vpack.c.b16 %v1468, %v1464
      %v1789 = vpack.c.b16 %v1469, %v1465
      %v1790 = vpack.c.b16 %v1474, %v1470
      %v1791 = vpack.c.b16 %v1475, %v1471
      %v1792 = vpack.c.b16 %v1476, %v1472
      %v1793 = vpack.c.b16 %v1477, %v1473
      %v1794 = vpack.c.b16 %v1482, %v1478
      %v1795 = vpack.c.b16 %v1483, %v1479
      %v1796 = vpack.c.b16 %v1484, %v1480
      %v1797 = vpack.c.b16 %v1485, %v1481
      %v1798 = vpack.c.b16 %v1490, %v1486
      %v1799 = vpack.c.b16 %v1491, %v1487
      %v1800 = vpack.c.b16 %v1492, %v1488
      %v1801 = vpack.c.b16 %v1493, %v1489
      %v1802 = vpack.c.b16 %v1498, %v1494
      %v1803 = vpack.c.b16 %v1499, %v1495
      %v1804 = vpack.c.b16 %v1500, %v1496
      %v1805 = vpack.c.b16 %v1501, %v1497
      %v1806 = vpack.c.b16 %v1506, %v1502
      %v1807 = vpack.c.b16 %v1507, %v1503
      %v1808 = vpack.c.b16 %v1508, %v1504
      %v1809 = vpack.c.b16 %v1509, %v1505
      %v1810 = vpack.c.b16 %v1514, %v1510
      %v1811 = vpack.c.b16 %v1515, %v1511
      %v1812 = vpack.c.b16 %v1516, %v1512
      %v1813 = vpack.c.b16 %v1517, %v1513
      %v1814 = vpack.c.b16 %v1522, %v1518
      %v1815 = vpack.c.b16 %v1523, %v1519
      %v1816 = vpack.c.b16 %v1524, %v1520
      %v1817 = vpack.c.b16 %v1525, %v1521
      %v1818 = vpack.c.b16 %v1530, %v1526
      %v1819 = vpack.c.b16 %v1531, %v1527
      %v1820 = vpack.c.b16 %v1532, %v1528
      %v1821 = vpack.c.b16 %v1533, %v1529
      %v1822 = vpack.c.b16 %v1538, %v1534
      %v1823 = vpack.c.b16 %v1539, %v1535
      %v1824 = vpack.c.b16 %v1540, %v1536
      %v1825 = vpack.c.b16 %v1541, %v1537
      %v1826 = vpack.c.b16 %v1546, %v1542
      %v1827 = vpack.c.b16 %v1547, %v1543
      %v1828 = vpack.c.b16 %v1548, %v1544
      %v1829 = vpack.c.b16 %v1549, %v1545
      %v1830 = vpack.c.b16 %v1554, %v1550
      %v1831 = vpack.c.b16 %v1555, %v1551
      %v1832 = vpack.c.b16 %v1556, %v1552
      %v1833 = vpack.c.b16 %v1557, %v1553
      %v1834 = vpack.c.b16 %v1562, %v1558
      %v1835 = vpack.c.b16 %v1563, %v1559
      %v1836 = vpack.c.b16 %v1564, %v1560
      %v1837 = vpack.c.b16 %v1565, %v1561
      %v1838 = vpack.c.b16 %v1570, %v1566
      %v1839 = vpack.c.b16 %v1571, %v1567
      %v1840 = vpack.c.b16 %v1572, %v1568
      %v1841 = vpack.c.b16 %v1573, %v1569
      %v1842 = vpack.c.b16 %v1578, %v1574
      %v1843 = vpack.c.b16 %v1579, %v1575
      %v1844 = vpack.c.b16 %v1580, %v1576
      %v1845 = vpack.c.b16 %v1581, %v1577
      %v1846 = vpack.c.b16 %v1586, %v1582
      %v1847 = vpack.c.b16 %v1587, %v1583
      %v1848 = vpack.c.b16 %v1588, %v1584
      %v1849 = vpack.c.b16 %v1589, %v1585
      %v1850 = vpack.c.b16 %v1594, %v1590
      %v1851 = vpack.c.b16 %v1595, %v1591
      %v1852 = vpack.c.b16 %v1596, %v1592
      %v1853 = vpack.c.b16 %v1597, %v1593
      %2110 = vmatprep.subr.bf16.mxu0 %v1627
      %2111 = vmatpush1.bf16.msra.mxu0 %v1626
      %2112 = vmatprep.subr.bf16.mxu0 %v1623
      %2113 = vmatpush1.bf16.msra.mxu0 %v1622
      %2114 = vmatprep.subr.bf16.mxu0 %v1619
      %2115 = vmatpush1.bf16.msra.mxu0 %v1618
      %2116 = vmatprep.subr.bf16.mxu0 %v1615
      %2117 = vmatpush1.bf16.msra.mxu0 %v1614
      %2118 = vmatprep.subr.bf16.mxu0 %v1611
      %2119 = vmatpush1.bf16.msra.mxu0 %v1610
      %2120 = vmatprep.subr.bf16.mxu0 %v1607
      %2121 = vmatpush1.bf16.msra.mxu0 %v1606
      %2122 = vmatprep.subr.bf16.mxu0 %v1603
      %2123 = vmatpush1.bf16.msra.mxu0 %v1602
      %2124 = vmatprep.subr.bf16.mxu0 %v1599
      %2125 = vmatpush1.bf16.msra.mxu0 %v1598
      %2126 = vmatprep.subr.bf16.mxu0 %v1659
      %2127 = vmatpush2.bf16.msra.mxu0 %v1658
      %2128 = vmatprep.subr.bf16.mxu0 %v1655
      %2129 = vmatpush2.bf16.msra.mxu0 %v1654
      %2130 = vmatprep.subr.bf16.mxu0 %v1651
      %2131 = vmatpush2.bf16.msra.mxu0 %v1650
      %2132 = vmatprep.subr.bf16.mxu0 %v1647
      %2133 = vmatpush2.bf16.msra.mxu0 %v1646
      %2134 = vmatprep.subr.bf16.mxu0 %v1643
      %2135 = vmatpush2.bf16.msra.mxu0 %v1642
      %2136 = vmatprep.subr.bf16.mxu0 %v1639
      %2137 = vmatpush2.bf16.msra.mxu0 %v1638
      %2138 = vmatprep.subr.bf16.mxu0 %v1635
      %2139 = vmatpush2.bf16.msra.mxu0 %v1634
      %2140 = vmatprep.subr.bf16.mxu0 %v1631
      %2141 = vmatpush2.bf16.msra.mxu0 %v1630
      %2142 = vmatprep.mubr.bf16.mxu0 %v767
      %2143 = vmatmul.mubr.bf16.gmra.mxu0 %v766
      %v2144 = vpop.f32.mrf.mxu0
      %v2145 = vadd.f32 0.0, %v2144
      %v2146 = vpop.f32.mrf.mxu0
      %v2147 = vadd.f32 0.0, %v2146
      %v2148 = vpop.f32.mrf.mxu0
      %v2149 = vadd.f32 0.0, %v2148
      %v2150 = vpop.f32.mrf.mxu0
      %v2151 = vadd.f32 0.0, %v2150
      %2152 = vmatprep.mubr.bf16.mxu0 %v775
      %2153 = vmatmul.mubr.bf16.gmra.mxu0 %v774
      %v2154 = vpop.f32.mrf.mxu0
      %v2155 = vadd.f32 0.0, %v2154
      %v2156 = vpop.f32.mrf.mxu0
      %v2157 = vadd.f32 0.0, %v2156
      %v2158 = vpop.f32.mrf.mxu0
      %v2159 = vadd.f32 0.0, %v2158
      %v2160 = vpop.f32.mrf.mxu0
      %v2161 = vadd.f32 0.0, %v2160
      %2162 = vmatprep.mubr.bf16.mxu0 %v783
      %2163 = vmatmul.mubr.bf16.gmra.mxu0 %v782
      %v2164 = vpop.f32.mrf.mxu0
      %v2165 = vadd.f32 0.0, %v2164
      %v2166 = vpop.f32.mrf.mxu0
      %v2167 = vadd.f32 0.0, %v2166
      %v2168 = vpop.f32.mrf.mxu0
      %v2169 = vadd.f32 0.0, %v2168
      %v2170 = vpop.f32.mrf.mxu0
      %v2171 = vadd.f32 0.0, %v2170
      %2172 = vmatprep.mubr.bf16.mxu0 %v791
      %2173 = vmatmul.mubr.bf16.gmra.mxu0 %v790
      %v2174 = vpop.f32.mrf.mxu0
      %v2175 = vadd.f32 0.0, %v2174
      %v2176 = vpop.f32.mrf.mxu0
      %v2177 = vadd.f32 0.0, %v2176
      %v2178 = vpop.f32.mrf.mxu0
      %v2179 = vadd.f32 0.0, %v2178
      %v2180 = vpop.f32.mrf.mxu0
      %v2181 = vadd.f32 0.0, %v2180
      %2182 = vdwg.mxu0
      %2183 = vmatprep.subr.bf16.mxu0 %v1691
      %2184 = vmatpush1.bf16.msra.mxu0 %v1690
      %2185 = vmatprep.subr.bf16.mxu0 %v1687
      %2186 = vmatpush1.bf16.msra.mxu0 %v1686
      %2187 = vmatprep.subr.bf16.mxu0 %v1683
      %2188 = vmatpush1.bf16.msra.mxu0 %v1682
      %2189 = vmatprep.subr.bf16.mxu0 %v1679
      %2190 = vmatpush1.bf16.msra.mxu0 %v1678
      %2191 = vmatprep.subr.bf16.mxu0 %v1675
      %2192 = vmatpush1.bf16.msra.mxu0 %v1674
      %2193 = vmatprep.subr.bf16.mxu0 %v1671
      %2194 = vmatpush1.bf16.msra.mxu0 %v1670
      %2195 = vmatprep.subr.bf16.mxu0 %v1667
      %2196 = vmatpush1.bf16.msra.mxu0 %v1666
      %2197 = vmatprep.subr.bf16.mxu0 %v1663
      %2198 = vmatpush1.bf16.msra.mxu0 %v1662
      %2199 = vmatprep.subr.bf16.mxu0 %v1723
      %2200 = vmatpush2.bf16.msra.mxu0 %v1722
      %2201 = vmatprep.subr.bf16.mxu0 %v1719
      %2202 = vmatpush2.bf16.msra.mxu0 %v1718
      %2203 = vmatprep.subr.bf16.mxu0 %v1715
      %2204 = vmatpush2.bf16.msra.mxu0 %v1714
      %2205 = vmatprep.subr.bf16.mxu0 %v1711
      %2206 = vmatpush2.bf16.msra.mxu0 %v1710
      %2207 = vmatprep.subr.bf16.mxu0 %v1707
      %2208 = vmatpush2.bf16.msra.mxu0 %v1706
      %2209 = vmatprep.subr.bf16.mxu0 %v1703
      %2210 = vmatpush2.bf16.msra.mxu0 %v1702
      %2211 = vmatprep.subr.bf16.mxu0 %v1699
      %2212 = vmatpush2.bf16.msra.mxu0 %v1698
      %2213 = vmatprep.subr.bf16.mxu0 %v1695
      %2214 = vmatpush2.bf16.msra.mxu0 %v1694
      %2215 = vmatprep.mubr.bf16.mxu0 %v769
      %2216 = vmatmul.mubr.bf16.gmra.mxu0 %v768
      %v2217 = vpop.f32.mrf.mxu0
      %v2218 = vadd.f32 %v2145, %v2217
      %v2219 = vpop.f32.mrf.mxu0
      %v2220 = vadd.f32 %v2147, %v2219
      %v2221 = vpop.f32.mrf.mxu0
      %v2222 = vadd.f32 %v2149, %v2221
      %v2223 = vpop.f32.mrf.mxu0
      %v2224 = vadd.f32 %v2151, %v2223
      %2225 = vmatprep.mubr.bf16.mxu0 %v777
      %2226 = vmatmul.mubr.bf16.gmra.mxu0 %v776
      %v2227 = vpop.f32.mrf.mxu0
      %v2228 = vadd.f32 %v2155, %v2227
      %v2229 = vpop.f32.mrf.mxu0
      %v2230 = vadd.f32 %v2157, %v2229
      %v2231 = vpop.f32.mrf.mxu0
      %v2232 = vadd.f32 %v2159, %v2231
      %v2233 = vpop.f32.mrf.mxu0
      %v2234 = vadd.f32 %v2161, %v2233
      %2235 = vmatprep.mubr.bf16.mxu0 %v785
      %2236 = vmatmul.mubr.bf16.gmra.mxu0 %v784
      %v2237 = vpop.f32.mrf.mxu0
      %v2238 = vadd.f32 %v2165, %v2237
      %v2239 = vpop.f32.mrf.mxu0
      %v2240 = vadd.f32 %v2167, %v2239
      %v2241 = vpop.f32.mrf.mxu0
      %v2242 = vadd.f32 %v2169, %v2241
      %v2243 = vpop.f32.mrf.mxu0
      %v2244 = vadd.f32 %v2171, %v2243
      %2245 = vmatprep.mubr.bf16.mxu0 %v793
      %2246 = vmatmul.mubr.bf16.gmra.mxu0 %v792
      %v2247 = vpop.f32.mrf.mxu0
      %v2248 = vadd.f32 %v2175, %v2247
      %v2249 = vpop.f32.mrf.mxu0
      %v2250 = vadd.f32 %v2177, %v2249
      %v2251 = vpop.f32.mrf.mxu0
      %v2252 = vadd.f32 %v2179, %v2251
      %v2253 = vpop.f32.mrf.mxu0
      %v2254 = vadd.f32 %v2181, %v2253
      %2255 = vdwg.mxu0
      %2256 = vmatprep.subr.bf16.mxu0 %v1755
      %2257 = vmatpush1.bf16.msra.mxu0 %v1754
      %2258 = vmatprep.subr.bf16.mxu0 %v1751
      %2259 = vmatpush1.bf16.msra.mxu0 %v1750
      %2260 = vmatprep.subr.bf16.mxu0 %v1747
      %2261 = vmatpush1.bf16.msra.mxu0 %v1746
      %2262 = vmatprep.subr.bf16.mxu0 %v1743
      %2263 = vmatpush1.bf16.msra.mxu0 %v1742
      %2264 = vmatprep.subr.bf16.mxu0 %v1739
      %2265 = vmatpush1.bf16.msra.mxu0 %v1738
      %2266 = vmatprep.subr.bf16.mxu0 %v1735
      %2267 = vmatpush1.bf16.msra.mxu0 %v1734
      %2268 = vmatprep.subr.bf16.mxu0 %v1731
      %2269 = vmatpush1.bf16.msra.mxu0 %v1730
      %2270 = vmatprep.subr.bf16.mxu0 %v1727
      %2271 = vmatpush1.bf16.msra.mxu0 %v1726
      %2272 = vmatprep.subr.bf16.mxu0 %v1787
      %2273 = vmatpush2.bf16.msra.mxu0 %v1786
      %2274 = vmatprep.subr.bf16.mxu0 %v1783
      %2275 = vmatpush2.bf16.msra.mxu0 %v1782
      %2276 = vmatprep.subr.bf16.mxu0 %v1779
      %2277 = vmatpush2.bf16.msra.mxu0 %v1778
      %2278 = vmatprep.subr.bf16.mxu0 %v1775
      %2279 = vmatpush2.bf16.msra.mxu0 %v1774
      %2280 = vmatprep.subr.bf16.mxu0 %v1771
      %2281 = vmatpush2.bf16.msra.mxu0 %v1770
      %2282 = vmatprep.subr.bf16.mxu0 %v1767
      %2283 = vmatpush2.bf16.msra.mxu0 %v1766
      %2284 = vmatprep.subr.bf16.mxu0 %v1763
      %2285 = vmatpush2.bf16.msra.mxu0 %v1762
      %2286 = vmatprep.subr.bf16.mxu0 %v1759
      %2287 = vmatpush2.bf16.msra.mxu0 %v1758
      %2288 = vmatprep.mubr.bf16.mxu0 %v771
      %2289 = vmatmul.mubr.bf16.gmra.mxu0 %v770
      %v2290 = vpop.f32.mrf.mxu0
      %v2291 = vadd.f32 %v2218, %v2290
      %v2292 = vpop.f32.mrf.mxu0
      %v2293 = vadd.f32 %v2220, %v2292
      %v2294 = vpop.f32.mrf.mxu0
      %v2295 = vadd.f32 %v2222, %v2294
      %v2296 = vpop.f32.mrf.mxu0
      %v2297 = vadd.f32 %v2224, %v2296
      %2298 = vmatprep.mubr.bf16.mxu0 %v779
      %2299 = vmatmul.mubr.bf16.gmra.mxu0 %v778
      %v2300 = vpop.f32.mrf.mxu0
      %v2301 = vadd.f32 %v2228, %v2300
      %v2302 = vpop.f32.mrf.mxu0
      %v2303 = vadd.f32 %v2230, %v2302
      %v2304 = vpop.f32.mrf.mxu0
      %v2305 = vadd.f32 %v2232, %v2304
      %v2306 = vpop.f32.mrf.mxu0
      %v2307 = vadd.f32 %v2234, %v2306
      %2308 = vmatprep.mubr.bf16.mxu0 %v787
      %2309 = vmatmul.mubr.bf16.gmra.mxu0 %v786
      %v2310 = vpop.f32.mrf.mxu0
      %v2311 = vadd.f32 %v2238, %v2310
      %v2312 = vpop.f32.mrf.mxu0
      %v2313 = vadd.f32 %v2240, %v2312
      %v2314 = vpop.f32.mrf.mxu0
      %v2315 = vadd.f32 %v2242, %v2314
      %v2316 = vpop.f32.mrf.mxu0
      %v2317 = vadd.f32 %v2244, %v2316
      %2318 = vmatprep.mubr.bf16.mxu0 %v795
      %2319 = vmatmul.mubr.bf16.gmra.mxu0 %v794
      %v2320 = vpop.f32.mrf.mxu0
      %v2321 = vadd.f32 %v2248, %v2320
      %v2322 = vpop.f32.mrf.mxu0
      %v2323 = vadd.f32 %v2250, %v2322
      %v2324 = vpop.f32.mrf.mxu0
      %v2325 = vadd.f32 %v2252, %v2324
      %v2326 = vpop.f32.mrf.mxu0
      %v2327 = vadd.f32 %v2254, %v2326
      %2328 = vdwg.mxu0
      %2329 = vmatprep.subr.bf16.mxu0 %v1819
      %2330 = vmatpush1.bf16.msra.mxu0 %v1818
      %2331 = vmatprep.subr.bf16.mxu0 %v1815
      %2332 = vmatpush1.bf16.msra.mxu0 %v1814
      %2333 = vmatprep.subr.bf16.mxu0 %v1811
      %2334 = vmatpush1.bf16.msra.mxu0 %v1810
      %2335 = vmatprep.subr.bf16.mxu0 %v1807
      %2336 = vmatpush1.bf16.msra.mxu0 %v1806
      %2337 = vmatprep.subr.bf16.mxu0 %v1803
      %2338 = vmatpush1.bf16.msra.mxu0 %v1802
      %2339 = vmatprep.subr.bf16.mxu0 %v1799
      %2340 = vmatpush1.bf16.msra.mxu0 %v1798
      %2341 = vmatprep.subr.bf16.mxu0 %v1795
      %2342 = vmatpush1.bf16.msra.mxu0 %v1794
      %2343 = vmatprep.subr.bf16.mxu0 %v1791
      %2344 = vmatpush1.bf16.msra.mxu0 %v1790
      %2345 = vmatprep.subr.bf16.mxu0 %v1851
      %2346 = vmatpush2.bf16.msra.mxu0 %v1850
      %2347 = vmatprep.subr.bf16.mxu0 %v1847
      %2348 = vmatpush2.bf16.msra.mxu0 %v1846
      %2349 = vmatprep.subr.bf16.mxu0 %v1843
      %2350 = vmatpush2.bf16.msra.mxu0 %v1842
      %2351 = vmatprep.subr.bf16.mxu0 %v1839
      %2352 = vmatpush2.bf16.msra.mxu0 %v1838
      %2353 = vmatprep.subr.bf16.mxu0 %v1835
      %2354 = vmatpush2.bf16.msra.mxu0 %v1834
      %2355 = vmatprep.subr.bf16.mxu0 %v1831
      %2356 = vmatpush2.bf16.msra.mxu0 %v1830
      %2357 = vmatprep.subr.bf16.mxu0 %v1827
      %2358 = vmatpush2.bf16.msra.mxu0 %v1826
      %2359 = vmatprep.subr.bf16.mxu0 %v1823
      %2360 = vmatpush2.bf16.msra.mxu0 %v1822
      %2361 = vmatprep.mubr.bf16.mxu0 %v773
      %2362 = vmatmul.mubr.bf16.gmra.mxu0 %v772
      %v2363 = vpop.f32.mrf.mxu0
      %v2364 = vadd.f32 %v2291, %v2363
      %v2365 = vpop.f32.mrf.mxu0
      %v2366 = vadd.f32 %v2293, %v2365
      %v2367 = vpop.f32.mrf.mxu0
      %v2368 = vadd.f32 %v2295, %v2367
      %v2369 = vpop.f32.mrf.mxu0
      %v2370 = vadd.f32 %v2297, %v2369
      %2371 = vmatprep.mubr.bf16.mxu0 %v781
      %2372 = vmatmul.mubr.bf16.gmra.mxu0 %v780
      %v2373 = vpop.f32.mrf.mxu0
      %v2374 = vadd.f32 %v2301, %v2373
      %v2375 = vpop.f32.mrf.mxu0
      %v2376 = vadd.f32 %v2303, %v2375
      %v2377 = vpop.f32.mrf.mxu0
      %v2378 = vadd.f32 %v2305, %v2377
      %v2379 = vpop.f32.mrf.mxu0
      %v2380 = vadd.f32 %v2307, %v2379
      %2381 = vmatprep.mubr.bf16.mxu0 %v789
      %2382 = vmatmul.mubr.bf16.gmra.mxu0 %v788
      %v2383 = vpop.f32.mrf.mxu0
      %v2384 = vadd.f32 %v2311, %v2383
      %v2385 = vpop.f32.mrf.mxu0
      %v2386 = vadd.f32 %v2313, %v2385
      %v2387 = vpop.f32.mrf.mxu0
      %v2388 = vadd.f32 %v2315, %v2387
      %v2389 = vpop.f32.mrf.mxu0
      %v2390 = vadd.f32 %v2317, %v2389
      %2391 = vmatprep.mubr.bf16.mxu0 %v797
      %2392 = vmatmul.mubr.bf16.gmra.mxu0 %v796
      %v2393 = vpop.f32.mrf.mxu0
      %v2394 = vadd.f32 %v2321, %v2393
      %v2395 = vpop.f32.mrf.mxu0
      %v2396 = vadd.f32 %v2323, %v2395
      %v2397 = vpop.f32.mrf.mxu0
      %v2398 = vadd.f32 %v2325, %v2397
      %v2399 = vpop.f32.mrf.mxu0
      %v2400 = vadd.f32 %v2327, %v2399
      %2401 = vdwg.mxu0
      %2402 = vmatprep.subr.bf16.mxu0 %v1629
      %2403 = vmatpush1.bf16.msra.mxu0 %v1628
      %2404 = vmatprep.subr.bf16.mxu0 %v1625
      %2405 = vmatpush1.bf16.msra.mxu0 %v1624
      %2406 = vmatprep.subr.bf16.mxu0 %v1621
      %2407 = vmatpush1.bf16.msra.mxu0 %v1620
      %2408 = vmatprep.subr.bf16.mxu0 %v1617
      %2409 = vmatpush1.bf16.msra.mxu0 %v1616
      %2410 = vmatprep.subr.bf16.mxu0 %v1613
      %2411 = vmatpush1.bf16.msra.mxu0 %v1612
      %2412 = vmatprep.subr.bf16.mxu0 %v1609
      %2413 = vmatpush1.bf16.msra.mxu0 %v1608
      %2414 = vmatprep.subr.bf16.mxu0 %v1605
      %2415 = vmatpush1.bf16.msra.mxu0 %v1604
      %2416 = vmatprep.subr.bf16.mxu0 %v1601
      %2417 = vmatpush1.bf16.msra.mxu0 %v1600
      %2418 = vmatprep.subr.bf16.mxu0 %v1661
      %2419 = vmatpush2.bf16.msra.mxu0 %v1660
      %2420 = vmatprep.subr.bf16.mxu0 %v1657
      %2421 = vmatpush2.bf16.msra.mxu0 %v1656
      %2422 = vmatprep.subr.bf16.mxu0 %v1653
      %2423 = vmatpush2.bf16.msra.mxu0 %v1652
      %2424 = vmatprep.subr.bf16.mxu0 %v1649
      %2425 = vmatpush2.bf16.msra.mxu0 %v1648
      %2426 = vmatprep.subr.bf16.mxu0 %v1645
      %2427 = vmatpush2.bf16.msra.mxu0 %v1644
      %2428 = vmatprep.subr.bf16.mxu0 %v1641
      %2429 = vmatpush2.bf16.msra.mxu0 %v1640
      %2430 = vmatprep.subr.bf16.mxu0 %v1637
      %2431 = vmatpush2.bf16.msra.mxu0 %v1636
      %2432 = vmatprep.subr.bf16.mxu0 %v1633
      %2433 = vmatpush2.bf16.msra.mxu0 %v1632
      %2434 = vmatprep.mubr.bf16.mxu0 %v767
      %2435 = vmatmul.mubr.bf16.gmra.mxu0 %v766
      %v2436 = vpop.f32.mrf.mxu0
      %v2437 = vadd.f32 0.0, %v2436
      %v2438 = vpop.f32.mrf.mxu0
      %v2439 = vadd.f32 0.0, %v2438
      %v2440 = vpop.f32.mrf.mxu0
      %v2441 = vadd.f32 0.0, %v2440
      %v2442 = vpop.f32.mrf.mxu0
      %v2443 = vadd.f32 0.0, %v2442
      %2444 = vmatprep.mubr.bf16.mxu0 %v775
      %2445 = vmatmul.mubr.bf16.gmra.mxu0 %v774
      %v2446 = vpop.f32.mrf.mxu0
      %v2447 = vadd.f32 0.0, %v2446
      %v2448 = vpop.f32.mrf.mxu0
      %v2449 = vadd.f32 0.0, %v2448
      %v2450 = vpop.f32.mrf.mxu0
      %v2451 = vadd.f32 0.0, %v2450
      %v2452 = vpop.f32.mrf.mxu0
      %v2453 = vadd.f32 0.0, %v2452
      %2454 = vmatprep.mubr.bf16.mxu0 %v783
      %2455 = vmatmul.mubr.bf16.gmra.mxu0 %v782
      %v2456 = vpop.f32.mrf.mxu0
      %v2457 = vadd.f32 0.0, %v2456
      %v2458 = vpop.f32.mrf.mxu0
      %v2459 = vadd.f32 0.0, %v2458
      %v2460 = vpop.f32.mrf.mxu0
      %v2461 = vadd.f32 0.0, %v2460
      %v2462 = vpop.f32.mrf.mxu0
      %v2463 = vadd.f32 0.0, %v2462
      %2464 = vmatprep.mubr.bf16.mxu0 %v791
      %2465 = vmatmul.mubr.bf16.gmra.mxu0 %v790
      %v2466 = vpop.f32.mrf.mxu0
      %v2467 = vadd.f32 0.0, %v2466
      %v2468 = vpop.f32.mrf.mxu0
      %v2469 = vadd.f32 0.0, %v2468
      %v2470 = vpop.f32.mrf.mxu0
      %v2471 = vadd.f32 0.0, %v2470
      %v2472 = vpop.f32.mrf.mxu0
      %v2473 = vadd.f32 0.0, %v2472
      %2474 = vdwg.mxu0
      %2475 = vmatprep.subr.bf16.mxu0 %v1693
      %2476 = vmatpush1.bf16.msra.mxu0 %v1692
      %2477 = vmatprep.subr.bf16.mxu0 %v1689
      %2478 = vmatpush1.bf16.msra.mxu0 %v1688
      %2479 = vmatprep.subr.bf16.mxu0 %v1685
      %2480 = vmatpush1.bf16.msra.mxu0 %v1684
      %2481 = vmatprep.subr.bf16.mxu0 %v1681
      %2482 = vmatpush1.bf16.msra.mxu0 %v1680
      %2483 = vmatprep.subr.bf16.mxu0 %v1677
      %2484 = vmatpush1.bf16.msra.mxu0 %v1676
      %2485 = vmatprep.subr.bf16.mxu0 %v1673
      %2486 = vmatpush1.bf16.msra.mxu0 %v1672
      %2487 = vmatprep.subr.bf16.mxu0 %v1669
      %2488 = vmatpush1.bf16.msra.mxu0 %v1668
      %2489 = vmatprep.subr.bf16.mxu0 %v1665
      %2490 = vmatpush1.bf16.msra.mxu0 %v1664
      %2491 = vmatprep.subr.bf16.mxu0 %v1725
      %2492 = vmatpush2.bf16.msra.mxu0 %v1724
      %2493 = vmatprep.subr.bf16.mxu0 %v1721
      %2494 = vmatpush2.bf16.msra.mxu0 %v1720
      %2495 = vmatprep.subr.bf16.mxu0 %v1717
      %2496 = vmatpush2.bf16.msra.mxu0 %v1716
      %2497 = vmatprep.subr.bf16.mxu0 %v1713
      %2498 = vmatpush2.bf16.msra.mxu0 %v1712
      %2499 = vmatprep.subr.bf16.mxu0 %v1709
      %2500 = vmatpush2.bf16.msra.mxu0 %v1708
      %2501 = vmatprep.subr.bf16.mxu0 %v1705
      %2502 = vmatpush2.bf16.msra.mxu0 %v1704
      %2503 = vmatprep.subr.bf16.mxu0 %v1701
      %2504 = vmatpush2.bf16.msra.mxu0 %v1700
      %2505 = vmatprep.subr.bf16.mxu0 %v1697
      %2506 = vmatpush2.bf16.msra.mxu0 %v1696
      %2507 = vmatprep.mubr.bf16.mxu0 %v769
      %2508 = vmatmul.mubr.bf16.gmra.mxu0 %v768
      %v2509 = vpop.f32.mrf.mxu0
      %v2510 = vadd.f32 %v2437, %v2509
      %v2511 = vpop.f32.mrf.mxu0
      %v2512 = vadd.f32 %v2439, %v2511
      %v2513 = vpop.f32.mrf.mxu0
      %v2514 = vadd.f32 %v2441, %v2513
      %v2515 = vpop.f32.mrf.mxu0
      %v2516 = vadd.f32 %v2443, %v2515
      %2517 = vmatprep.mubr.bf16.mxu0 %v777
      %2518 = vmatmul.mubr.bf16.gmra.mxu0 %v776
      %v2519 = vpop.f32.mrf.mxu0
      %v2520 = vadd.f32 %v2447, %v2519
      %v2521 = vpop.f32.mrf.mxu0
      %v2522 = vadd.f32 %v2449, %v2521
      %v2523 = vpop.f32.mrf.mxu0
      %v2524 = vadd.f32 %v2451, %v2523
      %v2525 = vpop.f32.mrf.mxu0
      %v2526 = vadd.f32 %v2453, %v2525
      %2527 = vmatprep.mubr.bf16.mxu0 %v785
      %2528 = vmatmul.mubr.bf16.gmra.mxu0 %v784
      %v2529 = vpop.f32.mrf.mxu0
      %v2530 = vadd.f32 %v2457, %v2529
      %v2531 = vpop.f32.mrf.mxu0
      %v2532 = vadd.f32 %v2459, %v2531
      %v2533 = vpop.f32.mrf.mxu0
      %v2534 = vadd.f32 %v2461, %v2533
      %v2535 = vpop.f32.mrf.mxu0
      %v2536 = vadd.f32 %v2463, %v2535
      %2537 = vmatprep.mubr.bf16.mxu0 %v793
      %2538 = vmatmul.mubr.bf16.gmra.mxu0 %v792
      %v2539 = vpop.f32.mrf.mxu0
      %v2540 = vadd.f32 %v2467, %v2539
      %v2541 = vpop.f32.mrf.mxu0
      %v2542 = vadd.f32 %v2469, %v2541
      %v2543 = vpop.f32.mrf.mxu0
      %v2544 = vadd.f32 %v2471, %v2543
      %v2545 = vpop.f32.mrf.mxu0
      %v2546 = vadd.f32 %v2473, %v2545
      %2547 = vdwg.mxu0
      %2548 = vmatprep.subr.bf16.mxu0 %v1757
      %2549 = vmatpush1.bf16.msra.mxu0 %v1756
      %2550 = vmatprep.subr.bf16.mxu0 %v1753
      %2551 = vmatpush1.bf16.msra.mxu0 %v1752
      %2552 = vmatprep.subr.bf16.mxu0 %v1749
      %2553 = vmatpush1.bf16.msra.mxu0 %v1748
      %2554 = vmatprep.subr.bf16.mxu0 %v1745
      %2555 = vmatpush1.bf16.msra.mxu0 %v1744
      %2556 = vmatprep.subr.bf16.mxu0 %v1741
      %2557 = vmatpush1.bf16.msra.mxu0 %v1740
      %2558 = vmatprep.subr.bf16.mxu0 %v1737
      %2559 = vmatpush1.bf16.msra.mxu0 %v1736
      %2560 = vmatprep.subr.bf16.mxu0 %v1733
      %2561 = vmatpush1.bf16.msra.mxu0 %v1732
      %2562 = vmatprep.subr.bf16.mxu0 %v1729
      %2563 = vmatpush1.bf16.msra.mxu0 %v1728
      %2564 = vmatprep.subr.bf16.mxu0 %v1789
      %2565 = vmatpush2.bf16.msra.mxu0 %v1788
      %2566 = vmatprep.subr.bf16.mxu0 %v1785
      %2567 = vmatpush2.bf16.msra.mxu0 %v1784
      %2568 = vmatprep.subr.bf16.mxu0 %v1781
      %2569 = vmatpush2.bf16.msra.mxu0 %v1780
      %2570 = vmatprep.subr.bf16.mxu0 %v1777
      %2571 = vmatpush2.bf16.msra.mxu0 %v1776
      %2572 = vmatprep.subr.bf16.mxu0 %v1773
      %2573 = vmatpush2.bf16.msra.mxu0 %v1772
      %2574 = vmatprep.subr.bf16.mxu0 %v1769
      %2575 = vmatpush2.bf16.msra.mxu0 %v1768
      %2576 = vmatprep.subr.bf16.mxu0 %v1765
      %2577 = vmatpush2.bf16.msra.mxu0 %v1764
      %2578 = vmatprep.subr.bf16.mxu0 %v1761
      %2579 = vmatpush2.bf16.msra.mxu0 %v1760
      %2580 = vmatprep.mubr.bf16.mxu0 %v771
      %2581 = vmatmul.mubr.bf16.gmra.mxu0 %v770
      %v2582 = vpop.f32.mrf.mxu0
      %v2583 = vadd.f32 %v2510, %v2582
      %v2584 = vpop.f32.mrf.mxu0
      %v2585 = vadd.f32 %v2512, %v2584
      %v2586 = vpop.f32.mrf.mxu0
      %v2587 = vadd.f32 %v2514, %v2586
      %v2588 = vpop.f32.mrf.mxu0
      %v2589 = vadd.f32 %v2516, %v2588
      %2590 = vmatprep.mubr.bf16.mxu0 %v779
      %2591 = vmatmul.mubr.bf16.gmra.mxu0 %v778
      %v2592 = vpop.f32.mrf.mxu0
      %v2593 = vadd.f32 %v2520, %v2592
      %v2594 = vpop.f32.mrf.mxu0
      %v2595 = vadd.f32 %v2522, %v2594
      %v2596 = vpop.f32.mrf.mxu0
      %v2597 = vadd.f32 %v2524, %v2596
      %v2598 = vpop.f32.mrf.mxu0
      %v2599 = vadd.f32 %v2526, %v2598
      %2600 = vmatprep.mubr.bf16.mxu0 %v787
      %2601 = vmatmul.mubr.bf16.gmra.mxu0 %v786
      %v2602 = vpop.f32.mrf.mxu0
      %v2603 = vadd.f32 %v2530, %v2602
      %v2604 = vpop.f32.mrf.mxu0
      %v2605 = vadd.f32 %v2532, %v2604
      %v2606 = vpop.f32.mrf.mxu0
      %v2607 = vadd.f32 %v2534, %v2606
      %v2608 = vpop.f32.mrf.mxu0
      %v2609 = vadd.f32 %v2536, %v2608
      %2610 = vmatprep.mubr.bf16.mxu0 %v795
      %2611 = vmatmul.mubr.bf16.gmra.mxu0 %v794
      %v2612 = vpop.f32.mrf.mxu0
      %v2613 = vadd.f32 %v2540, %v2612
      %v2614 = vpop.f32.mrf.mxu0
      %v2615 = vadd.f32 %v2542, %v2614
      %v2616 = vpop.f32.mrf.mxu0
      %v2617 = vadd.f32 %v2544, %v2616
      %v2618 = vpop.f32.mrf.mxu0
      %v2619 = vadd.f32 %v2546, %v2618
      %2620 = vdwg.mxu0
      %2621 = vmatprep.subr.bf16.mxu0 %v1821
      %2622 = vmatpush1.bf16.msra.mxu0 %v1820
      %2623 = vmatprep.subr.bf16.mxu0 %v1817
      %2624 = vmatpush1.bf16.msra.mxu0 %v1816
      %2625 = vmatprep.subr.bf16.mxu0 %v1813
      %2626 = vmatpush1.bf16.msra.mxu0 %v1812
      %2627 = vmatprep.subr.bf16.mxu0 %v1809
      %2628 = vmatpush1.bf16.msra.mxu0 %v1808
      %2629 = vmatprep.subr.bf16.mxu0 %v1805
      %2630 = vmatpush1.bf16.msra.mxu0 %v1804
      %2631 = vmatprep.subr.bf16.mxu0 %v1801
      %2632 = vmatpush1.bf16.msra.mxu0 %v1800
      %2633 = vmatprep.subr.bf16.mxu0 %v1797
      %2634 = vmatpush1.bf16.msra.mxu0 %v1796
      %2635 = vmatprep.subr.bf16.mxu0 %v1793
      %2636 = vmatpush1.bf16.msra.mxu0 %v1792
      %2637 = vmatprep.subr.bf16.mxu0 %v1853
      %2638 = vmatpush2.bf16.msra.mxu0 %v1852
      %2639 = vmatprep.subr.bf16.mxu0 %v1849
      %2640 = vmatpush2.bf16.msra.mxu0 %v1848
      %2641 = vmatprep.subr.bf16.mxu0 %v1845
      %2642 = vmatpush2.bf16.msra.mxu0 %v1844
      %2643 = vmatprep.subr.bf16.mxu0 %v1841
      %2644 = vmatpush2.bf16.msra.mxu0 %v1840
      %2645 = vmatprep.subr.bf16.mxu0 %v1837
      %2646 = vmatpush2.bf16.msra.mxu0 %v1836
      %2647 = vmatprep.subr.bf16.mxu0 %v1833
      %2648 = vmatpush2.bf16.msra.mxu0 %v1832
      %2649 = vmatprep.subr.bf16.mxu0 %v1829
      %2650 = vmatpush2.bf16.msra.mxu0 %v1828
      %2651 = vmatprep.subr.bf16.mxu0 %v1825
      %2652 = vmatpush2.bf16.msra.mxu0 %v1824
      %2653 = vmatprep.mubr.bf16.mxu0 %v773
      %2654 = vmatmul.mubr.bf16.gmra.mxu0 %v772
      %v2655 = vpop.f32.mrf.mxu0
      %v2656 = vadd.f32 %v2583, %v2655
      %v2657 = vpop.f32.mrf.mxu0
      %v2658 = vadd.f32 %v2585, %v2657
      %v2659 = vpop.f32.mrf.mxu0
      %v2660 = vadd.f32 %v2587, %v2659
      %v2661 = vpop.f32.mrf.mxu0
      %v2662 = vadd.f32 %v2589, %v2661
      %2663 = vmatprep.mubr.bf16.mxu0 %v781
      %2664 = vmatmul.mubr.bf16.gmra.mxu0 %v780
      %v2665 = vpop.f32.mrf.mxu0
      %v2666 = vadd.f32 %v2593, %v2665
      %v2667 = vpop.f32.mrf.mxu0
      %v2668 = vadd.f32 %v2595, %v2667
      %v2669 = vpop.f32.mrf.mxu0
      %v2670 = vadd.f32 %v2597, %v2669
      %v2671 = vpop.f32.mrf.mxu0
      %v2672 = vadd.f32 %v2599, %v2671
      %2673 = vmatprep.mubr.bf16.mxu0 %v789
      %2674 = vmatmul.mubr.bf16.gmra.mxu0 %v788
      %v2675 = vpop.f32.mrf.mxu0
      %v2676 = vadd.f32 %v2603, %v2675
      %v2677 = vpop.f32.mrf.mxu0
      %v2678 = vadd.f32 %v2605, %v2677
      %v2679 = vpop.f32.mrf.mxu0
      %v2680 = vadd.f32 %v2607, %v2679
      %v2681 = vpop.f32.mrf.mxu0
      %v2682 = vadd.f32 %v2609, %v2681
      %2683 = vmatprep.mubr.bf16.mxu0 %v797
      %2684 = vmatmul.mubr.bf16.gmra.mxu0 %v796
      %v2685 = vpop.f32.mrf.mxu0
      %v2686 = vadd.f32 %v2613, %v2685
      %v2687 = vpop.f32.mrf.mxu0
      %v2688 = vadd.f32 %v2615, %v2687
      %v2689 = vpop.f32.mrf.mxu0
      %v2690 = vadd.f32 %v2617, %v2689
      %v2691 = vpop.f32.mrf.mxu0
      %v2692 = vadd.f32 %v2619, %v2691
      %2693 = vdwg.mxu0
      %v2694 = vadd.f32 %v350, %v2364
      %v2695 = vadd.f32 %v351, %v2366
      %v2696 = vadd.f32 %v352, %v2656
      %v2697 = vadd.f32 %v353, %v2658
      %v2698 = vadd.f32 %v354, %v2368
      %v2699 = vadd.f32 %v355, %v2370
      %v2700 = vadd.f32 %v356, %v2660
      %v2701 = vadd.f32 %v357, %v2662
      %v2702 = vadd.f32 %v358, %v2374
      %v2703 = vadd.f32 %v359, %v2376
      %v2704 = vadd.f32 %v360, %v2666
      %v2705 = vadd.f32 %v361, %v2668
      %v2706 = vadd.f32 %v362, %v2378
      %v2707 = vadd.f32 %v363, %v2380
      %v2708 = vadd.f32 %v364, %v2670
      %v2709 = vadd.f32 %v365, %v2672
      %v2710 = vadd.f32 %v366, %v2384
      %v2711 = vadd.f32 %v367, %v2386
      %v2712 = vadd.f32 %v368, %v2676
      %v2713 = vadd.f32 %v369, %v2678
      %v2714 = vadd.f32 %v370, %v2388
      %v2715 = vadd.f32 %v371, %v2390
      %v2716 = vadd.f32 %v372, %v2680
      %v2717 = vadd.f32 %v373, %v2682
      %v2718 = vadd.f32 %v374, %v2394
      %v2719 = vadd.f32 %v375, %v2396
      %v2720 = vadd.f32 %v376, %v2686
      %v2721 = vadd.f32 %v377, %v2688
      %v2722 = vadd.f32 %v378, %v2398
      %v2723 = vadd.f32 %v379, %v2400
      %v2724 = vadd.f32 %v380, %v2690
      %v2725 = vadd.f32 %v381, %v2692
      %v2726 = vld [vmem:[%s273 + $0x40] sm:$0xff]
      %v2727 = vld [vmem:[%s273 + $0x48] sm:$0xff]
      %v2728 = vld [vmem:[%s273 + $0x50] sm:$0xff]
      %v2729 = vld [vmem:[%s273 + $0x58] sm:$0xff]
      %v2730 = vld [vmem:[%s273 + $0x60] sm:$0xff]
      %v2731 = vld [vmem:[%s273 + $0x68] sm:$0xff]
      %v2732 = vld [vmem:[%s273 + $0x70] sm:$0xff]
      %v2733 = vld [vmem:[%s273 + $0x78] sm:$0xff]
      %v2734 = vld [vmem:[%s273 + $0x80] sm:$0xff]
      %v2735 = vld [vmem:[%s273 + $0x88] sm:$0xff]
      %v2736 = vld [vmem:[%s273 + $0x90] sm:$0xff]
      %v2737 = vld [vmem:[%s273 + $0x98] sm:$0xff]
      %v2738 = vld [vmem:[%s273 + $0xa0] sm:$0xff]
      %v2739 = vld [vmem:[%s273 + $0xa8] sm:$0xff]
      %v2740 = vld [vmem:[%s273 + $0xb0] sm:$0xff]
      %v2741 = vld [vmem:[%s273 + $0xb8] sm:$0xff]
      %v2742 = vld [vmem:[%s273 + $0xc0] sm:$0xff]
      %v2743 = vld [vmem:[%s273 + $0xc8] sm:$0xff]
      %v2744 = vld [vmem:[%s273 + $0xd0] sm:$0xff]
      %v2745 = vld [vmem:[%s273 + $0xd8] sm:$0xff]
      %v2746 = vld [vmem:[%s273 + $0xe0] sm:$0xff]
      %v2747 = vld [vmem:[%s273 + $0xe8] sm:$0xff]
      %v2748 = vld [vmem:[%s273 + $0xf0] sm:$0xff]
      %v2749 = vld [vmem:[%s273 + $0xf8] sm:$0xff]
      %v2750 = vld [vmem:[%s273 + $0x100] sm:$0xff]
      %v2751 = vld [vmem:[%s273 + $0x108] sm:$0xff]
      %v2752 = vld [vmem:[%s273 + $0x110] sm:$0xff]
      %v2753 = vld [vmem:[%s273 + $0x118] sm:$0xff]
      %v2754 = vld [vmem:[%s273 + $0x120] sm:$0xff]
      %v2755 = vld [vmem:[%s273 + $0x128] sm:$0xff]
      %v2756 = vld [vmem:[%s273 + $0x130] sm:$0xff]
      %v2757 = vld [vmem:[%s273 + $0x138] sm:$0xff]
      %s2758 = scalar_lea.vmem %s278, 2048
      %v2759 = vld [vmem:[%s2758] sm:$0xff]
      %v2760 = vld [vmem:[%s2758 + $0x8] sm:$0xff]
      %v2761 = vld [vmem:[%s2758 + $0x10] sm:$0xff]
      %v2762 = vld [vmem:[%s2758 + $0x18] sm:$0xff]
      %v2763 = vld [vmem:[%s2758 + $0x20] sm:$0xff]
      %v2764 = vld [vmem:[%s2758 + $0x28] sm:$0xff]
      %v2765 = vld [vmem:[%s2758 + $0x30] sm:$0xff]
      %v2766 = vld [vmem:[%s2758 + $0x38] sm:$0xff]
      %v2767 = vld [vmem:[%s2758 + $0x40] sm:$0xff]
      %v2768 = vld [vmem:[%s2758 + $0x48] sm:$0xff]
      %v2769 = vld [vmem:[%s2758 + $0x50] sm:$0xff]
      %v2770 = vld [vmem:[%s2758 + $0x58] sm:$0xff]
      %v2771 = vld [vmem:[%s2758 + $0x60] sm:$0xff]
      %v2772 = vld [vmem:[%s2758 + $0x68] sm:$0xff]
      %v2773 = vld [vmem:[%s2758 + $0x70] sm:$0xff]
      %v2774 = vld [vmem:[%s2758 + $0x78] sm:$0xff]
      %v2775 = vld [vmem:[%s2758 + $0x80] sm:$0xff]
      %v2776 = vld [vmem:[%s2758 + $0x88] sm:$0xff]
      %v2777 = vld [vmem:[%s2758 + $0x90] sm:$0xff]
      %v2778 = vld [vmem:[%s2758 + $0x98] sm:$0xff]
      %v2779 = vld [vmem:[%s2758 + $0xa0] sm:$0xff]
      %v2780 = vld [vmem:[%s2758 + $0xa8] sm:$0xff]
      %v2781 = vld [vmem:[%s2758 + $0xb0] sm:$0xff]
      %v2782 = vld [vmem:[%s2758 + $0xb8] sm:$0xff]
      %v2783 = vld [vmem:[%s2758 + $0xc0] sm:$0xff]
      %v2784 = vld [vmem:[%s2758 + $0xc8] sm:$0xff]
      %v2785 = vld [vmem:[%s2758 + $0xd0] sm:$0xff]
      %v2786 = vld [vmem:[%s2758 + $0xd8] sm:$0xff]
      %v2787 = vld [vmem:[%s2758 + $0xe0] sm:$0xff]
      %v2788 = vld [vmem:[%s2758 + $0xe8] sm:$0xff]
      %v2789 = vld [vmem:[%s2758 + $0xf0] sm:$0xff]
      %v2790 = vld [vmem:[%s2758 + $0xf8] sm:$0xff]
      %v2791 = vld [vmem:[%s2758 + $0x100] sm:$0xff]
      %v2792 = vld [vmem:[%s2758 + $0x108] sm:$0xff]
      %v2793 = vld [vmem:[%s2758 + $0x110] sm:$0xff]
      %v2794 = vld [vmem:[%s2758 + $0x118] sm:$0xff]
      %v2795 = vld [vmem:[%s2758 + $0x120] sm:$0xff]
      %v2796 = vld [vmem:[%s2758 + $0x128] sm:$0xff]
      %v2797 = vld [vmem:[%s2758 + $0x130] sm:$0xff]
      %v2798 = vld [vmem:[%s2758 + $0x138] sm:$0xff]
      %v2799 = vld [vmem:[%s2758 + $0x140] sm:$0xff]
      %v2800 = vld [vmem:[%s2758 + $0x148] sm:$0xff]
      %v2801 = vld [vmem:[%s2758 + $0x150] sm:$0xff]
      %v2802 = vld [vmem:[%s2758 + $0x158] sm:$0xff]
      %v2803 = vld [vmem:[%s2758 + $0x160] sm:$0xff]
      %v2804 = vld [vmem:[%s2758 + $0x168] sm:$0xff]
      %v2805 = vld [vmem:[%s2758 + $0x170] sm:$0xff]
      %v2806 = vld [vmem:[%s2758 + $0x178] sm:$0xff]
      %v2807 = vld [vmem:[%s2758 + $0x180] sm:$0xff]
      %v2808 = vld [vmem:[%s2758 + $0x188] sm:$0xff]
      %v2809 = vld [vmem:[%s2758 + $0x190] sm:$0xff]
      %v2810 = vld [vmem:[%s2758 + $0x198] sm:$0xff]
      %v2811 = vld [vmem:[%s2758 + $0x1a0] sm:$0xff]
      %v2812 = vld [vmem:[%s2758 + $0x1a8] sm:$0xff]
      %v2813 = vld [vmem:[%s2758 + $0x1b0] sm:$0xff]
      %v2814 = vld [vmem:[%s2758 + $0x1b8] sm:$0xff]
      %v2815 = vld [vmem:[%s2758 + $0x1c0] sm:$0xff]
      %v2816 = vld [vmem:[%s2758 + $0x1c8] sm:$0xff]
      %v2817 = vld [vmem:[%s2758 + $0x1d0] sm:$0xff]
      %v2818 = vld [vmem:[%s2758 + $0x1d8] sm:$0xff]
      %v2819 = vld [vmem:[%s2758 + $0x1e0] sm:$0xff]
      %v2820 = vld [vmem:[%s2758 + $0x1e8] sm:$0xff]
      %v2821 = vld [vmem:[%s2758 + $0x1f0] sm:$0xff]
      %v2822 = vld [vmem:[%s2758 + $0x1f8] sm:$0xff]
      %v2823 = vld [vmem:[%s2758 + $0x200] sm:$0xff]
      %v2824 = vld [vmem:[%s2758 + $0x208] sm:$0xff]
      %v2825 = vld [vmem:[%s2758 + $0x210] sm:$0xff]
      %v2826 = vld [vmem:[%s2758 + $0x218] sm:$0xff]
      %v2827 = vld [vmem:[%s2758 + $0x220] sm:$0xff]
      %v2828 = vld [vmem:[%s2758 + $0x228] sm:$0xff]
      %v2829 = vld [vmem:[%s2758 + $0x230] sm:$0xff]
      %v2830 = vld [vmem:[%s2758 + $0x238] sm:$0xff]
      %v2831 = vld [vmem:[%s2758 + $0x240] sm:$0xff]
      %v2832 = vld [vmem:[%s2758 + $0x248] sm:$0xff]
      %v2833 = vld [vmem:[%s2758 + $0x250] sm:$0xff]
      %v2834 = vld [vmem:[%s2758 + $0x258] sm:$0xff]
      %v2835 = vld [vmem:[%s2758 + $0x260] sm:$0xff]
      %v2836 = vld [vmem:[%s2758 + $0x268] sm:$0xff]
      %v2837 = vld [vmem:[%s2758 + $0x270] sm:$0xff]
      %v2838 = vld [vmem:[%s2758 + $0x278] sm:$0xff]
      %v2839 = vld [vmem:[%s2758 + $0x280] sm:$0xff]
      %v2840 = vld [vmem:[%s2758 + $0x288] sm:$0xff]
      %v2841 = vld [vmem:[%s2758 + $0x290] sm:$0xff]
      %v2842 = vld [vmem:[%s2758 + $0x298] sm:$0xff]
      %v2843 = vld [vmem:[%s2758 + $0x2a0] sm:$0xff]
      %v2844 = vld [vmem:[%s2758 + $0x2a8] sm:$0xff]
      %v2845 = vld [vmem:[%s2758 + $0x2b0] sm:$0xff]
      %v2846 = vld [vmem:[%s2758 + $0x2b8] sm:$0xff]
      %v2847 = vld [vmem:[%s2758 + $0x2c0] sm:$0xff]
      %v2848 = vld [vmem:[%s2758 + $0x2c8] sm:$0xff]
      %v2849 = vld [vmem:[%s2758 + $0x2d0] sm:$0xff]
      %v2850 = vld [vmem:[%s2758 + $0x2d8] sm:$0xff]
      %v2851 = vld [vmem:[%s2758 + $0x2e0] sm:$0xff]
      %v2852 = vld [vmem:[%s2758 + $0x2e8] sm:$0xff]
      %v2853 = vld [vmem:[%s2758 + $0x2f0] sm:$0xff]
      %v2854 = vld [vmem:[%s2758 + $0x2f8] sm:$0xff]
      %v2855 = vld [vmem:[%s2758 + $0x300] sm:$0xff]
      %v2856 = vld [vmem:[%s2758 + $0x308] sm:$0xff]
      %v2857 = vld [vmem:[%s2758 + $0x310] sm:$0xff]
      %v2858 = vld [vmem:[%s2758 + $0x318] sm:$0xff]
      %v2859 = vld [vmem:[%s2758 + $0x320] sm:$0xff]
      %v2860 = vld [vmem:[%s2758 + $0x328] sm:$0xff]
      %v2861 = vld [vmem:[%s2758 + $0x330] sm:$0xff]
      %v2862 = vld [vmem:[%s2758 + $0x338] sm:$0xff]
      %v2863 = vld [vmem:[%s2758 + $0x340] sm:$0xff]
      %v2864 = vld [vmem:[%s2758 + $0x348] sm:$0xff]
      %v2865 = vld [vmem:[%s2758 + $0x350] sm:$0xff]
      %v2866 = vld [vmem:[%s2758 + $0x358] sm:$0xff]
      %v2867 = vld [vmem:[%s2758 + $0x360] sm:$0xff]
      %v2868 = vld [vmem:[%s2758 + $0x368] sm:$0xff]
      %v2869 = vld [vmem:[%s2758 + $0x370] sm:$0xff]
      %v2870 = vld [vmem:[%s2758 + $0x378] sm:$0xff]
      %v2871 = vld [vmem:[%s2758 + $0x380] sm:$0xff]
      %v2872 = vld [vmem:[%s2758 + $0x388] sm:$0xff]
      %v2873 = vld [vmem:[%s2758 + $0x390] sm:$0xff]
      %v2874 = vld [vmem:[%s2758 + $0x398] sm:$0xff]
      %v2875 = vld [vmem:[%s2758 + $0x3a0] sm:$0xff]
      %v2876 = vld [vmem:[%s2758 + $0x3a8] sm:$0xff]
      %v2877 = vld [vmem:[%s2758 + $0x3b0] sm:$0xff]
      %v2878 = vld [vmem:[%s2758 + $0x3b8] sm:$0xff]
      %v2879 = vld [vmem:[%s2758 + $0x3c0] sm:$0xff]
      %v2880 = vld [vmem:[%s2758 + $0x3c8] sm:$0xff]
      %v2881 = vld [vmem:[%s2758 + $0x3d0] sm:$0xff]
      %v2882 = vld [vmem:[%s2758 + $0x3d8] sm:$0xff]
      %v2883 = vld [vmem:[%s2758 + $0x3e0] sm:$0xff]
      %v2884 = vld [vmem:[%s2758 + $0x3e8] sm:$0xff]
      %v2885 = vld [vmem:[%s2758 + $0x3f0] sm:$0xff]
      %v2886 = vld [vmem:[%s2758 + $0x3f8] sm:$0xff]
      %v2887 = vld [vmem:[%s2758 + $0x400] sm:$0xff]
      %v2888 = vld [vmem:[%s2758 + $0x408] sm:$0xff]
      %v2889 = vld [vmem:[%s2758 + $0x410] sm:$0xff]
      %v2890 = vld [vmem:[%s2758 + $0x418] sm:$0xff]
      %v2891 = vld [vmem:[%s2758 + $0x420] sm:$0xff]
      %v2892 = vld [vmem:[%s2758 + $0x428] sm:$0xff]
      %v2893 = vld [vmem:[%s2758 + $0x430] sm:$0xff]
      %v2894 = vld [vmem:[%s2758 + $0x438] sm:$0xff]
      %v2895 = vld [vmem:[%s2758 + $0x440] sm:$0xff]
      %v2896 = vld [vmem:[%s2758 + $0x448] sm:$0xff]
      %v2897 = vld [vmem:[%s2758 + $0x450] sm:$0xff]
      %v2898 = vld [vmem:[%s2758 + $0x458] sm:$0xff]
      %v2899 = vld [vmem:[%s2758 + $0x460] sm:$0xff]
      %v2900 = vld [vmem:[%s2758 + $0x468] sm:$0xff]
      %v2901 = vld [vmem:[%s2758 + $0x470] sm:$0xff]
      %v2902 = vld [vmem:[%s2758 + $0x478] sm:$0xff]
      %v2903 = vld [vmem:[%s2758 + $0x480] sm:$0xff]
      %v2904 = vld [vmem:[%s2758 + $0x488] sm:$0xff]
      %v2905 = vld [vmem:[%s2758 + $0x490] sm:$0xff]
      %v2906 = vld [vmem:[%s2758 + $0x498] sm:$0xff]
      %v2907 = vld [vmem:[%s2758 + $0x4a0] sm:$0xff]
      %v2908 = vld [vmem:[%s2758 + $0x4a8] sm:$0xff]
      %v2909 = vld [vmem:[%s2758 + $0x4b0] sm:$0xff]
      %v2910 = vld [vmem:[%s2758 + $0x4b8] sm:$0xff]
      %v2911 = vld [vmem:[%s2758 + $0x4c0] sm:$0xff]
      %v2912 = vld [vmem:[%s2758 + $0x4c8] sm:$0xff]
      %v2913 = vld [vmem:[%s2758 + $0x4d0] sm:$0xff]
      %v2914 = vld [vmem:[%s2758 + $0x4d8] sm:$0xff]
      %v2915 = vld [vmem:[%s2758 + $0x4e0] sm:$0xff]
      %v2916 = vld [vmem:[%s2758 + $0x4e8] sm:$0xff]
      %v2917 = vld [vmem:[%s2758 + $0x4f0] sm:$0xff]
      %v2918 = vld [vmem:[%s2758 + $0x4f8] sm:$0xff]
      %v2919 = vld [vmem:[%s2758 + $0x500] sm:$0xff]
      %v2920 = vld [vmem:[%s2758 + $0x508] sm:$0xff]
      %v2921 = vld [vmem:[%s2758 + $0x510] sm:$0xff]
      %v2922 = vld [vmem:[%s2758 + $0x518] sm:$0xff]
      %v2923 = vld [vmem:[%s2758 + $0x520] sm:$0xff]
      %v2924 = vld [vmem:[%s2758 + $0x528] sm:$0xff]
      %v2925 = vld [vmem:[%s2758 + $0x530] sm:$0xff]
      %v2926 = vld [vmem:[%s2758 + $0x538] sm:$0xff]
      %v2927 = vld [vmem:[%s2758 + $0x540] sm:$0xff]
      %v2928 = vld [vmem:[%s2758 + $0x548] sm:$0xff]
      %v2929 = vld [vmem:[%s2758 + $0x550] sm:$0xff]
      %v2930 = vld [vmem:[%s2758 + $0x558] sm:$0xff]
      %v2931 = vld [vmem:[%s2758 + $0x560] sm:$0xff]
      %v2932 = vld [vmem:[%s2758 + $0x568] sm:$0xff]
      %v2933 = vld [vmem:[%s2758 + $0x570] sm:$0xff]
      %v2934 = vld [vmem:[%s2758 + $0x578] sm:$0xff]
      %v2935 = vld [vmem:[%s2758 + $0x580] sm:$0xff]
      %v2936 = vld [vmem:[%s2758 + $0x588] sm:$0xff]
      %v2937 = vld [vmem:[%s2758 + $0x590] sm:$0xff]
      %v2938 = vld [vmem:[%s2758 + $0x598] sm:$0xff]
      %v2939 = vld [vmem:[%s2758 + $0x5a0] sm:$0xff]
      %v2940 = vld [vmem:[%s2758 + $0x5a8] sm:$0xff]
      %v2941 = vld [vmem:[%s2758 + $0x5b0] sm:$0xff]
      %v2942 = vld [vmem:[%s2758 + $0x5b8] sm:$0xff]
      %v2943 = vld [vmem:[%s2758 + $0x5c0] sm:$0xff]
      %v2944 = vld [vmem:[%s2758 + $0x5c8] sm:$0xff]
      %v2945 = vld [vmem:[%s2758 + $0x5d0] sm:$0xff]
      %v2946 = vld [vmem:[%s2758 + $0x5d8] sm:$0xff]
      %v2947 = vld [vmem:[%s2758 + $0x5e0] sm:$0xff]
      %v2948 = vld [vmem:[%s2758 + $0x5e8] sm:$0xff]
      %v2949 = vld [vmem:[%s2758 + $0x5f0] sm:$0xff]
      %v2950 = vld [vmem:[%s2758 + $0x5f8] sm:$0xff]
      %v2951 = vld [vmem:[%s2758 + $0x600] sm:$0xff]
      %v2952 = vld [vmem:[%s2758 + $0x608] sm:$0xff]
      %v2953 = vld [vmem:[%s2758 + $0x610] sm:$0xff]
      %v2954 = vld [vmem:[%s2758 + $0x618] sm:$0xff]
      %v2955 = vld [vmem:[%s2758 + $0x620] sm:$0xff]
      %v2956 = vld [vmem:[%s2758 + $0x628] sm:$0xff]
      %v2957 = vld [vmem:[%s2758 + $0x630] sm:$0xff]
      %v2958 = vld [vmem:[%s2758 + $0x638] sm:$0xff]
      %v2959 = vld [vmem:[%s2758 + $0x640] sm:$0xff]
      %v2960 = vld [vmem:[%s2758 + $0x648] sm:$0xff]
      %v2961 = vld [vmem:[%s2758 + $0x650] sm:$0xff]
      %v2962 = vld [vmem:[%s2758 + $0x658] sm:$0xff]
      %v2963 = vld [vmem:[%s2758 + $0x660] sm:$0xff]
      %v2964 = vld [vmem:[%s2758 + $0x668] sm:$0xff]
      %v2965 = vld [vmem:[%s2758 + $0x670] sm:$0xff]
      %v2966 = vld [vmem:[%s2758 + $0x678] sm:$0xff]
      %v2967 = vld [vmem:[%s2758 + $0x680] sm:$0xff]
      %v2968 = vld [vmem:[%s2758 + $0x688] sm:$0xff]
      %v2969 = vld [vmem:[%s2758 + $0x690] sm:$0xff]
      %v2970 = vld [vmem:[%s2758 + $0x698] sm:$0xff]
      %v2971 = vld [vmem:[%s2758 + $0x6a0] sm:$0xff]
      %v2972 = vld [vmem:[%s2758 + $0x6a8] sm:$0xff]
      %v2973 = vld [vmem:[%s2758 + $0x6b0] sm:$0xff]
      %v2974 = vld [vmem:[%s2758 + $0x6b8] sm:$0xff]
      %v2975 = vld [vmem:[%s2758 + $0x6c0] sm:$0xff]
      %v2976 = vld [vmem:[%s2758 + $0x6c8] sm:$0xff]
      %v2977 = vld [vmem:[%s2758 + $0x6d0] sm:$0xff]
      %v2978 = vld [vmem:[%s2758 + $0x6d8] sm:$0xff]
      %v2979 = vld [vmem:[%s2758 + $0x6e0] sm:$0xff]
      %v2980 = vld [vmem:[%s2758 + $0x6e8] sm:$0xff]
      %v2981 = vld [vmem:[%s2758 + $0x6f0] sm:$0xff]
      %v2982 = vld [vmem:[%s2758 + $0x6f8] sm:$0xff]
      %v2983 = vld [vmem:[%s2758 + $0x700] sm:$0xff]
      %v2984 = vld [vmem:[%s2758 + $0x708] sm:$0xff]
      %v2985 = vld [vmem:[%s2758 + $0x710] sm:$0xff]
      %v2986 = vld [vmem:[%s2758 + $0x718] sm:$0xff]
      %v2987 = vld [vmem:[%s2758 + $0x720] sm:$0xff]
      %v2988 = vld [vmem:[%s2758 + $0x728] sm:$0xff]
      %v2989 = vld [vmem:[%s2758 + $0x730] sm:$0xff]
      %v2990 = vld [vmem:[%s2758 + $0x738] sm:$0xff]
      %v2991 = vld [vmem:[%s2758 + $0x740] sm:$0xff]
      %v2992 = vld [vmem:[%s2758 + $0x748] sm:$0xff]
      %v2993 = vld [vmem:[%s2758 + $0x750] sm:$0xff]
      %v2994 = vld [vmem:[%s2758 + $0x758] sm:$0xff]
      %v2995 = vld [vmem:[%s2758 + $0x760] sm:$0xff]
      %v2996 = vld [vmem:[%s2758 + $0x768] sm:$0xff]
      %v2997 = vld [vmem:[%s2758 + $0x770] sm:$0xff]
      %v2998 = vld [vmem:[%s2758 + $0x778] sm:$0xff]
      %v2999 = vld [vmem:[%s2758 + $0x780] sm:$0xff]
      %v3000 = vld [vmem:[%s2758 + $0x788] sm:$0xff]
      %v3001 = vld [vmem:[%s2758 + $0x790] sm:$0xff]
      %v3002 = vld [vmem:[%s2758 + $0x798] sm:$0xff]
      %v3003 = vld [vmem:[%s2758 + $0x7a0] sm:$0xff]
      %v3004 = vld [vmem:[%s2758 + $0x7a8] sm:$0xff]
      %v3005 = vld [vmem:[%s2758 + $0x7b0] sm:$0xff]
      %v3006 = vld [vmem:[%s2758 + $0x7b8] sm:$0xff]
      %v3007 = vld [vmem:[%s2758 + $0x7c0] sm:$0xff]
      %v3008 = vld [vmem:[%s2758 + $0x7c8] sm:$0xff]
      %v3009 = vld [vmem:[%s2758 + $0x7d0] sm:$0xff]
      %v3010 = vld [vmem:[%s2758 + $0x7d8] sm:$0xff]
      %v3011 = vld [vmem:[%s2758 + $0x7e0] sm:$0xff]
      %v3012 = vld [vmem:[%s2758 + $0x7e8] sm:$0xff]
      %v3013 = vld [vmem:[%s2758 + $0x7f0] sm:$0xff]
      %v3014 = vld [vmem:[%s2758 + $0x7f8] sm:$0xff]
      %v3047 = vunpack.c.l.b16 %v2726
      %v3048 = vunpack.c.h.b16 %v2726
      %v3049 = vunpack.c.l.b16 %v2727
      %v3050 = vunpack.c.h.b16 %v2727
      %v3051 = vunpack.c.l.b16 %v2728
      %v3052 = vunpack.c.h.b16 %v2728
      %v3053 = vunpack.c.l.b16 %v2729
      %v3054 = vunpack.c.h.b16 %v2729
      %v3055 = vunpack.c.l.b16 %v2730
      %v3056 = vunpack.c.h.b16 %v2730
      %v3057 = vunpack.c.l.b16 %v2731
      %v3058 = vunpack.c.h.b16 %v2731
      %v3059 = vunpack.c.l.b16 %v2732
      %v3060 = vunpack.c.h.b16 %v2732
      %v3061 = vunpack.c.l.b16 %v2733
      %v3062 = vunpack.c.h.b16 %v2733
      %v3063 = vunpack.c.l.b16 %v2734
      %v3064 = vunpack.c.h.b16 %v2734
      %v3065 = vunpack.c.l.b16 %v2735
      %v3066 = vunpack.c.h.b16 %v2735
      %v3067 = vunpack.c.l.b16 %v2736
      %v3068 = vunpack.c.h.b16 %v2736
      %v3069 = vunpack.c.l.b16 %v2737
      %v3070 = vunpack.c.h.b16 %v2737
      %v3071 = vunpack.c.l.b16 %v2738
      %v3072 = vunpack.c.h.b16 %v2738
      %v3073 = vunpack.c.l.b16 %v2739
      %v3074 = vunpack.c.h.b16 %v2739
      %v3075 = vunpack.c.l.b16 %v2740
      %v3076 = vunpack.c.h.b16 %v2740
      %v3077 = vunpack.c.l.b16 %v2741
      %v3078 = vunpack.c.h.b16 %v2741
      %v3079 = vunpack.c.l.b16 %v2742
      %v3080 = vunpack.c.h.b16 %v2742
      %v3081 = vunpack.c.l.b16 %v2743
      %v3082 = vunpack.c.h.b16 %v2743
      %v3083 = vunpack.c.l.b16 %v2744
      %v3084 = vunpack.c.h.b16 %v2744
      %v3085 = vunpack.c.l.b16 %v2745
      %v3086 = vunpack.c.h.b16 %v2745
      %v3087 = vunpack.c.l.b16 %v2746
      %v3088 = vunpack.c.h.b16 %v2746
      %v3089 = vunpack.c.l.b16 %v2747
      %v3090 = vunpack.c.h.b16 %v2747
      %v3091 = vunpack.c.l.b16 %v2748
      %v3092 = vunpack.c.h.b16 %v2748
      %v3093 = vunpack.c.l.b16 %v2749
      %v3094 = vunpack.c.h.b16 %v2749
      %v3095 = vunpack.c.l.b16 %v2750
      %v3096 = vunpack.c.h.b16 %v2750
      %v3097 = vunpack.c.l.b16 %v2751
      %v3098 = vunpack.c.h.b16 %v2751
      %v3099 = vunpack.c.l.b16 %v2752
      %v3100 = vunpack.c.h.b16 %v2752
      %v3101 = vunpack.c.l.b16 %v2753
      %v3102 = vunpack.c.h.b16 %v2753
      %v3103 = vunpack.c.l.b16 %v2754
      %v3104 = vunpack.c.h.b16 %v2754
      %v3105 = vunpack.c.l.b16 %v2755
      %v3106 = vunpack.c.h.b16 %v2755
      %v3107 = vunpack.c.l.b16 %v2756
      %v3108 = vunpack.c.h.b16 %v2756
      %v3109 = vunpack.c.l.b16 %v2757
      %v3110 = vunpack.c.h.b16 %v2757
      %v3111 = vpack.c.b16 %v3055, %v3047
      %v3112 = vpack.c.b16 %v3056, %v3048
      %v3113 = vpack.c.b16 %v3057, %v3049
      %v3114 = vpack.c.b16 %v3058, %v3050
      %v3115 = vpack.c.b16 %v3059, %v3051
      %v3116 = vpack.c.b16 %v3060, %v3052
      %v3117 = vpack.c.b16 %v3061, %v3053
      %v3118 = vpack.c.b16 %v3062, %v3054
      %v3119 = vpack.c.b16 %v3071, %v3063
      %v3120 = vpack.c.b16 %v3072, %v3064
      %v3121 = vpack.c.b16 %v3073, %v3065
      %v3122 = vpack.c.b16 %v3074, %v3066
      %v3123 = vpack.c.b16 %v3075, %v3067
      %v3124 = vpack.c.b16 %v3076, %v3068
      %v3125 = vpack.c.b16 %v3077, %v3069
      %v3126 = vpack.c.b16 %v3078, %v3070
      %v3127 = vpack.c.b16 %v3087, %v3079
      %v3128 = vpack.c.b16 %v3088, %v3080
      %v3129 = vpack.c.b16 %v3089, %v3081
      %v3130 = vpack.c.b16 %v3090, %v3082
      %v3131 = vpack.c.b16 %v3091, %v3083
      %v3132 = vpack.c.b16 %v3092, %v3084
      %v3133 = vpack.c.b16 %v3093, %v3085
      %v3134 = vpack.c.b16 %v3094, %v3086
      %v3135 = vpack.c.b16 %v3103, %v3095
      %v3136 = vpack.c.b16 %v3104, %v3096
      %v3137 = vpack.c.b16 %v3105, %v3097
      %v3138 = vpack.c.b16 %v3106, %v3098
      %v3139 = vpack.c.b16 %v3107, %v3099
      %v3140 = vpack.c.b16 %v3108, %v3100
      %v3141 = vpack.c.b16 %v3109, %v3101
      %v3142 = vpack.c.b16 %v3110, %v3102
      %v3431 = vunpack.c.l.b16 %v2759
      %v3432 = vunpack.c.h.b16 %v2759
      %v3433 = vunpack.c.l.b16 %v2760
      %v3434 = vunpack.c.h.b16 %v2760
      %v3435 = vunpack.c.l.b16 %v2761
      %v3436 = vunpack.c.h.b16 %v2761
      %v3437 = vunpack.c.l.b16 %v2762
      %v3438 = vunpack.c.h.b16 %v2762
      %v3439 = vunpack.c.l.b16 %v2763
      %v3440 = vunpack.c.h.b16 %v2763
      %v3441 = vunpack.c.l.b16 %v2764
      %v3442 = vunpack.c.h.b16 %v2764
      %v3443 = vunpack.c.l.b16 %v2765
      %v3444 = vunpack.c.h.b16 %v2765
      %v3445 = vunpack.c.l.b16 %v2766
      %v3446 = vunpack.c.h.b16 %v2766
      %v3447 = vunpack.c.l.b16 %v2767
      %v3448 = vunpack.c.h.b16 %v2767
      %v3449 = vunpack.c.l.b16 %v2768
      %v3450 = vunpack.c.h.b16 %v2768
      %v3451 = vunpack.c.l.b16 %v2769
      %v3452 = vunpack.c.h.b16 %v2769
      %v3453 = vunpack.c.l.b16 %v2770
      %v3454 = vunpack.c.h.b16 %v2770
      %v3455 = vunpack.c.l.b16 %v2771
      %v3456 = vunpack.c.h.b16 %v2771
      %v3457 = vunpack.c.l.b16 %v2772
      %v3458 = vunpack.c.h.b16 %v2772
      %v3459 = vunpack.c.l.b16 %v2773
      %v3460 = vunpack.c.h.b16 %v2773
      %v3461 = vunpack.c.l.b16 %v2774
      %v3462 = vunpack.c.h.b16 %v2774
      %v3463 = vunpack.c.l.b16 %v2775
      %v3464 = vunpack.c.h.b16 %v2775
      %v3465 = vunpack.c.l.b16 %v2776
      %v3466 = vunpack.c.h.b16 %v2776
      %v3467 = vunpack.c.l.b16 %v2777
      %v3468 = vunpack.c.h.b16 %v2777
      %v3469 = vunpack.c.l.b16 %v2778
      %v3470 = vunpack.c.h.b16 %v2778
      %v3471 = vunpack.c.l.b16 %v2779
      %v3472 = vunpack.c.h.b16 %v2779
      %v3473 = vunpack.c.l.b16 %v2780
      %v3474 = vunpack.c.h.b16 %v2780
      %v3475 = vunpack.c.l.b16 %v2781
      %v3476 = vunpack.c.h.b16 %v2781
      %v3477 = vunpack.c.l.b16 %v2782
      %v3478 = vunpack.c.h.b16 %v2782
      %v3479 = vunpack.c.l.b16 %v2783
      %v3480 = vunpack.c.h.b16 %v2783
      %v3481 = vunpack.c.l.b16 %v2784
      %v3482 = vunpack.c.h.b16 %v2784
      %v3483 = vunpack.c.l.b16 %v2785
      %v3484 = vunpack.c.h.b16 %v2785
      %v3485 = vunpack.c.l.b16 %v2786
      %v3486 = vunpack.c.h.b16 %v2786
      %v3487 = vunpack.c.l.b16 %v2787
      %v3488 = vunpack.c.h.b16 %v2787
      %v3489 = vunpack.c.l.b16 %v2788
      %v3490 = vunpack.c.h.b16 %v2788
      %v3491 = vunpack.c.l.b16 %v2789
      %v3492 = vunpack.c.h.b16 %v2789
      %v3493 = vunpack.c.l.b16 %v2790
      %v3494 = vunpack.c.h.b16 %v2790
      %v3495 = vunpack.c.l.b16 %v2791
      %v3496 = vunpack.c.h.b16 %v2791
      %v3497 = vunpack.c.l.b16 %v2792
      %v3498 = vunpack.c.h.b16 %v2792
      %v3499 = vunpack.c.l.b16 %v2793
      %v3500 = vunpack.c.h.b16 %v2793
      %v3501 = vunpack.c.l.b16 %v2794
      %v3502 = vunpack.c.h.b16 %v2794
      %v3503 = vunpack.c.l.b16 %v2795
      %v3504 = vunpack.c.h.b16 %v2795
      %v3505 = vunpack.c.l.b16 %v2796
      %v3506 = vunpack.c.h.b16 %v2796
      %v3507 = vunpack.c.l.b16 %v2797
      %v3508 = vunpack.c.h.b16 %v2797
      %v3509 = vunpack.c.l.b16 %v2798
      %v3510 = vunpack.c.h.b16 %v2798
      %v3511 = vunpack.c.l.b16 %v2799
      %v3512 = vunpack.c.h.b16 %v2799
      %v3513 = vunpack.c.l.b16 %v2800
      %v3514 = vunpack.c.h.b16 %v2800
      %v3515 = vunpack.c.l.b16 %v2801
      %v3516 = vunpack.c.h.b16 %v2801
      %v3517 = vunpack.c.l.b16 %v2802
      %v3518 = vunpack.c.h.b16 %v2802
      %v3519 = vunpack.c.l.b16 %v2803
      %v3520 = vunpack.c.h.b16 %v2803
      %v3521 = vunpack.c.l.b16 %v2804
      %v3522 = vunpack.c.h.b16 %v2804
      %v3523 = vunpack.c.l.b16 %v2805
      %v3524 = vunpack.c.h.b16 %v2805
      %v3525 = vunpack.c.l.b16 %v2806
      %v3526 = vunpack.c.h.b16 %v2806
      %v3527 = vunpack.c.l.b16 %v2807
      %v3528 = vunpack.c.h.b16 %v2807
      %v3529 = vunpack.c.l.b16 %v2808
      %v3530 = vunpack.c.h.b16 %v2808
      %v3531 = vunpack.c.l.b16 %v2809
      %v3532 = vunpack.c.h.b16 %v2809
      %v3533 = vunpack.c.l.b16 %v2810
      %v3534 = vunpack.c.h.b16 %v2810
      %v3535 = vunpack.c.l.b16 %v2811
      %v3536 = vunpack.c.h.b16 %v2811
      %v3537 = vunpack.c.l.b16 %v2812
      %v3538 = vunpack.c.h.b16 %v2812
      %v3539 = vunpack.c.l.b16 %v2813
      %v3540 = vunpack.c.h.b16 %v2813
      %v3541 = vunpack.c.l.b16 %v2814
      %v3542 = vunpack.c.h.b16 %v2814
      %v3543 = vunpack.c.l.b16 %v2815
      %v3544 = vunpack.c.h.b16 %v2815
      %v3545 = vunpack.c.l.b16 %v2816
      %v3546 = vunpack.c.h.b16 %v2816
      %v3547 = vunpack.c.l.b16 %v2817
      %v3548 = vunpack.c.h.b16 %v2817
      %v3549 = vunpack.c.l.b16 %v2818
      %v3550 = vunpack.c.h.b16 %v2818
      %v3551 = vunpack.c.l.b16 %v2819
      %v3552 = vunpack.c.h.b16 %v2819
      %v3553 = vunpack.c.l.b16 %v2820
      %v3554 = vunpack.c.h.b16 %v2820
      %v3555 = vunpack.c.l.b16 %v2821
      %v3556 = vunpack.c.h.b16 %v2821
      %v3557 = vunpack.c.l.b16 %v2822
      %v3558 = vunpack.c.h.b16 %v2822
      %v3559 = vunpack.c.l.b16 %v2823
      %v3560 = vunpack.c.h.b16 %v2823
      %v3561 = vunpack.c.l.b16 %v2824
      %v3562 = vunpack.c.h.b16 %v2824
      %v3563 = vunpack.c.l.b16 %v2825
      %v3564 = vunpack.c.h.b16 %v2825
      %v3565 = vunpack.c.l.b16 %v2826
      %v3566 = vunpack.c.h.b16 %v2826
      %v3567 = vunpack.c.l.b16 %v2827
      %v3568 = vunpack.c.h.b16 %v2827
      %v3569 = vunpack.c.l.b16 %v2828
      %v3570 = vunpack.c.h.b16 %v2828
      %v3571 = vunpack.c.l.b16 %v2829
      %v3572 = vunpack.c.h.b16 %v2829
      %v3573 = vunpack.c.l.b16 %v2830
      %v3574 = vunpack.c.h.b16 %v2830
      %v3575 = vunpack.c.l.b16 %v2831
      %v3576 = vunpack.c.h.b16 %v2831
      %v3577 = vunpack.c.l.b16 %v2832
      %v3578 = vunpack.c.h.b16 %v2832
      %v3579 = vunpack.c.l.b16 %v2833
      %v3580 = vunpack.c.h.b16 %v2833
      %v3581 = vunpack.c.l.b16 %v2834
      %v3582 = vunpack.c.h.b16 %v2834
      %v3583 = vunpack.c.l.b16 %v2835
      %v3584 = vunpack.c.h.b16 %v2835
      %v3585 = vunpack.c.l.b16 %v2836
      %v3586 = vunpack.c.h.b16 %v2836
      %v3587 = vunpack.c.l.b16 %v2837
      %v3588 = vunpack.c.h.b16 %v2837
      %v3589 = vunpack.c.l.b16 %v2838
      %v3590 = vunpack.c.h.b16 %v2838
      %v3591 = vunpack.c.l.b16 %v2839
      %v3592 = vunpack.c.h.b16 %v2839
      %v3593 = vunpack.c.l.b16 %v2840
      %v3594 = vunpack.c.h.b16 %v2840
      %v3595 = vunpack.c.l.b16 %v2841
      %v3596 = vunpack.c.h.b16 %v2841
      %v3597 = vunpack.c.l.b16 %v2842
      %v3598 = vunpack.c.h.b16 %v2842
      %v3599 = vunpack.c.l.b16 %v2843
      %v3600 = vunpack.c.h.b16 %v2843
      %v3601 = vunpack.c.l.b16 %v2844
      %v3602 = vunpack.c.h.b16 %v2844
      %v3603 = vunpack.c.l.b16 %v2845
      %v3604 = vunpack.c.h.b16 %v2845
      %v3605 = vunpack.c.l.b16 %v2846
      %v3606 = vunpack.c.h.b16 %v2846
      %v3607 = vunpack.c.l.b16 %v2847
      %v3608 = vunpack.c.h.b16 %v2847
      %v3609 = vunpack.c.l.b16 %v2848
      %v3610 = vunpack.c.h.b16 %v2848
      %v3611 = vunpack.c.l.b16 %v2849
      %v3612 = vunpack.c.h.b16 %v2849
      %v3613 = vunpack.c.l.b16 %v2850
      %v3614 = vunpack.c.h.b16 %v2850
      %v3615 = vunpack.c.l.b16 %v2851
      %v3616 = vunpack.c.h.b16 %v2851
      %v3617 = vunpack.c.l.b16 %v2852
      %v3618 = vunpack.c.h.b16 %v2852
      %v3619 = vunpack.c.l.b16 %v2853
      %v3620 = vunpack.c.h.b16 %v2853
      %v3621 = vunpack.c.l.b16 %v2854
      %v3622 = vunpack.c.h.b16 %v2854
      %v3623 = vunpack.c.l.b16 %v2855
      %v3624 = vunpack.c.h.b16 %v2855
      %v3625 = vunpack.c.l.b16 %v2856
      %v3626 = vunpack.c.h.b16 %v2856
      %v3627 = vunpack.c.l.b16 %v2857
      %v3628 = vunpack.c.h.b16 %v2857
      %v3629 = vunpack.c.l.b16 %v2858
      %v3630 = vunpack.c.h.b16 %v2858
      %v3631 = vunpack.c.l.b16 %v2859
      %v3632 = vunpack.c.h.b16 %v2859
      %v3633 = vunpack.c.l.b16 %v2860
      %v3634 = vunpack.c.h.b16 %v2860
      %v3635 = vunpack.c.l.b16 %v2861
      %v3636 = vunpack.c.h.b16 %v2861
      %v3637 = vunpack.c.l.b16 %v2862
      %v3638 = vunpack.c.h.b16 %v2862
      %v3639 = vunpack.c.l.b16 %v2863
      %v3640 = vunpack.c.h.b16 %v2863
      %v3641 = vunpack.c.l.b16 %v2864
      %v3642 = vunpack.c.h.b16 %v2864
      %v3643 = vunpack.c.l.b16 %v2865
      %v3644 = vunpack.c.h.b16 %v2865
      %v3645 = vunpack.c.l.b16 %v2866
      %v3646 = vunpack.c.h.b16 %v2866
      %v3647 = vunpack.c.l.b16 %v2867
      %v3648 = vunpack.c.h.b16 %v2867
      %v3649 = vunpack.c.l.b16 %v2868
      %v3650 = vunpack.c.h.b16 %v2868
      %v3651 = vunpack.c.l.b16 %v2869
      %v3652 = vunpack.c.h.b16 %v2869
      %v3653 = vunpack.c.l.b16 %v2870
      %v3654 = vunpack.c.h.b16 %v2870
      %v3655 = vunpack.c.l.b16 %v2871
      %v3656 = vunpack.c.h.b16 %v2871
      %v3657 = vunpack.c.l.b16 %v2872
      %v3658 = vunpack.c.h.b16 %v2872
      %v3659 = vunpack.c.l.b16 %v2873
      %v3660 = vunpack.c.h.b16 %v2873
      %v3661 = vunpack.c.l.b16 %v2874
      %v3662 = vunpack.c.h.b16 %v2874
      %v3663 = vunpack.c.l.b16 %v2875
      %v3664 = vunpack.c.h.b16 %v2875
      %v3665 = vunpack.c.l.b16 %v2876
      %v3666 = vunpack.c.h.b16 %v2876
      %v3667 = vunpack.c.l.b16 %v2877
      %v3668 = vunpack.c.h.b16 %v2877
      %v3669 = vunpack.c.l.b16 %v2878
      %v3670 = vunpack.c.h.b16 %v2878
      %v3671 = vunpack.c.l.b16 %v2879
      %v3672 = vunpack.c.h.b16 %v2879
      %v3673 = vunpack.c.l.b16 %v2880
      %v3674 = vunpack.c.h.b16 %v2880
      %v3675 = vunpack.c.l.b16 %v2881
      %v3676 = vunpack.c.h.b16 %v2881
      %v3677 = vunpack.c.l.b16 %v2882
      %v3678 = vunpack.c.h.b16 %v2882
      %v3679 = vunpack.c.l.b16 %v2883
      %v3680 = vunpack.c.h.b16 %v2883
      %v3681 = vunpack.c.l.b16 %v2884
      %v3682 = vunpack.c.h.b16 %v2884
      %v3683 = vunpack.c.l.b16 %v2885
      %v3684 = vunpack.c.h.b16 %v2885
      %v3685 = vunpack.c.l.b16 %v2886
      %v3686 = vunpack.c.h.b16 %v2886
      %v3687 = vunpack.c.l.b16 %v2887
      %v3688 = vunpack.c.h.b16 %v2887
      %v3689 = vunpack.c.l.b16 %v2888
      %v3690 = vunpack.c.h.b16 %v2888
      %v3691 = vunpack.c.l.b16 %v2889
      %v3692 = vunpack.c.h.b16 %v2889
      %v3693 = vunpack.c.l.b16 %v2890
      %v3694 = vunpack.c.h.b16 %v2890
      %v3695 = vunpack.c.l.b16 %v2891
      %v3696 = vunpack.c.h.b16 %v2891
      %v3697 = vunpack.c.l.b16 %v2892
      %v3698 = vunpack.c.h.b16 %v2892
      %v3699 = vunpack.c.l.b16 %v2893
      %v3700 = vunpack.c.h.b16 %v2893
      %v3701 = vunpack.c.l.b16 %v2894
      %v3702 = vunpack.c.h.b16 %v2894
      %v3703 = vunpack.c.l.b16 %v2895
      %v3704 = vunpack.c.h.b16 %v2895
      %v3705 = vunpack.c.l.b16 %v2896
      %v3706 = vunpack.c.h.b16 %v2896
      %v3707 = vunpack.c.l.b16 %v2897
      %v3708 = vunpack.c.h.b16 %v2897
      %v3709 = vunpack.c.l.b16 %v2898
      %v3710 = vunpack.c.h.b16 %v2898
      %v3711 = vunpack.c.l.b16 %v2899
      %v3712 = vunpack.c.h.b16 %v2899
      %v3713 = vunpack.c.l.b16 %v2900
      %v3714 = vunpack.c.h.b16 %v2900
      %v3715 = vunpack.c.l.b16 %v2901
      %v3716 = vunpack.c.h.b16 %v2901
      %v3717 = vunpack.c.l.b16 %v2902
      %v3718 = vunpack.c.h.b16 %v2902
      %v3719 = vunpack.c.l.b16 %v2903
      %v3720 = vunpack.c.h.b16 %v2903
      %v3721 = vunpack.c.l.b16 %v2904
      %v3722 = vunpack.c.h.b16 %v2904
      %v3723 = vunpack.c.l.b16 %v2905
      %v3724 = vunpack.c.h.b16 %v2905
      %v3725 = vunpack.c.l.b16 %v2906
      %v3726 = vunpack.c.h.b16 %v2906
      %v3727 = vunpack.c.l.b16 %v2907
      %v3728 = vunpack.c.h.b16 %v2907
      %v3729 = vunpack.c.l.b16 %v2908
      %v3730 = vunpack.c.h.b16 %v2908
      %v3731 = vunpack.c.l.b16 %v2909
      %v3732 = vunpack.c.h.b16 %v2909
      %v3733 = vunpack.c.l.b16 %v2910
      %v3734 = vunpack.c.h.b16 %v2910
      %v3735 = vunpack.c.l.b16 %v2911
      %v3736 = vunpack.c.h.b16 %v2911
      %v3737 = vunpack.c.l.b16 %v2912
      %v3738 = vunpack.c.h.b16 %v2912
      %v3739 = vunpack.c.l.b16 %v2913
      %v3740 = vunpack.c.h.b16 %v2913
      %v3741 = vunpack.c.l.b16 %v2914
      %v3742 = vunpack.c.h.b16 %v2914
      %v3743 = vunpack.c.l.b16 %v2915
      %v3744 = vunpack.c.h.b16 %v2915
      %v3745 = vunpack.c.l.b16 %v2916
      %v3746 = vunpack.c.h.b16 %v2916
      %v3747 = vunpack.c.l.b16 %v2917
      %v3748 = vunpack.c.h.b16 %v2917
      %v3749 = vunpack.c.l.b16 %v2918
      %v3750 = vunpack.c.h.b16 %v2918
      %v3751 = vunpack.c.l.b16 %v2919
      %v3752 = vunpack.c.h.b16 %v2919
      %v3753 = vunpack.c.l.b16 %v2920
      %v3754 = vunpack.c.h.b16 %v2920
      %v3755 = vunpack.c.l.b16 %v2921
      %v3756 = vunpack.c.h.b16 %v2921
      %v3757 = vunpack.c.l.b16 %v2922
      %v3758 = vunpack.c.h.b16 %v2922
      %v3759 = vunpack.c.l.b16 %v2923
      %v3760 = vunpack.c.h.b16 %v2923
      %v3761 = vunpack.c.l.b16 %v2924
      %v3762 = vunpack.c.h.b16 %v2924
      %v3763 = vunpack.c.l.b16 %v2925
      %v3764 = vunpack.c.h.b16 %v2925
      %v3765 = vunpack.c.l.b16 %v2926
      %v3766 = vunpack.c.h.b16 %v2926
      %v3767 = vunpack.c.l.b16 %v2927
      %v3768 = vunpack.c.h.b16 %v2927
      %v3769 = vunpack.c.l.b16 %v2928
      %v3770 = vunpack.c.h.b16 %v2928
      %v3771 = vunpack.c.l.b16 %v2929
      %v3772 = vunpack.c.h.b16 %v2929
      %v3773 = vunpack.c.l.b16 %v2930
      %v3774 = vunpack.c.h.b16 %v2930
      %v3775 = vunpack.c.l.b16 %v2931
      %v3776 = vunpack.c.h.b16 %v2931
      %v3777 = vunpack.c.l.b16 %v2932
      %v3778 = vunpack.c.h.b16 %v2932
      %v3779 = vunpack.c.l.b16 %v2933
      %v3780 = vunpack.c.h.b16 %v2933
      %v3781 = vunpack.c.l.b16 %v2934
      %v3782 = vunpack.c.h.b16 %v2934
      %v3783 = vunpack.c.l.b16 %v2935
      %v3784 = vunpack.c.h.b16 %v2935
      %v3785 = vunpack.c.l.b16 %v2936
      %v3786 = vunpack.c.h.b16 %v2936
      %v3787 = vunpack.c.l.b16 %v2937
      %v3788 = vunpack.c.h.b16 %v2937
      %v3789 = vunpack.c.l.b16 %v2938
      %v3790 = vunpack.c.h.b16 %v2938
      %v3791 = vunpack.c.l.b16 %v2939
      %v3792 = vunpack.c.h.b16 %v2939
      %v3793 = vunpack.c.l.b16 %v2940
      %v3794 = vunpack.c.h.b16 %v2940
      %v3795 = vunpack.c.l.b16 %v2941
      %v3796 = vunpack.c.h.b16 %v2941
      %v3797 = vunpack.c.l.b16 %v2942
      %v3798 = vunpack.c.h.b16 %v2942
      %v3799 = vunpack.c.l.b16 %v2943
      %v3800 = vunpack.c.h.b16 %v2943
      %v3801 = vunpack.c.l.b16 %v2944
      %v3802 = vunpack.c.h.b16 %v2944
      %v3803 = vunpack.c.l.b16 %v2945
      %v3804 = vunpack.c.h.b16 %v2945
      %v3805 = vunpack.c.l.b16 %v2946
      %v3806 = vunpack.c.h.b16 %v2946
      %v3807 = vunpack.c.l.b16 %v2947
      %v3808 = vunpack.c.h.b16 %v2947
      %v3809 = vunpack.c.l.b16 %v2948
      %v3810 = vunpack.c.h.b16 %v2948
      %v3811 = vunpack.c.l.b16 %v2949
      %v3812 = vunpack.c.h.b16 %v2949
      %v3813 = vunpack.c.l.b16 %v2950
      %v3814 = vunpack.c.h.b16 %v2950
      %v3815 = vunpack.c.l.b16 %v2951
      %v3816 = vunpack.c.h.b16 %v2951
      %v3817 = vunpack.c.l.b16 %v2952
      %v3818 = vunpack.c.h.b16 %v2952
      %v3819 = vunpack.c.l.b16 %v2953
      %v3820 = vunpack.c.h.b16 %v2953
      %v3821 = vunpack.c.l.b16 %v2954
      %v3822 = vunpack.c.h.b16 %v2954
      %v3823 = vunpack.c.l.b16 %v2955
      %v3824 = vunpack.c.h.b16 %v2955
      %v3825 = vunpack.c.l.b16 %v2956
      %v3826 = vunpack.c.h.b16 %v2956
      %v3827 = vunpack.c.l.b16 %v2957
      %v3828 = vunpack.c.h.b16 %v2957
      %v3829 = vunpack.c.l.b16 %v2958
      %v3830 = vunpack.c.h.b16 %v2958
      %v3831 = vunpack.c.l.b16 %v2959
      %v3832 = vunpack.c.h.b16 %v2959
      %v3833 = vunpack.c.l.b16 %v2960
      %v3834 = vunpack.c.h.b16 %v2960
      %v3835 = vunpack.c.l.b16 %v2961
      %v3836 = vunpack.c.h.b16 %v2961
      %v3837 = vunpack.c.l.b16 %v2962
      %v3838 = vunpack.c.h.b16 %v2962
      %v3839 = vunpack.c.l.b16 %v2963
      %v3840 = vunpack.c.h.b16 %v2963
      %v3841 = vunpack.c.l.b16 %v2964
      %v3842 = vunpack.c.h.b16 %v2964
      %v3843 = vunpack.c.l.b16 %v2965
      %v3844 = vunpack.c.h.b16 %v2965
      %v3845 = vunpack.c.l.b16 %v2966
      %v3846 = vunpack.c.h.b16 %v2966
      %v3847 = vunpack.c.l.b16 %v2967
      %v3848 = vunpack.c.h.b16 %v2967
      %v3849 = vunpack.c.l.b16 %v2968
      %v3850 = vunpack.c.h.b16 %v2968
      %v3851 = vunpack.c.l.b16 %v2969
      %v3852 = vunpack.c.h.b16 %v2969
      %v3853 = vunpack.c.l.b16 %v2970
      %v3854 = vunpack.c.h.b16 %v2970
      %v3855 = vunpack.c.l.b16 %v2971
      %v3856 = vunpack.c.h.b16 %v2971
      %v3857 = vunpack.c.l.b16 %v2972
      %v3858 = vunpack.c.h.b16 %v2972
      %v3859 = vunpack.c.l.b16 %v2973
      %v3860 = vunpack.c.h.b16 %v2973
      %v3861 = vunpack.c.l.b16 %v2974
      %v3862 = vunpack.c.h.b16 %v2974
      %v3863 = vunpack.c.l.b16 %v2975
      %v3864 = vunpack.c.h.b16 %v2975
      %v3865 = vunpack.c.l.b16 %v2976
      %v3866 = vunpack.c.h.b16 %v2976
      %v3867 = vunpack.c.l.b16 %v2977
      %v3868 = vunpack.c.h.b16 %v2977
      %v3869 = vunpack.c.l.b16 %v2978
      %v3870 = vunpack.c.h.b16 %v2978
      %v3871 = vunpack.c.l.b16 %v2979
      %v3872 = vunpack.c.h.b16 %v2979
      %v3873 = vunpack.c.l.b16 %v2980
      %v3874 = vunpack.c.h.b16 %v2980
      %v3875 = vunpack.c.l.b16 %v2981
      %v3876 = vunpack.c.h.b16 %v2981
      %v3877 = vunpack.c.l.b16 %v2982
      %v3878 = vunpack.c.h.b16 %v2982
      %v3879 = vunpack.c.l.b16 %v2983
      %v3880 = vunpack.c.h.b16 %v2983
      %v3881 = vunpack.c.l.b16 %v2984
      %v3882 = vunpack.c.h.b16 %v2984
      %v3883 = vunpack.c.l.b16 %v2985
      %v3884 = vunpack.c.h.b16 %v2985
      %v3885 = vunpack.c.l.b16 %v2986
      %v3886 = vunpack.c.h.b16 %v2986
      %v3887 = vunpack.c.l.b16 %v2987
      %v3888 = vunpack.c.h.b16 %v2987
      %v3889 = vunpack.c.l.b16 %v2988
      %v3890 = vunpack.c.h.b16 %v2988
      %v3891 = vunpack.c.l.b16 %v2989
      %v3892 = vunpack.c.h.b16 %v2989
      %v3893 = vunpack.c.l.b16 %v2990
      %v3894 = vunpack.c.h.b16 %v2990
      %v3895 = vunpack.c.l.b16 %v2991
      %v3896 = vunpack.c.h.b16 %v2991
      %v3897 = vunpack.c.l.b16 %v2992
      %v3898 = vunpack.c.h.b16 %v2992
      %v3899 = vunpack.c.l.b16 %v2993
      %v3900 = vunpack.c.h.b16 %v2993
      %v3901 = vunpack.c.l.b16 %v2994
      %v3902 = vunpack.c.h.b16 %v2994
      %v3903 = vunpack.c.l.b16 %v2995
      %v3904 = vunpack.c.h.b16 %v2995
      %v3905 = vunpack.c.l.b16 %v2996
      %v3906 = vunpack.c.h.b16 %v2996
      %v3907 = vunpack.c.l.b16 %v2997
      %v3908 = vunpack.c.h.b16 %v2997
      %v3909 = vunpack.c.l.b16 %v2998
      %v3910 = vunpack.c.h.b16 %v2998
      %v3911 = vunpack.c.l.b16 %v2999
      %v3912 = vunpack.c.h.b16 %v2999
      %v3913 = vunpack.c.l.b16 %v3000
      %v3914 = vunpack.c.h.b16 %v3000
      %v3915 = vunpack.c.l.b16 %v3001
      %v3916 = vunpack.c.h.b16 %v3001
      %v3917 = vunpack.c.l.b16 %v3002
      %v3918 = vunpack.c.h.b16 %v3002
      %v3919 = vunpack.c.l.b16 %v3003
      %v3920 = vunpack.c.h.b16 %v3003
      %v3921 = vunpack.c.l.b16 %v3004
      %v3922 = vunpack.c.h.b16 %v3004
      %v3923 = vunpack.c.l.b16 %v3005
      %v3924 = vunpack.c.h.b16 %v3005
      %v3925 = vunpack.c.l.b16 %v3006
      %v3926 = vunpack.c.h.b16 %v3006
      %v3927 = vunpack.c.l.b16 %v3007
      %v3928 = vunpack.c.h.b16 %v3007
      %v3929 = vunpack.c.l.b16 %v3008
      %v3930 = vunpack.c.h.b16 %v3008
      %v3931 = vunpack.c.l.b16 %v3009
      %v3932 = vunpack.c.h.b16 %v3009
      %v3933 = vunpack.c.l.b16 %v3010
      %v3934 = vunpack.c.h.b16 %v3010
      %v3935 = vunpack.c.l.b16 %v3011
      %v3936 = vunpack.c.h.b16 %v3011
      %v3937 = vunpack.c.l.b16 %v3012
      %v3938 = vunpack.c.h.b16 %v3012
      %v3939 = vunpack.c.l.b16 %v3013
      %v3940 = vunpack.c.h.b16 %v3013
      %v3941 = vunpack.c.l.b16 %v3014
      %v3942 = vunpack.c.h.b16 %v3014
      %v3943 = vpack.c.b16 %v3435, %v3431
      %v3944 = vpack.c.b16 %v3436, %v3432
      %v3945 = vpack.c.b16 %v3437, %v3433
      %v3946 = vpack.c.b16 %v3438, %v3434
      %v3947 = vpack.c.b16 %v3443, %v3439
      %v3948 = vpack.c.b16 %v3444, %v3440
      %v3949 = vpack.c.b16 %v3445, %v3441
      %v3950 = vpack.c.b16 %v3446, %v3442
      %v3951 = vpack.c.b16 %v3451, %v3447
      %v3952 = vpack.c.b16 %v3452, %v3448
      %v3953 = vpack.c.b16 %v3453, %v3449
      %v3954 = vpack.c.b16 %v3454, %v3450
      %v3955 = vpack.c.b16 %v3459, %v3455
      %v3956 = vpack.c.b16 %v3460, %v3456
      %v3957 = vpack.c.b16 %v3461, %v3457
      %v3958 = vpack.c.b16 %v3462, %v3458
      %v3959 = vpack.c.b16 %v3467, %v3463
      %v3960 = vpack.c.b16 %v3468, %v3464
      %v3961 = vpack.c.b16 %v3469, %v3465
      %v3962 = vpack.c.b16 %v3470, %v3466
      %v3963 = vpack.c.b16 %v3475, %v3471
      %v3964 = vpack.c.b16 %v3476, %v3472
      %v3965 = vpack.c.b16 %v3477, %v3473
      %v3966 = vpack.c.b16 %v3478, %v3474
      %v3967 = vpack.c.b16 %v3483, %v3479
      %v3968 = vpack.c.b16 %v3484, %v3480
      %v3969 = vpack.c.b16 %v3485, %v3481
      %v3970 = vpack.c.b16 %v3486, %v3482
      %v3971 = vpack.c.b16 %v3491, %v3487
      %v3972 = vpack.c.b16 %v3492, %v3488
      %v3973 = vpack.c.b16 %v3493, %v3489
      %v3974 = vpack.c.b16 %v3494, %v3490
      %v3975 = vpack.c.b16 %v3499, %v3495
      %v3976 = vpack.c.b16 %v3500, %v3496
      %v3977 = vpack.c.b16 %v3501, %v3497
      %v3978 = vpack.c.b16 %v3502, %v3498
      %v3979 = vpack.c.b16 %v3507, %v3503
      %v3980 = vpack.c.b16 %v3508, %v3504
      %v3981 = vpack.c.b16 %v3509, %v3505
      %v3982 = vpack.c.b16 %v3510, %v3506
      %v3983 = vpack.c.b16 %v3515, %v3511
      %v3984 = vpack.c.b16 %v3516, %v3512
      %v3985 = vpack.c.b16 %v3517, %v3513
      %v3986 = vpack.c.b16 %v3518, %v3514
      %v3987 = vpack.c.b16 %v3523, %v3519
      %v3988 = vpack.c.b16 %v3524, %v3520
      %v3989 = vpack.c.b16 %v3525, %v3521
      %v3990 = vpack.c.b16 %v3526, %v3522
      %v3991 = vpack.c.b16 %v3531, %v3527
      %v3992 = vpack.c.b16 %v3532, %v3528
      %v3993 = vpack.c.b16 %v3533, %v3529
      %v3994 = vpack.c.b16 %v3534, %v3530
      %v3995 = vpack.c.b16 %v3539, %v3535
      %v3996 = vpack.c.b16 %v3540, %v3536
      %v3997 = vpack.c.b16 %v3541, %v3537
      %v3998 = vpack.c.b16 %v3542, %v3538
      %v3999 = vpack.c.b16 %v3547, %v3543
      %v4000 = vpack.c.b16 %v3548, %v3544
      %v4001 = vpack.c.b16 %v3549, %v3545
      %v4002 = vpack.c.b16 %v3550, %v3546
      %v4003 = vpack.c.b16 %v3555, %v3551
      %v4004 = vpack.c.b16 %v3556, %v3552
      %v4005 = vpack.c.b16 %v3557, %v3553
      %v4006 = vpack.c.b16 %v3558, %v3554
      %v4007 = vpack.c.b16 %v3563, %v3559
      %v4008 = vpack.c.b16 %v3564, %v3560
      %v4009 = vpack.c.b16 %v3565, %v3561
      %v4010 = vpack.c.b16 %v3566, %v3562
      %v4011 = vpack.c.b16 %v3571, %v3567
      %v4012 = vpack.c.b16 %v3572, %v3568
      %v4013 = vpack.c.b16 %v3573, %v3569
      %v4014 = vpack.c.b16 %v3574, %v3570
      %v4015 = vpack.c.b16 %v3579, %v3575
      %v4016 = vpack.c.b16 %v3580, %v3576
      %v4017 = vpack.c.b16 %v3581, %v3577
      %v4018 = vpack.c.b16 %v3582, %v3578
      %v4019 = vpack.c.b16 %v3587, %v3583
      %v4020 = vpack.c.b16 %v3588, %v3584
      %v4021 = vpack.c.b16 %v3589, %v3585
      %v4022 = vpack.c.b16 %v3590, %v3586
      %v4023 = vpack.c.b16 %v3595, %v3591
      %v4024 = vpack.c.b16 %v3596, %v3592
      %v4025 = vpack.c.b16 %v3597, %v3593
      %v4026 = vpack.c.b16 %v3598, %v3594
      %v4027 = vpack.c.b16 %v3603, %v3599
      %v4028 = vpack.c.b16 %v3604, %v3600
      %v4029 = vpack.c.b16 %v3605, %v3601
      %v4030 = vpack.c.b16 %v3606, %v3602
      %v4031 = vpack.c.b16 %v3611, %v3607
      %v4032 = vpack.c.b16 %v3612, %v3608
      %v4033 = vpack.c.b16 %v3613, %v3609
      %v4034 = vpack.c.b16 %v3614, %v3610
      %v4035 = vpack.c.b16 %v3619, %v3615
      %v4036 = vpack.c.b16 %v3620, %v3616
      %v4037 = vpack.c.b16 %v3621, %v3617
      %v4038 = vpack.c.b16 %v3622, %v3618
      %v4039 = vpack.c.b16 %v3627, %v3623
      %v4040 = vpack.c.b16 %v3628, %v3624
      %v4041 = vpack.c.b16 %v3629, %v3625
      %v4042 = vpack.c.b16 %v3630, %v3626
      %v4043 = vpack.c.b16 %v3635, %v3631
      %v4044 = vpack.c.b16 %v3636, %v3632
      %v4045 = vpack.c.b16 %v3637, %v3633
      %v4046 = vpack.c.b16 %v3638, %v3634
      %v4047 = vpack.c.b16 %v3643, %v3639
      %v4048 = vpack.c.b16 %v3644, %v3640
      %v4049 = vpack.c.b16 %v3645, %v3641
      %v4050 = vpack.c.b16 %v3646, %v3642
      %v4051 = vpack.c.b16 %v3651, %v3647
      %v4052 = vpack.c.b16 %v3652, %v3648
      %v4053 = vpack.c.b16 %v3653, %v3649
      %v4054 = vpack.c.b16 %v3654, %v3650
      %v4055 = vpack.c.b16 %v3659, %v3655
      %v4056 = vpack.c.b16 %v3660, %v3656
      %v4057 = vpack.c.b16 %v3661, %v3657
      %v4058 = vpack.c.b16 %v3662, %v3658
      %v4059 = vpack.c.b16 %v3667, %v3663
      %v4060 = vpack.c.b16 %v3668, %v3664
      %v4061 = vpack.c.b16 %v3669, %v3665
      %v4062 = vpack.c.b16 %v3670, %v3666
      %v4063 = vpack.c.b16 %v3675, %v3671
      %v4064 = vpack.c.b16 %v3676, %v3672
      %v4065 = vpack.c.b16 %v3677, %v3673
      %v4066 = vpack.c.b16 %v3678, %v3674
      %v4067 = vpack.c.b16 %v3683, %v3679
      %v4068 = vpack.c.b16 %v3684, %v3680
      %v4069 = vpack.c.b16 %v3685, %v3681
      %v4070 = vpack.c.b16 %v3686, %v3682
      %v4071 = vpack.c.b16 %v3691, %v3687
      %v4072 = vpack.c.b16 %v3692, %v3688
      %v4073 = vpack.c.b16 %v3693, %v3689
      %v4074 = vpack.c.b16 %v3694, %v3690
      %v4075 = vpack.c.b16 %v3699, %v3695
      %v4076 = vpack.c.b16 %v3700, %v3696
      %v4077 = vpack.c.b16 %v3701, %v3697
      %v4078 = vpack.c.b16 %v3702, %v3698
      %v4079 = vpack.c.b16 %v3707, %v3703
      %v4080 = vpack.c.b16 %v3708, %v3704
      %v4081 = vpack.c.b16 %v3709, %v3705
      %v4082 = vpack.c.b16 %v3710, %v3706
      %v4083 = vpack.c.b16 %v3715, %v3711
      %v4084 = vpack.c.b16 %v3716, %v3712
      %v4085 = vpack.c.b16 %v3717, %v3713
      %v4086 = vpack.c.b16 %v3718, %v3714
      %v4087 = vpack.c.b16 %v3723, %v3719
      %v4088 = vpack.c.b16 %v3724, %v3720
      %v4089 = vpack.c.b16 %v3725, %v3721
      %v4090 = vpack.c.b16 %v3726, %v3722
      %v4091 = vpack.c.b16 %v3731, %v3727
      %v4092 = vpack.c.b16 %v3732, %v3728
      %v4093 = vpack.c.b16 %v3733, %v3729
      %v4094 = vpack.c.b16 %v3734, %v3730
      %v4095 = vpack.c.b16 %v3739, %v3735
      %v4096 = vpack.c.b16 %v3740, %v3736
      %v4097 = vpack.c.b16 %v3741, %v3737
      %v4098 = vpack.c.b16 %v3742, %v3738
      %v4099 = vpack.c.b16 %v3747, %v3743
      %v4100 = vpack.c.b16 %v3748, %v3744
      %v4101 = vpack.c.b16 %v3749, %v3745
      %v4102 = vpack.c.b16 %v3750, %v3746
      %v4103 = vpack.c.b16 %v3755, %v3751
      %v4104 = vpack.c.b16 %v3756, %v3752
      %v4105 = vpack.c.b16 %v3757, %v3753
      %v4106 = vpack.c.b16 %v3758, %v3754
      %v4107 = vpack.c.b16 %v3763, %v3759
      %v4108 = vpack.c.b16 %v3764, %v3760
      %v4109 = vpack.c.b16 %v3765, %v3761
      %v4110 = vpack.c.b16 %v3766, %v3762
      %v4111 = vpack.c.b16 %v3771, %v3767
      %v4112 = vpack.c.b16 %v3772, %v3768
      %v4113 = vpack.c.b16 %v3773, %v3769
      %v4114 = vpack.c.b16 %v3774, %v3770
      %v4115 = vpack.c.b16 %v3779, %v3775
      %v4116 = vpack.c.b16 %v3780, %v3776
      %v4117 = vpack.c.b16 %v3781, %v3777
      %v4118 = vpack.c.b16 %v3782, %v3778
      %v4119 = vpack.c.b16 %v3787, %v3783
      %v4120 = vpack.c.b16 %v3788, %v3784
      %v4121 = vpack.c.b16 %v3789, %v3785
      %v4122 = vpack.c.b16 %v3790, %v3786
      %v4123 = vpack.c.b16 %v3795, %v3791
      %v4124 = vpack.c.b16 %v3796, %v3792
      %v4125 = vpack.c.b16 %v3797, %v3793
      %v4126 = vpack.c.b16 %v3798, %v3794
      %v4127 = vpack.c.b16 %v3803, %v3799
      %v4128 = vpack.c.b16 %v3804, %v3800
      %v4129 = vpack.c.b16 %v3805, %v3801
      %v4130 = vpack.c.b16 %v3806, %v3802
      %v4131 = vpack.c.b16 %v3811, %v3807
      %v4132 = vpack.c.b16 %v3812, %v3808
      %v4133 = vpack.c.b16 %v3813, %v3809
      %v4134 = vpack.c.b16 %v3814, %v3810
      %v4135 = vpack.c.b16 %v3819, %v3815
      %v4136 = vpack.c.b16 %v3820, %v3816
      %v4137 = vpack.c.b16 %v3821, %v3817
      %v4138 = vpack.c.b16 %v3822, %v3818
      %v4139 = vpack.c.b16 %v3827, %v3823
      %v4140 = vpack.c.b16 %v3828, %v3824
      %v4141 = vpack.c.b16 %v3829, %v3825
      %v4142 = vpack.c.b16 %v3830, %v3826
      %v4143 = vpack.c.b16 %v3835, %v3831
      %v4144 = vpack.c.b16 %v3836, %v3832
      %v4145 = vpack.c.b16 %v3837, %v3833
      %v4146 = vpack.c.b16 %v3838, %v3834
      %v4147 = vpack.c.b16 %v3843, %v3839
      %v4148 = vpack.c.b16 %v3844, %v3840
      %v4149 = vpack.c.b16 %v3845, %v3841
      %v4150 = vpack.c.b16 %v3846, %v3842
      %v4151 = vpack.c.b16 %v3851, %v3847
      %v4152 = vpack.c.b16 %v3852, %v3848
      %v4153 = vpack.c.b16 %v3853, %v3849
      %v4154 = vpack.c.b16 %v3854, %v3850
      %v4155 = vpack.c.b16 %v3859, %v3855
      %v4156 = vpack.c.b16 %v3860, %v3856
      %v4157 = vpack.c.b16 %v3861, %v3857
      %v4158 = vpack.c.b16 %v3862, %v3858
      %v4159 = vpack.c.b16 %v3867, %v3863
      %v4160 = vpack.c.b16 %v3868, %v3864
      %v4161 = vpack.c.b16 %v3869, %v3865
      %v4162 = vpack.c.b16 %v3870, %v3866
      %v4163 = vpack.c.b16 %v3875, %v3871
      %v4164 = vpack.c.b16 %v3876, %v3872
      %v4165 = vpack.c.b16 %v3877, %v3873
      %v4166 = vpack.c.b16 %v3878, %v3874
      %v4167 = vpack.c.b16 %v3883, %v3879
      %v4168 = vpack.c.b16 %v3884, %v3880
      %v4169 = vpack.c.b16 %v3885, %v3881
      %v4170 = vpack.c.b16 %v3886, %v3882
      %v4171 = vpack.c.b16 %v3891, %v3887
      %v4172 = vpack.c.b16 %v3892, %v3888
      %v4173 = vpack.c.b16 %v3893, %v3889
      %v4174 = vpack.c.b16 %v3894, %v3890
      %v4175 = vpack.c.b16 %v3899, %v3895
      %v4176 = vpack.c.b16 %v3900, %v3896
      %v4177 = vpack.c.b16 %v3901, %v3897
      %v4178 = vpack.c.b16 %v3902, %v3898
      %v4179 = vpack.c.b16 %v3907, %v3903
      %v4180 = vpack.c.b16 %v3908, %v3904
      %v4181 = vpack.c.b16 %v3909, %v3905
      %v4182 = vpack.c.b16 %v3910, %v3906
      %v4183 = vpack.c.b16 %v3915, %v3911
      %v4184 = vpack.c.b16 %v3916, %v3912
      %v4185 = vpack.c.b16 %v3917, %v3913
      %v4186 = vpack.c.b16 %v3918, %v3914
      %v4187 = vpack.c.b16 %v3923, %v3919
      %v4188 = vpack.c.b16 %v3924, %v3920
      %v4189 = vpack.c.b16 %v3925, %v3921
      %v4190 = vpack.c.b16 %v3926, %v3922
      %v4191 = vpack.c.b16 %v3931, %v3927
      %v4192 = vpack.c.b16 %v3932, %v3928
      %v4193 = vpack.c.b16 %v3933, %v3929
      %v4194 = vpack.c.b16 %v3934, %v3930
      %v4195 = vpack.c.b16 %v3939, %v3935
      %v4196 = vpack.c.b16 %v3940, %v3936
      %v4197 = vpack.c.b16 %v3941, %v3937
      %v4198 = vpack.c.b16 %v3942, %v3938
      %4455 = vmatprep.subr.bf16.mxu0 %v3972
      %4456 = vmatpush1.bf16.msra.mxu0 %v3971
      %4457 = vmatprep.subr.bf16.mxu0 %v3968
      %4458 = vmatpush1.bf16.msra.mxu0 %v3967
      %4459 = vmatprep.subr.bf16.mxu0 %v3964
      %4460 = vmatpush1.bf16.msra.mxu0 %v3963
      %4461 = vmatprep.subr.bf16.mxu0 %v3960
      %4462 = vmatpush1.bf16.msra.mxu0 %v3959
      %4463 = vmatprep.subr.bf16.mxu0 %v3956
      %4464 = vmatpush1.bf16.msra.mxu0 %v3955
      %4465 = vmatprep.subr.bf16.mxu0 %v3952
      %4466 = vmatpush1.bf16.msra.mxu0 %v3951
      %4467 = vmatprep.subr.bf16.mxu0 %v3948
      %4468 = vmatpush1.bf16.msra.mxu0 %v3947
      %4469 = vmatprep.subr.bf16.mxu0 %v3944
      %4470 = vmatpush1.bf16.msra.mxu0 %v3943
      %4471 = vmatprep.subr.bf16.mxu0 %v4004
      %4472 = vmatpush2.bf16.msra.mxu0 %v4003
      %4473 = vmatprep.subr.bf16.mxu0 %v4000
      %4474 = vmatpush2.bf16.msra.mxu0 %v3999
      %4475 = vmatprep.subr.bf16.mxu0 %v3996
      %4476 = vmatpush2.bf16.msra.mxu0 %v3995
      %4477 = vmatprep.subr.bf16.mxu0 %v3992
      %4478 = vmatpush2.bf16.msra.mxu0 %v3991
      %4479 = vmatprep.subr.bf16.mxu0 %v3988
      %4480 = vmatpush2.bf16.msra.mxu0 %v3987
      %4481 = vmatprep.subr.bf16.mxu0 %v3984
      %4482 = vmatpush2.bf16.msra.mxu0 %v3983
      %4483 = vmatprep.subr.bf16.mxu0 %v3980
      %4484 = vmatpush2.bf16.msra.mxu0 %v3979
      %4485 = vmatprep.subr.bf16.mxu0 %v3976
      %4486 = vmatpush2.bf16.msra.mxu0 %v3975
      %4487 = vmatprep.mubr.bf16.mxu0 %v3112
      %4488 = vmatmul.mubr.bf16.gmra.mxu0 %v3111
      %v4489 = vpop.f32.mrf.mxu0
      %v4490 = vadd.f32 0.0, %v4489
      %v4491 = vpop.f32.mrf.mxu0
      %v4492 = vadd.f32 0.0, %v4491
      %v4493 = vpop.f32.mrf.mxu0
      %v4494 = vadd.f32 0.0, %v4493
      %v4495 = vpop.f32.mrf.mxu0
      %v4496 = vadd.f32 0.0, %v4495
      %4497 = vmatprep.mubr.bf16.mxu0 %v3120
      %4498 = vmatmul.mubr.bf16.gmra.mxu0 %v3119
      %v4499 = vpop.f32.mrf.mxu0
      %v4500 = vadd.f32 0.0, %v4499
      %v4501 = vpop.f32.mrf.mxu0
      %v4502 = vadd.f32 0.0, %v4501
      %v4503 = vpop.f32.mrf.mxu0
      %v4504 = vadd.f32 0.0, %v4503
      %v4505 = vpop.f32.mrf.mxu0
      %v4506 = vadd.f32 0.0, %v4505
      %4507 = vmatprep.mubr.bf16.mxu0 %v3128
      %4508 = vmatmul.mubr.bf16.gmra.mxu0 %v3127
      %v4509 = vpop.f32.mrf.mxu0
      %v4510 = vadd.f32 0.0, %v4509
      %v4511 = vpop.f32.mrf.mxu0
      %v4512 = vadd.f32 0.0, %v4511
      %v4513 = vpop.f32.mrf.mxu0
      %v4514 = vadd.f32 0.0, %v4513
      %v4515 = vpop.f32.mrf.mxu0
      %v4516 = vadd.f32 0.0, %v4515
      %4517 = vmatprep.mubr.bf16.mxu0 %v3136
      %4518 = vmatmul.mubr.bf16.gmra.mxu0 %v3135
      %v4519 = vpop.f32.mrf.mxu0
      %v4520 = vadd.f32 0.0, %v4519
      %v4521 = vpop.f32.mrf.mxu0
      %v4522 = vadd.f32 0.0, %v4521
      %v4523 = vpop.f32.mrf.mxu0
      %v4524 = vadd.f32 0.0, %v4523
      %v4525 = vpop.f32.mrf.mxu0
      %v4526 = vadd.f32 0.0, %v4525
      %4527 = vdwg.mxu0
      %4528 = vmatprep.subr.bf16.mxu0 %v4036
      %4529 = vmatpush1.bf16.msra.mxu0 %v4035
      %4530 = vmatprep.subr.bf16.mxu0 %v4032
      %4531 = vmatpush1.bf16.msra.mxu0 %v4031
      %4532 = vmatprep.subr.bf16.mxu0 %v4028
      %4533 = vmatpush1.bf16.msra.mxu0 %v4027
      %4534 = vmatprep.subr.bf16.mxu0 %v4024
      %4535 = vmatpush1.bf16.msra.mxu0 %v4023
      %4536 = vmatprep.subr.bf16.mxu0 %v4020
      %4537 = vmatpush1.bf16.msra.mxu0 %v4019
      %4538 = vmatprep.subr.bf16.mxu0 %v4016
      %4539 = vmatpush1.bf16.msra.mxu0 %v4015
      %4540 = vmatprep.subr.bf16.mxu0 %v4012
      %4541 = vmatpush1.bf16.msra.mxu0 %v4011
      %4542 = vmatprep.subr.bf16.mxu0 %v4008
      %4543 = vmatpush1.bf16.msra.mxu0 %v4007
      %4544 = vmatprep.subr.bf16.mxu0 %v4068
      %4545 = vmatpush2.bf16.msra.mxu0 %v4067
      %4546 = vmatprep.subr.bf16.mxu0 %v4064
      %4547 = vmatpush2.bf16.msra.mxu0 %v4063
      %4548 = vmatprep.subr.bf16.mxu0 %v4060
      %4549 = vmatpush2.bf16.msra.mxu0 %v4059
      %4550 = vmatprep.subr.bf16.mxu0 %v4056
      %4551 = vmatpush2.bf16.msra.mxu0 %v4055
      %4552 = vmatprep.subr.bf16.mxu0 %v4052
      %4553 = vmatpush2.bf16.msra.mxu0 %v4051
      %4554 = vmatprep.subr.bf16.mxu0 %v4048
      %4555 = vmatpush2.bf16.msra.mxu0 %v4047
      %4556 = vmatprep.subr.bf16.mxu0 %v4044
      %4557 = vmatpush2.bf16.msra.mxu0 %v4043
      %4558 = vmatprep.subr.bf16.mxu0 %v4040
      %4559 = vmatpush2.bf16.msra.mxu0 %v4039
      %4560 = vmatprep.mubr.bf16.mxu0 %v3114
      %4561 = vmatmul.mubr.bf16.gmra.mxu0 %v3113
      %v4562 = vpop.f32.mrf.mxu0
      %v4563 = vadd.f32 %v4490, %v4562
      %v4564 = vpop.f32.mrf.mxu0
      %v4565 = vadd.f32 %v4492, %v4564
      %v4566 = vpop.f32.mrf.mxu0
      %v4567 = vadd.f32 %v4494, %v4566
      %v4568 = vpop.f32.mrf.mxu0
      %v4569 = vadd.f32 %v4496, %v4568
      %4570 = vmatprep.mubr.bf16.mxu0 %v3122
      %4571 = vmatmul.mubr.bf16.gmra.mxu0 %v3121
      %v4572 = vpop.f32.mrf.mxu0
      %v4573 = vadd.f32 %v4500, %v4572
      %v4574 = vpop.f32.mrf.mxu0
      %v4575 = vadd.f32 %v4502, %v4574
      %v4576 = vpop.f32.mrf.mxu0
      %v4577 = vadd.f32 %v4504, %v4576
      %v4578 = vpop.f32.mrf.mxu0
      %v4579 = vadd.f32 %v4506, %v4578
      %4580 = vmatprep.mubr.bf16.mxu0 %v3130
      %4581 = vmatmul.mubr.bf16.gmra.mxu0 %v3129
      %v4582 = vpop.f32.mrf.mxu0
      %v4583 = vadd.f32 %v4510, %v4582
      %v4584 = vpop.f32.mrf.mxu0
      %v4585 = vadd.f32 %v4512, %v4584
      %v4586 = vpop.f32.mrf.mxu0
      %v4587 = vadd.f32 %v4514, %v4586
      %v4588 = vpop.f32.mrf.mxu0
      %v4589 = vadd.f32 %v4516, %v4588
      %4590 = vmatprep.mubr.bf16.mxu0 %v3138
      %4591 = vmatmul.mubr.bf16.gmra.mxu0 %v3137
      %v4592 = vpop.f32.mrf.mxu0
      %v4593 = vadd.f32 %v4520, %v4592
      %v4594 = vpop.f32.mrf.mxu0
      %v4595 = vadd.f32 %v4522, %v4594
      %v4596 = vpop.f32.mrf.mxu0
      %v4597 = vadd.f32 %v4524, %v4596
      %v4598 = vpop.f32.mrf.mxu0
      %v4599 = vadd.f32 %v4526, %v4598
      %4600 = vdwg.mxu0
      %4601 = vmatprep.subr.bf16.mxu0 %v4100
      %4602 = vmatpush1.bf16.msra.mxu0 %v4099
      %4603 = vmatprep.subr.bf16.mxu0 %v4096
      %4604 = vmatpush1.bf16.msra.mxu0 %v4095
      %4605 = vmatprep.subr.bf16.mxu0 %v4092
      %4606 = vmatpush1.bf16.msra.mxu0 %v4091
      %4607 = vmatprep.subr.bf16.mxu0 %v4088
      %4608 = vmatpush1.bf16.msra.mxu0 %v4087
      %4609 = vmatprep.subr.bf16.mxu0 %v4084
      %4610 = vmatpush1.bf16.msra.mxu0 %v4083
      %4611 = vmatprep.subr.bf16.mxu0 %v4080
      %4612 = vmatpush1.bf16.msra.mxu0 %v4079
      %4613 = vmatprep.subr.bf16.mxu0 %v4076
      %4614 = vmatpush1.bf16.msra.mxu0 %v4075
      %4615 = vmatprep.subr.bf16.mxu0 %v4072
      %4616 = vmatpush1.bf16.msra.mxu0 %v4071
      %4617 = vmatprep.subr.bf16.mxu0 %v4132
      %4618 = vmatpush2.bf16.msra.mxu0 %v4131
      %4619 = vmatprep.subr.bf16.mxu0 %v4128
      %4620 = vmatpush2.bf16.msra.mxu0 %v4127
      %4621 = vmatprep.subr.bf16.mxu0 %v4124
      %4622 = vmatpush2.bf16.msra.mxu0 %v4123
      %4623 = vmatprep.subr.bf16.mxu0 %v4120
      %4624 = vmatpush2.bf16.msra.mxu0 %v4119
      %4625 = vmatprep.subr.bf16.mxu0 %v4116
      %4626 = vmatpush2.bf16.msra.mxu0 %v4115
      %4627 = vmatprep.subr.bf16.mxu0 %v4112
      %4628 = vmatpush2.bf16.msra.mxu0 %v4111
      %4629 = vmatprep.subr.bf16.mxu0 %v4108
      %4630 = vmatpush2.bf16.msra.mxu0 %v4107
      %4631 = vmatprep.subr.bf16.mxu0 %v4104
      %4632 = vmatpush2.bf16.msra.mxu0 %v4103
      %4633 = vmatprep.mubr.bf16.mxu0 %v3116
      %4634 = vmatmul.mubr.bf16.gmra.mxu0 %v3115
      %v4635 = vpop.f32.mrf.mxu0
      %v4636 = vadd.f32 %v4563, %v4635
      %v4637 = vpop.f32.mrf.mxu0
      %v4638 = vadd.f32 %v4565, %v4637
      %v4639 = vpop.f32.mrf.mxu0
      %v4640 = vadd.f32 %v4567, %v4639
      %v4641 = vpop.f32.mrf.mxu0
      %v4642 = vadd.f32 %v4569, %v4641
      %4643 = vmatprep.mubr.bf16.mxu0 %v3124
      %4644 = vmatmul.mubr.bf16.gmra.mxu0 %v3123
      %v4645 = vpop.f32.mrf.mxu0
      %v4646 = vadd.f32 %v4573, %v4645
      %v4647 = vpop.f32.mrf.mxu0
      %v4648 = vadd.f32 %v4575, %v4647
      %v4649 = vpop.f32.mrf.mxu0
      %v4650 = vadd.f32 %v4577, %v4649
      %v4651 = vpop.f32.mrf.mxu0
      %v4652 = vadd.f32 %v4579, %v4651
      %4653 = vmatprep.mubr.bf16.mxu0 %v3132
      %4654 = vmatmul.mubr.bf16.gmra.mxu0 %v3131
      %v4655 = vpop.f32.mrf.mxu0
      %v4656 = vadd.f32 %v4583, %v4655
      %v4657 = vpop.f32.mrf.mxu0
      %v4658 = vadd.f32 %v4585, %v4657
      %v4659 = vpop.f32.mrf.mxu0
      %v4660 = vadd.f32 %v4587, %v4659
      %v4661 = vpop.f32.mrf.mxu0
      %v4662 = vadd.f32 %v4589, %v4661
      %4663 = vmatprep.mubr.bf16.mxu0 %v3140
      %4664 = vmatmul.mubr.bf16.gmra.mxu0 %v3139
      %v4665 = vpop.f32.mrf.mxu0
      %v4666 = vadd.f32 %v4593, %v4665
      %v4667 = vpop.f32.mrf.mxu0
      %v4668 = vadd.f32 %v4595, %v4667
      %v4669 = vpop.f32.mrf.mxu0
      %v4670 = vadd.f32 %v4597, %v4669
      %v4671 = vpop.f32.mrf.mxu0
      %v4672 = vadd.f32 %v4599, %v4671
      %4673 = vdwg.mxu0
      %4674 = vmatprep.subr.bf16.mxu0 %v4164
      %4675 = vmatpush1.bf16.msra.mxu0 %v4163
      %4676 = vmatprep.subr.bf16.mxu0 %v4160
      %4677 = vmatpush1.bf16.msra.mxu0 %v4159
      %4678 = vmatprep.subr.bf16.mxu0 %v4156
      %4679 = vmatpush1.bf16.msra.mxu0 %v4155
      %4680 = vmatprep.subr.bf16.mxu0 %v4152
      %4681 = vmatpush1.bf16.msra.mxu0 %v4151
      %4682 = vmatprep.subr.bf16.mxu0 %v4148
      %4683 = vmatpush1.bf16.msra.mxu0 %v4147
      %4684 = vmatprep.subr.bf16.mxu0 %v4144
      %4685 = vmatpush1.bf16.msra.mxu0 %v4143
      %4686 = vmatprep.subr.bf16.mxu0 %v4140
      %4687 = vmatpush1.bf16.msra.mxu0 %v4139
      %4688 = vmatprep.subr.bf16.mxu0 %v4136
      %4689 = vmatpush1.bf16.msra.mxu0 %v4135
      %4690 = vmatprep.subr.bf16.mxu0 %v4196
      %4691 = vmatpush2.bf16.msra.mxu0 %v4195
      %4692 = vmatprep.subr.bf16.mxu0 %v4192
      %4693 = vmatpush2.bf16.msra.mxu0 %v4191
      %4694 = vmatprep.subr.bf16.mxu0 %v4188
      %4695 = vmatpush2.bf16.msra.mxu0 %v4187
      %4696 = vmatprep.subr.bf16.mxu0 %v4184
      %4697 = vmatpush2.bf16.msra.mxu0 %v4183
      %4698 = vmatprep.subr.bf16.mxu0 %v4180
      %4699 = vmatpush2.bf16.msra.mxu0 %v4179
      %4700 = vmatprep.subr.bf16.mxu0 %v4176
      %4701 = vmatpush2.bf16.msra.mxu0 %v4175
      %4702 = vmatprep.subr.bf16.mxu0 %v4172
      %4703 = vmatpush2.bf16.msra.mxu0 %v4171
      %4704 = vmatprep.subr.bf16.mxu0 %v4168
      %4705 = vmatpush2.bf16.msra.mxu0 %v4167
      %4706 = vmatprep.mubr.bf16.mxu0 %v3118
      %4707 = vmatmul.mubr.bf16.gmra.mxu0 %v3117
      %v4708 = vpop.f32.mrf.mxu0
      %v4709 = vadd.f32 %v4636, %v4708
      %v4710 = vpop.f32.mrf.mxu0
      %v4711 = vadd.f32 %v4638, %v4710
      %v4712 = vpop.f32.mrf.mxu0
      %v4713 = vadd.f32 %v4640, %v4712
      %v4714 = vpop.f32.mrf.mxu0
      %v4715 = vadd.f32 %v4642, %v4714
      %4716 = vmatprep.mubr.bf16.mxu0 %v3126
      %4717 = vmatmul.mubr.bf16.gmra.mxu0 %v3125
      %v4718 = vpop.f32.mrf.mxu0
      %v4719 = vadd.f32 %v4646, %v4718
      %v4720 = vpop.f32.mrf.mxu0
      %v4721 = vadd.f32 %v4648, %v4720
      %v4722 = vpop.f32.mrf.mxu0
      %v4723 = vadd.f32 %v4650, %v4722
      %v4724 = vpop.f32.mrf.mxu0
      %v4725 = vadd.f32 %v4652, %v4724
      %4726 = vmatprep.mubr.bf16.mxu0 %v3134
      %4727 = vmatmul.mubr.bf16.gmra.mxu0 %v3133
      %v4728 = vpop.f32.mrf.mxu0
      %v4729 = vadd.f32 %v4656, %v4728
      %v4730 = vpop.f32.mrf.mxu0
      %v4731 = vadd.f32 %v4658, %v4730
      %v4732 = vpop.f32.mrf.mxu0
      %v4733 = vadd.f32 %v4660, %v4732
      %v4734 = vpop.f32.mrf.mxu0
      %v4735 = vadd.f32 %v4662, %v4734
      %4736 = vmatprep.mubr.bf16.mxu0 %v3142
      %4737 = vmatmul.mubr.bf16.gmra.mxu0 %v3141
      %v4738 = vpop.f32.mrf.mxu0
      %v4739 = vadd.f32 %v4666, %v4738
      %v4740 = vpop.f32.mrf.mxu0
      %v4741 = vadd.f32 %v4668, %v4740
      %v4742 = vpop.f32.mrf.mxu0
      %v4743 = vadd.f32 %v4670, %v4742
      %v4744 = vpop.f32.mrf.mxu0
      %v4745 = vadd.f32 %v4672, %v4744
      %4746 = vdwg.mxu0
      %4747 = vmatprep.subr.bf16.mxu0 %v3974
      %4748 = vmatpush1.bf16.msra.mxu0 %v3973
      %4749 = vmatprep.subr.bf16.mxu0 %v3970
      %4750 = vmatpush1.bf16.msra.mxu0 %v3969
      %4751 = vmatprep.subr.bf16.mxu0 %v3966
      %4752 = vmatpush1.bf16.msra.mxu0 %v3965
      %4753 = vmatprep.subr.bf16.mxu0 %v3962
      %4754 = vmatpush1.bf16.msra.mxu0 %v3961
      %4755 = vmatprep.subr.bf16.mxu0 %v3958
      %4756 = vmatpush1.bf16.msra.mxu0 %v3957
      %4757 = vmatprep.subr.bf16.mxu0 %v3954
      %4758 = vmatpush1.bf16.msra.mxu0 %v3953
      %4759 = vmatprep.subr.bf16.mxu0 %v3950
      %4760 = vmatpush1.bf16.msra.mxu0 %v3949
      %4761 = vmatprep.subr.bf16.mxu0 %v3946
      %4762 = vmatpush1.bf16.msra.mxu0 %v3945
      %4763 = vmatprep.subr.bf16.mxu0 %v4006
      %4764 = vmatpush2.bf16.msra.mxu0 %v4005
      %4765 = vmatprep.subr.bf16.mxu0 %v4002
      %4766 = vmatpush2.bf16.msra.mxu0 %v4001
      %4767 = vmatprep.subr.bf16.mxu0 %v3998
      %4768 = vmatpush2.bf16.msra.mxu0 %v3997
      %4769 = vmatprep.subr.bf16.mxu0 %v3994
      %4770 = vmatpush2.bf16.msra.mxu0 %v3993
      %4771 = vmatprep.subr.bf16.mxu0 %v3990
      %4772 = vmatpush2.bf16.msra.mxu0 %v3989
      %4773 = vmatprep.subr.bf16.mxu0 %v3986
      %4774 = vmatpush2.bf16.msra.mxu0 %v3985
      %4775 = vmatprep.subr.bf16.mxu0 %v3982
      %4776 = vmatpush2.bf16.msra.mxu0 %v3981
      %4777 = vmatprep.subr.bf16.mxu0 %v3978
      %4778 = vmatpush2.bf16.msra.mxu0 %v3977
      %4779 = vmatprep.mubr.bf16.mxu0 %v3112
      %4780 = vmatmul.mubr.bf16.gmra.mxu0 %v3111
      %v4781 = vpop.f32.mrf.mxu0
      %v4782 = vadd.f32 0.0, %v4781
      %v4783 = vpop.f32.mrf.mxu0
      %v4784 = vadd.f32 0.0, %v4783
      %v4785 = vpop.f32.mrf.mxu0
      %v4786 = vadd.f32 0.0, %v4785
      %v4787 = vpop.f32.mrf.mxu0
      %v4788 = vadd.f32 0.0, %v4787
      %4789 = vmatprep.mubr.bf16.mxu0 %v3120
      %4790 = vmatmul.mubr.bf16.gmra.mxu0 %v3119
      %v4791 = vpop.f32.mrf.mxu0
      %v4792 = vadd.f32 0.0, %v4791
      %v4793 = vpop.f32.mrf.mxu0
      %v4794 = vadd.f32 0.0, %v4793
      %v4795 = vpop.f32.mrf.mxu0
      %v4796 = vadd.f32 0.0, %v4795
      %v4797 = vpop.f32.mrf.mxu0
      %v4798 = vadd.f32 0.0, %v4797
      %4799 = vmatprep.mubr.bf16.mxu0 %v3128
      %4800 = vmatmul.mubr.bf16.gmra.mxu0 %v3127
      %v4801 = vpop.f32.mrf.mxu0
      %v4802 = vadd.f32 0.0, %v4801
      %v4803 = vpop.f32.mrf.mxu0
      %v4804 = vadd.f32 0.0, %v4803
      %v4805 = vpop.f32.mrf.mxu0
      %v4806 = vadd.f32 0.0, %v4805
      %v4807 = vpop.f32.mrf.mxu0
      %v4808 = vadd.f32 0.0, %v4807
      %4809 = vmatprep.mubr.bf16.mxu0 %v3136
      %4810 = vmatmul.mubr.bf16.gmra.mxu0 %v3135
      %v4811 = vpop.f32.mrf.mxu0
      %v4812 = vadd.f32 0.0, %v4811
      %v4813 = vpop.f32.mrf.mxu0
      %v4814 = vadd.f32 0.0, %v4813
      %v4815 = vpop.f32.mrf.mxu0
      %v4816 = vadd.f32 0.0, %v4815
      %v4817 = vpop.f32.mrf.mxu0
      %v4818 = vadd.f32 0.0, %v4817
      %4819 = vdwg.mxu0
      %4820 = vmatprep.subr.bf16.mxu0 %v4038
      %4821 = vmatpush1.bf16.msra.mxu0 %v4037
      %4822 = vmatprep.subr.bf16.mxu0 %v4034
      %4823 = vmatpush1.bf16.msra.mxu0 %v4033
      %4824 = vmatprep.subr.bf16.mxu0 %v4030
      %4825 = vmatpush1.bf16.msra.mxu0 %v4029
      %4826 = vmatprep.subr.bf16.mxu0 %v4026
      %4827 = vmatpush1.bf16.msra.mxu0 %v4025
      %4828 = vmatprep.subr.bf16.mxu0 %v4022
      %4829 = vmatpush1.bf16.msra.mxu0 %v4021
      %4830 = vmatprep.subr.bf16.mxu0 %v4018
      %4831 = vmatpush1.bf16.msra.mxu0 %v4017
      %4832 = vmatprep.subr.bf16.mxu0 %v4014
      %4833 = vmatpush1.bf16.msra.mxu0 %v4013
      %4834 = vmatprep.subr.bf16.mxu0 %v4010
      %4835 = vmatpush1.bf16.msra.mxu0 %v4009
      %4836 = vmatprep.subr.bf16.mxu0 %v4070
      %4837 = vmatpush2.bf16.msra.mxu0 %v4069
      %4838 = vmatprep.subr.bf16.mxu0 %v4066
      %4839 = vmatpush2.bf16.msra.mxu0 %v4065
      %4840 = vmatprep.subr.bf16.mxu0 %v4062
      %4841 = vmatpush2.bf16.msra.mxu0 %v4061
      %4842 = vmatprep.subr.bf16.mxu0 %v4058
      %4843 = vmatpush2.bf16.msra.mxu0 %v4057
      %4844 = vmatprep.subr.bf16.mxu0 %v4054
      %4845 = vmatpush2.bf16.msra.mxu0 %v4053
      %4846 = vmatprep.subr.bf16.mxu0 %v4050
      %4847 = vmatpush2.bf16.msra.mxu0 %v4049
      %4848 = vmatprep.subr.bf16.mxu0 %v4046
      %4849 = vmatpush2.bf16.msra.mxu0 %v4045
      %4850 = vmatprep.subr.bf16.mxu0 %v4042
      %4851 = vmatpush2.bf16.msra.mxu0 %v4041
      %4852 = vmatprep.mubr.bf16.mxu0 %v3114
      %4853 = vmatmul.mubr.bf16.gmra.mxu0 %v3113
      %v4854 = vpop.f32.mrf.mxu0
      %v4855 = vadd.f32 %v4782, %v4854
      %v4856 = vpop.f32.mrf.mxu0
      %v4857 = vadd.f32 %v4784, %v4856
      %v4858 = vpop.f32.mrf.mxu0
      %v4859 = vadd.f32 %v4786, %v4858
      %v4860 = vpop.f32.mrf.mxu0
      %v4861 = vadd.f32 %v4788, %v4860
      %4862 = vmatprep.mubr.bf16.mxu0 %v3122
      %4863 = vmatmul.mubr.bf16.gmra.mxu0 %v3121
      %v4864 = vpop.f32.mrf.mxu0
      %v4865 = vadd.f32 %v4792, %v4864
      %v4866 = vpop.f32.mrf.mxu0
      %v4867 = vadd.f32 %v4794, %v4866
      %v4868 = vpop.f32.mrf.mxu0
      %v4869 = vadd.f32 %v4796, %v4868
      %v4870 = vpop.f32.mrf.mxu0
      %v4871 = vadd.f32 %v4798, %v4870
      %4872 = vmatprep.mubr.bf16.mxu0 %v3130
      %4873 = vmatmul.mubr.bf16.gmra.mxu0 %v3129
      %v4874 = vpop.f32.mrf.mxu0
      %v4875 = vadd.f32 %v4802, %v4874
      %v4876 = vpop.f32.mrf.mxu0
      %v4877 = vadd.f32 %v4804, %v4876
      %v4878 = vpop.f32.mrf.mxu0
      %v4879 = vadd.f32 %v4806, %v4878
      %v4880 = vpop.f32.mrf.mxu0
      %v4881 = vadd.f32 %v4808, %v4880
      %4882 = vmatprep.mubr.bf16.mxu0 %v3138
      %4883 = vmatmul.mubr.bf16.gmra.mxu0 %v3137
      %v4884 = vpop.f32.mrf.mxu0
      %v4885 = vadd.f32 %v4812, %v4884
      %v4886 = vpop.f32.mrf.mxu0
      %v4887 = vadd.f32 %v4814, %v4886
      %v4888 = vpop.f32.mrf.mxu0
      %v4889 = vadd.f32 %v4816, %v4888
      %v4890 = vpop.f32.mrf.mxu0
      %v4891 = vadd.f32 %v4818, %v4890
      %4892 = vdwg.mxu0
      %4893 = vmatprep.subr.bf16.mxu0 %v4102
      %4894 = vmatpush1.bf16.msra.mxu0 %v4101
      %4895 = vmatprep.subr.bf16.mxu0 %v4098
      %4896 = vmatpush1.bf16.msra.mxu0 %v4097
      %4897 = vmatprep.subr.bf16.mxu0 %v4094
      %4898 = vmatpush1.bf16.msra.mxu0 %v4093
      %4899 = vmatprep.subr.bf16.mxu0 %v4090
      %4900 = vmatpush1.bf16.msra.mxu0 %v4089
      %4901 = vmatprep.subr.bf16.mxu0 %v4086
      %4902 = vmatpush1.bf16.msra.mxu0 %v4085
      %4903 = vmatprep.subr.bf16.mxu0 %v4082
      %4904 = vmatpush1.bf16.msra.mxu0 %v4081
      %4905 = vmatprep.subr.bf16.mxu0 %v4078
      %4906 = vmatpush1.bf16.msra.mxu0 %v4077
      %4907 = vmatprep.subr.bf16.mxu0 %v4074
      %4908 = vmatpush1.bf16.msra.mxu0 %v4073
      %4909 = vmatprep.subr.bf16.mxu0 %v4134
      %4910 = vmatpush2.bf16.msra.mxu0 %v4133
      %4911 = vmatprep.subr.bf16.mxu0 %v4130
      %4912 = vmatpush2.bf16.msra.mxu0 %v4129
      %4913 = vmatprep.subr.bf16.mxu0 %v4126
      %4914 = vmatpush2.bf16.msra.mxu0 %v4125
      %4915 = vmatprep.subr.bf16.mxu0 %v4122
      %4916 = vmatpush2.bf16.msra.mxu0 %v4121
      %4917 = vmatprep.subr.bf16.mxu0 %v4118
      %4918 = vmatpush2.bf16.msra.mxu0 %v4117
      %4919 = vmatprep.subr.bf16.mxu0 %v4114
      %4920 = vmatpush2.bf16.msra.mxu0 %v4113
      %4921 = vmatprep.subr.bf16.mxu0 %v4110
      %4922 = vmatpush2.bf16.msra.mxu0 %v4109
      %4923 = vmatprep.subr.bf16.mxu0 %v4106
      %4924 = vmatpush2.bf16.msra.mxu0 %v4105
      %4925 = vmatprep.mubr.bf16.mxu0 %v3116
      %4926 = vmatmul.mubr.bf16.gmra.mxu0 %v3115
      %v4927 = vpop.f32.mrf.mxu0
      %v4928 = vadd.f32 %v4855, %v4927
      %v4929 = vpop.f32.mrf.mxu0
      %v4930 = vadd.f32 %v4857, %v4929
      %v4931 = vpop.f32.mrf.mxu0
      %v4932 = vadd.f32 %v4859, %v4931
      %v4933 = vpop.f32.mrf.mxu0
      %v4934 = vadd.f32 %v4861, %v4933
      %4935 = vmatprep.mubr.bf16.mxu0 %v3124
      %4936 = vmatmul.mubr.bf16.gmra.mxu0 %v3123
      %v4937 = vpop.f32.mrf.mxu0
      %v4938 = vadd.f32 %v4865, %v4937
      %v4939 = vpop.f32.mrf.mxu0
      %v4940 = vadd.f32 %v4867, %v4939
      %v4941 = vpop.f32.mrf.mxu0
      %v4942 = vadd.f32 %v4869, %v4941
      %v4943 = vpop.f32.mrf.mxu0
      %v4944 = vadd.f32 %v4871, %v4943
      %4945 = vmatprep.mubr.bf16.mxu0 %v3132
      %4946 = vmatmul.mubr.bf16.gmra.mxu0 %v3131
      %v4947 = vpop.f32.mrf.mxu0
      %v4948 = vadd.f32 %v4875, %v4947
      %v4949 = vpop.f32.mrf.mxu0
      %v4950 = vadd.f32 %v4877, %v4949
      %v4951 = vpop.f32.mrf.mxu0
      %v4952 = vadd.f32 %v4879, %v4951
      %v4953 = vpop.f32.mrf.mxu0
      %v4954 = vadd.f32 %v4881, %v4953
      %4955 = vmatprep.mubr.bf16.mxu0 %v3140
      %4956 = vmatmul.mubr.bf16.gmra.mxu0 %v3139
      %v4957 = vpop.f32.mrf.mxu0
      %v4958 = vadd.f32 %v4885, %v4957
      %v4959 = vpop.f32.mrf.mxu0
      %v4960 = vadd.f32 %v4887, %v4959
      %v4961 = vpop.f32.mrf.mxu0
      %v4962 = vadd.f32 %v4889, %v4961
      %v4963 = vpop.f32.mrf.mxu0
      %v4964 = vadd.f32 %v4891, %v4963
      %4965 = vdwg.mxu0
      %4966 = vmatprep.subr.bf16.mxu0 %v4166
      %4967 = vmatpush1.bf16.msra.mxu0 %v4165
      %4968 = vmatprep.subr.bf16.mxu0 %v4162
      %4969 = vmatpush1.bf16.msra.mxu0 %v4161
      %4970 = vmatprep.subr.bf16.mxu0 %v4158
      %4971 = vmatpush1.bf16.msra.mxu0 %v4157
      %4972 = vmatprep.subr.bf16.mxu0 %v4154
      %4973 = vmatpush1.bf16.msra.mxu0 %v4153
      %4974 = vmatprep.subr.bf16.mxu0 %v4150
      %4975 = vmatpush1.bf16.msra.mxu0 %v4149
      %4976 = vmatprep.subr.bf16.mxu0 %v4146
      %4977 = vmatpush1.bf16.msra.mxu0 %v4145
      %4978 = vmatprep.subr.bf16.mxu0 %v4142
      %4979 = vmatpush1.bf16.msra.mxu0 %v4141
      %4980 = vmatprep.subr.bf16.mxu0 %v4138
      %4981 = vmatpush1.bf16.msra.mxu0 %v4137
      %4982 = vmatprep.subr.bf16.mxu0 %v4198
      %4983 = vmatpush2.bf16.msra.mxu0 %v4197
      %4984 = vmatprep.subr.bf16.mxu0 %v4194
      %4985 = vmatpush2.bf16.msra.mxu0 %v4193
      %4986 = vmatprep.subr.bf16.mxu0 %v4190
      %4987 = vmatpush2.bf16.msra.mxu0 %v4189
      %4988 = vmatprep.subr.bf16.mxu0 %v4186
      %4989 = vmatpush2.bf16.msra.mxu0 %v4185
      %4990 = vmatprep.subr.bf16.mxu0 %v4182
      %4991 = vmatpush2.bf16.msra.mxu0 %v4181
      %4992 = vmatprep.subr.bf16.mxu0 %v4178
      %4993 = vmatpush2.bf16.msra.mxu0 %v4177
      %4994 = vmatprep.subr.bf16.mxu0 %v4174
      %4995 = vmatpush2.bf16.msra.mxu0 %v4173
      %4996 = vmatprep.subr.bf16.mxu0 %v4170
      %4997 = vmatpush2.bf16.msra.mxu0 %v4169
      %4998 = vmatprep.mubr.bf16.mxu0 %v3118
      %4999 = vmatmul.mubr.bf16.gmra.mxu0 %v3117
      %v5000 = vpop.f32.mrf.mxu0
      %v5001 = vadd.f32 %v4928, %v5000
      %v5002 = vpop.f32.mrf.mxu0
      %v5003 = vadd.f32 %v4930, %v5002
      %v5004 = vpop.f32.mrf.mxu0
      %v5005 = vadd.f32 %v4932, %v5004
      %v5006 = vpop.f32.mrf.mxu0
      %v5007 = vadd.f32 %v4934, %v5006
      %5008 = vmatprep.mubr.bf16.mxu0 %v3126
      %5009 = vmatmul.mubr.bf16.gmra.mxu0 %v3125
      %v5010 = vpop.f32.mrf.mxu0
      %v5011 = vadd.f32 %v4938, %v5010
      %v5012 = vpop.f32.mrf.mxu0
      %v5013 = vadd.f32 %v4940, %v5012
      %v5014 = vpop.f32.mrf.mxu0
      %v5015 = vadd.f32 %v4942, %v5014
      %v5016 = vpop.f32.mrf.mxu0
      %v5017 = vadd.f32 %v4944, %v5016
      %5018 = vmatprep.mubr.bf16.mxu0 %v3134
      %5019 = vmatmul.mubr.bf16.gmra.mxu0 %v3133
      %v5020 = vpop.f32.mrf.mxu0
      %v5021 = vadd.f32 %v4948, %v5020
      %v5022 = vpop.f32.mrf.mxu0
      %v5023 = vadd.f32 %v4950, %v5022
      %v5024 = vpop.f32.mrf.mxu0
      %v5025 = vadd.f32 %v4952, %v5024
      %v5026 = vpop.f32.mrf.mxu0
      %v5027 = vadd.f32 %v4954, %v5026
      %5028 = vmatprep.mubr.bf16.mxu0 %v3142
      %5029 = vmatmul.mubr.bf16.gmra.mxu0 %v3141
      %v5030 = vpop.f32.mrf.mxu0
      %v5031 = vadd.f32 %v4958, %v5030
      %v5032 = vpop.f32.mrf.mxu0
      %v5033 = vadd.f32 %v4960, %v5032
      %v5034 = vpop.f32.mrf.mxu0
      %v5035 = vadd.f32 %v4962, %v5034
      %v5036 = vpop.f32.mrf.mxu0
      %v5037 = vadd.f32 %v4964, %v5036
      %5038 = vdwg.mxu0
      %v5039 = vadd.f32 %v2694, %v4709
      %v5040 = vadd.f32 %v2695, %v4711
      %v5041 = vadd.f32 %v2696, %v5001
      %v5042 = vadd.f32 %v2697, %v5003
      %v5043 = vadd.f32 %v2698, %v4713
      %v5044 = vadd.f32 %v2699, %v4715
      %v5045 = vadd.f32 %v2700, %v5005
      %v5046 = vadd.f32 %v2701, %v5007
      %v5047 = vadd.f32 %v2702, %v4719
      %v5048 = vadd.f32 %v2703, %v4721
      %v5049 = vadd.f32 %v2704, %v5011
      %v5050 = vadd.f32 %v2705, %v5013
      %v5051 = vadd.f32 %v2706, %v4723
      %v5052 = vadd.f32 %v2707, %v4725
      %v5053 = vadd.f32 %v2708, %v5015
      %v5054 = vadd.f32 %v2709, %v5017
      %v5055 = vadd.f32 %v2710, %v4729
      %v5056 = vadd.f32 %v2711, %v4731
      %v5057 = vadd.f32 %v2712, %v5021
      %v5058 = vadd.f32 %v2713, %v5023
      %v5059 = vadd.f32 %v2714, %v4733
      %v5060 = vadd.f32 %v2715, %v4735
      %v5061 = vadd.f32 %v2716, %v5025
      %v5062 = vadd.f32 %v2717, %v5027
      %v5063 = vadd.f32 %v2718, %v4739
      %v5064 = vadd.f32 %v2719, %v4741
      %v5065 = vadd.f32 %v2720, %v5031
      %v5066 = vadd.f32 %v2721, %v5033
      %v5067 = vadd.f32 %v2722, %v4743
      %v5068 = vadd.f32 %v2723, %v4745
      %v5069 = vadd.f32 %v2724, %v5035
      %v5070 = vadd.f32 %v2725, %v5037
      %v5071 = vld [vmem:[%s273 + $0x80] sm:$0xff]
      %v5072 = vld [vmem:[%s273 + $0x88] sm:$0xff]
      %v5073 = vld [vmem:[%s273 + $0x90] sm:$0xff]
      %v5074 = vld [vmem:[%s273 + $0x98] sm:$0xff]
      %v5075 = vld [vmem:[%s273 + $0xa0] sm:$0xff]
      %v5076 = vld [vmem:[%s273 + $0xa8] sm:$0xff]
      %v5077 = vld [vmem:[%s273 + $0xb0] sm:$0xff]
      %v5078 = vld [vmem:[%s273 + $0xb8] sm:$0xff]
      %v5079 = vld [vmem:[%s273 + $0xc0] sm:$0xff]
      %v5080 = vld [vmem:[%s273 + $0xc8] sm:$0xff]
      %v5081 = vld [vmem:[%s273 + $0xd0] sm:$0xff]
      %v5082 = vld [vmem:[%s273 + $0xd8] sm:$0xff]
      %v5083 = vld [vmem:[%s273 + $0xe0] sm:$0xff]
      %v5084 = vld [vmem:[%s273 + $0xe8] sm:$0xff]
      %v5085 = vld [vmem:[%s273 + $0xf0] sm:$0xff]
      %v5086 = vld [vmem:[%s273 + $0xf8] sm:$0xff]
      %v5087 = vld [vmem:[%s273 + $0x100] sm:$0xff]
      %v5088 = vld [vmem:[%s273 + $0x108] sm:$0xff]
      %v5089 = vld [vmem:[%s273 + $0x110] sm:$0xff]
      %v5090 = vld [vmem:[%s273 + $0x118] sm:$0xff]
      %v5091 = vld [vmem:[%s273 + $0x120] sm:$0xff]
      %v5092 = vld [vmem:[%s273 + $0x128] sm:$0xff]
      %v5093 = vld [vmem:[%s273 + $0x130] sm:$0xff]
      %v5094 = vld [vmem:[%s273 + $0x138] sm:$0xff]
      %v5095 = vld [vmem:[%s273 + $0x140] sm:$0xff]
      %v5096 = vld [vmem:[%s273 + $0x148] sm:$0xff]
      %v5097 = vld [vmem:[%s273 + $0x150] sm:$0xff]
      %v5098 = vld [vmem:[%s273 + $0x158] sm:$0xff]
      %v5099 = vld [vmem:[%s273 + $0x160] sm:$0xff]
      %v5100 = vld [vmem:[%s273 + $0x168] sm:$0xff]
      %v5101 = vld [vmem:[%s273 + $0x170] sm:$0xff]
      %v5102 = vld [vmem:[%s273 + $0x178] sm:$0xff]
      %s5103 = scalar_lea.vmem %s278, 4096
      %v5104 = vld [vmem:[%s5103] sm:$0xff]
      %v5105 = vld [vmem:[%s5103 + $0x8] sm:$0xff]
      %v5106 = vld [vmem:[%s5103 + $0x10] sm:$0xff]
      %v5107 = vld [vmem:[%s5103 + $0x18] sm:$0xff]
      %v5108 = vld [vmem:[%s5103 + $0x20] sm:$0xff]
      %v5109 = vld [vmem:[%s5103 + $0x28] sm:$0xff]
      %v5110 = vld [vmem:[%s5103 + $0x30] sm:$0xff]
      %v5111 = vld [vmem:[%s5103 + $0x38] sm:$0xff]
      %v5112 = vld [vmem:[%s5103 + $0x40] sm:$0xff]
      %v5113 = vld [vmem:[%s5103 + $0x48] sm:$0xff]
      %v5114 = vld [vmem:[%s5103 + $0x50] sm:$0xff]
      %v5115 = vld [vmem:[%s5103 + $0x58] sm:$0xff]
      %v5116 = vld [vmem:[%s5103 + $0x60] sm:$0xff]
      %v5117 = vld [vmem:[%s5103 + $0x68] sm:$0xff]
      %v5118 = vld [vmem:[%s5103 + $0x70] sm:$0xff]
      %v5119 = vld [vmem:[%s5103 + $0x78] sm:$0xff]
      %v5120 = vld [vmem:[%s5103 + $0x80] sm:$0xff]
      %v5121 = vld [vmem:[%s5103 + $0x88] sm:$0xff]
      %v5122 = vld [vmem:[%s5103 + $0x90] sm:$0xff]
      %v5123 = vld [vmem:[%s5103 + $0x98] sm:$0xff]
      %v5124 = vld [vmem:[%s5103 + $0xa0] sm:$0xff]
      %v5125 = vld [vmem:[%s5103 + $0xa8] sm:$0xff]
      %v5126 = vld [vmem:[%s5103 + $0xb0] sm:$0xff]
      %v5127 = vld [vmem:[%s5103 + $0xb8] sm:$0xff]
      %v5128 = vld [vmem:[%s5103 + $0xc0] sm:$0xff]
      %v5129 = vld [vmem:[%s5103 + $0xc8] sm:$0xff]
      %v5130 = vld [vmem:[%s5103 + $0xd0] sm:$0xff]
      %v5131 = vld [vmem:[%s5103 + $0xd8] sm:$0xff]
      %v5132 = vld [vmem:[%s5103 + $0xe0] sm:$0xff]
      %v5133 = vld [vmem:[%s5103 + $0xe8] sm:$0xff]
      %v5134 = vld [vmem:[%s5103 + $0xf0] sm:$0xff]
      %v5135 = vld [vmem:[%s5103 + $0xf8] sm:$0xff]
      %v5136 = vld [vmem:[%s5103 + $0x100] sm:$0xff]
      %v5137 = vld [vmem:[%s5103 + $0x108] sm:$0xff]
      %v5138 = vld [vmem:[%s5103 + $0x110] sm:$0xff]
      %v5139 = vld [vmem:[%s5103 + $0x118] sm:$0xff]
      %v5140 = vld [vmem:[%s5103 + $0x120] sm:$0xff]
      %v5141 = vld [vmem:[%s5103 + $0x128] sm:$0xff]
      %v5142 = vld [vmem:[%s5103 + $0x130] sm:$0xff]
      %v5143 = vld [vmem:[%s5103 + $0x138] sm:$0xff]
      %v5144 = vld [vmem:[%s5103 + $0x140] sm:$0xff]
      %v5145 = vld [vmem:[%s5103 + $0x148] sm:$0xff]
      %v5146 = vld [vmem:[%s5103 + $0x150] sm:$0xff]
      %v5147 = vld [vmem:[%s5103 + $0x158] sm:$0xff]
      %v5148 = vld [vmem:[%s5103 + $0x160] sm:$0xff]
      %v5149 = vld [vmem:[%s5103 + $0x168] sm:$0xff]
      %v5150 = vld [vmem:[%s5103 + $0x170] sm:$0xff]
      %v5151 = vld [vmem:[%s5103 + $0x178] sm:$0xff]
      %v5152 = vld [vmem:[%s5103 + $0x180] sm:$0xff]
      %v5153 = vld [vmem:[%s5103 + $0x188] sm:$0xff]
      %v5154 = vld [vmem:[%s5103 + $0x190] sm:$0xff]
      %v5155 = vld [vmem:[%s5103 + $0x198] sm:$0xff]
      %v5156 = vld [vmem:[%s5103 + $0x1a0] sm:$0xff]
      %v5157 = vld [vmem:[%s5103 + $0x1a8] sm:$0xff]
      %v5158 = vld [vmem:[%s5103 + $0x1b0] sm:$0xff]
      %v5159 = vld [vmem:[%s5103 + $0x1b8] sm:$0xff]
      %v5160 = vld [vmem:[%s5103 + $0x1c0] sm:$0xff]
      %v5161 = vld [vmem:[%s5103 + $0x1c8] sm:$0xff]
      %v5162 = vld [vmem:[%s5103 + $0x1d0] sm:$0xff]
      %v5163 = vld [vmem:[%s5103 + $0x1d8] sm:$0xff]
      %v5164 = vld [vmem:[%s5103 + $0x1e0] sm:$0xff]
      %v5165 = vld [vmem:[%s5103 + $0x1e8] sm:$0xff]
      %v5166 = vld [vmem:[%s5103 + $0x1f0] sm:$0xff]
      %v5167 = vld [vmem:[%s5103 + $0x1f8] sm:$0xff]
      %v5168 = vld [vmem:[%s5103 + $0x200] sm:$0xff]
      %v5169 = vld [vmem:[%s5103 + $0x208] sm:$0xff]
      %v5170 = vld [vmem:[%s5103 + $0x210] sm:$0xff]
      %v5171 = vld [vmem:[%s5103 + $0x218] sm:$0xff]
      %v5172 = vld [vmem:[%s5103 + $0x220] sm:$0xff]
      %v5173 = vld [vmem:[%s5103 + $0x228] sm:$0xff]
      %v5174 = vld [vmem:[%s5103 + $0x230] sm:$0xff]
      %v5175 = vld [vmem:[%s5103 + $0x238] sm:$0xff]
      %v5176 = vld [vmem:[%s5103 + $0x240] sm:$0xff]
      %v5177 = vld [vmem:[%s5103 + $0x248] sm:$0xff]
      %v5178 = vld [vmem:[%s5103 + $0x250] sm:$0xff]
      %v5179 = vld [vmem:[%s5103 + $0x258] sm:$0xff]
      %v5180 = vld [vmem:[%s5103 + $0x260] sm:$0xff]
      %v5181 = vld [vmem:[%s5103 + $0x268] sm:$0xff]
      %v5182 = vld [vmem:[%s5103 + $0x270] sm:$0xff]
      %v5183 = vld [vmem:[%s5103 + $0x278] sm:$0xff]
      %v5184 = vld [vmem:[%s5103 + $0x280] sm:$0xff]
      %v5185 = vld [vmem:[%s5103 + $0x288] sm:$0xff]
      %v5186 = vld [vmem:[%s5103 + $0x290] sm:$0xff]
      %v5187 = vld [vmem:[%s5103 + $0x298] sm:$0xff]
      %v5188 = vld [vmem:[%s5103 + $0x2a0] sm:$0xff]
      %v5189 = vld [vmem:[%s5103 + $0x2a8] sm:$0xff]
      %v5190 = vld [vmem:[%s5103 + $0x2b0] sm:$0xff]
      %v5191 = vld [vmem:[%s5103 + $0x2b8] sm:$0xff]
      %v5192 = vld [vmem:[%s5103 + $0x2c0] sm:$0xff]
      %v5193 = vld [vmem:[%s5103 + $0x2c8] sm:$0xff]
      %v5194 = vld [vmem:[%s5103 + $0x2d0] sm:$0xff]
      %v5195 = vld [vmem:[%s5103 + $0x2d8] sm:$0xff]
      %v5196 = vld [vmem:[%s5103 + $0x2e0] sm:$0xff]
      %v5197 = vld [vmem:[%s5103 + $0x2e8] sm:$0xff]
      %v5198 = vld [vmem:[%s5103 + $0x2f0] sm:$0xff]
      %v5199 = vld [vmem:[%s5103 + $0x2f8] sm:$0xff]
      %v5200 = vld [vmem:[%s5103 + $0x300] sm:$0xff]
      %v5201 = vld [vmem:[%s5103 + $0x308] sm:$0xff]
      %v5202 = vld [vmem:[%s5103 + $0x310] sm:$0xff]
      %v5203 = vld [vmem:[%s5103 + $0x318] sm:$0xff]
      %v5204 = vld [vmem:[%s5103 + $0x320] sm:$0xff]
      %v5205 = vld [vmem:[%s5103 + $0x328] sm:$0xff]
      %v5206 = vld [vmem:[%s5103 + $0x330] sm:$0xff]
      %v5207 = vld [vmem:[%s5103 + $0x338] sm:$0xff]
      %v5208 = vld [vmem:[%s5103 + $0x340] sm:$0xff]
      %v5209 = vld [vmem:[%s5103 + $0x348] sm:$0xff]
      %v5210 = vld [vmem:[%s5103 + $0x350] sm:$0xff]
      %v5211 = vld [vmem:[%s5103 + $0x358] sm:$0xff]
      %v5212 = vld [vmem:[%s5103 + $0x360] sm:$0xff]
      %v5213 = vld [vmem:[%s5103 + $0x368] sm:$0xff]
      %v5214 = vld [vmem:[%s5103 + $0x370] sm:$0xff]
      %v5215 = vld [vmem:[%s5103 + $0x378] sm:$0xff]
      %v5216 = vld [vmem:[%s5103 + $0x380] sm:$0xff]
      %v5217 = vld [vmem:[%s5103 + $0x388] sm:$0xff]
      %v5218 = vld [vmem:[%s5103 + $0x390] sm:$0xff]
      %v5219 = vld [vmem:[%s5103 + $0x398] sm:$0xff]
      %v5220 = vld [vmem:[%s5103 + $0x3a0] sm:$0xff]
      %v5221 = vld [vmem:[%s5103 + $0x3a8] sm:$0xff]
      %v5222 = vld [vmem:[%s5103 + $0x3b0] sm:$0xff]
      %v5223 = vld [vmem:[%s5103 + $0x3b8] sm:$0xff]
      %v5224 = vld [vmem:[%s5103 + $0x3c0] sm:$0xff]
      %v5225 = vld [vmem:[%s5103 + $0x3c8] sm:$0xff]
      %v5226 = vld [vmem:[%s5103 + $0x3d0] sm:$0xff]
      %v5227 = vld [vmem:[%s5103 + $0x3d8] sm:$0xff]
      %v5228 = vld [vmem:[%s5103 + $0x3e0] sm:$0xff]
      %v5229 = vld [vmem:[%s5103 + $0x3e8] sm:$0xff]
      %v5230 = vld [vmem:[%s5103 + $0x3f0] sm:$0xff]
      %v5231 = vld [vmem:[%s5103 + $0x3f8] sm:$0xff]
      %v5232 = vld [vmem:[%s5103 + $0x400] sm:$0xff]
      %v5233 = vld [vmem:[%s5103 + $0x408] sm:$0xff]
      %v5234 = vld [vmem:[%s5103 + $0x410] sm:$0xff]
      %v5235 = vld [vmem:[%s5103 + $0x418] sm:$0xff]
      %v5236 = vld [vmem:[%s5103 + $0x420] sm:$0xff]
      %v5237 = vld [vmem:[%s5103 + $0x428] sm:$0xff]
      %v5238 = vld [vmem:[%s5103 + $0x430] sm:$0xff]
      %v5239 = vld [vmem:[%s5103 + $0x438] sm:$0xff]
      %v5240 = vld [vmem:[%s5103 + $0x440] sm:$0xff]
      %v5241 = vld [vmem:[%s5103 + $0x448] sm:$0xff]
      %v5242 = vld [vmem:[%s5103 + $0x450] sm:$0xff]
      %v5243 = vld [vmem:[%s5103 + $0x458] sm:$0xff]
      %v5244 = vld [vmem:[%s5103 + $0x460] sm:$0xff]
      %v5245 = vld [vmem:[%s5103 + $0x468] sm:$0xff]
      %v5246 = vld [vmem:[%s5103 + $0x470] sm:$0xff]
      %v5247 = vld [vmem:[%s5103 + $0x478] sm:$0xff]
      %v5248 = vld [vmem:[%s5103 + $0x480] sm:$0xff]
      %v5249 = vld [vmem:[%s5103 + $0x488] sm:$0xff]
      %v5250 = vld [vmem:[%s5103 + $0x490] sm:$0xff]
      %v5251 = vld [vmem:[%s5103 + $0x498] sm:$0xff]
      %v5252 = vld [vmem:[%s5103 + $0x4a0] sm:$0xff]
      %v5253 = vld [vmem:[%s5103 + $0x4a8] sm:$0xff]
      %v5254 = vld [vmem:[%s5103 + $0x4b0] sm:$0xff]
      %v5255 = vld [vmem:[%s5103 + $0x4b8] sm:$0xff]
      %v5256 = vld [vmem:[%s5103 + $0x4c0] sm:$0xff]
      %v5257 = vld [vmem:[%s5103 + $0x4c8] sm:$0xff]
      %v5258 = vld [vmem:[%s5103 + $0x4d0] sm:$0xff]
      %v5259 = vld [vmem:[%s5103 + $0x4d8] sm:$0xff]
      %v5260 = vld [vmem:[%s5103 + $0x4e0] sm:$0xff]
      %v5261 = vld [vmem:[%s5103 + $0x4e8] sm:$0xff]
      %v5262 = vld [vmem:[%s5103 + $0x4f0] sm:$0xff]
      %v5263 = vld [vmem:[%s5103 + $0x4f8] sm:$0xff]
      %v5264 = vld [vmem:[%s5103 + $0x500] sm:$0xff]
      %v5265 = vld [vmem:[%s5103 + $0x508] sm:$0xff]
      %v5266 = vld [vmem:[%s5103 + $0x510] sm:$0xff]
      %v5267 = vld [vmem:[%s5103 + $0x518] sm:$0xff]
      %v5268 = vld [vmem:[%s5103 + $0x520] sm:$0xff]
      %v5269 = vld [vmem:[%s5103 + $0x528] sm:$0xff]
      %v5270 = vld [vmem:[%s5103 + $0x530] sm:$0xff]
      %v5271 = vld [vmem:[%s5103 + $0x538] sm:$0xff]
      %v5272 = vld [vmem:[%s5103 + $0x540] sm:$0xff]
      %v5273 = vld [vmem:[%s5103 + $0x548] sm:$0xff]
      %v5274 = vld [vmem:[%s5103 + $0x550] sm:$0xff]
      %v5275 = vld [vmem:[%s5103 + $0x558] sm:$0xff]
      %v5276 = vld [vmem:[%s5103 + $0x560] sm:$0xff]
      %v5277 = vld [vmem:[%s5103 + $0x568] sm:$0xff]
      %v5278 = vld [vmem:[%s5103 + $0x570] sm:$0xff]
      %v5279 = vld [vmem:[%s5103 + $0x578] sm:$0xff]
      %v5280 = vld [vmem:[%s5103 + $0x580] sm:$0xff]
      %v5281 = vld [vmem:[%s5103 + $0x588] sm:$0xff]
      %v5282 = vld [vmem:[%s5103 + $0x590] sm:$0xff]
      %v5283 = vld [vmem:[%s5103 + $0x598] sm:$0xff]
      %v5284 = vld [vmem:[%s5103 + $0x5a0] sm:$0xff]
      %v5285 = vld [vmem:[%s5103 + $0x5a8] sm:$0xff]
      %v5286 = vld [vmem:[%s5103 + $0x5b0] sm:$0xff]
      %v5287 = vld [vmem:[%s5103 + $0x5b8] sm:$0xff]
      %v5288 = vld [vmem:[%s5103 + $0x5c0] sm:$0xff]
      %v5289 = vld [vmem:[%s5103 + $0x5c8] sm:$0xff]
      %v5290 = vld [vmem:[%s5103 + $0x5d0] sm:$0xff]
      %v5291 = vld [vmem:[%s5103 + $0x5d8] sm:$0xff]
      %v5292 = vld [vmem:[%s5103 + $0x5e0] sm:$0xff]
      %v5293 = vld [vmem:[%s5103 + $0x5e8] sm:$0xff]
      %v5294 = vld [vmem:[%s5103 + $0x5f0] sm:$0xff]
      %v5295 = vld [vmem:[%s5103 + $0x5f8] sm:$0xff]
      %v5296 = vld [vmem:[%s5103 + $0x600] sm:$0xff]
      %v5297 = vld [vmem:[%s5103 + $0x608] sm:$0xff]
      %v5298 = vld [vmem:[%s5103 + $0x610] sm:$0xff]
      %v5299 = vld [vmem:[%s5103 + $0x618] sm:$0xff]
      %v5300 = vld [vmem:[%s5103 + $0x620] sm:$0xff]
      %v5301 = vld [vmem:[%s5103 + $0x628] sm:$0xff]
      %v5302 = vld [vmem:[%s5103 + $0x630] sm:$0xff]
      %v5303 = vld [vmem:[%s5103 + $0x638] sm:$0xff]
      %v5304 = vld [vmem:[%s5103 + $0x640] sm:$0xff]
      %v5305 = vld [vmem:[%s5103 + $0x648] sm:$0xff]
      %v5306 = vld [vmem:[%s5103 + $0x650] sm:$0xff]
      %v5307 = vld [vmem:[%s5103 + $0x658] sm:$0xff]
      %v5308 = vld [vmem:[%s5103 + $0x660] sm:$0xff]
      %v5309 = vld [vmem:[%s5103 + $0x668] sm:$0xff]
      %v5310 = vld [vmem:[%s5103 + $0x670] sm:$0xff]
      %v5311 = vld [vmem:[%s5103 + $0x678] sm:$0xff]
      %v5312 = vld [vmem:[%s5103 + $0x680] sm:$0xff]
      %v5313 = vld [vmem:[%s5103 + $0x688] sm:$0xff]
      %v5314 = vld [vmem:[%s5103 + $0x690] sm:$0xff]
      %v5315 = vld [vmem:[%s5103 + $0x698] sm:$0xff]
      %v5316 = vld [vmem:[%s5103 + $0x6a0] sm:$0xff]
      %v5317 = vld [vmem:[%s5103 + $0x6a8] sm:$0xff]
      %v5318 = vld [vmem:[%s5103 + $0x6b0] sm:$0xff]
      %v5319 = vld [vmem:[%s5103 + $0x6b8] sm:$0xff]
      %v5320 = vld [vmem:[%s5103 + $0x6c0] sm:$0xff]
      %v5321 = vld [vmem:[%s5103 + $0x6c8] sm:$0xff]
      %v5322 = vld [vmem:[%s5103 + $0x6d0] sm:$0xff]
      %v5323 = vld [vmem:[%s5103 + $0x6d8] sm:$0xff]
      %v5324 = vld [vmem:[%s5103 + $0x6e0] sm:$0xff]
      %v5325 = vld [vmem:[%s5103 + $0x6e8] sm:$0xff]
      %v5326 = vld [vmem:[%s5103 + $0x6f0] sm:$0xff]
      %v5327 = vld [vmem:[%s5103 + $0x6f8] sm:$0xff]
      %v5328 = vld [vmem:[%s5103 + $0x700] sm:$0xff]
      %v5329 = vld [vmem:[%s5103 + $0x708] sm:$0xff]
      %v5330 = vld [vmem:[%s5103 + $0x710] sm:$0xff]
      %v5331 = vld [vmem:[%s5103 + $0x718] sm:$0xff]
      %v5332 = vld [vmem:[%s5103 + $0x720] sm:$0xff]
      %v5333 = vld [vmem:[%s5103 + $0x728] sm:$0xff]
      %v5334 = vld [vmem:[%s5103 + $0x730] sm:$0xff]
      %v5335 = vld [vmem:[%s5103 + $0x738] sm:$0xff]
      %v5336 = vld [vmem:[%s5103 + $0x740] sm:$0xff]
      %v5337 = vld [vmem:[%s5103 + $0x748] sm:$0xff]
      %v5338 = vld [vmem:[%s5103 + $0x750] sm:$0xff]
      %v5339 = vld [vmem:[%s5103 + $0x758] sm:$0xff]
      %v5340 = vld [vmem:[%s5103 + $0x760] sm:$0xff]
      %v5341 = vld [vmem:[%s5103 + $0x768] sm:$0xff]
      %v5342 = vld [vmem:[%s5103 + $0x770] sm:$0xff]
      %v5343 = vld [vmem:[%s5103 + $0x778] sm:$0xff]
      %v5344 = vld [vmem:[%s5103 + $0x780] sm:$0xff]
      %v5345 = vld [vmem:[%s5103 + $0x788] sm:$0xff]
      %v5346 = vld [vmem:[%s5103 + $0x790] sm:$0xff]
      %v5347 = vld [vmem:[%s5103 + $0x798] sm:$0xff]
      %v5348 = vld [vmem:[%s5103 + $0x7a0] sm:$0xff]
      %v5349 = vld [vmem:[%s5103 + $0x7a8] sm:$0xff]
      %v5350 = vld [vmem:[%s5103 + $0x7b0] sm:$0xff]
      %v5351 = vld [vmem:[%s5103 + $0x7b8] sm:$0xff]
      %v5352 = vld [vmem:[%s5103 + $0x7c0] sm:$0xff]
      %v5353 = vld [vmem:[%s5103 + $0x7c8] sm:$0xff]
      %v5354 = vld [vmem:[%s5103 + $0x7d0] sm:$0xff]
      %v5355 = vld [vmem:[%s5103 + $0x7d8] sm:$0xff]
      %v5356 = vld [vmem:[%s5103 + $0x7e0] sm:$0xff]
      %v5357 = vld [vmem:[%s5103 + $0x7e8] sm:$0xff]
      %v5358 = vld [vmem:[%s5103 + $0x7f0] sm:$0xff]
      %v5359 = vld [vmem:[%s5103 + $0x7f8] sm:$0xff]
      %v5392 = vunpack.c.l.b16 %v5071
      %v5393 = vunpack.c.h.b16 %v5071
      %v5394 = vunpack.c.l.b16 %v5072
      %v5395 = vunpack.c.h.b16 %v5072
      %v5396 = vunpack.c.l.b16 %v5073
      %v5397 = vunpack.c.h.b16 %v5073
      %v5398 = vunpack.c.l.b16 %v5074
      %v5399 = vunpack.c.h.b16 %v5074
      %v5400 = vunpack.c.l.b16 %v5075
      %v5401 = vunpack.c.h.b16 %v5075
      %v5402 = vunpack.c.l.b16 %v5076
      %v5403 = vunpack.c.h.b16 %v5076
      %v5404 = vunpack.c.l.b16 %v5077
      %v5405 = vunpack.c.h.b16 %v5077
      %v5406 = vunpack.c.l.b16 %v5078
      %v5407 = vunpack.c.h.b16 %v5078
      %v5408 = vunpack.c.l.b16 %v5079
      %v5409 = vunpack.c.h.b16 %v5079
      %v5410 = vunpack.c.l.b16 %v5080
      %v5411 = vunpack.c.h.b16 %v5080
      %v5412 = vunpack.c.l.b16 %v5081
      %v5413 = vunpack.c.h.b16 %v5081
      %v5414 = vunpack.c.l.b16 %v5082
      %v5415 = vunpack.c.h.b16 %v5082
      %v5416 = vunpack.c.l.b16 %v5083
      %v5417 = vunpack.c.h.b16 %v5083
      %v5418 = vunpack.c.l.b16 %v5084
      %v5419 = vunpack.c.h.b16 %v5084
      %v5420 = vunpack.c.l.b16 %v5085
      %v5421 = vunpack.c.h.b16 %v5085
      %v5422 = vunpack.c.l.b16 %v5086
      %v5423 = vunpack.c.h.b16 %v5086
      %v5424 = vunpack.c.l.b16 %v5087
      %v5425 = vunpack.c.h.b16 %v5087
      %v5426 = vunpack.c.l.b16 %v5088
      %v5427 = vunpack.c.h.b16 %v5088
      %v5428 = vunpack.c.l.b16 %v5089
      %v5429 = vunpack.c.h.b16 %v5089
      %v5430 = vunpack.c.l.b16 %v5090
      %v5431 = vunpack.c.h.b16 %v5090
      %v5432 = vunpack.c.l.b16 %v5091
      %v5433 = vunpack.c.h.b16 %v5091
      %v5434 = vunpack.c.l.b16 %v5092
      %v5435 = vunpack.c.h.b16 %v5092
      %v5436 = vunpack.c.l.b16 %v5093
      %v5437 = vunpack.c.h.b16 %v5093
      %v5438 = vunpack.c.l.b16 %v5094
      %v5439 = vunpack.c.h.b16 %v5094
      %v5440 = vunpack.c.l.b16 %v5095
      %v5441 = vunpack.c.h.b16 %v5095
      %v5442 = vunpack.c.l.b16 %v5096
      %v5443 = vunpack.c.h.b16 %v5096
      %v5444 = vunpack.c.l.b16 %v5097
      %v5445 = vunpack.c.h.b16 %v5097
      %v5446 = vunpack.c.l.b16 %v5098
      %v5447 = vunpack.c.h.b16 %v5098
      %v5448 = vunpack.c.l.b16 %v5099
      %v5449 = vunpack.c.h.b16 %v5099
      %v5450 = vunpack.c.l.b16 %v5100
      %v5451 = vunpack.c.h.b16 %v5100
      %v5452 = vunpack.c.l.b16 %v5101
      %v5453 = vunpack.c.h.b16 %v5101
      %v5454 = vunpack.c.l.b16 %v5102
      %v5455 = vunpack.c.h.b16 %v5102
      %v5456 = vpack.c.b16 %v5400, %v5392
      %v5457 = vpack.c.b16 %v5401, %v5393
      %v5458 = vpack.c.b16 %v5402, %v5394
      %v5459 = vpack.c.b16 %v5403, %v5395
      %v5460 = vpack.c.b16 %v5404, %v5396
      %v5461 = vpack.c.b16 %v5405, %v5397
      %v5462 = vpack.c.b16 %v5406, %v5398
      %v5463 = vpack.c.b16 %v5407, %v5399
      %v5464 = vpack.c.b16 %v5416, %v5408
      %v5465 = vpack.c.b16 %v5417, %v5409
      %v5466 = vpack.c.b16 %v5418, %v5410
      %v5467 = vpack.c.b16 %v5419, %v5411
      %v5468 = vpack.c.b16 %v5420, %v5412
      %v5469 = vpack.c.b16 %v5421, %v5413
      %v5470 = vpack.c.b16 %v5422, %v5414
      %v5471 = vpack.c.b16 %v5423, %v5415
      %v5472 = vpack.c.b16 %v5432, %v5424
      %v5473 = vpack.c.b16 %v5433, %v5425
      %v5474 = vpack.c.b16 %v5434, %v5426
      %v5475 = vpack.c.b16 %v5435, %v5427
      %v5476 = vpack.c.b16 %v5436, %v5428
      %v5477 = vpack.c.b16 %v5437, %v5429
      %v5478 = vpack.c.b16 %v5438, %v5430
      %v5479 = vpack.c.b16 %v5439, %v5431
      %v5480 = vpack.c.b16 %v5448, %v5440
      %v5481 = vpack.c.b16 %v5449, %v5441
      %v5482 = vpack.c.b16 %v5450, %v5442
      %v5483 = vpack.c.b16 %v5451, %v5443
      %v5484 = vpack.c.b16 %v5452, %v5444
      %v5485 = vpack.c.b16 %v5453, %v5445
      %v5486 = vpack.c.b16 %v5454, %v5446
      %v5487 = vpack.c.b16 %v5455, %v5447
      %v5776 = vunpack.c.l.b16 %v5104
      %v5777 = vunpack.c.h.b16 %v5104
      %v5778 = vunpack.c.l.b16 %v5105
      %v5779 = vunpack.c.h.b16 %v5105
      %v5780 = vunpack.c.l.b16 %v5106
      %v5781 = vunpack.c.h.b16 %v5106
      %v5782 = vunpack.c.l.b16 %v5107
      %v5783 = vunpack.c.h.b16 %v5107
      %v5784 = vunpack.c.l.b16 %v5108
      %v5785 = vunpack.c.h.b16 %v5108
      %v5786 = vunpack.c.l.b16 %v5109
      %v5787 = vunpack.c.h.b16 %v5109
      %v5788 = vunpack.c.l.b16 %v5110
      %v5789 = vunpack.c.h.b16 %v5110
      %v5790 = vunpack.c.l.b16 %v5111
      %v5791 = vunpack.c.h.b16 %v5111
      %v5792 = vunpack.c.l.b16 %v5112
      %v5793 = vunpack.c.h.b16 %v5112
      %v5794 = vunpack.c.l.b16 %v5113
      %v5795 = vunpack.c.h.b16 %v5113
      %v5796 = vunpack.c.l.b16 %v5114
      %v5797 = vunpack.c.h.b16 %v5114
      %v5798 = vunpack.c.l.b16 %v5115
      %v5799 = vunpack.c.h.b16 %v5115
      %v5800 = vunpack.c.l.b16 %v5116
      %v5801 = vunpack.c.h.b16 %v5116
      %v5802 = vunpack.c.l.b16 %v5117
      %v5803 = vunpack.c.h.b16 %v5117
      %v5804 = vunpack.c.l.b16 %v5118
      %v5805 = vunpack.c.h.b16 %v5118
      %v5806 = vunpack.c.l.b16 %v5119
      %v5807 = vunpack.c.h.b16 %v5119
      %v5808 = vunpack.c.l.b16 %v5120
      %v5809 = vunpack.c.h.b16 %v5120
      %v5810 = vunpack.c.l.b16 %v5121
      %v5811 = vunpack.c.h.b16 %v5121
      %v5812 = vunpack.c.l.b16 %v5122
      %v5813 = vunpack.c.h.b16 %v5122
      %v5814 = vunpack.c.l.b16 %v5123
      %v5815 = vunpack.c.h.b16 %v5123
      %v5816 = vunpack.c.l.b16 %v5124
      %v5817 = vunpack.c.h.b16 %v5124
      %v5818 = vunpack.c.l.b16 %v5125
      %v5819 = vunpack.c.h.b16 %v5125
      %v5820 = vunpack.c.l.b16 %v5126
      %v5821 = vunpack.c.h.b16 %v5126
      %v5822 = vunpack.c.l.b16 %v5127
      %v5823 = vunpack.c.h.b16 %v5127
      %v5824 = vunpack.c.l.b16 %v5128
      %v5825 = vunpack.c.h.b16 %v5128
      %v5826 = vunpack.c.l.b16 %v5129
      %v5827 = vunpack.c.h.b16 %v5129
      %v5828 = vunpack.c.l.b16 %v5130
      %v5829 = vunpack.c.h.b16 %v5130
      %v5830 = vunpack.c.l.b16 %v5131
      %v5831 = vunpack.c.h.b16 %v5131
      %v5832 = vunpack.c.l.b16 %v5132
      %v5833 = vunpack.c.h.b16 %v5132
      %v5834 = vunpack.c.l.b16 %v5133
      %v5835 = vunpack.c.h.b16 %v5133
      %v5836 = vunpack.c.l.b16 %v5134
      %v5837 = vunpack.c.h.b16 %v5134
      %v5838 = vunpack.c.l.b16 %v5135
      %v5839 = vunpack.c.h.b16 %v5135
      %v5840 = vunpack.c.l.b16 %v5136
      %v5841 = vunpack.c.h.b16 %v5136
      %v5842 = vunpack.c.l.b16 %v5137
      %v5843 = vunpack.c.h.b16 %v5137
      %v5844 = vunpack.c.l.b16 %v5138
      %v5845 = vunpack.c.h.b16 %v5138
      %v5846 = vunpack.c.l.b16 %v5139
      %v5847 = vunpack.c.h.b16 %v5139
      %v5848 = vunpack.c.l.b16 %v5140
      %v5849 = vunpack.c.h.b16 %v5140
      %v5850 = vunpack.c.l.b16 %v5141
      %v5851 = vunpack.c.h.b16 %v5141
      %v5852 = vunpack.c.l.b16 %v5142
      %v5853 = vunpack.c.h.b16 %v5142
      %v5854 = vunpack.c.l.b16 %v5143
      %v5855 = vunpack.c.h.b16 %v5143
      %v5856 = vunpack.c.l.b16 %v5144
      %v5857 = vunpack.c.h.b16 %v5144
      %v5858 = vunpack.c.l.b16 %v5145
      %v5859 = vunpack.c.h.b16 %v5145
      %v5860 = vunpack.c.l.b16 %v5146
      %v5861 = vunpack.c.h.b16 %v5146
      %v5862 = vunpack.c.l.b16 %v5147
      %v5863 = vunpack.c.h.b16 %v5147
      %v5864 = vunpack.c.l.b16 %v5148
      %v5865 = vunpack.c.h.b16 %v5148
      %v5866 = vunpack.c.l.b16 %v5149
      %v5867 = vunpack.c.h.b16 %v5149
      %v5868 = vunpack.c.l.b16 %v5150
      %v5869 = vunpack.c.h.b16 %v5150
      %v5870 = vunpack.c.l.b16 %v5151
      %v5871 = vunpack.c.h.b16 %v5151
      %v5872 = vunpack.c.l.b16 %v5152
      %v5873 = vunpack.c.h.b16 %v5152
      %v5874 = vunpack.c.l.b16 %v5153
      %v5875 = vunpack.c.h.b16 %v5153
      %v5876 = vunpack.c.l.b16 %v5154
      %v5877 = vunpack.c.h.b16 %v5154
      %v5878 = vunpack.c.l.b16 %v5155
      %v5879 = vunpack.c.h.b16 %v5155
      %v5880 = vunpack.c.l.b16 %v5156
      %v5881 = vunpack.c.h.b16 %v5156
      %v5882 = vunpack.c.l.b16 %v5157
      %v5883 = vunpack.c.h.b16 %v5157
      %v5884 = vunpack.c.l.b16 %v5158
      %v5885 = vunpack.c.h.b16 %v5158
      %v5886 = vunpack.c.l.b16 %v5159
      %v5887 = vunpack.c.h.b16 %v5159
      %v5888 = vunpack.c.l.b16 %v5160
      %v5889 = vunpack.c.h.b16 %v5160
      %v5890 = vunpack.c.l.b16 %v5161
      %v5891 = vunpack.c.h.b16 %v5161
      %v5892 = vunpack.c.l.b16 %v5162
      %v5893 = vunpack.c.h.b16 %v5162
      %v5894 = vunpack.c.l.b16 %v5163
      %v5895 = vunpack.c.h.b16 %v5163
      %v5896 = vunpack.c.l.b16 %v5164
      %v5897 = vunpack.c.h.b16 %v5164
      %v5898 = vunpack.c.l.b16 %v5165
      %v5899 = vunpack.c.h.b16 %v5165
      %v5900 = vunpack.c.l.b16 %v5166
      %v5901 = vunpack.c.h.b16 %v5166
      %v5902 = vunpack.c.l.b16 %v5167
      %v5903 = vunpack.c.h.b16 %v5167
      %v5904 = vunpack.c.l.b16 %v5168
      %v5905 = vunpack.c.h.b16 %v5168
      %v5906 = vunpack.c.l.b16 %v5169
      %v5907 = vunpack.c.h.b16 %v5169
      %v5908 = vunpack.c.l.b16 %v5170
      %v5909 = vunpack.c.h.b16 %v5170
      %v5910 = vunpack.c.l.b16 %v5171
      %v5911 = vunpack.c.h.b16 %v5171
      %v5912 = vunpack.c.l.b16 %v5172
      %v5913 = vunpack.c.h.b16 %v5172
      %v5914 = vunpack.c.l.b16 %v5173
      %v5915 = vunpack.c.h.b16 %v5173
      %v5916 = vunpack.c.l.b16 %v5174
      %v5917 = vunpack.c.h.b16 %v5174
      %v5918 = vunpack.c.l.b16 %v5175
      %v5919 = vunpack.c.h.b16 %v5175
      %v5920 = vunpack.c.l.b16 %v5176
      %v5921 = vunpack.c.h.b16 %v5176
      %v5922 = vunpack.c.l.b16 %v5177
      %v5923 = vunpack.c.h.b16 %v5177
      %v5924 = vunpack.c.l.b16 %v5178
      %v5925 = vunpack.c.h.b16 %v5178
      %v5926 = vunpack.c.l.b16 %v5179
      %v5927 = vunpack.c.h.b16 %v5179
      %v5928 = vunpack.c.l.b16 %v5180
      %v5929 = vunpack.c.h.b16 %v5180
      %v5930 = vunpack.c.l.b16 %v5181
      %v5931 = vunpack.c.h.b16 %v5181
      %v5932 = vunpack.c.l.b16 %v5182
      %v5933 = vunpack.c.h.b16 %v5182
      %v5934 = vunpack.c.l.b16 %v5183
      %v5935 = vunpack.c.h.b16 %v5183
      %v5936 = vunpack.c.l.b16 %v5184
      %v5937 = vunpack.c.h.b16 %v5184
      %v5938 = vunpack.c.l.b16 %v5185
      %v5939 = vunpack.c.h.b16 %v5185
      %v5940 = vunpack.c.l.b16 %v5186
      %v5941 = vunpack.c.h.b16 %v5186
      %v5942 = vunpack.c.l.b16 %v5187
      %v5943 = vunpack.c.h.b16 %v5187
      %v5944 = vunpack.c.l.b16 %v5188
      %v5945 = vunpack.c.h.b16 %v5188
      %v5946 = vunpack.c.l.b16 %v5189
      %v5947 = vunpack.c.h.b16 %v5189
      %v5948 = vunpack.c.l.b16 %v5190
      %v5949 = vunpack.c.h.b16 %v5190
      %v5950 = vunpack.c.l.b16 %v5191
      %v5951 = vunpack.c.h.b16 %v5191
      %v5952 = vunpack.c.l.b16 %v5192
      %v5953 = vunpack.c.h.b16 %v5192
      %v5954 = vunpack.c.l.b16 %v5193
      %v5955 = vunpack.c.h.b16 %v5193
      %v5956 = vunpack.c.l.b16 %v5194
      %v5957 = vunpack.c.h.b16 %v5194
      %v5958 = vunpack.c.l.b16 %v5195
      %v5959 = vunpack.c.h.b16 %v5195
      %v5960 = vunpack.c.l.b16 %v5196
      %v5961 = vunpack.c.h.b16 %v5196
      %v5962 = vunpack.c.l.b16 %v5197
      %v5963 = vunpack.c.h.b16 %v5197
      %v5964 = vunpack.c.l.b16 %v5198
      %v5965 = vunpack.c.h.b16 %v5198
      %v5966 = vunpack.c.l.b16 %v5199
      %v5967 = vunpack.c.h.b16 %v5199
      %v5968 = vunpack.c.l.b16 %v5200
      %v5969 = vunpack.c.h.b16 %v5200
      %v5970 = vunpack.c.l.b16 %v5201
      %v5971 = vunpack.c.h.b16 %v5201
      %v5972 = vunpack.c.l.b16 %v5202
      %v5973 = vunpack.c.h.b16 %v5202
      %v5974 = vunpack.c.l.b16 %v5203
      %v5975 = vunpack.c.h.b16 %v5203
      %v5976 = vunpack.c.l.b16 %v5204
      %v5977 = vunpack.c.h.b16 %v5204
      %v5978 = vunpack.c.l.b16 %v5205
      %v5979 = vunpack.c.h.b16 %v5205
      %v5980 = vunpack.c.l.b16 %v5206
      %v5981 = vunpack.c.h.b16 %v5206
      %v5982 = vunpack.c.l.b16 %v5207
      %v5983 = vunpack.c.h.b16 %v5207
      %v5984 = vunpack.c.l.b16 %v5208
      %v5985 = vunpack.c.h.b16 %v5208
      %v5986 = vunpack.c.l.b16 %v5209
      %v5987 = vunpack.c.h.b16 %v5209
      %v5988 = vunpack.c.l.b16 %v5210
      %v5989 = vunpack.c.h.b16 %v5210
      %v5990 = vunpack.c.l.b16 %v5211
      %v5991 = vunpack.c.h.b16 %v5211
      %v5992 = vunpack.c.l.b16 %v5212
      %v5993 = vunpack.c.h.b16 %v5212
      %v5994 = vunpack.c.l.b16 %v5213
      %v5995 = vunpack.c.h.b16 %v5213
      %v5996 = vunpack.c.l.b16 %v5214
      %v5997 = vunpack.c.h.b16 %v5214
      %v5998 = vunpack.c.l.b16 %v5215
      %v5999 = vunpack.c.h.b16 %v5215
      %v6000 = vunpack.c.l.b16 %v5216
      %v6001 = vunpack.c.h.b16 %v5216
      %v6002 = vunpack.c.l.b16 %v5217
      %v6003 = vunpack.c.h.b16 %v5217
      %v6004 = vunpack.c.l.b16 %v5218
      %v6005 = vunpack.c.h.b16 %v5218
      %v6006 = vunpack.c.l.b16 %v5219
      %v6007 = vunpack.c.h.b16 %v5219
      %v6008 = vunpack.c.l.b16 %v5220
      %v6009 = vunpack.c.h.b16 %v5220
      %v6010 = vunpack.c.l.b16 %v5221
      %v6011 = vunpack.c.h.b16 %v5221
      %v6012 = vunpack.c.l.b16 %v5222
      %v6013 = vunpack.c.h.b16 %v5222
      %v6014 = vunpack.c.l.b16 %v5223
      %v6015 = vunpack.c.h.b16 %v5223
      %v6016 = vunpack.c.l.b16 %v5224
      %v6017 = vunpack.c.h.b16 %v5224
      %v6018 = vunpack.c.l.b16 %v5225
      %v6019 = vunpack.c.h.b16 %v5225
      %v6020 = vunpack.c.l.b16 %v5226
      %v6021 = vunpack.c.h.b16 %v5226
      %v6022 = vunpack.c.l.b16 %v5227
      %v6023 = vunpack.c.h.b16 %v5227
      %v6024 = vunpack.c.l.b16 %v5228
      %v6025 = vunpack.c.h.b16 %v5228
      %v6026 = vunpack.c.l.b16 %v5229
      %v6027 = vunpack.c.h.b16 %v5229
      %v6028 = vunpack.c.l.b16 %v5230
      %v6029 = vunpack.c.h.b16 %v5230
      %v6030 = vunpack.c.l.b16 %v5231
      %v6031 = vunpack.c.h.b16 %v5231
      %v6032 = vunpack.c.l.b16 %v5232
      %v6033 = vunpack.c.h.b16 %v5232
      %v6034 = vunpack.c.l.b16 %v5233
      %v6035 = vunpack.c.h.b16 %v5233
      %v6036 = vunpack.c.l.b16 %v5234
      %v6037 = vunpack.c.h.b16 %v5234
      %v6038 = vunpack.c.l.b16 %v5235
      %v6039 = vunpack.c.h.b16 %v5235
      %v6040 = vunpack.c.l.b16 %v5236
      %v6041 = vunpack.c.h.b16 %v5236
      %v6042 = vunpack.c.l.b16 %v5237
      %v6043 = vunpack.c.h.b16 %v5237
      %v6044 = vunpack.c.l.b16 %v5238
      %v6045 = vunpack.c.h.b16 %v5238
      %v6046 = vunpack.c.l.b16 %v5239
      %v6047 = vunpack.c.h.b16 %v5239
      %v6048 = vunpack.c.l.b16 %v5240
      %v6049 = vunpack.c.h.b16 %v5240
      %v6050 = vunpack.c.l.b16 %v5241
      %v6051 = vunpack.c.h.b16 %v5241
      %v6052 = vunpack.c.l.b16 %v5242
      %v6053 = vunpack.c.h.b16 %v5242
      %v6054 = vunpack.c.l.b16 %v5243
      %v6055 = vunpack.c.h.b16 %v5243
      %v6056 = vunpack.c.l.b16 %v5244
      %v6057 = vunpack.c.h.b16 %v5244
      %v6058 = vunpack.c.l.b16 %v5245
      %v6059 = vunpack.c.h.b16 %v5245
      %v6060 = vunpack.c.l.b16 %v5246
      %v6061 = vunpack.c.h.b16 %v5246
      %v6062 = vunpack.c.l.b16 %v5247
      %v6063 = vunpack.c.h.b16 %v5247
      %v6064 = vunpack.c.l.b16 %v5248
      %v6065 = vunpack.c.h.b16 %v5248
      %v6066 = vunpack.c.l.b16 %v5249
      %v6067 = vunpack.c.h.b16 %v5249
      %v6068 = vunpack.c.l.b16 %v5250
      %v6069 = vunpack.c.h.b16 %v5250
      %v6070 = vunpack.c.l.b16 %v5251
      %v6071 = vunpack.c.h.b16 %v5251
      %v6072 = vunpack.c.l.b16 %v5252
      %v6073 = vunpack.c.h.b16 %v5252
      %v6074 = vunpack.c.l.b16 %v5253
      %v6075 = vunpack.c.h.b16 %v5253
      %v6076 = vunpack.c.l.b16 %v5254
      %v6077 = vunpack.c.h.b16 %v5254
      %v6078 = vunpack.c.l.b16 %v5255
      %v6079 = vunpack.c.h.b16 %v5255
      %v6080 = vunpack.c.l.b16 %v5256
      %v6081 = vunpack.c.h.b16 %v5256
      %v6082 = vunpack.c.l.b16 %v5257
      %v6083 = vunpack.c.h.b16 %v5257
      %v6084 = vunpack.c.l.b16 %v5258
      %v6085 = vunpack.c.h.b16 %v5258
      %v6086 = vunpack.c.l.b16 %v5259
      %v6087 = vunpack.c.h.b16 %v5259
      %v6088 = vunpack.c.l.b16 %v5260
      %v6089 = vunpack.c.h.b16 %v5260
      %v6090 = vunpack.c.l.b16 %v5261
      %v6091 = vunpack.c.h.b16 %v5261
      %v6092 = vunpack.c.l.b16 %v5262
      %v6093 = vunpack.c.h.b16 %v5262
      %v6094 = vunpack.c.l.b16 %v5263
      %v6095 = vunpack.c.h.b16 %v5263
      %v6096 = vunpack.c.l.b16 %v5264
      %v6097 = vunpack.c.h.b16 %v5264
      %v6098 = vunpack.c.l.b16 %v5265
      %v6099 = vunpack.c.h.b16 %v5265
      %v6100 = vunpack.c.l.b16 %v5266
      %v6101 = vunpack.c.h.b16 %v5266
      %v6102 = vunpack.c.l.b16 %v5267
      %v6103 = vunpack.c.h.b16 %v5267
      %v6104 = vunpack.c.l.b16 %v5268
      %v6105 = vunpack.c.h.b16 %v5268
      %v6106 = vunpack.c.l.b16 %v5269
      %v6107 = vunpack.c.h.b16 %v5269
      %v6108 = vunpack.c.l.b16 %v5270
      %v6109 = vunpack.c.h.b16 %v5270
      %v6110 = vunpack.c.l.b16 %v5271
      %v6111 = vunpack.c.h.b16 %v5271
      %v6112 = vunpack.c.l.b16 %v5272
      %v6113 = vunpack.c.h.b16 %v5272
      %v6114 = vunpack.c.l.b16 %v5273
      %v6115 = vunpack.c.h.b16 %v5273
      %v6116 = vunpack.c.l.b16 %v5274
      %v6117 = vunpack.c.h.b16 %v5274
      %v6118 = vunpack.c.l.b16 %v5275
      %v6119 = vunpack.c.h.b16 %v5275
      %v6120 = vunpack.c.l.b16 %v5276
      %v6121 = vunpack.c.h.b16 %v5276
      %v6122 = vunpack.c.l.b16 %v5277
      %v6123 = vunpack.c.h.b16 %v5277
      %v6124 = vunpack.c.l.b16 %v5278
      %v6125 = vunpack.c.h.b16 %v5278
      %v6126 = vunpack.c.l.b16 %v5279
      %v6127 = vunpack.c.h.b16 %v5279
      %v6128 = vunpack.c.l.b16 %v5280
      %v6129 = vunpack.c.h.b16 %v5280
      %v6130 = vunpack.c.l.b16 %v5281
      %v6131 = vunpack.c.h.b16 %v5281
      %v6132 = vunpack.c.l.b16 %v5282
      %v6133 = vunpack.c.h.b16 %v5282
      %v6134 = vunpack.c.l.b16 %v5283
      %v6135 = vunpack.c.h.b16 %v5283
      %v6136 = vunpack.c.l.b16 %v5284
      %v6137 = vunpack.c.h.b16 %v5284
      %v6138 = vunpack.c.l.b16 %v5285
      %v6139 = vunpack.c.h.b16 %v5285
      %v6140 = vunpack.c.l.b16 %v5286
      %v6141 = vunpack.c.h.b16 %v5286
      %v6142 = vunpack.c.l.b16 %v5287
      %v6143 = vunpack.c.h.b16 %v5287
      %v6144 = vunpack.c.l.b16 %v5288
      %v6145 = vunpack.c.h.b16 %v5288
      %v6146 = vunpack.c.l.b16 %v5289
      %v6147 = vunpack.c.h.b16 %v5289
      %v6148 = vunpack.c.l.b16 %v5290
      %v6149 = vunpack.c.h.b16 %v5290
      %v6150 = vunpack.c.l.b16 %v5291
      %v6151 = vunpack.c.h.b16 %v5291
      %v6152 = vunpack.c.l.b16 %v5292
      %v6153 = vunpack.c.h.b16 %v5292
      %v6154 = vunpack.c.l.b16 %v5293
      %v6155 = vunpack.c.h.b16 %v5293
      %v6156 = vunpack.c.l.b16 %v5294
      %v6157 = vunpack.c.h.b16 %v5294
      %v6158 = vunpack.c.l.b16 %v5295
      %v6159 = vunpack.c.h.b16 %v5295
      %v6160 = vunpack.c.l.b16 %v5296
      %v6161 = vunpack.c.h.b16 %v5296
      %v6162 = vunpack.c.l.b16 %v5297
      %v6163 = vunpack.c.h.b16 %v5297
      %v6164 = vunpack.c.l.b16 %v5298
      %v6165 = vunpack.c.h.b16 %v5298
      %v6166 = vunpack.c.l.b16 %v5299
      %v6167 = vunpack.c.h.b16 %v5299
      %v6168 = vunpack.c.l.b16 %v5300
      %v6169 = vunpack.c.h.b16 %v5300
      %v6170 = vunpack.c.l.b16 %v5301
      %v6171 = vunpack.c.h.b16 %v5301
      %v6172 = vunpack.c.l.b16 %v5302
      %v6173 = vunpack.c.h.b16 %v5302
      %v6174 = vunpack.c.l.b16 %v5303
      %v6175 = vunpack.c.h.b16 %v5303
      %v6176 = vunpack.c.l.b16 %v5304
      %v6177 = vunpack.c.h.b16 %v5304
      %v6178 = vunpack.c.l.b16 %v5305
      %v6179 = vunpack.c.h.b16 %v5305
      %v6180 = vunpack.c.l.b16 %v5306
      %v6181 = vunpack.c.h.b16 %v5306
      %v6182 = vunpack.c.l.b16 %v5307
      %v6183 = vunpack.c.h.b16 %v5307
      %v6184 = vunpack.c.l.b16 %v5308
      %v6185 = vunpack.c.h.b16 %v5308
      %v6186 = vunpack.c.l.b16 %v5309
      %v6187 = vunpack.c.h.b16 %v5309
      %v6188 = vunpack.c.l.b16 %v5310
      %v6189 = vunpack.c.h.b16 %v5310
      %v6190 = vunpack.c.l.b16 %v5311
      %v6191 = vunpack.c.h.b16 %v5311
      %v6192 = vunpack.c.l.b16 %v5312
      %v6193 = vunpack.c.h.b16 %v5312
      %v6194 = vunpack.c.l.b16 %v5313
      %v6195 = vunpack.c.h.b16 %v5313
      %v6196 = vunpack.c.l.b16 %v5314
      %v6197 = vunpack.c.h.b16 %v5314
      %v6198 = vunpack.c.l.b16 %v5315
      %v6199 = vunpack.c.h.b16 %v5315
      %v6200 = vunpack.c.l.b16 %v5316
      %v6201 = vunpack.c.h.b16 %v5316
      %v6202 = vunpack.c.l.b16 %v5317
      %v6203 = vunpack.c.h.b16 %v5317
      %v6204 = vunpack.c.l.b16 %v5318
      %v6205 = vunpack.c.h.b16 %v5318
      %v6206 = vunpack.c.l.b16 %v5319
      %v6207 = vunpack.c.h.b16 %v5319
      %v6208 = vunpack.c.l.b16 %v5320
      %v6209 = vunpack.c.h.b16 %v5320
      %v6210 = vunpack.c.l.b16 %v5321
      %v6211 = vunpack.c.h.b16 %v5321
      %v6212 = vunpack.c.l.b16 %v5322
      %v6213 = vunpack.c.h.b16 %v5322
      %v6214 = vunpack.c.l.b16 %v5323
      %v6215 = vunpack.c.h.b16 %v5323
      %v6216 = vunpack.c.l.b16 %v5324
      %v6217 = vunpack.c.h.b16 %v5324
      %v6218 = vunpack.c.l.b16 %v5325
      %v6219 = vunpack.c.h.b16 %v5325
      %v6220 = vunpack.c.l.b16 %v5326
      %v6221 = vunpack.c.h.b16 %v5326
      %v6222 = vunpack.c.l.b16 %v5327
      %v6223 = vunpack.c.h.b16 %v5327
      %v6224 = vunpack.c.l.b16 %v5328
      %v6225 = vunpack.c.h.b16 %v5328
      %v6226 = vunpack.c.l.b16 %v5329
      %v6227 = vunpack.c.h.b16 %v5329
      %v6228 = vunpack.c.l.b16 %v5330
      %v6229 = vunpack.c.h.b16 %v5330
      %v6230 = vunpack.c.l.b16 %v5331
      %v6231 = vunpack.c.h.b16 %v5331
      %v6232 = vunpack.c.l.b16 %v5332
      %v6233 = vunpack.c.h.b16 %v5332
      %v6234 = vunpack.c.l.b16 %v5333
      %v6235 = vunpack.c.h.b16 %v5333
      %v6236 = vunpack.c.l.b16 %v5334
      %v6237 = vunpack.c.h.b16 %v5334
      %v6238 = vunpack.c.l.b16 %v5335
      %v6239 = vunpack.c.h.b16 %v5335
      %v6240 = vunpack.c.l.b16 %v5336
      %v6241 = vunpack.c.h.b16 %v5336
      %v6242 = vunpack.c.l.b16 %v5337
      %v6243 = vunpack.c.h.b16 %v5337
      %v6244 = vunpack.c.l.b16 %v5338
      %v6245 = vunpack.c.h.b16 %v5338
      %v6246 = vunpack.c.l.b16 %v5339
      %v6247 = vunpack.c.h.b16 %v5339
      %v6248 = vunpack.c.l.b16 %v5340
      %v6249 = vunpack.c.h.b16 %v5340
      %v6250 = vunpack.c.l.b16 %v5341
      %v6251 = vunpack.c.h.b16 %v5341
      %v6252 = vunpack.c.l.b16 %v5342
      %v6253 = vunpack.c.h.b16 %v5342
      %v6254 = vunpack.c.l.b16 %v5343
      %v6255 = vunpack.c.h.b16 %v5343
      %v6256 = vunpack.c.l.b16 %v5344
      %v6257 = vunpack.c.h.b16 %v5344
      %v6258 = vunpack.c.l.b16 %v5345
      %v6259 = vunpack.c.h.b16 %v5345
      %v6260 = vunpack.c.l.b16 %v5346
      %v6261 = vunpack.c.h.b16 %v5346
      %v6262 = vunpack.c.l.b16 %v5347
      %v6263 = vunpack.c.h.b16 %v5347
      %v6264 = vunpack.c.l.b16 %v5348
      %v6265 = vunpack.c.h.b16 %v5348
      %v6266 = vunpack.c.l.b16 %v5349
      %v6267 = vunpack.c.h.b16 %v5349
      %v6268 = vunpack.c.l.b16 %v5350
      %v6269 = vunpack.c.h.b16 %v5350
      %v6270 = vunpack.c.l.b16 %v5351
      %v6271 = vunpack.c.h.b16 %v5351
      %v6272 = vunpack.c.l.b16 %v5352
      %v6273 = vunpack.c.h.b16 %v5352
      %v6274 = vunpack.c.l.b16 %v5353
      %v6275 = vunpack.c.h.b16 %v5353
      %v6276 = vunpack.c.l.b16 %v5354
      %v6277 = vunpack.c.h.b16 %v5354
      %v6278 = vunpack.c.l.b16 %v5355
      %v6279 = vunpack.c.h.b16 %v5355
      %v6280 = vunpack.c.l.b16 %v5356
      %v6281 = vunpack.c.h.b16 %v5356
      %v6282 = vunpack.c.l.b16 %v5357
      %v6283 = vunpack.c.h.b16 %v5357
      %v6284 = vunpack.c.l.b16 %v5358
      %v6285 = vunpack.c.h.b16 %v5358
      %v6286 = vunpack.c.l.b16 %v5359
      %v6287 = vunpack.c.h.b16 %v5359
      %v6288 = vpack.c.b16 %v5780, %v5776
      %v6289 = vpack.c.b16 %v5781, %v5777
      %v6290 = vpack.c.b16 %v5782, %v5778
      %v6291 = vpack.c.b16 %v5783, %v5779
      %v6292 = vpack.c.b16 %v5788, %v5784
      %v6293 = vpack.c.b16 %v5789, %v5785
      %v6294 = vpack.c.b16 %v5790, %v5786
      %v6295 = vpack.c.b16 %v5791, %v5787
      %v6296 = vpack.c.b16 %v5796, %v5792
      %v6297 = vpack.c.b16 %v5797, %v5793
      %v6298 = vpack.c.b16 %v5798, %v5794
      %v6299 = vpack.c.b16 %v5799, %v5795
      %v6300 = vpack.c.b16 %v5804, %v5800
      %v6301 = vpack.c.b16 %v5805, %v5801
      %v6302 = vpack.c.b16 %v5806, %v5802
      %v6303 = vpack.c.b16 %v5807, %v5803
      %v6304 = vpack.c.b16 %v5812, %v5808
      %v6305 = vpack.c.b16 %v5813, %v5809
      %v6306 = vpack.c.b16 %v5814, %v5810
      %v6307 = vpack.c.b16 %v5815, %v5811
      %v6308 = vpack.c.b16 %v5820, %v5816
      %v6309 = vpack.c.b16 %v5821, %v5817
      %v6310 = vpack.c.b16 %v5822, %v5818
      %v6311 = vpack.c.b16 %v5823, %v5819
      %v6312 = vpack.c.b16 %v5828, %v5824
      %v6313 = vpack.c.b16 %v5829, %v5825
      %v6314 = vpack.c.b16 %v5830, %v5826
      %v6315 = vpack.c.b16 %v5831, %v5827
      %v6316 = vpack.c.b16 %v5836, %v5832
      %v6317 = vpack.c.b16 %v5837, %v5833
      %v6318 = vpack.c.b16 %v5838, %v5834
      %v6319 = vpack.c.b16 %v5839, %v5835
      %v6320 = vpack.c.b16 %v5844, %v5840
      %v6321 = vpack.c.b16 %v5845, %v5841
      %v6322 = vpack.c.b16 %v5846, %v5842
      %v6323 = vpack.c.b16 %v5847, %v5843
      %v6324 = vpack.c.b16 %v5852, %v5848
      %v6325 = vpack.c.b16 %v5853, %v5849
      %v6326 = vpack.c.b16 %v5854, %v5850
      %v6327 = vpack.c.b16 %v5855, %v5851
      %v6328 = vpack.c.b16 %v5860, %v5856
      %v6329 = vpack.c.b16 %v5861, %v5857
      %v6330 = vpack.c.b16 %v5862, %v5858
      %v6331 = vpack.c.b16 %v5863, %v5859
      %v6332 = vpack.c.b16 %v5868, %v5864
      %v6333 = vpack.c.b16 %v5869, %v5865
      %v6334 = vpack.c.b16 %v5870, %v5866
      %v6335 = vpack.c.b16 %v5871, %v5867
      %v6336 = vpack.c.b16 %v5876, %v5872
      %v6337 = vpack.c.b16 %v5877, %v5873
      %v6338 = vpack.c.b16 %v5878, %v5874
      %v6339 = vpack.c.b16 %v5879, %v5875
      %v6340 = vpack.c.b16 %v5884, %v5880
      %v6341 = vpack.c.b16 %v5885, %v5881
      %v6342 = vpack.c.b16 %v5886, %v5882
      %v6343 = vpack.c.b16 %v5887, %v5883
      %v6344 = vpack.c.b16 %v5892, %v5888
      %v6345 = vpack.c.b16 %v5893, %v5889
      %v6346 = vpack.c.b16 %v5894, %v5890
      %v6347 = vpack.c.b16 %v5895, %v5891
      %v6348 = vpack.c.b16 %v5900, %v5896
      %v6349 = vpack.c.b16 %v5901, %v5897
      %v6350 = vpack.c.b16 %v5902, %v5898
      %v6351 = vpack.c.b16 %v5903, %v5899
      %v6352 = vpack.c.b16 %v5908, %v5904
      %v6353 = vpack.c.b16 %v5909, %v5905
      %v6354 = vpack.c.b16 %v5910, %v5906
      %v6355 = vpack.c.b16 %v5911, %v5907
      %v6356 = vpack.c.b16 %v5916, %v5912
      %v6357 = vpack.c.b16 %v5917, %v5913
      %v6358 = vpack.c.b16 %v5918, %v5914
      %v6359 = vpack.c.b16 %v5919, %v5915
      %v6360 = vpack.c.b16 %v5924, %v5920
      %v6361 = vpack.c.b16 %v5925, %v5921
      %v6362 = vpack.c.b16 %v5926, %v5922
      %v6363 = vpack.c.b16 %v5927, %v5923
      %v6364 = vpack.c.b16 %v5932, %v5928
      %v6365 = vpack.c.b16 %v5933, %v5929
      %v6366 = vpack.c.b16 %v5934, %v5930
      %v6367 = vpack.c.b16 %v5935, %v5931
      %v6368 = vpack.c.b16 %v5940, %v5936
      %v6369 = vpack.c.b16 %v5941, %v5937
      %v6370 = vpack.c.b16 %v5942, %v5938
      %v6371 = vpack.c.b16 %v5943, %v5939
      %v6372 = vpack.c.b16 %v5948, %v5944
      %v6373 = vpack.c.b16 %v5949, %v5945
      %v6374 = vpack.c.b16 %v5950, %v5946
      %v6375 = vpack.c.b16 %v5951, %v5947
      %v6376 = vpack.c.b16 %v5956, %v5952
      %v6377 = vpack.c.b16 %v5957, %v5953
      %v6378 = vpack.c.b16 %v5958, %v5954
      %v6379 = vpack.c.b16 %v5959, %v5955
      %v6380 = vpack.c.b16 %v5964, %v5960
      %v6381 = vpack.c.b16 %v5965, %v5961
      %v6382 = vpack.c.b16 %v5966, %v5962
      %v6383 = vpack.c.b16 %v5967, %v5963
      %v6384 = vpack.c.b16 %v5972, %v5968
      %v6385 = vpack.c.b16 %v5973, %v5969
      %v6386 = vpack.c.b16 %v5974, %v5970
      %v6387 = vpack.c.b16 %v5975, %v5971
      %v6388 = vpack.c.b16 %v5980, %v5976
      %v6389 = vpack.c.b16 %v5981, %v5977
      %v6390 = vpack.c.b16 %v5982, %v5978
      %v6391 = vpack.c.b16 %v5983, %v5979
      %v6392 = vpack.c.b16 %v5988, %v5984
      %v6393 = vpack.c.b16 %v5989, %v5985
      %v6394 = vpack.c.b16 %v5990, %v5986
      %v6395 = vpack.c.b16 %v5991, %v5987
      %v6396 = vpack.c.b16 %v5996, %v5992
      %v6397 = vpack.c.b16 %v5997, %v5993
      %v6398 = vpack.c.b16 %v5998, %v5994
      %v6399 = vpack.c.b16 %v5999, %v5995
      %v6400 = vpack.c.b16 %v6004, %v6000
      %v6401 = vpack.c.b16 %v6005, %v6001
      %v6402 = vpack.c.b16 %v6006, %v6002
      %v6403 = vpack.c.b16 %v6007, %v6003
      %v6404 = vpack.c.b16 %v6012, %v6008
      %v6405 = vpack.c.b16 %v6013, %v6009
      %v6406 = vpack.c.b16 %v6014, %v6010
      %v6407 = vpack.c.b16 %v6015, %v6011
      %v6408 = vpack.c.b16 %v6020, %v6016
      %v6409 = vpack.c.b16 %v6021, %v6017
      %v6410 = vpack.c.b16 %v6022, %v6018
      %v6411 = vpack.c.b16 %v6023, %v6019
      %v6412 = vpack.c.b16 %v6028, %v6024
      %v6413 = vpack.c.b16 %v6029, %v6025
      %v6414 = vpack.c.b16 %v6030, %v6026
      %v6415 = vpack.c.b16 %v6031, %v6027
      %v6416 = vpack.c.b16 %v6036, %v6032
      %v6417 = vpack.c.b16 %v6037, %v6033
      %v6418 = vpack.c.b16 %v6038, %v6034
      %v6419 = vpack.c.b16 %v6039, %v6035
      %v6420 = vpack.c.b16 %v6044, %v6040
      %v6421 = vpack.c.b16 %v6045, %v6041
      %v6422 = vpack.c.b16 %v6046, %v6042
      %v6423 = vpack.c.b16 %v6047, %v6043
      %v6424 = vpack.c.b16 %v6052, %v6048
      %v6425 = vpack.c.b16 %v6053, %v6049
      %v6426 = vpack.c.b16 %v6054, %v6050
      %v6427 = vpack.c.b16 %v6055, %v6051
      %v6428 = vpack.c.b16 %v6060, %v6056
      %v6429 = vpack.c.b16 %v6061, %v6057
      %v6430 = vpack.c.b16 %v6062, %v6058
      %v6431 = vpack.c.b16 %v6063, %v6059
      %v6432 = vpack.c.b16 %v6068, %v6064
      %v6433 = vpack.c.b16 %v6069, %v6065
      %v6434 = vpack.c.b16 %v6070, %v6066
      %v6435 = vpack.c.b16 %v6071, %v6067
      %v6436 = vpack.c.b16 %v6076, %v6072
      %v6437 = vpack.c.b16 %v6077, %v6073
      %v6438 = vpack.c.b16 %v6078, %v6074
      %v6439 = vpack.c.b16 %v6079, %v6075
      %v6440 = vpack.c.b16 %v6084, %v6080
      %v6441 = vpack.c.b16 %v6085, %v6081
      %v6442 = vpack.c.b16 %v6086, %v6082
      %v6443 = vpack.c.b16 %v6087, %v6083
      %v6444 = vpack.c.b16 %v6092, %v6088
      %v6445 = vpack.c.b16 %v6093, %v6089
      %v6446 = vpack.c.b16 %v6094, %v6090
      %v6447 = vpack.c.b16 %v6095, %v6091
      %v6448 = vpack.c.b16 %v6100, %v6096
      %v6449 = vpack.c.b16 %v6101, %v6097
      %v6450 = vpack.c.b16 %v6102, %v6098
      %v6451 = vpack.c.b16 %v6103, %v6099
      %v6452 = vpack.c.b16 %v6108, %v6104
      %v6453 = vpack.c.b16 %v6109, %v6105
      %v6454 = vpack.c.b16 %v6110, %v6106
      %v6455 = vpack.c.b16 %v6111, %v6107
      %v6456 = vpack.c.b16 %v6116, %v6112
      %v6457 = vpack.c.b16 %v6117, %v6113
      %v6458 = vpack.c.b16 %v6118, %v6114
      %v6459 = vpack.c.b16 %v6119, %v6115
      %v6460 = vpack.c.b16 %v6124, %v6120
      %v6461 = vpack.c.b16 %v6125, %v6121
      %v6462 = vpack.c.b16 %v6126, %v6122
      %v6463 = vpack.c.b16 %v6127, %v6123
      %v6464 = vpack.c.b16 %v6132, %v6128
      %v6465 = vpack.c.b16 %v6133, %v6129
      %v6466 = vpack.c.b16 %v6134, %v6130
      %v6467 = vpack.c.b16 %v6135, %v6131
      %v6468 = vpack.c.b16 %v6140, %v6136
      %v6469 = vpack.c.b16 %v6141, %v6137
      %v6470 = vpack.c.b16 %v6142, %v6138
      %v6471 = vpack.c.b16 %v6143, %v6139
      %v6472 = vpack.c.b16 %v6148, %v6144
      %v6473 = vpack.c.b16 %v6149, %v6145
      %v6474 = vpack.c.b16 %v6150, %v6146
      %v6475 = vpack.c.b16 %v6151, %v6147
      %v6476 = vpack.c.b16 %v6156, %v6152
      %v6477 = vpack.c.b16 %v6157, %v6153
      %v6478 = vpack.c.b16 %v6158, %v6154
      %v6479 = vpack.c.b16 %v6159, %v6155
      %v6480 = vpack.c.b16 %v6164, %v6160
      %v6481 = vpack.c.b16 %v6165, %v6161
      %v6482 = vpack.c.b16 %v6166, %v6162
      %v6483 = vpack.c.b16 %v6167, %v6163
      %v6484 = vpack.c.b16 %v6172, %v6168
      %v6485 = vpack.c.b16 %v6173, %v6169
      %v6486 = vpack.c.b16 %v6174, %v6170
      %v6487 = vpack.c.b16 %v6175, %v6171
      %v6488 = vpack.c.b16 %v6180, %v6176
      %v6489 = vpack.c.b16 %v6181, %v6177
      %v6490 = vpack.c.b16 %v6182, %v6178
      %v6491 = vpack.c.b16 %v6183, %v6179
      %v6492 = vpack.c.b16 %v6188, %v6184
      %v6493 = vpack.c.b16 %v6189, %v6185
      %v6494 = vpack.c.b16 %v6190, %v6186
      %v6495 = vpack.c.b16 %v6191, %v6187
      %v6496 = vpack.c.b16 %v6196, %v6192
      %v6497 = vpack.c.b16 %v6197, %v6193
      %v6498 = vpack.c.b16 %v6198, %v6194
      %v6499 = vpack.c.b16 %v6199, %v6195
      %v6500 = vpack.c.b16 %v6204, %v6200
      %v6501 = vpack.c.b16 %v6205, %v6201
      %v6502 = vpack.c.b16 %v6206, %v6202
      %v6503 = vpack.c.b16 %v6207, %v6203
      %v6504 = vpack.c.b16 %v6212, %v6208
      %v6505 = vpack.c.b16 %v6213, %v6209
      %v6506 = vpack.c.b16 %v6214, %v6210
      %v6507 = vpack.c.b16 %v6215, %v6211
      %v6508 = vpack.c.b16 %v6220, %v6216
      %v6509 = vpack.c.b16 %v6221, %v6217
      %v6510 = vpack.c.b16 %v6222, %v6218
      %v6511 = vpack.c.b16 %v6223, %v6219
      %v6512 = vpack.c.b16 %v6228, %v6224
      %v6513 = vpack.c.b16 %v6229, %v6225
      %v6514 = vpack.c.b16 %v6230, %v6226
      %v6515 = vpack.c.b16 %v6231, %v6227
      %v6516 = vpack.c.b16 %v6236, %v6232
      %v6517 = vpack.c.b16 %v6237, %v6233
      %v6518 = vpack.c.b16 %v6238, %v6234
      %v6519 = vpack.c.b16 %v6239, %v6235
      %v6520 = vpack.c.b16 %v6244, %v6240
      %v6521 = vpack.c.b16 %v6245, %v6241
      %v6522 = vpack.c.b16 %v6246, %v6242
      %v6523 = vpack.c.b16 %v6247, %v6243
      %v6524 = vpack.c.b16 %v6252, %v6248
      %v6525 = vpack.c.b16 %v6253, %v6249
      %v6526 = vpack.c.b16 %v6254, %v6250
      %v6527 = vpack.c.b16 %v6255, %v6251
      %v6528 = vpack.c.b16 %v6260, %v6256
      %v6529 = vpack.c.b16 %v6261, %v6257
      %v6530 = vpack.c.b16 %v6262, %v6258
      %v6531 = vpack.c.b16 %v6263, %v6259
      %v6532 = vpack.c.b16 %v6268, %v6264
      %v6533 = vpack.c.b16 %v6269, %v6265
      %v6534 = vpack.c.b16 %v6270, %v6266
      %v6535 = vpack.c.b16 %v6271, %v6267
      %v6536 = vpack.c.b16 %v6276, %v6272
      %v6537 = vpack.c.b16 %v6277, %v6273
      %v6538 = vpack.c.b16 %v6278, %v6274
      %v6539 = vpack.c.b16 %v6279, %v6275
      %v6540 = vpack.c.b16 %v6284, %v6280
      %v6541 = vpack.c.b16 %v6285, %v6281
      %v6542 = vpack.c.b16 %v6286, %v6282
      %v6543 = vpack.c.b16 %v6287, %v6283
      %6800 = vmatprep.subr.bf16.mxu0 %v6317
      %6801 = vmatpush1.bf16.msra.mxu0 %v6316
      %6802 = vmatprep.subr.bf16.mxu0 %v6313
      %6803 = vmatpush1.bf16.msra.mxu0 %v6312
      %6804 = vmatprep.subr.bf16.mxu0 %v6309
      %6805 = vmatpush1.bf16.msra.mxu0 %v6308
      %6806 = vmatprep.subr.bf16.mxu0 %v6305
      %6807 = vmatpush1.bf16.msra.mxu0 %v6304
      %6808 = vmatprep.subr.bf16.mxu0 %v6301
      %6809 = vmatpush1.bf16.msra.mxu0 %v6300
      %6810 = vmatprep.subr.bf16.mxu0 %v6297
      %6811 = vmatpush1.bf16.msra.mxu0 %v6296
      %6812 = vmatprep.subr.bf16.mxu0 %v6293
      %6813 = vmatpush1.bf16.msra.mxu0 %v6292
      %6814 = vmatprep.subr.bf16.mxu0 %v6289
      %6815 = vmatpush1.bf16.msra.mxu0 %v6288
      %6816 = vmatprep.subr.bf16.mxu0 %v6349
      %6817 = vmatpush2.bf16.msra.mxu0 %v6348
      %6818 = vmatprep.subr.bf16.mxu0 %v6345
      %6819 = vmatpush2.bf16.msra.mxu0 %v6344
      %6820 = vmatprep.subr.bf16.mxu0 %v6341
      %6821 = vmatpush2.bf16.msra.mxu0 %v6340
      %6822 = vmatprep.subr.bf16.mxu0 %v6337
      %6823 = vmatpush2.bf16.msra.mxu0 %v6336
      %6824 = vmatprep.subr.bf16.mxu0 %v6333
      %6825 = vmatpush2.bf16.msra.mxu0 %v6332
      %6826 = vmatprep.subr.bf16.mxu0 %v6329
      %6827 = vmatpush2.bf16.msra.mxu0 %v6328
      %6828 = vmatprep.subr.bf16.mxu0 %v6325
      %6829 = vmatpush2.bf16.msra.mxu0 %v6324
      %6830 = vmatprep.subr.bf16.mxu0 %v6321
      %6831 = vmatpush2.bf16.msra.mxu0 %v6320
      %6832 = vmatprep.mubr.bf16.mxu0 %v5457
      %6833 = vmatmul.mubr.bf16.gmra.mxu0 %v5456
      %v6834 = vpop.f32.mrf.mxu0
      %v6835 = vadd.f32 0.0, %v6834
      %v6836 = vpop.f32.mrf.mxu0
      %v6837 = vadd.f32 0.0, %v6836
      %v6838 = vpop.f32.mrf.mxu0
      %v6839 = vadd.f32 0.0, %v6838
      %v6840 = vpop.f32.mrf.mxu0
      %v6841 = vadd.f32 0.0, %v6840
      %6842 = vmatprep.mubr.bf16.mxu0 %v5465
      %6843 = vmatmul.mubr.bf16.gmra.mxu0 %v5464
      %v6844 = vpop.f32.mrf.mxu0
      %v6845 = vadd.f32 0.0, %v6844
      %v6846 = vpop.f32.mrf.mxu0
      %v6847 = vadd.f32 0.0, %v6846
      %v6848 = vpop.f32.mrf.mxu0
      %v6849 = vadd.f32 0.0, %v6848
      %v6850 = vpop.f32.mrf.mxu0
      %v6851 = vadd.f32 0.0, %v6850
      %6852 = vmatprep.mubr.bf16.mxu0 %v5473
      %6853 = vmatmul.mubr.bf16.gmra.mxu0 %v5472
      %v6854 = vpop.f32.mrf.mxu0
      %v6855 = vadd.f32 0.0, %v6854
      %v6856 = vpop.f32.mrf.mxu0
      %v6857 = vadd.f32 0.0, %v6856
      %v6858 = vpop.f32.mrf.mxu0
      %v6859 = vadd.f32 0.0, %v6858
      %v6860 = vpop.f32.mrf.mxu0
      %v6861 = vadd.f32 0.0, %v6860
      %6862 = vmatprep.mubr.bf16.mxu0 %v5481
      %6863 = vmatmul.mubr.bf16.gmra.mxu0 %v5480
      %v6864 = vpop.f32.mrf.mxu0
      %v6865 = vadd.f32 0.0, %v6864
      %v6866 = vpop.f32.mrf.mxu0
      %v6867 = vadd.f32 0.0, %v6866
      %v6868 = vpop.f32.mrf.mxu0
      %v6869 = vadd.f32 0.0, %v6868
      %v6870 = vpop.f32.mrf.mxu0
      %v6871 = vadd.f32 0.0, %v6870
      %6872 = vdwg.mxu0
      %6873 = vmatprep.subr.bf16.mxu0 %v6381
      %6874 = vmatpush1.bf16.msra.mxu0 %v6380
      %6875 = vmatprep.subr.bf16.mxu0 %v6377
      %6876 = vmatpush1.bf16.msra.mxu0 %v6376
      %6877 = vmatprep.subr.bf16.mxu0 %v6373
      %6878 = vmatpush1.bf16.msra.mxu0 %v6372
      %6879 = vmatprep.subr.bf16.mxu0 %v6369
      %6880 = vmatpush1.bf16.msra.mxu0 %v6368
      %6881 = vmatprep.subr.bf16.mxu0 %v6365
      %6882 = vmatpush1.bf16.msra.mxu0 %v6364
      %6883 = vmatprep.subr.bf16.mxu0 %v6361
      %6884 = vmatpush1.bf16.msra.mxu0 %v6360
      %6885 = vmatprep.subr.bf16.mxu0 %v6357
      %6886 = vmatpush1.bf16.msra.mxu0 %v6356
      %6887 = vmatprep.subr.bf16.mxu0 %v6353
      %6888 = vmatpush1.bf16.msra.mxu0 %v6352
      %6889 = vmatprep.subr.bf16.mxu0 %v6413
      %6890 = vmatpush2.bf16.msra.mxu0 %v6412
      %6891 = vmatprep.subr.bf16.mxu0 %v6409
      %6892 = vmatpush2.bf16.msra.mxu0 %v6408
      %6893 = vmatprep.subr.bf16.mxu0 %v6405
      %6894 = vmatpush2.bf16.msra.mxu0 %v6404
      %6895 = vmatprep.subr.bf16.mxu0 %v6401
      %6896 = vmatpush2.bf16.msra.mxu0 %v6400
      %6897 = vmatprep.subr.bf16.mxu0 %v6397
      %6898 = vmatpush2.bf16.msra.mxu0 %v6396
      %6899 = vmatprep.subr.bf16.mxu0 %v6393
      %6900 = vmatpush2.bf16.msra.mxu0 %v6392
      %6901 = vmatprep.subr.bf16.mxu0 %v6389
      %6902 = vmatpush2.bf16.msra.mxu0 %v6388
      %6903 = vmatprep.subr.bf16.mxu0 %v6385
      %6904 = vmatpush2.bf16.msra.mxu0 %v6384
      %6905 = vmatprep.mubr.bf16.mxu0 %v5459
      %6906 = vmatmul.mubr.bf16.gmra.mxu0 %v5458
      %v6907 = vpop.f32.mrf.mxu0
      %v6908 = vadd.f32 %v6835, %v6907
      %v6909 = vpop.f32.mrf.mxu0
      %v6910 = vadd.f32 %v6837, %v6909
      %v6911 = vpop.f32.mrf.mxu0
      %v6912 = vadd.f32 %v6839, %v6911
      %v6913 = vpop.f32.mrf.mxu0
      %v6914 = vadd.f32 %v6841, %v6913
      %6915 = vmatprep.mubr.bf16.mxu0 %v5467
      %6916 = vmatmul.mubr.bf16.gmra.mxu0 %v5466
      %v6917 = vpop.f32.mrf.mxu0
      %v6918 = vadd.f32 %v6845, %v6917
      %v6919 = vpop.f32.mrf.mxu0
      %v6920 = vadd.f32 %v6847, %v6919
      %v6921 = vpop.f32.mrf.mxu0
      %v6922 = vadd.f32 %v6849, %v6921
      %v6923 = vpop.f32.mrf.mxu0
      %v6924 = vadd.f32 %v6851, %v6923
      %6925 = vmatprep.mubr.bf16.mxu0 %v5475
      %6926 = vmatmul.mubr.bf16.gmra.mxu0 %v5474
      %v6927 = vpop.f32.mrf.mxu0
      %v6928 = vadd.f32 %v6855, %v6927
      %v6929 = vpop.f32.mrf.mxu0
      %v6930 = vadd.f32 %v6857, %v6929
      %v6931 = vpop.f32.mrf.mxu0
      %v6932 = vadd.f32 %v6859, %v6931
      %v6933 = vpop.f32.mrf.mxu0
      %v6934 = vadd.f32 %v6861, %v6933
      %6935 = vmatprep.mubr.bf16.mxu0 %v5483
      %6936 = vmatmul.mubr.bf16.gmra.mxu0 %v5482
      %v6937 = vpop.f32.mrf.mxu0
      %v6938 = vadd.f32 %v6865, %v6937
      %v6939 = vpop.f32.mrf.mxu0
      %v6940 = vadd.f32 %v6867, %v6939
      %v6941 = vpop.f32.mrf.mxu0
      %v6942 = vadd.f32 %v6869, %v6941
      %v6943 = vpop.f32.mrf.mxu0
      %v6944 = vadd.f32 %v6871, %v6943
      %6945 = vdwg.mxu0
      %6946 = vmatprep.subr.bf16.mxu0 %v6445
      %6947 = vmatpush1.bf16.msra.mxu0 %v6444
      %6948 = vmatprep.subr.bf16.mxu0 %v6441
      %6949 = vmatpush1.bf16.msra.mxu0 %v6440
      %6950 = vmatprep.subr.bf16.mxu0 %v6437
      %6951 = vmatpush1.bf16.msra.mxu0 %v6436
      %6952 = vmatprep.subr.bf16.mxu0 %v6433
      %6953 = vmatpush1.bf16.msra.mxu0 %v6432
      %6954 = vmatprep.subr.bf16.mxu0 %v6429
      %6955 = vmatpush1.bf16.msra.mxu0 %v6428
      %6956 = vmatprep.subr.bf16.mxu0 %v6425
      %6957 = vmatpush1.bf16.msra.mxu0 %v6424
      %6958 = vmatprep.subr.bf16.mxu0 %v6421
      %6959 = vmatpush1.bf16.msra.mxu0 %v6420
      %6960 = vmatprep.subr.bf16.mxu0 %v6417
      %6961 = vmatpush1.bf16.msra.mxu0 %v6416
      %6962 = vmatprep.subr.bf16.mxu0 %v6477
      %6963 = vmatpush2.bf16.msra.mxu0 %v6476
      %6964 = vmatprep.subr.bf16.mxu0 %v6473
      %6965 = vmatpush2.bf16.msra.mxu0 %v6472
      %6966 = vmatprep.subr.bf16.mxu0 %v6469
      %6967 = vmatpush2.bf16.msra.mxu0 %v6468
      %6968 = vmatprep.subr.bf16.mxu0 %v6465
      %6969 = vmatpush2.bf16.msra.mxu0 %v6464
      %6970 = vmatprep.subr.bf16.mxu0 %v6461
      %6971 = vmatpush2.bf16.msra.mxu0 %v6460
      %6972 = vmatprep.subr.bf16.mxu0 %v6457
      %6973 = vmatpush2.bf16.msra.mxu0 %v6456
      %6974 = vmatprep.subr.bf16.mxu0 %v6453
      %6975 = vmatpush2.bf16.msra.mxu0 %v6452
      %6976 = vmatprep.subr.bf16.mxu0 %v6449
      %6977 = vmatpush2.bf16.msra.mxu0 %v6448
      %6978 = vmatprep.mubr.bf16.mxu0 %v5461
      %6979 = vmatmul.mubr.bf16.gmra.mxu0 %v5460
      %v6980 = vpop.f32.mrf.mxu0
      %v6981 = vadd.f32 %v6908, %v6980
      %v6982 = vpop.f32.mrf.mxu0
      %v6983 = vadd.f32 %v6910, %v6982
      %v6984 = vpop.f32.mrf.mxu0
      %v6985 = vadd.f32 %v6912, %v6984
      %v6986 = vpop.f32.mrf.mxu0
      %v6987 = vadd.f32 %v6914, %v6986
      %6988 = vmatprep.mubr.bf16.mxu0 %v5469
      %6989 = vmatmul.mubr.bf16.gmra.mxu0 %v5468
      %v6990 = vpop.f32.mrf.mxu0
      %v6991 = vadd.f32 %v6918, %v6990
      %v6992 = vpop.f32.mrf.mxu0
      %v6993 = vadd.f32 %v6920, %v6992
      %v6994 = vpop.f32.mrf.mxu0
      %v6995 = vadd.f32 %v6922, %v6994
      %v6996 = vpop.f32.mrf.mxu0
      %v6997 = vadd.f32 %v6924, %v6996
      %6998 = vmatprep.mubr.bf16.mxu0 %v5477
      %6999 = vmatmul.mubr.bf16.gmra.mxu0 %v5476
      %v7000 = vpop.f32.mrf.mxu0
      %v7001 = vadd.f32 %v6928, %v7000
      %v7002 = vpop.f32.mrf.mxu0
      %v7003 = vadd.f32 %v6930, %v7002
      %v7004 = vpop.f32.mrf.mxu0
      %v7005 = vadd.f32 %v6932, %v7004
      %v7006 = vpop.f32.mrf.mxu0
      %v7007 = vadd.f32 %v6934, %v7006
      %7008 = vmatprep.mubr.bf16.mxu0 %v5485
      %7009 = vmatmul.mubr.bf16.gmra.mxu0 %v5484
      %v7010 = vpop.f32.mrf.mxu0
      %v7011 = vadd.f32 %v6938, %v7010
      %v7012 = vpop.f32.mrf.mxu0
      %v7013 = vadd.f32 %v6940, %v7012
      %v7014 = vpop.f32.mrf.mxu0
      %v7015 = vadd.f32 %v6942, %v7014
      %v7016 = vpop.f32.mrf.mxu0
      %v7017 = vadd.f32 %v6944, %v7016
      %7018 = vdwg.mxu0
      %7019 = vmatprep.subr.bf16.mxu0 %v6509
      %7020 = vmatpush1.bf16.msra.mxu0 %v6508
      %7021 = vmatprep.subr.bf16.mxu0 %v6505
      %7022 = vmatpush1.bf16.msra.mxu0 %v6504
      %7023 = vmatprep.subr.bf16.mxu0 %v6501
      %7024 = vmatpush1.bf16.msra.mxu0 %v6500
      %7025 = vmatprep.subr.bf16.mxu0 %v6497
      %7026 = vmatpush1.bf16.msra.mxu0 %v6496
      %7027 = vmatprep.subr.bf16.mxu0 %v6493
      %7028 = vmatpush1.bf16.msra.mxu0 %v6492
      %7029 = vmatprep.subr.bf16.mxu0 %v6489
      %7030 = vmatpush1.bf16.msra.mxu0 %v6488
      %7031 = vmatprep.subr.bf16.mxu0 %v6485
      %7032 = vmatpush1.bf16.msra.mxu0 %v6484
      %7033 = vmatprep.subr.bf16.mxu0 %v6481
      %7034 = vmatpush1.bf16.msra.mxu0 %v6480
      %7035 = vmatprep.subr.bf16.mxu0 %v6541
      %7036 = vmatpush2.bf16.msra.mxu0 %v6540
      %7037 = vmatprep.subr.bf16.mxu0 %v6537
      %7038 = vmatpush2.bf16.msra.mxu0 %v6536
      %7039 = vmatprep.subr.bf16.mxu0 %v6533
      %7040 = vmatpush2.bf16.msra.mxu0 %v6532
      %7041 = vmatprep.subr.bf16.mxu0 %v6529
      %7042 = vmatpush2.bf16.msra.mxu0 %v6528
      %7043 = vmatprep.subr.bf16.mxu0 %v6525
      %7044 = vmatpush2.bf16.msra.mxu0 %v6524
      %7045 = vmatprep.subr.bf16.mxu0 %v6521
      %7046 = vmatpush2.bf16.msra.mxu0 %v6520
      %7047 = vmatprep.subr.bf16.mxu0 %v6517
      %7048 = vmatpush2.bf16.msra.mxu0 %v6516
      %7049 = vmatprep.subr.bf16.mxu0 %v6513
      %7050 = vmatpush2.bf16.msra.mxu0 %v6512
      %7051 = vmatprep.mubr.bf16.mxu0 %v5463
      %7052 = vmatmul.mubr.bf16.gmra.mxu0 %v5462
      %v7053 = vpop.f32.mrf.mxu0
      %v7054 = vadd.f32 %v6981, %v7053
      %v7055 = vpop.f32.mrf.mxu0
      %v7056 = vadd.f32 %v6983, %v7055
      %v7057 = vpop.f32.mrf.mxu0
      %v7058 = vadd.f32 %v6985, %v7057
      %v7059 = vpop.f32.mrf.mxu0
      %v7060 = vadd.f32 %v6987, %v7059
      %7061 = vmatprep.mubr.bf16.mxu0 %v5471
      %7062 = vmatmul.mubr.bf16.gmra.mxu0 %v5470
      %v7063 = vpop.f32.mrf.mxu0
      %v7064 = vadd.f32 %v6991, %v7063
      %v7065 = vpop.f32.mrf.mxu0
      %v7066 = vadd.f32 %v6993, %v7065
      %v7067 = vpop.f32.mrf.mxu0
      %v7068 = vadd.f32 %v6995, %v7067
      %v7069 = vpop.f32.mrf.mxu0
      %v7070 = vadd.f32 %v6997, %v7069
      %7071 = vmatprep.mubr.bf16.mxu0 %v5479
      %7072 = vmatmul.mubr.bf16.gmra.mxu0 %v5478
      %v7073 = vpop.f32.mrf.mxu0
      %v7074 = vadd.f32 %v7001, %v7073
      %v7075 = vpop.f32.mrf.mxu0
      %v7076 = vadd.f32 %v7003, %v7075
      %v7077 = vpop.f32.mrf.mxu0
      %v7078 = vadd.f32 %v7005, %v7077
      %v7079 = vpop.f32.mrf.mxu0
      %v7080 = vadd.f32 %v7007, %v7079
      %7081 = vmatprep.mubr.bf16.mxu0 %v5487
      %7082 = vmatmul.mubr.bf16.gmra.mxu0 %v5486
      %v7083 = vpop.f32.mrf.mxu0
      %v7084 = vadd.f32 %v7011, %v7083
      %v7085 = vpop.f32.mrf.mxu0
      %v7086 = vadd.f32 %v7013, %v7085
      %v7087 = vpop.f32.mrf.mxu0
      %v7088 = vadd.f32 %v7015, %v7087
      %v7089 = vpop.f32.mrf.mxu0
      %v7090 = vadd.f32 %v7017, %v7089
      %7091 = vdwg.mxu0
      %7092 = vmatprep.subr.bf16.mxu0 %v6319
      %7093 = vmatpush1.bf16.msra.mxu0 %v6318
      %7094 = vmatprep.subr.bf16.mxu0 %v6315
      %7095 = vmatpush1.bf16.msra.mxu0 %v6314
      %7096 = vmatprep.subr.bf16.mxu0 %v6311
      %7097 = vmatpush1.bf16.msra.mxu0 %v6310
      %7098 = vmatprep.subr.bf16.mxu0 %v6307
      %7099 = vmatpush1.bf16.msra.mxu0 %v6306
      %7100 = vmatprep.subr.bf16.mxu0 %v6303
      %7101 = vmatpush1.bf16.msra.mxu0 %v6302
      %7102 = vmatprep.subr.bf16.mxu0 %v6299
      %7103 = vmatpush1.bf16.msra.mxu0 %v6298
      %7104 = vmatprep.subr.bf16.mxu0 %v6295
      %7105 = vmatpush1.bf16.msra.mxu0 %v6294
      %7106 = vmatprep.subr.bf16.mxu0 %v6291
      %7107 = vmatpush1.bf16.msra.mxu0 %v6290
      %7108 = vmatprep.subr.bf16.mxu0 %v6351
      %7109 = vmatpush2.bf16.msra.mxu0 %v6350
      %7110 = vmatprep.subr.bf16.mxu0 %v6347
      %7111 = vmatpush2.bf16.msra.mxu0 %v6346
      %7112 = vmatprep.subr.bf16.mxu0 %v6343
      %7113 = vmatpush2.bf16.msra.mxu0 %v6342
      %7114 = vmatprep.subr.bf16.mxu0 %v6339
      %7115 = vmatpush2.bf16.msra.mxu0 %v6338
      %7116 = vmatprep.subr.bf16.mxu0 %v6335
      %7117 = vmatpush2.bf16.msra.mxu0 %v6334
      %7118 = vmatprep.subr.bf16.mxu0 %v6331
      %7119 = vmatpush2.bf16.msra.mxu0 %v6330
      %7120 = vmatprep.subr.bf16.mxu0 %v6327
      %7121 = vmatpush2.bf16.msra.mxu0 %v6326
      %7122 = vmatprep.subr.bf16.mxu0 %v6323
      %7123 = vmatpush2.bf16.msra.mxu0 %v6322
      %7124 = vmatprep.mubr.bf16.mxu0 %v5457
      %7125 = vmatmul.mubr.bf16.gmra.mxu0 %v5456
      %v7126 = vpop.f32.mrf.mxu0
      %v7127 = vadd.f32 0.0, %v7126
      %v7128 = vpop.f32.mrf.mxu0
      %v7129 = vadd.f32 0.0, %v7128
      %v7130 = vpop.f32.mrf.mxu0
      %v7131 = vadd.f32 0.0, %v7130
      %v7132 = vpop.f32.mrf.mxu0
      %v7133 = vadd.f32 0.0, %v7132
      %7134 = vmatprep.mubr.bf16.mxu0 %v5465
      %7135 = vmatmul.mubr.bf16.gmra.mxu0 %v5464
      %v7136 = vpop.f32.mrf.mxu0
      %v7137 = vadd.f32 0.0, %v7136
      %v7138 = vpop.f32.mrf.mxu0
      %v7139 = vadd.f32 0.0, %v7138
      %v7140 = vpop.f32.mrf.mxu0
      %v7141 = vadd.f32 0.0, %v7140
      %v7142 = vpop.f32.mrf.mxu0
      %v7143 = vadd.f32 0.0, %v7142
      %7144 = vmatprep.mubr.bf16.mxu0 %v5473
      %7145 = vmatmul.mubr.bf16.gmra.mxu0 %v5472
      %v7146 = vpop.f32.mrf.mxu0
      %v7147 = vadd.f32 0.0, %v7146
      %v7148 = vpop.f32.mrf.mxu0
      %v7149 = vadd.f32 0.0, %v7148
      %v7150 = vpop.f32.mrf.mxu0
      %v7151 = vadd.f32 0.0, %v7150
      %v7152 = vpop.f32.mrf.mxu0
      %v7153 = vadd.f32 0.0, %v7152
      %7154 = vmatprep.mubr.bf16.mxu0 %v5481
      %7155 = vmatmul.mubr.bf16.gmra.mxu0 %v5480
      %v7156 = vpop.f32.mrf.mxu0
      %v7157 = vadd.f32 0.0, %v7156
      %v7158 = vpop.f32.mrf.mxu0
      %v7159 = vadd.f32 0.0, %v7158
      %v7160 = vpop.f32.mrf.mxu0
      %v7161 = vadd.f32 0.0, %v7160
      %v7162 = vpop.f32.mrf.mxu0
      %v7163 = vadd.f32 0.0, %v7162
      %7164 = vdwg.mxu0
      %7165 = vmatprep.subr.bf16.mxu0 %v6383
      %7166 = vmatpush1.bf16.msra.mxu0 %v6382
      %7167 = vmatprep.subr.bf16.mxu0 %v6379
      %7168 = vmatpush1.bf16.msra.mxu0 %v6378
      %7169 = vmatprep.subr.bf16.mxu0 %v6375
      %7170 = vmatpush1.bf16.msra.mxu0 %v6374
      %7171 = vmatprep.subr.bf16.mxu0 %v6371
      %7172 = vmatpush1.bf16.msra.mxu0 %v6370
      %7173 = vmatprep.subr.bf16.mxu0 %v6367
      %7174 = vmatpush1.bf16.msra.mxu0 %v6366
      %7175 = vmatprep.subr.bf16.mxu0 %v6363
      %7176 = vmatpush1.bf16.msra.mxu0 %v6362
      %7177 = vmatprep.subr.bf16.mxu0 %v6359
      %7178 = vmatpush1.bf16.msra.mxu0 %v6358
      %7179 = vmatprep.subr.bf16.mxu0 %v6355
      %7180 = vmatpush1.bf16.msra.mxu0 %v6354
      %7181 = vmatprep.subr.bf16.mxu0 %v6415
      %7182 = vmatpush2.bf16.msra.mxu0 %v6414
      %7183 = vmatprep.subr.bf16.mxu0 %v6411
      %7184 = vmatpush2.bf16.msra.mxu0 %v6410
      %7185 = vmatprep.subr.bf16.mxu0 %v6407
      %7186 = vmatpush2.bf16.msra.mxu0 %v6406
      %7187 = vmatprep.subr.bf16.mxu0 %v6403
      %7188 = vmatpush2.bf16.msra.mxu0 %v6402
      %7189 = vmatprep.subr.bf16.mxu0 %v6399
      %7190 = vmatpush2.bf16.msra.mxu0 %v6398
      %7191 = vmatprep.subr.bf16.mxu0 %v6395
      %7192 = vmatpush2.bf16.msra.mxu0 %v6394
      %7193 = vmatprep.subr.bf16.mxu0 %v6391
      %7194 = vmatpush2.bf16.msra.mxu0 %v6390
      %7195 = vmatprep.subr.bf16.mxu0 %v6387
      %7196 = vmatpush2.bf16.msra.mxu0 %v6386
      %7197 = vmatprep.mubr.bf16.mxu0 %v5459
      %7198 = vmatmul.mubr.bf16.gmra.mxu0 %v5458
      %v7199 = vpop.f32.mrf.mxu0
      %v7200 = vadd.f32 %v7127, %v7199
      %v7201 = vpop.f32.mrf.mxu0
      %v7202 = vadd.f32 %v7129, %v7201
      %v7203 = vpop.f32.mrf.mxu0
      %v7204 = vadd.f32 %v7131, %v7203
      %v7205 = vpop.f32.mrf.mxu0
      %v7206 = vadd.f32 %v7133, %v7205
      %7207 = vmatprep.mubr.bf16.mxu0 %v5467
      %7208 = vmatmul.mubr.bf16.gmra.mxu0 %v5466
      %v7209 = vpop.f32.mrf.mxu0
      %v7210 = vadd.f32 %v7137, %v7209
      %v7211 = vpop.f32.mrf.mxu0
      %v7212 = vadd.f32 %v7139, %v7211
      %v7213 = vpop.f32.mrf.mxu0
      %v7214 = vadd.f32 %v7141, %v7213
      %v7215 = vpop.f32.mrf.mxu0
      %v7216 = vadd.f32 %v7143, %v7215
      %7217 = vmatprep.mubr.bf16.mxu0 %v5475
      %7218 = vmatmul.mubr.bf16.gmra.mxu0 %v5474
      %v7219 = vpop.f32.mrf.mxu0
      %v7220 = vadd.f32 %v7147, %v7219
      %v7221 = vpop.f32.mrf.mxu0
      %v7222 = vadd.f32 %v7149, %v7221
      %v7223 = vpop.f32.mrf.mxu0
      %v7224 = vadd.f32 %v7151, %v7223
      %v7225 = vpop.f32.mrf.mxu0
      %v7226 = vadd.f32 %v7153, %v7225
      %7227 = vmatprep.mubr.bf16.mxu0 %v5483
      %7228 = vmatmul.mubr.bf16.gmra.mxu0 %v5482
      %v7229 = vpop.f32.mrf.mxu0
      %v7230 = vadd.f32 %v7157, %v7229
      %v7231 = vpop.f32.mrf.mxu0
      %v7232 = vadd.f32 %v7159, %v7231
      %v7233 = vpop.f32.mrf.mxu0
      %v7234 = vadd.f32 %v7161, %v7233
      %v7235 = vpop.f32.mrf.mxu0
      %v7236 = vadd.f32 %v7163, %v7235
      %7237 = vdwg.mxu0
      %7238 = vmatprep.subr.bf16.mxu0 %v6447
      %7239 = vmatpush1.bf16.msra.mxu0 %v6446
      %7240 = vmatprep.subr.bf16.mxu0 %v6443
      %7241 = vmatpush1.bf16.msra.mxu0 %v6442
      %7242 = vmatprep.subr.bf16.mxu0 %v6439
      %7243 = vmatpush1.bf16.msra.mxu0 %v6438
      %7244 = vmatprep.subr.bf16.mxu0 %v6435
      %7245 = vmatpush1.bf16.msra.mxu0 %v6434
      %7246 = vmatprep.subr.bf16.mxu0 %v6431
      %7247 = vmatpush1.bf16.msra.mxu0 %v6430
      %7248 = vmatprep.subr.bf16.mxu0 %v6427
      %7249 = vmatpush1.bf16.msra.mxu0 %v6426
      %7250 = vmatprep.subr.bf16.mxu0 %v6423
      %7251 = vmatpush1.bf16.msra.mxu0 %v6422
      %7252 = vmatprep.subr.bf16.mxu0 %v6419
      %7253 = vmatpush1.bf16.msra.mxu0 %v6418
      %7254 = vmatprep.subr.bf16.mxu0 %v6479
      %7255 = vmatpush2.bf16.msra.mxu0 %v6478
      %7256 = vmatprep.subr.bf16.mxu0 %v6475
      %7257 = vmatpush2.bf16.msra.mxu0 %v6474
      %7258 = vmatprep.subr.bf16.mxu0 %v6471
      %7259 = vmatpush2.bf16.msra.mxu0 %v6470
      %7260 = vmatprep.subr.bf16.mxu0 %v6467
      %7261 = vmatpush2.bf16.msra.mxu0 %v6466
      %7262 = vmatprep.subr.bf16.mxu0 %v6463
      %7263 = vmatpush2.bf16.msra.mxu0 %v6462
      %7264 = vmatprep.subr.bf16.mxu0 %v6459
      %7265 = vmatpush2.bf16.msra.mxu0 %v6458
      %7266 = vmatprep.subr.bf16.mxu0 %v6455
      %7267 = vmatpush2.bf16.msra.mxu0 %v6454
      %7268 = vmatprep.subr.bf16.mxu0 %v6451
      %7269 = vmatpush2.bf16.msra.mxu0 %v6450
      %7270 = vmatprep.mubr.bf16.mxu0 %v5461
      %7271 = vmatmul.mubr.bf16.gmra.mxu0 %v5460
      %v7272 = vpop.f32.mrf.mxu0
      %v7273 = vadd.f32 %v7200, %v7272
      %v7274 = vpop.f32.mrf.mxu0
      %v7275 = vadd.f32 %v7202, %v7274
      %v7276 = vpop.f32.mrf.mxu0
      %v7277 = vadd.f32 %v7204, %v7276
      %v7278 = vpop.f32.mrf.mxu0
      %v7279 = vadd.f32 %v7206, %v7278
      %7280 = vmatprep.mubr.bf16.mxu0 %v5469
      %7281 = vmatmul.mubr.bf16.gmra.mxu0 %v5468
      %v7282 = vpop.f32.mrf.mxu0
      %v7283 = vadd.f32 %v7210, %v7282
      %v7284 = vpop.f32.mrf.mxu0
      %v7285 = vadd.f32 %v7212, %v7284
      %v7286 = vpop.f32.mrf.mxu0
      %v7287 = vadd.f32 %v7214, %v7286
      %v7288 = vpop.f32.mrf.mxu0
      %v7289 = vadd.f32 %v7216, %v7288
      %7290 = vmatprep.mubr.bf16.mxu0 %v5477
      %7291 = vmatmul.mubr.bf16.gmra.mxu0 %v5476
      %v7292 = vpop.f32.mrf.mxu0
      %v7293 = vadd.f32 %v7220, %v7292
      %v7294 = vpop.f32.mrf.mxu0
      %v7295 = vadd.f32 %v7222, %v7294
      %v7296 = vpop.f32.mrf.mxu0
      %v7297 = vadd.f32 %v7224, %v7296
      %v7298 = vpop.f32.mrf.mxu0
      %v7299 = vadd.f32 %v7226, %v7298
      %7300 = vmatprep.mubr.bf16.mxu0 %v5485
      %7301 = vmatmul.mubr.bf16.gmra.mxu0 %v5484
      %v7302 = vpop.f32.mrf.mxu0
      %v7303 = vadd.f32 %v7230, %v7302
      %v7304 = vpop.f32.mrf.mxu0
      %v7305 = vadd.f32 %v7232, %v7304
      %v7306 = vpop.f32.mrf.mxu0
      %v7307 = vadd.f32 %v7234, %v7306
      %v7308 = vpop.f32.mrf.mxu0
      %v7309 = vadd.f32 %v7236, %v7308
      %7310 = vdwg.mxu0
      %7311 = vmatprep.subr.bf16.mxu0 %v6511
      %7312 = vmatpush1.bf16.msra.mxu0 %v6510
      %7313 = vmatprep.subr.bf16.mxu0 %v6507
      %7314 = vmatpush1.bf16.msra.mxu0 %v6506
      %7315 = vmatprep.subr.bf16.mxu0 %v6503
      %7316 = vmatpush1.bf16.msra.mxu0 %v6502
      %7317 = vmatprep.subr.bf16.mxu0 %v6499
      %7318 = vmatpush1.bf16.msra.mxu0 %v6498
      %7319 = vmatprep.subr.bf16.mxu0 %v6495
      %7320 = vmatpush1.bf16.msra.mxu0 %v6494
      %7321 = vmatprep.subr.bf16.mxu0 %v6491
      %7322 = vmatpush1.bf16.msra.mxu0 %v6490
      %7323 = vmatprep.subr.bf16.mxu0 %v6487
      %7324 = vmatpush1.bf16.msra.mxu0 %v6486
      %7325 = vmatprep.subr.bf16.mxu0 %v6483
      %7326 = vmatpush1.bf16.msra.mxu0 %v6482
      %7327 = vmatprep.subr.bf16.mxu0 %v6543
      %7328 = vmatpush2.bf16.msra.mxu0 %v6542
      %7329 = vmatprep.subr.bf16.mxu0 %v6539
      %7330 = vmatpush2.bf16.msra.mxu0 %v6538
      %7331 = vmatprep.subr.bf16.mxu0 %v6535
      %7332 = vmatpush2.bf16.msra.mxu0 %v6534
      %7333 = vmatprep.subr.bf16.mxu0 %v6531
      %7334 = vmatpush2.bf16.msra.mxu0 %v6530
      %7335 = vmatprep.subr.bf16.mxu0 %v6527
      %7336 = vmatpush2.bf16.msra.mxu0 %v6526
      %7337 = vmatprep.subr.bf16.mxu0 %v6523
      %7338 = vmatpush2.bf16.msra.mxu0 %v6522
      %7339 = vmatprep.subr.bf16.mxu0 %v6519
      %7340 = vmatpush2.bf16.msra.mxu0 %v6518
      %7341 = vmatprep.subr.bf16.mxu0 %v6515
      %7342 = vmatpush2.bf16.msra.mxu0 %v6514
      %7343 = vmatprep.mubr.bf16.mxu0 %v5463
      %7344 = vmatmul.mubr.bf16.gmra.mxu0 %v5462
      %v7345 = vpop.f32.mrf.mxu0
      %v7346 = vadd.f32 %v7273, %v7345
      %v7347 = vpop.f32.mrf.mxu0
      %v7348 = vadd.f32 %v7275, %v7347
      %v7349 = vpop.f32.mrf.mxu0
      %v7350 = vadd.f32 %v7277, %v7349
      %v7351 = vpop.f32.mrf.mxu0
      %v7352 = vadd.f32 %v7279, %v7351
      %7353 = vmatprep.mubr.bf16.mxu0 %v5471
      %7354 = vmatmul.mubr.bf16.gmra.mxu0 %v5470
      %v7355 = vpop.f32.mrf.mxu0
      %v7356 = vadd.f32 %v7283, %v7355
      %v7357 = vpop.f32.mrf.mxu0
      %v7358 = vadd.f32 %v7285, %v7357
      %v7359 = vpop.f32.mrf.mxu0
      %v7360 = vadd.f32 %v7287, %v7359
      %v7361 = vpop.f32.mrf.mxu0
      %v7362 = vadd.f32 %v7289, %v7361
      %7363 = vmatprep.mubr.bf16.mxu0 %v5479
      %7364 = vmatmul.mubr.bf16.gmra.mxu0 %v5478
      %v7365 = vpop.f32.mrf.mxu0
      %v7366 = vadd.f32 %v7293, %v7365
      %v7367 = vpop.f32.mrf.mxu0
      %v7368 = vadd.f32 %v7295, %v7367
      %v7369 = vpop.f32.mrf.mxu0
      %v7370 = vadd.f32 %v7297, %v7369
      %v7371 = vpop.f32.mrf.mxu0
      %v7372 = vadd.f32 %v7299, %v7371
      %7373 = vmatprep.mubr.bf16.mxu0 %v5487
      %7374 = vmatmul.mubr.bf16.gmra.mxu0 %v5486
      %v7375 = vpop.f32.mrf.mxu0
      %v7376 = vadd.f32 %v7303, %v7375
      %v7377 = vpop.f32.mrf.mxu0
      %v7378 = vadd.f32 %v7305, %v7377
      %v7379 = vpop.f32.mrf.mxu0
      %v7380 = vadd.f32 %v7307, %v7379
      %v7381 = vpop.f32.mrf.mxu0
      %v7382 = vadd.f32 %v7309, %v7381
      %7383 = vdwg.mxu0
      %v7384 = vadd.f32 %v5039, %v7054
      %v7385 = vadd.f32 %v5040, %v7056
      %v7386 = vadd.f32 %v5041, %v7346
      %v7387 = vadd.f32 %v5042, %v7348
      %v7388 = vadd.f32 %v5043, %v7058
      %v7389 = vadd.f32 %v5044, %v7060
      %v7390 = vadd.f32 %v5045, %v7350
      %v7391 = vadd.f32 %v5046, %v7352
      %v7392 = vadd.f32 %v5047, %v7064
      %v7393 = vadd.f32 %v5048, %v7066
      %v7394 = vadd.f32 %v5049, %v7356
      %v7395 = vadd.f32 %v5050, %v7358
      %v7396 = vadd.f32 %v5051, %v7068
      %v7397 = vadd.f32 %v5052, %v7070
      %v7398 = vadd.f32 %v5053, %v7360
      %v7399 = vadd.f32 %v5054, %v7362
      %v7400 = vadd.f32 %v5055, %v7074
      %v7401 = vadd.f32 %v5056, %v7076
      %v7402 = vadd.f32 %v5057, %v7366
      %v7403 = vadd.f32 %v5058, %v7368
      %v7404 = vadd.f32 %v5059, %v7078
      %v7405 = vadd.f32 %v5060, %v7080
      %v7406 = vadd.f32 %v5061, %v7370
      %v7407 = vadd.f32 %v5062, %v7372
      %v7408 = vadd.f32 %v5063, %v7084
      %v7409 = vadd.f32 %v5064, %v7086
      %v7410 = vadd.f32 %v5065, %v7376
      %v7411 = vadd.f32 %v5066, %v7378
      %v7412 = vadd.f32 %v5067, %v7088
      %v7413 = vadd.f32 %v5068, %v7090
      %v7414 = vadd.f32 %v5069, %v7380
      %v7415 = vadd.f32 %v5070, %v7382
      %7416 = vst [vmem:[#allocation2] sm:$0xff] %v7384
      %7417 = vst [vmem:[#allocation2 + $0x8] sm:$0xff] %v7385
      %7418 = vst [vmem:[#allocation2 + $0x10] sm:$0xff] %v7386
      %7419 = vst [vmem:[#allocation2 + $0x18] sm:$0xff] %v7387
      %7420 = vst [vmem:[#allocation2 + $0x20] sm:$0xff] %v7388
      %7421 = vst [vmem:[#allocation2 + $0x28] sm:$0xff] %v7389
      %7422 = vst [vmem:[#allocation2 + $0x30] sm:$0xff] %v7390
      %7423 = vst [vmem:[#allocation2 + $0x38] sm:$0xff] %v7391
      %7424 = vst [vmem:[#allocation2 + $0x40] sm:$0xff] %v7392
      %7425 = vst [vmem:[#allocation2 + $0x48] sm:$0xff] %v7393
      %7426 = vst [vmem:[#allocation2 + $0x50] sm:$0xff] %v7394
      %7427 = vst [vmem:[#allocation2 + $0x58] sm:$0xff] %v7395
      %7428 = vst [vmem:[#allocation2 + $0x60] sm:$0xff] %v7396
      %7429 = vst [vmem:[#allocation2 + $0x68] sm:$0xff] %v7397
      %7430 = vst [vmem:[#allocation2 + $0x70] sm:$0xff] %v7398
      %7431 = vst [vmem:[#allocation2 + $0x78] sm:$0xff] %v7399
      %7432 = vst [vmem:[#allocation2 + $0x80] sm:$0xff] %v7400
      %7433 = vst [vmem:[#allocation2 + $0x88] sm:$0xff] %v7401
      %7434 = vst [vmem:[#allocation2 + $0x90] sm:$0xff] %v7402
      %7435 = vst [vmem:[#allocation2 + $0x98] sm:$0xff] %v7403
      %7436 = vst [vmem:[#allocation2 + $0xa0] sm:$0xff] %v7404
      %7437 = vst [vmem:[#allocation2 + $0xa8] sm:$0xff] %v7405
      %7438 = vst [vmem:[#allocation2 + $0xb0] sm:$0xff] %v7406
      %7439 = vst [vmem:[#allocation2 + $0xb8] sm:$0xff] %v7407
      %7440 = vst [vmem:[#allocation2 + $0xc0] sm:$0xff] %v7408
      %7441 = vst [vmem:[#allocation2 + $0xc8] sm:$0xff] %v7409
      %7442 = vst [vmem:[#allocation2 + $0xd0] sm:$0xff] %v7410
      %7443 = vst [vmem:[#allocation2 + $0xd8] sm:$0xff] %v7411
      %7444 = vst [vmem:[#allocation2 + $0xe0] sm:$0xff] %v7412
      %7445 = vst [vmem:[#allocation2 + $0xe8] sm:$0xff] %v7413
      %7446 = vst [vmem:[#allocation2 + $0xf0] sm:$0xff] %v7414
      %7447 = vst [vmem:[#allocation2 + $0xf8] sm:$0xff] %v7415
      %p7448 = scmp.eq.s32.totalorder %s22, 8
      // Predicated region
      $region37: #{_lambda_.4} parent=31 // pred_check
        %p7449 = pneg %p7448
      $region38: #{_lambda_.4} parent=31 // pred_check_branch
        %7451 = sbr.rel (%p7449) target = $region40
      $region39: #{_lambda_.4} parent=31 // pred_region
        %v7452 = vpack.c.bf16 %v7388, %v7384
        %v7453 = vpack.c.bf16 %v7389, %v7385
        %v7454 = vpack.c.bf16 %v7390, %v7386
        %v7455 = vpack.c.bf16 %v7391, %v7387
        %v7456 = vpack.c.bf16 %v7396, %v7392
        %v7457 = vpack.c.bf16 %v7397, %v7393
        %v7458 = vpack.c.bf16 %v7398, %v7394
        %v7459 = vpack.c.bf16 %v7399, %v7395
        %v7460 = vpack.c.bf16 %v7404, %v7400
        %v7461 = vpack.c.bf16 %v7405, %v7401
        %v7462 = vpack.c.bf16 %v7406, %v7402
        %v7463 = vpack.c.bf16 %v7407, %v7403
        %v7464 = vpack.c.bf16 %v7412, %v7408
        %v7465 = vpack.c.bf16 %v7413, %v7409
        %v7466 = vpack.c.bf16 %v7414, %v7410
        %v7467 = vpack.c.bf16 %v7415, %v7411
        %v7484 = vunpack.c.l.b16 %v7452
        %v7485 = vunpack.c.l.b16 %v7453
        %v7486 = vunpack.c.l.b16 %v7454
        %v7487 = vunpack.c.l.b16 %v7455
        %v7488 = vunpack.c.h.b16 %v7452
        %v7489 = vunpack.c.h.b16 %v7453
        %v7490 = vunpack.c.h.b16 %v7454
        %v7491 = vunpack.c.h.b16 %v7455
        %v7492 = vunpack.c.l.b16 %v7456
        %v7493 = vunpack.c.l.b16 %v7457
        %v7494 = vunpack.c.l.b16 %v7458
        %v7495 = vunpack.c.l.b16 %v7459
        %v7496 = vunpack.c.h.b16 %v7456
        %v7497 = vunpack.c.h.b16 %v7457
        %v7498 = vunpack.c.h.b16 %v7458
        %v7499 = vunpack.c.h.b16 %v7459
        %v7500 = vunpack.c.l.b16 %v7460
        %v7501 = vunpack.c.l.b16 %v7461
        %v7502 = vunpack.c.l.b16 %v7462
        %v7503 = vunpack.c.l.b16 %v7463
        %v7504 = vunpack.c.h.b16 %v7460
        %v7505 = vunpack.c.h.b16 %v7461
        %v7506 = vunpack.c.h.b16 %v7462
        %v7507 = vunpack.c.h.b16 %v7463
        %v7508 = vunpack.c.l.b16 %v7464
        %v7509 = vunpack.c.l.b16 %v7465
        %v7510 = vunpack.c.l.b16 %v7466
        %v7511 = vunpack.c.l.b16 %v7467
        %v7512 = vunpack.c.h.b16 %v7464
        %v7513 = vunpack.c.h.b16 %v7465
        %v7514 = vunpack.c.h.b16 %v7466
        %v7515 = vunpack.c.h.b16 %v7467
        %v7516 = vpack.c.b16 %v7485, %v7484
        %v7517 = vpack.c.b16 %v7487, %v7486
        %v7518 = vpack.c.b16 %v7489, %v7488
        %v7519 = vpack.c.b16 %v7491, %v7490
        %v7520 = vpack.c.b16 %v7493, %v7492
        %v7521 = vpack.c.b16 %v7495, %v7494
        %v7522 = vpack.c.b16 %v7497, %v7496
        %v7523 = vpack.c.b16 %v7499, %v7498
        %v7524 = vpack.c.b16 %v7501, %v7500
        %v7525 = vpack.c.b16 %v7503, %v7502
        %v7526 = vpack.c.b16 %v7505, %v7504
        %v7527 = vpack.c.b16 %v7507, %v7506
        %v7528 = vpack.c.b16 %v7509, %v7508
        %v7529 = vpack.c.b16 %v7511, %v7510
        %v7530 = vpack.c.b16 %v7513, %v7512
        %v7531 = vpack.c.b16 %v7515, %v7514
        %7548 = vst [vmem:[%s283] sm:$0xff] %v7516
        %7549 = vst [vmem:[%s283 + $0x8] sm:$0xff] %v7517
        %7550 = vst [vmem:[%s283 + $0x10] sm:$0xff] %v7518
        %7551 = vst [vmem:[%s283 + $0x18] sm:$0xff] %v7519
        %7552 = vst [vmem:[%s283 + $0x20] sm:$0xff] %v7520
        %7553 = vst [vmem:[%s283 + $0x28] sm:$0xff] %v7521
        %7554 = vst [vmem:[%s283 + $0x30] sm:$0xff] %v7522
        %7555 = vst [vmem:[%s283 + $0x38] sm:$0xff] %v7523
        %7556 = vst [vmem:[%s283 + $0x40] sm:$0xff] %v7524
        %7557 = vst [vmem:[%s283 + $0x48] sm:$0xff] %v7525
        %7558 = vst [vmem:[%s283 + $0x50] sm:$0xff] %v7526
        %7559 = vst [vmem:[%s283 + $0x58] sm:$0xff] %v7527
        %7560 = vst [vmem:[%s283 + $0x60] sm:$0xff] %v7528
        %7561 = vst [vmem:[%s283 + $0x68] sm:$0xff] %v7529
        %7562 = vst [vmem:[%s283 + $0x70] sm:$0xff] %v7530
        %7563 = vst [vmem:[%s283 + $0x78] sm:$0xff] %v7531
        %v7564 = vadd.f32 %v7384, %v7388
        %v7565 = vadd.f32 %v7564, %v7392
        %v7566 = vadd.f32 %v7565, %v7396
        %v7567 = vadd.f32 %v7566, %v7400
        %v7568 = vadd.f32 %v7567, %v7404
        %v7569 = vadd.f32 %v7568, %v7408
        %v7570 = vadd.f32 %v7569, %v7412
        %v7571 = vrot.slane %v7570, 4
        %v7572 = vadd.f32 %v7570, %v7571
        %v7573 = vrot.slane %v7572, 2
        %v7574 = vadd.f32 %v7572, %v7573
        %v7575 = vrot.slane %v7574, 1
        %v7576 = vadd.f32 %v7574, %v7575
        %v7577 = vadd.f32 %v7385, %v7389
        %v7578 = vadd.f32 %v7577, %v7393
        %v7579 = vadd.f32 %v7578, %v7397
        %v7580 = vadd.f32 %v7579, %v7401
        %v7581 = vadd.f32 %v7580, %v7405
        %v7582 = vadd.f32 %v7581, %v7409
        %v7583 = vadd.f32 %v7582, %v7413
        %v7584 = vrot.slane %v7583, 4
        %v7585 = vadd.f32 %v7583, %v7584
        %v7586 = vrot.slane %v7585, 2
        %v7587 = vadd.f32 %v7585, %v7586
        %v7588 = vrot.slane %v7587, 1
        %v7589 = vadd.f32 %v7587, %v7588
        %v7590 = vadd.f32 %v7386, %v7390
        %v7591 = vadd.f32 %v7590, %v7394
        %v7592 = vadd.f32 %v7591, %v7398
        %v7593 = vadd.f32 %v7592, %v7402
        %v7594 = vadd.f32 %v7593, %v7406
        %v7595 = vadd.f32 %v7594, %v7410
        %v7596 = vadd.f32 %v7595, %v7414
        %v7597 = vrot.slane %v7596, 4
        %v7598 = vadd.f32 %v7596, %v7597
        %v7599 = vrot.slane %v7598, 2
        %v7600 = vadd.f32 %v7598, %v7599
        %v7601 = vrot.slane %v7600, 1
        %v7602 = vadd.f32 %v7600, %v7601
        %v7603 = vadd.f32 %v7387, %v7391
        %v7604 = vadd.f32 %v7603, %v7395
        %v7605 = vadd.f32 %v7604, %v7399
        %v7606 = vadd.f32 %v7605, %v7403
        %v7607 = vadd.f32 %v7606, %v7407
        %v7608 = vadd.f32 %v7607, %v7411
        %v7609 = vadd.f32 %v7608, %v7415
        %v7610 = vrot.slane %v7609, 4
        %v7611 = vadd.f32 %v7609, %v7610
        %v7612 = vrot.slane %v7611, 2
        %v7613 = vadd.f32 %v7611, %v7612
        %v7614 = vrot.slane %v7613, 1
        %v7615 = vadd.f32 %v7613, %v7614
        %v7620 = vcombine.low %v7576, %v7589
        %v7621 = vcombine.low %v7602, %v7615
        %v7623 = vunpack.c.l.s4 1966171168
        %v7624 = vunpack.c.0.s8 %v7623
        %v7625 = vlaneseq
        %v7626 = vshrl.u32 %v7625, 7
        %v7627 = vsub.s32 %v7624, %v7626
        %v7628 = vrot.slane %v7620, %v7627
        %v7630 = vunpack.c.l.s4 1966171168
        %v7631 = vunpack.c.0.s8 %v7630
        %v7632 = vlaneseq
        %v7633 = vshrl.u32 %v7632, 7
        %v7634 = vsub.s32 %v7631, %v7633
        %v7635 = vrot.slane %v7621, %v7634
        %v7636 = vcombine.low %v7628, %v7635
        %v7638 = vunpack.c.l.s4 1966171168
        %v7639 = vunpack.c.0.s8 %v7638
        %v7640 = vlaneseq
        %v7641 = vshrl.u32 %v7640, 7
        %v7642 = vsub.s32 %v7639, %v7641
        %v7643 = vrot.slane %v7636, %v7642
        %v7645 = vlaneseq
        %vm7646 = vcmp.ge.s32.totalorder %v7645, 0
        %vm7647 = vcmp.lt.s32.totalorder %v7645, 512
        %vm7648 = vmand %vm7646, %vm7647
        %7649 = vst.msk [vmem:[%s287] sm:$0xf] %vm7648, %v7643
        %v7650 = vmul.f32 %v7384, %v7384
        %v7651 = vmul.f32 %v7385, %v7385
        %v7652 = vmul.f32 %v7386, %v7386
        %v7653 = vmul.f32 %v7387, %v7387
        %v7654 = vmul.f32 %v7388, %v7388
        %v7655 = vmul.f32 %v7389, %v7389
        %v7656 = vmul.f32 %v7390, %v7390
        %v7657 = vmul.f32 %v7391, %v7391
        %v7658 = vmul.f32 %v7392, %v7392
        %v7659 = vmul.f32 %v7393, %v7393
        %v7660 = vmul.f32 %v7394, %v7394
        %v7661 = vmul.f32 %v7395, %v7395
        %v7662 = vmul.f32 %v7396, %v7396
        %v7663 = vmul.f32 %v7397, %v7397
        %v7664 = vmul.f32 %v7398, %v7398
        %v7665 = vmul.f32 %v7399, %v7399
        %v7666 = vmul.f32 %v7400, %v7400
        %v7667 = vmul.f32 %v7401, %v7401
        %v7668 = vmul.f32 %v7402, %v7402
        %v7669 = vmul.f32 %v7403, %v7403
        %v7670 = vmul.f32 %v7404, %v7404
        %v7671 = vmul.f32 %v7405, %v7405
        %v7672 = vmul.f32 %v7406, %v7406
        %v7673 = vmul.f32 %v7407, %v7407
        %v7674 = vmul.f32 %v7408, %v7408
        %v7675 = vmul.f32 %v7409, %v7409
        %v7676 = vmul.f32 %v7410, %v7410
        %v7677 = vmul.f32 %v7411, %v7411
        %v7678 = vmul.f32 %v7412, %v7412
        %v7679 = vmul.f32 %v7413, %v7413
        %v7680 = vmul.f32 %v7414, %v7414
        %v7681 = vmul.f32 %v7415, %v7415
        %v7682 = vadd.f32 %v7650, %v7654
        %v7683 = vadd.f32 %v7682, %v7658
        %v7684 = vadd.f32 %v7683, %v7662
        %v7685 = vadd.f32 %v7684, %v7666
        %v7686 = vadd.f32 %v7685, %v7670
        %v7687 = vadd.f32 %v7686, %v7674
        %v7688 = vadd.f32 %v7687, %v7678
        %v7689 = vrot.slane %v7688, 4
        %v7690 = vadd.f32 %v7688, %v7689
        %v7691 = vrot.slane %v7690, 2
        %v7692 = vadd.f32 %v7690, %v7691
        %v7693 = vrot.slane %v7692, 1
        %v7694 = vadd.f32 %v7692, %v7693
        %v7695 = vadd.f32 %v7651, %v7655
        %v7696 = vadd.f32 %v7695, %v7659
        %v7697 = vadd.f32 %v7696, %v7663
        %v7698 = vadd.f32 %v7697, %v7667
        %v7699 = vadd.f32 %v7698, %v7671
        %v7700 = vadd.f32 %v7699, %v7675
        %v7701 = vadd.f32 %v7700, %v7679
        %v7702 = vrot.slane %v7701, 4
        %v7703 = vadd.f32 %v7701, %v7702
        %v7704 = vrot.slane %v7703, 2
        %v7705 = vadd.f32 %v7703, %v7704
        %v7706 = vrot.slane %v7705, 1
        %v7707 = vadd.f32 %v7705, %v7706
        %v7708 = vadd.f32 %v7652, %v7656
        %v7709 = vadd.f32 %v7708, %v7660
        %v7710 = vadd.f32 %v7709, %v7664
        %v7711 = vadd.f32 %v7710, %v7668
        %v7712 = vadd.f32 %v7711, %v7672
        %v7713 = vadd.f32 %v7712, %v7676
        %v7714 = vadd.f32 %v7713, %v7680
        %v7715 = vrot.slane %v7714, 4
        %v7716 = vadd.f32 %v7714, %v7715
        %v7717 = vrot.slane %v7716, 2
        %v7718 = vadd.f32 %v7716, %v7717
        %v7719 = vrot.slane %v7718, 1
        %v7720 = vadd.f32 %v7718, %v7719
        %v7721 = vadd.f32 %v7653, %v7657
        %v7722 = vadd.f32 %v7721, %v7661
        %v7723 = vadd.f32 %v7722, %v7665
        %v7724 = vadd.f32 %v7723, %v7669
        %v7725 = vadd.f32 %v7724, %v7673
        %v7726 = vadd.f32 %v7725, %v7677
        %v7727 = vadd.f32 %v7726, %v7681
        %v7728 = vrot.slane %v7727, 4
        %v7729 = vadd.f32 %v7727, %v7728
        %v7730 = vrot.slane %v7729, 2
        %v7731 = vadd.f32 %v7729, %v7730
        %v7732 = vrot.slane %v7731, 1
        %v7733 = vadd.f32 %v7731, %v7732
        %v7738 = vcombine.low %v7694, %v7707
        %v7739 = vcombine.low %v7720, %v7733
        %v7741 = vunpack.c.l.s4 1966171168
        %v7742 = vunpack.c.0.s8 %v7741
        %v7743 = vlaneseq
        %v7744 = vshrl.u32 %v7743, 7
        %v7745 = vsub.s32 %v7742, %v7744
        %v7746 = vrot.slane %v7738, %v7745
        %v7748 = vunpack.c.l.s4 1966171168
        %v7749 = vunpack.c.0.s8 %v7748
        %v7750 = vlaneseq
        %v7751 = vshrl.u32 %v7750, 7
        %v7752 = vsub.s32 %v7749, %v7751
        %v7753 = vrot.slane %v7739, %v7752
        %v7754 = vcombine.low %v7746, %v7753
        %v7756 = vunpack.c.l.s4 1966171168
        %v7757 = vunpack.c.0.s8 %v7756
        %v7758 = vlaneseq
        %v7759 = vshrl.u32 %v7758, 7
        %v7760 = vsub.s32 %v7757, %v7759
        %v7761 = vrot.slane %v7754, %v7760
        %7763 = vst.msk [vmem:[%s291] sm:$0xf] %vm7648, %v7761
      $region40: #{_lambda_.4} parent=31 // pred_fallthru
        _
      %p7764 = scmp.lt.s32.totalorder %s21, 1
      %s7765 = scalar_select %p7764, %s21, 1
      %s7766 = smul.addr %s7765, 32
      %s7767 = smul.addr %s7766, 4
      %s7768 = scalar_lea.vmem %s3, %s7767
      %p7769 = scmp.lt.s32.totalorder %s21, 1
      %s7770 = scalar_select %p7769, %s21, 1
      %s7771 = smul.addr %s7770, 4
      %s7772 = scalar_lea.vmem %s4, %s7771
      %p7773 = scmp.lt.s32.totalorder %s21, 1
      %s7774 = scalar_select %p7773, %s21, 1
      %s7775 = smul.addr %s7774, 4
      %s7776 = scalar_lea.vmem %s5, %s7775
      // Predicated region
      $region41: #{_lambda_.4} parent=31 // pred_check
        %p7777 = pneg %p122
      $region42: #{_lambda_.4} parent=31 // pred_check_branch
        %7779 = sbr.rel (%p7777) target = $region44
      $region43: #{_lambda_.4} parent=31 // pred_region
        _
      $region44: #{_lambda_.4} parent=31 // pred_fallthru
        _
      // Predicated region
      $region45: #{_lambda_.4} parent=31 // pred_check
        %p7780 = pneg %p148
      $region46: #{_lambda_.4} parent=31 // pred_check_branch
        %7782 = sbr.rel (%p7780) target = $region48
      $region47: #{_lambda_.4} parent=31 // pred_region
        _
      $region48: #{_lambda_.4} parent=31 // pred_fallthru
        _
      // Predicated region
      $region49: #{_lambda_.4} parent=31 // pred_check
        %p7783 = pneg %p174
      $region50: #{_lambda_.4} parent=31 // pred_check_branch
        %7785 = sbr.rel (%p7783) target = $region52
      $region51: #{_lambda_.4} parent=31 // pred_region
        _
      $region52: #{_lambda_.4} parent=31 // pred_fallthru
        _
    $region32: #{_lambda_.4} parent=5 // pred_fallthru
      _
    %p7786 = scmp.le.s32.totalorder 2, %s12
    // Predicated region
    $region53: #{_lambda_.4} parent=5 // pred_check
      %p7787 = pneg %p7786
    $region54: #{_lambda_.4} parent=5 // pred_check_branch
      %7789 = sbr.rel (%p7787) target = $region56
    $region55: #{_lambda_.4} parent=5 // pred_region
      %s7790 = ssub.s32 %s12, 2
      // Predicated region
      $region57: #{_lambda_.4} parent=55 // pred_check
        %p7791 = pneg %p128
      $region58: #{_lambda_.4} parent=55 // pred_check_branch
        %7793 = sbr.rel (%p7791) target = $region60
      $region59: #{_lambda_.4} parent=55 // pred_region
        %p7794 = scmp.lt.s32.totalorder %s23, 1
        %s7795 = scalar_select %p7794, %s23, 1
        %s7796 = smul.addr %s7795, 32
        %s7797 = smul.addr %s7796, 4
        %s7798 = scalar_lea.vmem %s3, %s7797
      $region60: #{_lambda_.4} parent=55 // pred_fallthru
        _
      // Predicated region
      $region61: #{_lambda_.4} parent=55 // pred_check
        %p7799 = pneg %p154
      $region62: #{_lambda_.4} parent=55 // pred_check_branch
        %7801 = sbr.rel (%p7799) target = $region64
      $region63: #{_lambda_.4} parent=55 // pred_region
        %p7802 = scmp.lt.s32.totalorder %s23, 1
        %s7803 = scalar_select %p7802, %s23, 1
        %s7804 = smul.addr %s7803, 4
        %s7805 = scalar_lea.vmem %s4, %s7804
      $region64: #{_lambda_.4} parent=55 // pred_fallthru
        _
      // Predicated region
      $region65: #{_lambda_.4} parent=55 // pred_check
        %p7806 = pneg %p180
      $region66: #{_lambda_.4} parent=55 // pred_check_branch
        %7808 = sbr.rel (%p7806) target = $region68
      $region67: #{_lambda_.4} parent=55 // pred_region
        %p7809 = scmp.lt.s32.totalorder %s23, 1
        %s7810 = scalar_select %p7809, %s23, 1
        %s7811 = smul.addr %s7810, 4
        %s7812 = scalar_lea.vmem %s5, %s7811
      $region68: #{_lambda_.4} parent=55 // pred_fallthru
        _
    $region56: #{_lambda_.4} parent=5 // pred_fallthru
      _
  $region6: #{_lambda_.4} parent=0 // loop_footer
    %s16 = sadd.s32 1, %s12
  $region7: #{_lambda_.4} parent=0 // loop_footer_branch
    %11 = sbr.rel target = $region3
  $region8: #{_lambda_.4} parent=0 // loop_exit
    _

// kernel: _lambda_.5
$region0: #{_lambda_.5}
  #allocation0 [shape = 'u32[]', space=smem, size = 0x4, offset = 0x4, fixed_abs, tag = 'smem constant byte address 0x4 - core index']
  #allocation1 [shape = 'u32[144,128]{1,0:T(1,128)}', space=vmem, size = 0x12000, scoped, tag = 'internal scratch']
  %s0 = inlined_call_operand.vmem [shape: bf16[128,512], index: 0, kind: input, shape index: {}]
  %s1 = inlined_call_operand.vmem [shape: f32[1,512], index: 1, kind: input, shape index: {}]
  %s2 = inlined_call_operand.vmem [shape: f32[1,512], index: 2, kind: input, shape index: {}]
  %s3 = inlined_call_operand.vmem [shape: bf16[128,512], index: 3, kind: output, shape index: {}]
  %s4 = sld [smem:[#allocation0]]
  $region22: #{_lambda_.5} parent=0
    _
  %s6 = ssub.s32 1, %s4
  %s7 = scalar_select 0, %s6, %s4
  // Predicated region
  $region2: #{_lambda_.5} parent=0 // pred_check
    _
  $region3: #{_lambda_.5} parent=0 // pred_check_branch
    %9 = sbr.rel (0) target = $region5
  $region4: #{_lambda_.5} parent=0 // pred_region
    _
  $region5: #{_lambda_.5} parent=0 // pred_fallthru
    _
  // Predicated region
  $region6: #{_lambda_.5} parent=0 // pred_check
    _
  $region7: #{_lambda_.5} parent=0 // pred_check_branch
    %11 = sbr.rel (0) target = $region9
  $region8: #{_lambda_.5} parent=0 // pred_region
    _
  $region9: #{_lambda_.5} parent=0 // pred_fallthru
    _
  // Predicated region
  $region10: #{_lambda_.5} parent=0 // pred_check
    _
  $region11: #{_lambda_.5} parent=0 // pred_check_branch
    %13 = sbr.rel (0) target = $region13
  $region12: #{_lambda_.5} parent=0 // pred_region
    _
  $region13: #{_lambda_.5} parent=0 // pred_fallthru
    _
  %v14 = vld [vmem:[%s0] sm:$0xff]
  %v15 = vld [vmem:[%s0 + $0x8] sm:$0xff]
  %v16 = vld [vmem:[%s0 + $0x10] sm:$0xff]
  %v17 = vld [vmem:[%s0 + $0x18] sm:$0xff]
  %v18 = vld [vmem:[%s0 + $0x20] sm:$0xff]
  %v19 = vld [vmem:[%s0 + $0x28] sm:$0xff]
  %v20 = vld [vmem:[%s0 + $0x30] sm:$0xff]
  %v21 = vld [vmem:[%s0 + $0x38] sm:$0xff]
  %v22 = vld [vmem:[%s0 + $0x40] sm:$0xff]
  %v23 = vld [vmem:[%s0 + $0x48] sm:$0xff]
  %v24 = vld [vmem:[%s0 + $0x50] sm:$0xff]
  %v25 = vld [vmem:[%s0 + $0x58] sm:$0xff]
  %v26 = vld [vmem:[%s0 + $0x60] sm:$0xff]
  %v27 = vld [vmem:[%s0 + $0x68] sm:$0xff]
  %v28 = vld [vmem:[%s0 + $0x70] sm:$0xff]
  %v29 = vld [vmem:[%s0 + $0x78] sm:$0xff]
  %v30 = vld [vmem:[%s0 + $0x80] sm:$0xff]
  %v31 = vld [vmem:[%s0 + $0x88] sm:$0xff]
  %v32 = vld [vmem:[%s0 + $0x90] sm:$0xff]
  %v33 = vld [vmem:[%s0 + $0x98] sm:$0xff]
  %v34 = vld [vmem:[%s0 + $0xa0] sm:$0xff]
  %v35 = vld [vmem:[%s0 + $0xa8] sm:$0xff]
  %v36 = vld [vmem:[%s0 + $0xb0] sm:$0xff]
  %v37 = vld [vmem:[%s0 + $0xb8] sm:$0xff]
  %v38 = vld [vmem:[%s0 + $0xc0] sm:$0xff]
  %v39 = vld [vmem:[%s0 + $0xc8] sm:$0xff]
  %v40 = vld [vmem:[%s0 + $0xd0] sm:$0xff]
  %v41 = vld [vmem:[%s0 + $0xd8] sm:$0xff]
  %v42 = vld [vmem:[%s0 + $0xe0] sm:$0xff]
  %v43 = vld [vmem:[%s0 + $0xe8] sm:$0xff]
  %v44 = vld [vmem:[%s0 + $0xf0] sm:$0xff]
  %v45 = vld [vmem:[%s0 + $0xf8] sm:$0xff]
  %v46 = vunpack.c.l.bf16 %v14
  %v47 = vunpack.c.h.bf16 %v14
  %v48 = vunpack.c.l.bf16 %v15
  %v49 = vunpack.c.h.bf16 %v15
  %v50 = vunpack.c.l.bf16 %v16
  %v51 = vunpack.c.h.bf16 %v16
  %v52 = vunpack.c.l.bf16 %v17
  %v53 = vunpack.c.h.bf16 %v17
  %v54 = vunpack.c.l.bf16 %v18
  %v55 = vunpack.c.h.bf16 %v18
  %v56 = vunpack.c.l.bf16 %v19
  %v57 = vunpack.c.h.bf16 %v19
  %v58 = vunpack.c.l.bf16 %v20
  %v59 = vunpack.c.h.bf16 %v20
  %v60 = vunpack.c.l.bf16 %v21
  %v61 = vunpack.c.h.bf16 %v21
  %v62 = vunpack.c.l.bf16 %v22
  %v63 = vunpack.c.h.bf16 %v22
  %v64 = vunpack.c.l.bf16 %v23
  %v65 = vunpack.c.h.bf16 %v23
  %v66 = vunpack.c.l.bf16 %v24
  %v67 = vunpack.c.h.bf16 %v24
  %v68 = vunpack.c.l.bf16 %v25
  %v69 = vunpack.c.h.bf16 %v25
  %v70 = vunpack.c.l.bf16 %v26
  %v71 = vunpack.c.h.bf16 %v26
  %v72 = vunpack.c.l.bf16 %v27
  %v73 = vunpack.c.h.bf16 %v27
  %v74 = vunpack.c.l.bf16 %v28
  %v75 = vunpack.c.h.bf16 %v28
  %v76 = vunpack.c.l.bf16 %v29
  %v77 = vunpack.c.h.bf16 %v29
  %v78 = vunpack.c.l.bf16 %v30
  %v79 = vunpack.c.h.bf16 %v30
  %v80 = vunpack.c.l.bf16 %v31
  %v81 = vunpack.c.h.bf16 %v31
  %v82 = vunpack.c.l.bf16 %v32
  %v83 = vunpack.c.h.bf16 %v32
  %v84 = vunpack.c.l.bf16 %v33
  %v85 = vunpack.c.h.bf16 %v33
  %v86 = vunpack.c.l.bf16 %v34
  %v87 = vunpack.c.h.bf16 %v34
  %v88 = vunpack.c.l.bf16 %v35
  %v89 = vunpack.c.h.bf16 %v35
  %v90 = vunpack.c.l.bf16 %v36
  %v91 = vunpack.c.h.bf16 %v36
  %v92 = vunpack.c.l.bf16 %v37
  %v93 = vunpack.c.h.bf16 %v37
  %v94 = vunpack.c.l.bf16 %v38
  %v95 = vunpack.c.h.bf16 %v38
  %v96 = vunpack.c.l.bf16 %v39
  %v97 = vunpack.c.h.bf16 %v39
  %v98 = vunpack.c.l.bf16 %v40
  %v99 = vunpack.c.h.bf16 %v40
  %v100 = vunpack.c.l.bf16 %v41
  %v101 = vunpack.c.h.bf16 %v41
  %v102 = vunpack.c.l.bf16 %v42
  %v103 = vunpack.c.h.bf16 %v42
  %v104 = vunpack.c.l.bf16 %v43
  %v105 = vunpack.c.h.bf16 %v43
  %v106 = vunpack.c.l.bf16 %v44
  %v107 = vunpack.c.h.bf16 %v44
  %v108 = vunpack.c.l.bf16 %v45
  %v109 = vunpack.c.h.bf16 %v45
  %v110 = vld [vmem:[%s1] sm:$0xf]
  %v112 = vlaneseq
  %v113 = vshrl.u32 %v112, 7
  %v114 = vsub.s32 0, %v113
  %v115 = vrot.slane %v110, %v114
  %v116 = vlaneseq
  %v117 = vshrl.u32 %v116, 7
  %v118 = vsub.s32 1, %v117
  %v119 = vrot.slane %v110, %v118
  %v120 = vlaneseq
  %v121 = vshrl.u32 %v120, 7
  %v122 = vsub.s32 2, %v121
  %v123 = vrot.slane %v110, %v122
  %v124 = vlaneseq
  %v125 = vshrl.u32 %v124, 7
  %v126 = vsub.s32 3, %v125
  %v127 = vrot.slane %v110, %v126
  %v132 = vmul.f32 %v46, %v115
  %v133 = vmul.f32 %v47, %v119
  %v134 = vmul.f32 %v48, %v123
  %v135 = vmul.f32 %v49, %v127
  %v136 = vmul.f32 %v50, %v115
  %v137 = vmul.f32 %v51, %v119
  %v138 = vmul.f32 %v52, %v123
  %v139 = vmul.f32 %v53, %v127
  %v140 = vmul.f32 %v54, %v115
  %v141 = vmul.f32 %v55, %v119
  %v142 = vmul.f32 %v56, %v123
  %v143 = vmul.f32 %v57, %v127
  %v144 = vmul.f32 %v58, %v115
  %v145 = vmul.f32 %v59, %v119
  %v146 = vmul.f32 %v60, %v123
  %v147 = vmul.f32 %v61, %v127
  %v148 = vmul.f32 %v62, %v115
  %v149 = vmul.f32 %v63, %v119
  %v150 = vmul.f32 %v64, %v123
  %v151 = vmul.f32 %v65, %v127
  %v152 = vmul.f32 %v66, %v115
  %v153 = vmul.f32 %v67, %v119
  %v154 = vmul.f32 %v68, %v123
  %v155 = vmul.f32 %v69, %v127
  %v156 = vmul.f32 %v70, %v115
  %v157 = vmul.f32 %v71, %v119
  %v158 = vmul.f32 %v72, %v123
  %v159 = vmul.f32 %v73, %v127
  %v160 = vmul.f32 %v74, %v115
  %v161 = vmul.f32 %v75, %v119
  %v162 = vmul.f32 %v76, %v123
  %v163 = vmul.f32 %v77, %v127
  %v164 = vmul.f32 %v78, %v115
  %v165 = vmul.f32 %v79, %v119
  %v166 = vmul.f32 %v80, %v123
  %v167 = vmul.f32 %v81, %v127
  %v168 = vmul.f32 %v82, %v115
  %v169 = vmul.f32 %v83, %v119
  %v170 = vmul.f32 %v84, %v123
  %v171 = vmul.f32 %v85, %v127
  %v172 = vmul.f32 %v86, %v115
  %v173 = vmul.f32 %v87, %v119
  %v174 = vmul.f32 %v88, %v123
  %v175 = vmul.f32 %v89, %v127
  %v176 = vmul.f32 %v90, %v115
  %v177 = vmul.f32 %v91, %v119
  %v178 = vmul.f32 %v92, %v123
  %v179 = vmul.f32 %v93, %v127
  %v180 = vmul.f32 %v94, %v115
  %v181 = vmul.f32 %v95, %v119
  %v182 = vmul.f32 %v96, %v123
  %v183 = vmul.f32 %v97, %v127
  %v184 = vmul.f32 %v98, %v115
  %v185 = vmul.f32 %v99, %v119
  %v186 = vmul.f32 %v100, %v123
  %v187 = vmul.f32 %v101, %v127
  %v188 = vmul.f32 %v102, %v115
  %v189 = vmul.f32 %v103, %v119
  %v190 = vmul.f32 %v104, %v123
  %v191 = vmul.f32 %v105, %v127
  %v192 = vmul.f32 %v106, %v115
  %v193 = vmul.f32 %v107, %v119
  %v194 = vmul.f32 %v108, %v123
  %v195 = vmul.f32 %v109, %v127
  %v196 = vld [vmem:[%s2] sm:$0xf]
  %v198 = vlaneseq
  %v199 = vshrl.u32 %v198, 7
  %v200 = vsub.s32 0, %v199
  %v201 = vrot.slane %v196, %v200
  %v202 = vlaneseq
  %v203 = vshrl.u32 %v202, 7
  %v204 = vsub.s32 1, %v203
  %v205 = vrot.slane %v196, %v204
  %v206 = vlaneseq
  %v207 = vshrl.u32 %v206, 7
  %v208 = vsub.s32 2, %v207
  %v209 = vrot.slane %v196, %v208
  %v210 = vlaneseq
  %v211 = vshrl.u32 %v210, 7
  %v212 = vsub.s32 3, %v211
  %v213 = vrot.slane %v196, %v212
  %v218 = vadd.f32 %v132, %v201
  %v219 = vadd.f32 %v133, %v205
  %v220 = vadd.f32 %v134, %v209
  %v221 = vadd.f32 %v135, %v213
  %v222 = vadd.f32 %v136, %v201
  %v223 = vadd.f32 %v137, %v205
  %v224 = vadd.f32 %v138, %v209
  %v225 = vadd.f32 %v139, %v213
  %v226 = vadd.f32 %v140, %v201
  %v227 = vadd.f32 %v141, %v205
  %v228 = vadd.f32 %v142, %v209
  %v229 = vadd.f32 %v143, %v213
  %v230 = vadd.f32 %v144, %v201
  %v231 = vadd.f32 %v145, %v205
  %v232 = vadd.f32 %v146, %v209
  %v233 = vadd.f32 %v147, %v213
  %v234 = vadd.f32 %v148, %v201
  %v235 = vadd.f32 %v149, %v205
  %v236 = vadd.f32 %v150, %v209
  %v237 = vadd.f32 %v151, %v213
  %v238 = vadd.f32 %v152, %v201
  %v239 = vadd.f32 %v153, %v205
  %v240 = vadd.f32 %v154, %v209
  %v241 = vadd.f32 %v155, %v213
  %v242 = vadd.f32 %v156, %v201
  %v243 = vadd.f32 %v157, %v205
  %v244 = vadd.f32 %v158, %v209
  %v245 = vadd.f32 %v159, %v213
  %v246 = vadd.f32 %v160, %v201
  %v247 = vadd.f32 %v161, %v205
  %v248 = vadd.f32 %v162, %v209
  %v249 = vadd.f32 %v163, %v213
  %v250 = vadd.f32 %v164, %v201
  %v251 = vadd.f32 %v165, %v205
  %v252 = vadd.f32 %v166, %v209
  %v253 = vadd.f32 %v167, %v213
  %v254 = vadd.f32 %v168, %v201
  %v255 = vadd.f32 %v169, %v205
  %v256 = vadd.f32 %v170, %v209
  %v257 = vadd.f32 %v171, %v213
  %v258 = vadd.f32 %v172, %v201
  %v259 = vadd.f32 %v173, %v205
  %v260 = vadd.f32 %v174, %v209
  %v261 = vadd.f32 %v175, %v213
  %v262 = vadd.f32 %v176, %v201
  %v263 = vadd.f32 %v177, %v205
  %v264 = vadd.f32 %v178, %v209
  %v265 = vadd.f32 %v179, %v213
  %v266 = vadd.f32 %v180, %v201
  %v267 = vadd.f32 %v181, %v205
  %v268 = vadd.f32 %v182, %v209
  %v269 = vadd.f32 %v183, %v213
  %v270 = vadd.f32 %v184, %v201
  %v271 = vadd.f32 %v185, %v205
  %v272 = vadd.f32 %v186, %v209
  %v273 = vadd.f32 %v187, %v213
  %v274 = vadd.f32 %v188, %v201
  %v275 = vadd.f32 %v189, %v205
  %v276 = vadd.f32 %v190, %v209
  %v277 = vadd.f32 %v191, %v213
  %v278 = vadd.f32 %v192, %v201
  %v279 = vadd.f32 %v193, %v205
  %v280 = vadd.f32 %v194, %v209
  %v281 = vadd.f32 %v195, %v213
  %v282 = vmax.f32 %v218, 0.0
  %v283 = vmax.f32 %v219, 0.0
  %v284 = vmax.f32 %v220, 0.0
  %v285 = vmax.f32 %v221, 0.0
  %v286 = vmax.f32 %v222, 0.0
  %v287 = vmax.f32 %v223, 0.0
  %v288 = vmax.f32 %v224, 0.0
  %v289 = vmax.f32 %v225, 0.0
  %v290 = vmax.f32 %v226, 0.0
  %v291 = vmax.f32 %v227, 0.0
  %v292 = vmax.f32 %v228, 0.0
  %v293 = vmax.f32 %v229, 0.0
  %v294 = vmax.f32 %v230, 0.0
  %v295 = vmax.f32 %v231, 0.0
  %v296 = vmax.f32 %v232, 0.0
  %v297 = vmax.f32 %v233, 0.0
  %v298 = vmax.f32 %v234, 0.0
  %v299 = vmax.f32 %v235, 0.0
  %v300 = vmax.f32 %v236, 0.0
  %v301 = vmax.f32 %v237, 0.0
  %v302 = vmax.f32 %v238, 0.0
  %v303 = vmax.f32 %v239, 0.0
  %v304 = vmax.f32 %v240, 0.0
  %v305 = vmax.f32 %v241, 0.0
  %v306 = vmax.f32 %v242, 0.0
  %v307 = vmax.f32 %v243, 0.0
  %v308 = vmax.f32 %v244, 0.0
  %v309 = vmax.f32 %v245, 0.0
  %v310 = vmax.f32 %v246, 0.0
  %v311 = vmax.f32 %v247, 0.0
  %v312 = vmax.f32 %v248, 0.0
  %v313 = vmax.f32 %v249, 0.0
  %v314 = vmax.f32 %v250, 0.0
  %v315 = vmax.f32 %v251, 0.0
  %v316 = vmax.f32 %v252, 0.0
  %v317 = vmax.f32 %v253, 0.0
  %v318 = vmax.f32 %v254, 0.0
  %v319 = vmax.f32 %v255, 0.0
  %v320 = vmax.f32 %v256, 0.0
  %v321 = vmax.f32 %v257, 0.0
  %v322 = vmax.f32 %v258, 0.0
  %v323 = vmax.f32 %v259, 0.0
  %v324 = vmax.f32 %v260, 0.0
  %v325 = vmax.f32 %v261, 0.0
  %v326 = vmax.f32 %v262, 0.0
  %v327 = vmax.f32 %v263, 0.0
  %v328 = vmax.f32 %v264, 0.0
  %v329 = vmax.f32 %v265, 0.0
  %v330 = vmax.f32 %v266, 0.0
  %v331 = vmax.f32 %v267, 0.0
  %v332 = vmax.f32 %v268, 0.0
  %v333 = vmax.f32 %v269, 0.0
  %v334 = vmax.f32 %v270, 0.0
  %v335 = vmax.f32 %v271, 0.0
  %v336 = vmax.f32 %v272, 0.0
  %v337 = vmax.f32 %v273, 0.0
  %v338 = vmax.f32 %v274, 0.0
  %v339 = vmax.f32 %v275, 0.0
  %v340 = vmax.f32 %v276, 0.0
  %v341 = vmax.f32 %v277, 0.0
  %v342 = vmax.f32 %v278, 0.0
  %v343 = vmax.f32 %v279, 0.0
  %v344 = vmax.f32 %v280, 0.0
  %v345 = vmax.f32 %v281, 0.0
  %v346 = vpack.c.bf16 %v286, %v282
  %v347 = vpack.c.bf16 %v287, %v283
  %v348 = vpack.c.bf16 %v288, %v284
  %v349 = vpack.c.bf16 %v289, %v285
  %v350 = vpack.c.bf16 %v294, %v290
  %v351 = vpack.c.bf16 %v295, %v291
  %v352 = vpack.c.bf16 %v296, %v292
  %v353 = vpack.c.bf16 %v297, %v293
  %v354 = vpack.c.bf16 %v302, %v298
  %v355 = vpack.c.bf16 %v303, %v299
  %v356 = vpack.c.bf16 %v304, %v300
  %v357 = vpack.c.bf16 %v305, %v301
  %v358 = vpack.c.bf16 %v310, %v306
  %v359 = vpack.c.bf16 %v311, %v307
  %v360 = vpack.c.bf16 %v312, %v308
  %v361 = vpack.c.bf16 %v313, %v309
  %v362 = vpack.c.bf16 %v318, %v314
  %v363 = vpack.c.bf16 %v319, %v315
  %v364 = vpack.c.bf16 %v320, %v316
  %v365 = vpack.c.bf16 %v321, %v317
  %v366 = vpack.c.bf16 %v326, %v322
  %v367 = vpack.c.bf16 %v327, %v323
  %v368 = vpack.c.bf16 %v328, %v324
  %v369 = vpack.c.bf16 %v329, %v325
  %v370 = vpack.c.bf16 %v334, %v330
  %v371 = vpack.c.bf16 %v335, %v331
  %v372 = vpack.c.bf16 %v336, %v332
  %v373 = vpack.c.bf16 %v337, %v333
  %v374 = vpack.c.bf16 %v342, %v338
  %v375 = vpack.c.bf16 %v343, %v339
  %v376 = vpack.c.bf16 %v344, %v340
  %v377 = vpack.c.bf16 %v345, %v341
  %v410 = vunpack.c.l.b16 %v346
  %v411 = vunpack.c.l.b16 %v347
  %v412 = vunpack.c.l.b16 %v348
  %v413 = vunpack.c.l.b16 %v349
  %v414 = vunpack.c.h.b16 %v346
  %v415 = vunpack.c.h.b16 %v347
  %v416 = vunpack.c.h.b16 %v348
  %v417 = vunpack.c.h.b16 %v349
  %v418 = vunpack.c.l.b16 %v350
  %v419 = vunpack.c.l.b16 %v351
  %v420 = vunpack.c.l.b16 %v352
  %v421 = vunpack.c.l.b16 %v353
  %v422 = vunpack.c.h.b16 %v350
  %v423 = vunpack.c.h.b16 %v351
  %v424 = vunpack.c.h.b16 %v352
  %v425 = vunpack.c.h.b16 %v353
  %v426 = vunpack.c.l.b16 %v354
  %v427 = vunpack.c.l.b16 %v355
  %v428 = vunpack.c.l.b16 %v356
  %v429 = vunpack.c.l.b16 %v357
  %v430 = vunpack.c.h.b16 %v354
  %v431 = vunpack.c.h.b16 %v355
  %v432 = vunpack.c.h.b16 %v356
  %v433 = vunpack.c.h.b16 %v357
  %v434 = vunpack.c.l.b16 %v358
  %v435 = vunpack.c.l.b16 %v359
  %v436 = vunpack.c.l.b16 %v360
  %v437 = vunpack.c.l.b16 %v361
  %v438 = vunpack.c.h.b16 %v358
  %v439 = vunpack.c.h.b16 %v359
  %v440 = vunpack.c.h.b16 %v360
  %v441 = vunpack.c.h.b16 %v361
  %v442 = vunpack.c.l.b16 %v362
  %v443 = vunpack.c.l.b16 %v363
  %v444 = vunpack.c.l.b16 %v364
  %v445 = vunpack.c.l.b16 %v365
  %v446 = vunpack.c.h.b16 %v362
  %v447 = vunpack.c.h.b16 %v363
  %v448 = vunpack.c.h.b16 %v364
  %v449 = vunpack.c.h.b16 %v365
  %v450 = vunpack.c.l.b16 %v366
  %v451 = vunpack.c.l.b16 %v367
  %v452 = vunpack.c.l.b16 %v368
  %v453 = vunpack.c.l.b16 %v369
  %v454 = vunpack.c.h.b16 %v366
  %v455 = vunpack.c.h.b16 %v367
  %v456 = vunpack.c.h.b16 %v368
  %v457 = vunpack.c.h.b16 %v369
  %v458 = vunpack.c.l.b16 %v370
  %v459 = vunpack.c.l.b16 %v371
  %v460 = vunpack.c.l.b16 %v372
  %v461 = vunpack.c.l.b16 %v373
  %v462 = vunpack.c.h.b16 %v370
  %v463 = vunpack.c.h.b16 %v371
  %v464 = vunpack.c.h.b16 %v372
  %v465 = vunpack.c.h.b16 %v373
  %v466 = vunpack.c.l.b16 %v374
  %v467 = vunpack.c.l.b16 %v375
  %v468 = vunpack.c.l.b16 %v376
  %v469 = vunpack.c.l.b16 %v377
  %v470 = vunpack.c.h.b16 %v374
  %v471 = vunpack.c.h.b16 %v375
  %v472 = vunpack.c.h.b16 %v376
  %v473 = vunpack.c.h.b16 %v377
  %v474 = vpack.c.b16 %v411, %v410
  %v475 = vpack.c.b16 %v413, %v412
  %v476 = vpack.c.b16 %v415, %v414
  %v477 = vpack.c.b16 %v417, %v416
  %v478 = vpack.c.b16 %v419, %v418
  %v479 = vpack.c.b16 %v421, %v420
  %v480 = vpack.c.b16 %v423, %v422
  %v481 = vpack.c.b16 %v425, %v424
  %v482 = vpack.c.b16 %v427, %v426
  %v483 = vpack.c.b16 %v429, %v428
  %v484 = vpack.c.b16 %v431, %v430
  %v485 = vpack.c.b16 %v433, %v432
  %v486 = vpack.c.b16 %v435, %v434
  %v487 = vpack.c.b16 %v437, %v436
  %v488 = vpack.c.b16 %v439, %v438
  %v489 = vpack.c.b16 %v441, %v440
  %v490 = vpack.c.b16 %v443, %v442
  %v491 = vpack.c.b16 %v445, %v444
  %v492 = vpack.c.b16 %v447, %v446
  %v493 = vpack.c.b16 %v449, %v448
  %v494 = vpack.c.b16 %v451, %v450
  %v495 = vpack.c.b16 %v453, %v452
  %v496 = vpack.c.b16 %v455, %v454
  %v497 = vpack.c.b16 %v457, %v456
  %v498 = vpack.c.b16 %v459, %v458
  %v499 = vpack.c.b16 %v461, %v460
  %v500 = vpack.c.b16 %v463, %v462
  %v501 = vpack.c.b16 %v465, %v464
  %v502 = vpack.c.b16 %v467, %v466
  %v503 = vpack.c.b16 %v469, %v468
  %v504 = vpack.c.b16 %v471, %v470
  %v505 = vpack.c.b16 %v473, %v472
  %538 = vst [vmem:[%s3] sm:$0xff] %v474
  %539 = vst [vmem:[%s3 + $0x8] sm:$0xff] %v475
  %540 = vst [vmem:[%s3 + $0x10] sm:$0xff] %v476
  %541 = vst [vmem:[%s3 + $0x18] sm:$0xff] %v477
  %542 = vst [vmem:[%s3 + $0x20] sm:$0xff] %v478
  %543 = vst [vmem:[%s3 + $0x28] sm:$0xff] %v479
  %544 = vst [vmem:[%s3 + $0x30] sm:$0xff] %v480
  %545 = vst [vmem:[%s3 + $0x38] sm:$0xff] %v481
  %546 = vst [vmem:[%s3 + $0x40] sm:$0xff] %v482
  %547 = vst [vmem:[%s3 + $0x48] sm:$0xff] %v483
  %548 = vst [vmem:[%s3 + $0x50] sm:$0xff] %v484
  %549 = vst [vmem:[%s3 + $0x58] sm:$0xff] %v485
  %550 = vst [vmem:[%s3 + $0x60] sm:$0xff] %v486
  %551 = vst [vmem:[%s3 + $0x68] sm:$0xff] %v487
  %552 = vst [vmem:[%s3 + $0x70] sm:$0xff] %v488
  %553 = vst [vmem:[%s3 + $0x78] sm:$0xff] %v489
  %554 = vst [vmem:[%s3 + $0x80] sm:$0xff] %v490
  %555 = vst [vmem:[%s3 + $0x88] sm:$0xff] %v491
  %556 = vst [vmem:[%s3 + $0x90] sm:$0xff] %v492
  %557 = vst [vmem:[%s3 + $0x98] sm:$0xff] %v493
  %558 = vst [vmem:[%s3 + $0xa0] sm:$0xff] %v494
  %559 = vst [vmem:[%s3 + $0xa8] sm:$0xff] %v495
  %560 = vst [vmem:[%s3 + $0xb0] sm:$0xff] %v496
  %561 = vst [vmem:[%s3 + $0xb8] sm:$0xff] %v497
  %562 = vst [vmem:[%s3 + $0xc0] sm:$0xff] %v498
  %563 = vst [vmem:[%s3 + $0xc8] sm:$0xff] %v499
  %564 = vst [vmem:[%s3 + $0xd0] sm:$0xff] %v500
  %565 = vst [vmem:[%s3 + $0xd8] sm:$0xff] %v501
  %566 = vst [vmem:[%s3 + $0xe0] sm:$0xff] %v502
  %567 = vst [vmem:[%s3 + $0xe8] sm:$0xff] %v503
  %568 = vst [vmem:[%s3 + $0xf0] sm:$0xff] %v504
  %569 = vst [vmem:[%s3 + $0xf8] sm:$0xff] %v505
  // Predicated region
  $region14: #{_lambda_.5} parent=0 // pred_check
    _
  $region15: #{_lambda_.5} parent=0 // pred_check_branch
    %571 = sbr.rel (0) target = $region17
  $region16: #{_lambda_.5} parent=0 // pred_region
    _
  $region17: #{_lambda_.5} parent=0 // pred_fallthru
    _
  // Predicated region
  $region18: #{_lambda_.5} parent=0 // pred_check
    _
  $region19: #{_lambda_.5} parent=0 // pred_check_branch
    %573 = sbr.rel (0) target = $region21
  $region20: #{_lambda_.5} parent=0 // pred_region
    _
  $region21: #{_lambda_.5} parent=0 // pred_fallthru
    _

// kernel: _lambda_.7
$region0: #{_lambda_.7}
  #allocation0 [shape = 'u32[]', space=smem, size = 0x4, offset = 0x4, fixed_abs, tag = 'smem constant byte address 0x4 - core index']
  #allocation1 [shape = 'u32[144,128]{1,0:T(1,128)}', space=vmem, size = 0x12000, scoped, tag = 'internal scratch']
  %s0 = inlined_call_operand.vmem [shape: bf16[128,512], index: 0, kind: input, shape index: {}]
  %s1 = inlined_call_operand.vmem [shape: f32[1,512], index: 1, kind: input, shape index: {}]
  %s2 = inlined_call_operand.vmem [shape: f32[1,512], index: 2, kind: input, shape index: {}]
  %s3 = inlined_call_operand.vmem [shape: f32[128,512], index: 3, kind: output, shape index: {}]
  %s4 = sld [smem:[#allocation0]]
  $region22: #{_lambda_.7} parent=0
    _
  %s6 = ssub.s32 1, %s4
  %s7 = scalar_select 0, %s6, %s4
  // Predicated region
  $region2: #{_lambda_.7} parent=0 // pred_check
    _
  $region3: #{_lambda_.7} parent=0 // pred_check_branch
    %9 = sbr.rel (0) target = $region5
  $region4: #{_lambda_.7} parent=0 // pred_region
    _
  $region5: #{_lambda_.7} parent=0 // pred_fallthru
    _
  // Predicated region
  $region6: #{_lambda_.7} parent=0 // pred_check
    _
  $region7: #{_lambda_.7} parent=0 // pred_check_branch
    %11 = sbr.rel (0) target = $region9
  $region8: #{_lambda_.7} parent=0 // pred_region
    _
  $region9: #{_lambda_.7} parent=0 // pred_fallthru
    _
  // Predicated region
  $region10: #{_lambda_.7} parent=0 // pred_check
    _
  $region11: #{_lambda_.7} parent=0 // pred_check_branch
    %13 = sbr.rel (0) target = $region13
  $region12: #{_lambda_.7} parent=0 // pred_region
    _
  $region13: #{_lambda_.7} parent=0 // pred_fallthru
    _
  %v14 = vld [vmem:[%s0] sm:$0xff]
  %v15 = vld [vmem:[%s0 + $0x8] sm:$0xff]
  %v16 = vld [vmem:[%s0 + $0x10] sm:$0xff]
  %v17 = vld [vmem:[%s0 + $0x18] sm:$0xff]
  %v18 = vld [vmem:[%s0 + $0x20] sm:$0xff]
  %v19 = vld [vmem:[%s0 + $0x28] sm:$0xff]
  %v20 = vld [vmem:[%s0 + $0x30] sm:$0xff]
  %v21 = vld [vmem:[%s0 + $0x38] sm:$0xff]
  %v22 = vld [vmem:[%s0 + $0x40] sm:$0xff]
  %v23 = vld [vmem:[%s0 + $0x48] sm:$0xff]
  %v24 = vld [vmem:[%s0 + $0x50] sm:$0xff]
  %v25 = vld [vmem:[%s0 + $0x58] sm:$0xff]
  %v26 = vld [vmem:[%s0 + $0x60] sm:$0xff]
  %v27 = vld [vmem:[%s0 + $0x68] sm:$0xff]
  %v28 = vld [vmem:[%s0 + $0x70] sm:$0xff]
  %v29 = vld [vmem:[%s0 + $0x78] sm:$0xff]
  %v30 = vld [vmem:[%s0 + $0x80] sm:$0xff]
  %v31 = vld [vmem:[%s0 + $0x88] sm:$0xff]
  %v32 = vld [vmem:[%s0 + $0x90] sm:$0xff]
  %v33 = vld [vmem:[%s0 + $0x98] sm:$0xff]
  %v34 = vld [vmem:[%s0 + $0xa0] sm:$0xff]
  %v35 = vld [vmem:[%s0 + $0xa8] sm:$0xff]
  %v36 = vld [vmem:[%s0 + $0xb0] sm:$0xff]
  %v37 = vld [vmem:[%s0 + $0xb8] sm:$0xff]
  %v38 = vld [vmem:[%s0 + $0xc0] sm:$0xff]
  %v39 = vld [vmem:[%s0 + $0xc8] sm:$0xff]
  %v40 = vld [vmem:[%s0 + $0xd0] sm:$0xff]
  %v41 = vld [vmem:[%s0 + $0xd8] sm:$0xff]
  %v42 = vld [vmem:[%s0 + $0xe0] sm:$0xff]
  %v43 = vld [vmem:[%s0 + $0xe8] sm:$0xff]
  %v44 = vld [vmem:[%s0 + $0xf0] sm:$0xff]
  %v45 = vld [vmem:[%s0 + $0xf8] sm:$0xff]
  %v46 = vunpack.c.l.bf16 %v14
  %v47 = vunpack.c.h.bf16 %v14
  %v48 = vunpack.c.l.bf16 %v15
  %v49 = vunpack.c.h.bf16 %v15
  %v50 = vunpack.c.l.bf16 %v16
  %v51 = vunpack.c.h.bf16 %v16
  %v52 = vunpack.c.l.bf16 %v17
  %v53 = vunpack.c.h.bf16 %v17
  %v54 = vunpack.c.l.bf16 %v18
  %v55 = vunpack.c.h.bf16 %v18
  %v56 = vunpack.c.l.bf16 %v19
  %v57 = vunpack.c.h.bf16 %v19
  %v58 = vunpack.c.l.bf16 %v20
  %v59 = vunpack.c.h.bf16 %v20
  %v60 = vunpack.c.l.bf16 %v21
  %v61 = vunpack.c.h.bf16 %v21
  %v62 = vunpack.c.l.bf16 %v22
  %v63 = vunpack.c.h.bf16 %v22
  %v64 = vunpack.c.l.bf16 %v23
  %v65 = vunpack.c.h.bf16 %v23
  %v66 = vunpack.c.l.bf16 %v24
  %v67 = vunpack.c.h.bf16 %v24
  %v68 = vunpack.c.l.bf16 %v25
  %v69 = vunpack.c.h.bf16 %v25
  %v70 = vunpack.c.l.bf16 %v26
  %v71 = vunpack.c.h.bf16 %v26
  %v72 = vunpack.c.l.bf16 %v27
  %v73 = vunpack.c.h.bf16 %v27
  %v74 = vunpack.c.l.bf16 %v28
  %v75 = vunpack.c.h.bf16 %v28
  %v76 = vunpack.c.l.bf16 %v29
  %v77 = vunpack.c.h.bf16 %v29
  %v78 = vunpack.c.l.bf16 %v30
  %v79 = vunpack.c.h.bf16 %v30
  %v80 = vunpack.c.l.bf16 %v31
  %v81 = vunpack.c.h.bf16 %v31
  %v82 = vunpack.c.l.bf16 %v32
  %v83 = vunpack.c.h.bf16 %v32
  %v84 = vunpack.c.l.bf16 %v33
  %v85 = vunpack.c.h.bf16 %v33
  %v86 = vunpack.c.l.bf16 %v34
  %v87 = vunpack.c.h.bf16 %v34
  %v88 = vunpack.c.l.bf16 %v35
  %v89 = vunpack.c.h.bf16 %v35
  %v90 = vunpack.c.l.bf16 %v36
  %v91 = vunpack.c.h.bf16 %v36
  %v92 = vunpack.c.l.bf16 %v37
  %v93 = vunpack.c.h.bf16 %v37
  %v94 = vunpack.c.l.bf16 %v38
  %v95 = vunpack.c.h.bf16 %v38
  %v96 = vunpack.c.l.bf16 %v39
  %v97 = vunpack.c.h.bf16 %v39
  %v98 = vunpack.c.l.bf16 %v40
  %v99 = vunpack.c.h.bf16 %v40
  %v100 = vunpack.c.l.bf16 %v41
  %v101 = vunpack.c.h.bf16 %v41
  %v102 = vunpack.c.l.bf16 %v42
  %v103 = vunpack.c.h.bf16 %v42
  %v104 = vunpack.c.l.bf16 %v43
  %v105 = vunpack.c.h.bf16 %v43
  %v106 = vunpack.c.l.bf16 %v44
  %v107 = vunpack.c.h.bf16 %v44
  %v108 = vunpack.c.l.bf16 %v45
  %v109 = vunpack.c.h.bf16 %v45
  %v110 = vld [vmem:[%s1] sm:$0xf]
  %v112 = vlaneseq
  %v113 = vshrl.u32 %v112, 7
  %v114 = vsub.s32 0, %v113
  %v115 = vrot.slane %v110, %v114
  %v116 = vlaneseq
  %v117 = vshrl.u32 %v116, 7
  %v118 = vsub.s32 1, %v117
  %v119 = vrot.slane %v110, %v118
  %v120 = vlaneseq
  %v121 = vshrl.u32 %v120, 7
  %v122 = vsub.s32 2, %v121
  %v123 = vrot.slane %v110, %v122
  %v124 = vlaneseq
  %v125 = vshrl.u32 %v124, 7
  %v126 = vsub.s32 3, %v125
  %v127 = vrot.slane %v110, %v126
  %v132 = vmul.f32 %v46, %v115
  %v133 = vmul.f32 %v47, %v119
  %v134 = vmul.f32 %v48, %v123
  %v135 = vmul.f32 %v49, %v127
  %v136 = vmul.f32 %v50, %v115
  %v137 = vmul.f32 %v51, %v119
  %v138 = vmul.f32 %v52, %v123
  %v139 = vmul.f32 %v53, %v127
  %v140 = vmul.f32 %v54, %v115
  %v141 = vmul.f32 %v55, %v119
  %v142 = vmul.f32 %v56, %v123
  %v143 = vmul.f32 %v57, %v127
  %v144 = vmul.f32 %v58, %v115
  %v145 = vmul.f32 %v59, %v119
  %v146 = vmul.f32 %v60, %v123
  %v147 = vmul.f32 %v61, %v127
  %v148 = vmul.f32 %v62, %v115
  %v149 = vmul.f32 %v63, %v119
  %v150 = vmul.f32 %v64, %v123
  %v151 = vmul.f32 %v65, %v127
  %v152 = vmul.f32 %v66, %v115
  %v153 = vmul.f32 %v67, %v119
  %v154 = vmul.f32 %v68, %v123
  %v155 = vmul.f32 %v69, %v127
  %v156 = vmul.f32 %v70, %v115
  %v157 = vmul.f32 %v71, %v119
  %v158 = vmul.f32 %v72, %v123
  %v159 = vmul.f32 %v73, %v127
  %v160 = vmul.f32 %v74, %v115
  %v161 = vmul.f32 %v75, %v119
  %v162 = vmul.f32 %v76, %v123
  %v163 = vmul.f32 %v77, %v127
  %v164 = vmul.f32 %v78, %v115
  %v165 = vmul.f32 %v79, %v119
  %v166 = vmul.f32 %v80, %v123
  %v167 = vmul.f32 %v81, %v127
  %v168 = vmul.f32 %v82, %v115
  %v169 = vmul.f32 %v83, %v119
  %v170 = vmul.f32 %v84, %v123
  %v171 = vmul.f32 %v85, %v127
  %v172 = vmul.f32 %v86, %v115
  %v173 = vmul.f32 %v87, %v119
  %v174 = vmul.f32 %v88, %v123
  %v175 = vmul.f32 %v89, %v127
  %v176 = vmul.f32 %v90, %v115
  %v177 = vmul.f32 %v91, %v119
  %v178 = vmul.f32 %v92, %v123
  %v179 = vmul.f32 %v93, %v127
  %v180 = vmul.f32 %v94, %v115
  %v181 = vmul.f32 %v95, %v119
  %v182 = vmul.f32 %v96, %v123
  %v183 = vmul.f32 %v97, %v127
  %v184 = vmul.f32 %v98, %v115
  %v185 = vmul.f32 %v99, %v119
  %v186 = vmul.f32 %v100, %v123
  %v187 = vmul.f32 %v101, %v127
  %v188 = vmul.f32 %v102, %v115
  %v189 = vmul.f32 %v103, %v119
  %v190 = vmul.f32 %v104, %v123
  %v191 = vmul.f32 %v105, %v127
  %v192 = vmul.f32 %v106, %v115
  %v193 = vmul.f32 %v107, %v119
  %v194 = vmul.f32 %v108, %v123
  %v195 = vmul.f32 %v109, %v127
  %v196 = vld [vmem:[%s2] sm:$0xf]
  %v198 = vlaneseq
  %v199 = vshrl.u32 %v198, 7
  %v200 = vsub.s32 0, %v199
  %v201 = vrot.slane %v196, %v200
  %v202 = vlaneseq
  %v203 = vshrl.u32 %v202, 7
  %v204 = vsub.s32 1, %v203
  %v205 = vrot.slane %v196, %v204
  %v206 = vlaneseq
  %v207 = vshrl.u32 %v206, 7
  %v208 = vsub.s32 2, %v207
  %v209 = vrot.slane %v196, %v208
  %v210 = vlaneseq
  %v211 = vshrl.u32 %v210, 7
  %v212 = vsub.s32 3, %v211
  %v213 = vrot.slane %v196, %v212
  %v218 = vadd.f32 %v132, %v201
  %v219 = vadd.f32 %v133, %v205
  %v220 = vadd.f32 %v134, %v209
  %v221 = vadd.f32 %v135, %v213
  %v222 = vadd.f32 %v136, %v201
  %v223 = vadd.f32 %v137, %v205
  %v224 = vadd.f32 %v138, %v209
  %v225 = vadd.f32 %v139, %v213
  %v226 = vadd.f32 %v140, %v201
  %v227 = vadd.f32 %v141, %v205
  %v228 = vadd.f32 %v142, %v209
  %v229 = vadd.f32 %v143, %v213
  %v230 = vadd.f32 %v144, %v201
  %v231 = vadd.f32 %v145, %v205
  %v232 = vadd.f32 %v146, %v209
  %v233 = vadd.f32 %v147, %v213
  %v234 = vadd.f32 %v148, %v201
  %v235 = vadd.f32 %v149, %v205
  %v236 = vadd.f32 %v150, %v209
  %v237 = vadd.f32 %v151, %v213
  %v238 = vadd.f32 %v152, %v201
  %v239 = vadd.f32 %v153, %v205
  %v240 = vadd.f32 %v154, %v209
  %v241 = vadd.f32 %v155, %v213
  %v242 = vadd.f32 %v156, %v201
  %v243 = vadd.f32 %v157, %v205
  %v244 = vadd.f32 %v158, %v209
  %v245 = vadd.f32 %v159, %v213
  %v246 = vadd.f32 %v160, %v201
  %v247 = vadd.f32 %v161, %v205
  %v248 = vadd.f32 %v162, %v209
  %v249 = vadd.f32 %v163, %v213
  %v250 = vadd.f32 %v164, %v201
  %v251 = vadd.f32 %v165, %v205
  %v252 = vadd.f32 %v166, %v209
  %v253 = vadd.f32 %v167, %v213
  %v254 = vadd.f32 %v168, %v201
  %v255 = vadd.f32 %v169, %v205
  %v256 = vadd.f32 %v170, %v209
  %v257 = vadd.f32 %v171, %v213
  %v258 = vadd.f32 %v172, %v201
  %v259 = vadd.f32 %v173, %v205
  %v260 = vadd.f32 %v174, %v209
  %v261 = vadd.f32 %v175, %v213
  %v262 = vadd.f32 %v176, %v201
  %v263 = vadd.f32 %v177, %v205
  %v264 = vadd.f32 %v178, %v209
  %v265 = vadd.f32 %v179, %v213
  %v266 = vadd.f32 %v180, %v201
  %v267 = vadd.f32 %v181, %v205
  %v268 = vadd.f32 %v182, %v209
  %v269 = vadd.f32 %v183, %v213
  %v270 = vadd.f32 %v184, %v201
  %v271 = vadd.f32 %v185, %v205
  %v272 = vadd.f32 %v186, %v209
  %v273 = vadd.f32 %v187, %v213
  %v274 = vadd.f32 %v188, %v201
  %v275 = vadd.f32 %v189, %v205
  %v276 = vadd.f32 %v190, %v209
  %v277 = vadd.f32 %v191, %v213
  %v278 = vadd.f32 %v192, %v201
  %v279 = vadd.f32 %v193, %v205
  %v280 = vadd.f32 %v194, %v209
  %v281 = vadd.f32 %v195, %v213
  %v282 = vmax.f32 %v218, 0.0
  %v283 = vmax.f32 %v219, 0.0
  %v284 = vmax.f32 %v220, 0.0
  %v285 = vmax.f32 %v221, 0.0
  %v286 = vmax.f32 %v222, 0.0
  %v287 = vmax.f32 %v223, 0.0
  %v288 = vmax.f32 %v224, 0.0
  %v289 = vmax.f32 %v225, 0.0
  %v290 = vmax.f32 %v226, 0.0
  %v291 = vmax.f32 %v227, 0.0
  %v292 = vmax.f32 %v228, 0.0
  %v293 = vmax.f32 %v229, 0.0
  %v294 = vmax.f32 %v230, 0.0
  %v295 = vmax.f32 %v231, 0.0
  %v296 = vmax.f32 %v232, 0.0
  %v297 = vmax.f32 %v233, 0.0
  %v298 = vmax.f32 %v234, 0.0
  %v299 = vmax.f32 %v235, 0.0
  %v300 = vmax.f32 %v236, 0.0
  %v301 = vmax.f32 %v237, 0.0
  %v302 = vmax.f32 %v238, 0.0
  %v303 = vmax.f32 %v239, 0.0
  %v304 = vmax.f32 %v240, 0.0
  %v305 = vmax.f32 %v241, 0.0
  %v306 = vmax.f32 %v242, 0.0
  %v307 = vmax.f32 %v243, 0.0
  %v308 = vmax.f32 %v244, 0.0
  %v309 = vmax.f32 %v245, 0.0
  %v310 = vmax.f32 %v246, 0.0
  %v311 = vmax.f32 %v247, 0.0
  %v312 = vmax.f32 %v248, 0.0
  %v313 = vmax.f32 %v249, 0.0
  %v314 = vmax.f32 %v250, 0.0
  %v315 = vmax.f32 %v251, 0.0
  %v316 = vmax.f32 %v252, 0.0
  %v317 = vmax.f32 %v253, 0.0
  %v318 = vmax.f32 %v254, 0.0
  %v319 = vmax.f32 %v255, 0.0
  %v320 = vmax.f32 %v256, 0.0
  %v321 = vmax.f32 %v257, 0.0
  %v322 = vmax.f32 %v258, 0.0
  %v323 = vmax.f32 %v259, 0.0
  %v324 = vmax.f32 %v260, 0.0
  %v325 = vmax.f32 %v261, 0.0
  %v326 = vmax.f32 %v262, 0.0
  %v327 = vmax.f32 %v263, 0.0
  %v328 = vmax.f32 %v264, 0.0
  %v329 = vmax.f32 %v265, 0.0
  %v330 = vmax.f32 %v266, 0.0
  %v331 = vmax.f32 %v267, 0.0
  %v332 = vmax.f32 %v268, 0.0
  %v333 = vmax.f32 %v269, 0.0
  %v334 = vmax.f32 %v270, 0.0
  %v335 = vmax.f32 %v271, 0.0
  %v336 = vmax.f32 %v272, 0.0
  %v337 = vmax.f32 %v273, 0.0
  %v338 = vmax.f32 %v274, 0.0
  %v339 = vmax.f32 %v275, 0.0
  %v340 = vmax.f32 %v276, 0.0
  %v341 = vmax.f32 %v277, 0.0
  %v342 = vmax.f32 %v278, 0.0
  %v343 = vmax.f32 %v279, 0.0
  %v344 = vmax.f32 %v280, 0.0
  %v345 = vmax.f32 %v281, 0.0
  %v346 = vsub.f32 0.0, %v282
  %v347 = vsub.f32 0.0, %v283
  %v348 = vsub.f32 0.0, %v284
  %v349 = vsub.f32 0.0, %v285
  %v350 = vsub.f32 0.0, %v286
  %v351 = vsub.f32 0.0, %v287
  %v352 = vsub.f32 0.0, %v288
  %v353 = vsub.f32 0.0, %v289
  %v354 = vsub.f32 0.0, %v290
  %v355 = vsub.f32 0.0, %v291
  %v356 = vsub.f32 0.0, %v292
  %v357 = vsub.f32 0.0, %v293
  %v358 = vsub.f32 0.0, %v294
  %v359 = vsub.f32 0.0, %v295
  %v360 = vsub.f32 0.0, %v296
  %v361 = vsub.f32 0.0, %v297
  %v362 = vsub.f32 0.0, %v298
  %v363 = vsub.f32 0.0, %v299
  %v364 = vsub.f32 0.0, %v300
  %v365 = vsub.f32 0.0, %v301
  %v366 = vsub.f32 0.0, %v302
  %v367 = vsub.f32 0.0, %v303
  %v368 = vsub.f32 0.0, %v304
  %v369 = vsub.f32 0.0, %v305
  %v370 = vsub.f32 0.0, %v306
  %v371 = vsub.f32 0.0, %v307
  %v372 = vsub.f32 0.0, %v308
  %v373 = vsub.f32 0.0, %v309
  %v374 = vsub.f32 0.0, %v310
  %v375 = vsub.f32 0.0, %v311
  %v376 = vsub.f32 0.0, %v312
  %v377 = vsub.f32 0.0, %v313
  %v378 = vsub.f32 0.0, %v314
  %v379 = vsub.f32 0.0, %v315
  %v380 = vsub.f32 0.0, %v316
  %v381 = vsub.f32 0.0, %v317
  %v382 = vsub.f32 0.0, %v318
  %v383 = vsub.f32 0.0, %v319
  %v384 = vsub.f32 0.0, %v320
  %v385 = vsub.f32 0.0, %v321
  %v386 = vsub.f32 0.0, %v322
  %v387 = vsub.f32 0.0, %v323
  %v388 = vsub.f32 0.0, %v324
  %v389 = vsub.f32 0.0, %v325
  %v390 = vsub.f32 0.0, %v326
  %v391 = vsub.f32 0.0, %v327
  %v392 = vsub.f32 0.0, %v328
  %v393 = vsub.f32 0.0, %v329
  %v394 = vsub.f32 0.0, %v330
  %v395 = vsub.f32 0.0, %v331
  %v396 = vsub.f32 0.0, %v332
  %v397 = vsub.f32 0.0, %v333
  %v398 = vsub.f32 0.0, %v334
  %v399 = vsub.f32 0.0, %v335
  %v400 = vsub.f32 0.0, %v336
  %v401 = vsub.f32 0.0, %v337
  %v402 = vsub.f32 0.0, %v338
  %v403 = vsub.f32 0.0, %v339
  %v404 = vsub.f32 0.0, %v340
  %v405 = vsub.f32 0.0, %v341
  %v406 = vsub.f32 0.0, %v342
  %v407 = vsub.f32 0.0, %v343
  %v408 = vsub.f32 0.0, %v344
  %v409 = vsub.f32 0.0, %v345
  %v410 = vmul.f32 %v346, 1.442695
  %v411 = vpow.pop %v410
  %v412 = vmul.f32 %v347, 1.442695
  %v413 = vpow.pop %v412
  %v414 = vmul.f32 %v348, 1.442695
  %v415 = vpow.pop %v414
  %v416 = vmul.f32 %v349, 1.442695
  %v417 = vpow.pop %v416
  %v418 = vmul.f32 %v350, 1.442695
  %v419 = vpow.pop %v418
  %v420 = vmul.f32 %v351, 1.442695
  %v421 = vpow.pop %v420
  %v422 = vmul.f32 %v352, 1.442695
  %v423 = vpow.pop %v422
  %v424 = vmul.f32 %v353, 1.442695
  %v425 = vpow.pop %v424
  %v426 = vmul.f32 %v354, 1.442695
  %v427 = vpow.pop %v426
  %v428 = vmul.f32 %v355, 1.442695
  %v429 = vpow.pop %v428
  %v430 = vmul.f32 %v356, 1.442695
  %v431 = vpow.pop %v430
  %v432 = vmul.f32 %v357, 1.442695
  %v433 = vpow.pop %v432
  %v434 = vmul.f32 %v358, 1.442695
  %v435 = vpow.pop %v434
  %v436 = vmul.f32 %v359, 1.442695
  %v437 = vpow.pop %v436
  %v438 = vmul.f32 %v360, 1.442695
  %v439 = vpow.pop %v438
  %v440 = vmul.f32 %v361, 1.442695
  %v441 = vpow.pop %v440
  %v442 = vmul.f32 %v362, 1.442695
  %v443 = vpow.pop %v442
  %v444 = vmul.f32 %v363, 1.442695
  %v445 = vpow.pop %v444
  %v446 = vmul.f32 %v364, 1.442695
  %v447 = vpow.pop %v446
  %v448 = vmul.f32 %v365, 1.442695
  %v449 = vpow.pop %v448
  %v450 = vmul.f32 %v366, 1.442695
  %v451 = vpow.pop %v450
  %v452 = vmul.f32 %v367, 1.442695
  %v453 = vpow.pop %v452
  %v454 = vmul.f32 %v368, 1.442695
  %v455 = vpow.pop %v454
  %v456 = vmul.f32 %v369, 1.442695
  %v457 = vpow.pop %v456
  %v458 = vmul.f32 %v370, 1.442695
  %v459 = vpow.pop %v458
  %v460 = vmul.f32 %v371, 1.442695
  %v461 = vpow.pop %v460
  %v462 = vmul.f32 %v372, 1.442695
  %v463 = vpow.pop %v462
  %v464 = vmul.f32 %v373, 1.442695
  %v465 = vpow.pop %v464
  %v466 = vmul.f32 %v374, 1.442695
  %v467 = vpow.pop %v466
  %v468 = vmul.f32 %v375, 1.442695
  %v469 = vpow.pop %v468
  %v470 = vmul.f32 %v376, 1.442695
  %v471 = vpow.pop %v470
  %v472 = vmul.f32 %v377, 1.442695
  %v473 = vpow.pop %v472
  %v474 = vmul.f32 %v378, 1.442695
  %v475 = vpow.pop %v474
  %v476 = vmul.f32 %v379, 1.442695
  %v477 = vpow.pop %v476
  %v478 = vmul.f32 %v380, 1.442695
  %v479 = vpow.pop %v478
  %v480 = vmul.f32 %v381, 1.442695
  %v481 = vpow.pop %v480
  %v482 = vmul.f32 %v382, 1.442695
  %v483 = vpow.pop %v482
  %v484 = vmul.f32 %v383, 1.442695
  %v485 = vpow.pop %v484
  %v486 = vmul.f32 %v384, 1.442695
  %v487 = vpow.pop %v486
  %v488 = vmul.f32 %v385, 1.442695
  %v489 = vpow.pop %v488
  %v490 = vmul.f32 %v386, 1.442695
  %v491 = vpow.pop %v490
  %v492 = vmul.f32 %v387, 1.442695
  %v493 = vpow.pop %v492
  %v494 = vmul.f32 %v388, 1.442695
  %v495 = vpow.pop %v494
  %v496 = vmul.f32 %v389, 1.442695
  %v497 = vpow.pop %v496
  %v498 = vmul.f32 %v390, 1.442695
  %v499 = vpow.pop %v498
  %v500 = vmul.f32 %v391, 1.442695
  %v501 = vpow.pop %v500
  %v502 = vmul.f32 %v392, 1.442695
  %v503 = vpow.pop %v502
  %v504 = vmul.f32 %v393, 1.442695
  %v505 = vpow.pop %v504
  %v506 = vmul.f32 %v394, 1.442695
  %v507 = vpow.pop %v506
  %v508 = vmul.f32 %v395, 1.442695
  %v509 = vpow.pop %v508
  %v510 = vmul.f32 %v396, 1.442695
  %v511 = vpow.pop %v510
  %v512 = vmul.f32 %v397, 1.442695
  %v513 = vpow.pop %v512
  %v514 = vmul.f32 %v398, 1.442695
  %v515 = vpow.pop %v514
  %v516 = vmul.f32 %v399, 1.442695
  %v517 = vpow.pop %v516
  %v518 = vmul.f32 %v400, 1.442695
  %v519 = vpow.pop %v518
  %v520 = vmul.f32 %v401, 1.442695
  %v521 = vpow.pop %v520
  %v522 = vmul.f32 %v402, 1.442695
  %v523 = vpow.pop %v522
  %v524 = vmul.f32 %v403, 1.442695
  %v525 = vpow.pop %v524
  %v526 = vmul.f32 %v404, 1.442695
  %v527 = vpow.pop %v526
  %v528 = vmul.f32 %v405, 1.442695
  %v529 = vpow.pop %v528
  %v530 = vmul.f32 %v406, 1.442695
  %v531 = vpow.pop %v530
  %v532 = vmul.f32 %v407, 1.442695
  %v533 = vpow.pop %v532
  %v534 = vmul.f32 %v408, 1.442695
  %v535 = vpow.pop %v534
  %v536 = vmul.f32 %v409, 1.442695
  %v537 = vpow.pop %v536
  %v538 = vadd.f32 %v411, 1.0
  %v539 = vadd.f32 %v413, 1.0
  %v540 = vadd.f32 %v415, 1.0
  %v541 = vadd.f32 %v417, 1.0
  %v542 = vadd.f32 %v419, 1.0
  %v543 = vadd.f32 %v421, 1.0
  %v544 = vadd.f32 %v423, 1.0
  %v545 = vadd.f32 %v425, 1.0
  %v546 = vadd.f32 %v427, 1.0
  %v547 = vadd.f32 %v429, 1.0
  %v548 = vadd.f32 %v431, 1.0
  %v549 = vadd.f32 %v433, 1.0
  %v550 = vadd.f32 %v435, 1.0
  %v551 = vadd.f32 %v437, 1.0
  %v552 = vadd.f32 %v439, 1.0
  %v553 = vadd.f32 %v441, 1.0
  %v554 = vadd.f32 %v443, 1.0
  %v555 = vadd.f32 %v445, 1.0
  %v556 = vadd.f32 %v447, 1.0
  %v557 = vadd.f32 %v449, 1.0
  %v558 = vadd.f32 %v451, 1.0
  %v559 = vadd.f32 %v453, 1.0
  %v560 = vadd.f32 %v455, 1.0
  %v561 = vadd.f32 %v457, 1.0
  %v562 = vadd.f32 %v459, 1.0
  %v563 = vadd.f32 %v461, 1.0
  %v564 = vadd.f32 %v463, 1.0
  %v565 = vadd.f32 %v465, 1.0
  %v566 = vadd.f32 %v467, 1.0
  %v567 = vadd.f32 %v469, 1.0
  %v568 = vadd.f32 %v471, 1.0
  %v569 = vadd.f32 %v473, 1.0
  %v570 = vadd.f32 %v475, 1.0
  %v571 = vadd.f32 %v477, 1.0
  %v572 = vadd.f32 %v479, 1.0
  %v573 = vadd.f32 %v481, 1.0
  %v574 = vadd.f32 %v483, 1.0
  %v575 = vadd.f32 %v485, 1.0
  %v576 = vadd.f32 %v487, 1.0
  %v577 = vadd.f32 %v489, 1.0
  %v578 = vadd.f32 %v491, 1.0
  %v579 = vadd.f32 %v493, 1.0
  %v580 = vadd.f32 %v495, 1.0
  %v581 = vadd.f32 %v497, 1.0
  %v582 = vadd.f32 %v499, 1.0
  %v583 = vadd.f32 %v501, 1.0
  %v584 = vadd.f32 %v503, 1.0
  %v585 = vadd.f32 %v505, 1.0
  %v586 = vadd.f32 %v507, 1.0
  %v587 = vadd.f32 %v509, 1.0
  %v588 = vadd.f32 %v511, 1.0
  %v589 = vadd.f32 %v513, 1.0
  %v590 = vadd.f32 %v515, 1.0
  %v591 = vadd.f32 %v517, 1.0
  %v592 = vadd.f32 %v519, 1.0
  %v593 = vadd.f32 %v521, 1.0
  %v594 = vadd.f32 %v523, 1.0
  %v595 = vadd.f32 %v525, 1.0
  %v596 = vadd.f32 %v527, 1.0
  %v597 = vadd.f32 %v529, 1.0
  %v598 = vadd.f32 %v531, 1.0
  %v599 = vadd.f32 %v533, 1.0
  %v600 = vadd.f32 %v535, 1.0
  %v601 = vadd.f32 %v537, 1.0
  %v602 = vrcp.pop %v538
  %v603 = vmul.f32 1.0, %v602
  %v604 = vrcp.pop %v539
  %v605 = vmul.f32 1.0, %v604
  %v606 = vrcp.pop %v540
  %v607 = vmul.f32 1.0, %v606
  %v608 = vrcp.pop %v541
  %v609 = vmul.f32 1.0, %v608
  %v610 = vrcp.pop %v542
  %v611 = vmul.f32 1.0, %v610
  %v612 = vrcp.pop %v543
  %v613 = vmul.f32 1.0, %v612
  %v614 = vrcp.pop %v544
  %v615 = vmul.f32 1.0, %v614
  %v616 = vrcp.pop %v545
  %v617 = vmul.f32 1.0, %v616
  %v618 = vrcp.pop %v546
  %v619 = vmul.f32 1.0, %v618
  %v620 = vrcp.pop %v547
  %v621 = vmul.f32 1.0, %v620
  %v622 = vrcp.pop %v548
  %v623 = vmul.f32 1.0, %v622
  %v624 = vrcp.pop %v549
  %v625 = vmul.f32 1.0, %v624
  %v626 = vrcp.pop %v550
  %v627 = vmul.f32 1.0, %v626
  %v628 = vrcp.pop %v551
  %v629 = vmul.f32 1.0, %v628
  %v630 = vrcp.pop %v552
  %v631 = vmul.f32 1.0, %v630
  %v632 = vrcp.pop %v553
  %v633 = vmul.f32 1.0, %v632
  %v634 = vrcp.pop %v554
  %v635 = vmul.f32 1.0, %v634
  %v636 = vrcp.pop %v555
  %v637 = vmul.f32 1.0, %v636
  %v638 = vrcp.pop %v556
  %v639 = vmul.f32 1.0, %v638
  %v640 = vrcp.pop %v557
  %v641 = vmul.f32 1.0, %v640
  %v642 = vrcp.pop %v558
  %v643 = vmul.f32 1.0, %v642
  %v644 = vrcp.pop %v559
  %v645 = vmul.f32 1.0, %v644
  %v646 = vrcp.pop %v560
  %v647 = vmul.f32 1.0, %v646
  %v648 = vrcp.pop %v561
  %v649 = vmul.f32 1.0, %v648
  %v650 = vrcp.pop %v562
  %v651 = vmul.f32 1.0, %v650
  %v652 = vrcp.pop %v563
  %v653 = vmul.f32 1.0, %v652
  %v654 = vrcp.pop %v564
  %v655 = vmul.f32 1.0, %v654
  %v656 = vrcp.pop %v565
  %v657 = vmul.f32 1.0, %v656
  %v658 = vrcp.pop %v566
  %v659 = vmul.f32 1.0, %v658
  %v660 = vrcp.pop %v567
  %v661 = vmul.f32 1.0, %v660
  %v662 = vrcp.pop %v568
  %v663 = vmul.f32 1.0, %v662
  %v664 = vrcp.pop %v569
  %v665 = vmul.f32 1.0, %v664
  %v666 = vrcp.pop %v570
  %v667 = vmul.f32 1.0, %v666
  %v668 = vrcp.pop %v571
  %v669 = vmul.f32 1.0, %v668
  %v670 = vrcp.pop %v572
  %v671 = vmul.f32 1.0, %v670
  %v672 = vrcp.pop %v573
  %v673 = vmul.f32 1.0, %v672
  %v674 = vrcp.pop %v574
  %v675 = vmul.f32 1.0, %v674
  %v676 = vrcp.pop %v575
  %v677 = vmul.f32 1.0, %v676
  %v678 = vrcp.pop %v576
  %v679 = vmul.f32 1.0, %v678
  %v680 = vrcp.pop %v577
  %v681 = vmul.f32 1.0, %v680
  %v682 = vrcp.pop %v578
  %v683 = vmul.f32 1.0, %v682
  %v684 = vrcp.pop %v579
  %v685 = vmul.f32 1.0, %v684
  %v686 = vrcp.pop %v580
  %v687 = vmul.f32 1.0, %v686
  %v688 = vrcp.pop %v581
  %v689 = vmul.f32 1.0, %v688
  %v690 = vrcp.pop %v582
  %v691 = vmul.f32 1.0, %v690
  %v692 = vrcp.pop %v583
  %v693 = vmul.f32 1.0, %v692
  %v694 = vrcp.pop %v584
  %v695 = vmul.f32 1.0, %v694
  %v696 = vrcp.pop %v585
  %v697 = vmul.f32 1.0, %v696
  %v698 = vrcp.pop %v586
  %v699 = vmul.f32 1.0, %v698
  %v700 = vrcp.pop %v587
  %v701 = vmul.f32 1.0, %v700
  %v702 = vrcp.pop %v588
  %v703 = vmul.f32 1.0, %v702
  %v704 = vrcp.pop %v589
  %v705 = vmul.f32 1.0, %v704
  %v706 = vrcp.pop %v590
  %v707 = vmul.f32 1.0, %v706
  %v708 = vrcp.pop %v591
  %v709 = vmul.f32 1.0, %v708
  %v710 = vrcp.pop %v592
  %v711 = vmul.f32 1.0, %v710
  %v712 = vrcp.pop %v593
  %v713 = vmul.f32 1.0, %v712
  %v714 = vrcp.pop %v594
  %v715 = vmul.f32 1.0, %v714
  %v716 = vrcp.pop %v595
  %v717 = vmul.f32 1.0, %v716
  %v718 = vrcp.pop %v596
  %v719 = vmul.f32 1.0, %v718
  %v720 = vrcp.pop %v597
  %v721 = vmul.f32 1.0, %v720
  %v722 = vrcp.pop %v598
  %v723 = vmul.f32 1.0, %v722
  %v724 = vrcp.pop %v599
  %v725 = vmul.f32 1.0, %v724
  %v726 = vrcp.pop %v600
  %v727 = vmul.f32 1.0, %v726
  %v728 = vrcp.pop %v601
  %v729 = vmul.f32 1.0, %v728
  %730 = vst [vmem:[%s3] sm:$0xff] %v603
  %731 = vst [vmem:[%s3 + $0x8] sm:$0xff] %v605
  %732 = vst [vmem:[%s3 + $0x10] sm:$0xff] %v607
  %733 = vst [vmem:[%s3 + $0x18] sm:$0xff] %v609
  %734 = vst [vmem:[%s3 + $0x20] sm:$0xff] %v611
  %735 = vst [vmem:[%s3 + $0x28] sm:$0xff] %v613
  %736 = vst [vmem:[%s3 + $0x30] sm:$0xff] %v615
  %737 = vst [vmem:[%s3 + $0x38] sm:$0xff] %v617
  %738 = vst [vmem:[%s3 + $0x40] sm:$0xff] %v619
  %739 = vst [vmem:[%s3 + $0x48] sm:$0xff] %v621
  %740 = vst [vmem:[%s3 + $0x50] sm:$0xff] %v623
  %741 = vst [vmem:[%s3 + $0x58] sm:$0xff] %v625
  %742 = vst [vmem:[%s3 + $0x60] sm:$0xff] %v627
  %743 = vst [vmem:[%s3 + $0x68] sm:$0xff] %v629
  %744 = vst [vmem:[%s3 + $0x70] sm:$0xff] %v631
  %745 = vst [vmem:[%s3 + $0x78] sm:$0xff] %v633
  %746 = vst [vmem:[%s3 + $0x80] sm:$0xff] %v635
  %747 = vst [vmem:[%s3 + $0x88] sm:$0xff] %v637
  %748 = vst [vmem:[%s3 + $0x90] sm:$0xff] %v639
  %749 = vst [vmem:[%s3 + $0x98] sm:$0xff] %v641
  %750 = vst [vmem:[%s3 + $0xa0] sm:$0xff] %v643
  %751 = vst [vmem:[%s3 + $0xa8] sm:$0xff] %v645
  %752 = vst [vmem:[%s3 + $0xb0] sm:$0xff] %v647
  %753 = vst [vmem:[%s3 + $0xb8] sm:$0xff] %v649
  %754 = vst [vmem:[%s3 + $0xc0] sm:$0xff] %v651
  %755 = vst [vmem:[%s3 + $0xc8] sm:$0xff] %v653
  %756 = vst [vmem:[%s3 + $0xd0] sm:$0xff] %v655
  %757 = vst [vmem:[%s3 + $0xd8] sm:$0xff] %v657
  %758 = vst [vmem:[%s3 + $0xe0] sm:$0xff] %v659
  %759 = vst [vmem:[%s3 + $0xe8] sm:$0xff] %v661
  %760 = vst [vmem:[%s3 + $0xf0] sm:$0xff] %v663
  %761 = vst [vmem:[%s3 + $0xf8] sm:$0xff] %v665
  %762 = vst [vmem:[%s3 + $0x100] sm:$0xff] %v667
  %763 = vst [vmem:[%s3 + $0x108] sm:$0xff] %v669
  %764 = vst [vmem:[%s3 + $0x110] sm:$0xff] %v671
  %765 = vst [vmem:[%s3 + $0x118] sm:$0xff] %v673
  %766 = vst [vmem:[%s3 + $0x120] sm:$0xff] %v675
  %767 = vst [vmem:[%s3 + $0x128] sm:$0xff] %v677
  %768 = vst [vmem:[%s3 + $0x130] sm:$0xff] %v679
  %769 = vst [vmem:[%s3 + $0x138] sm:$0xff] %v681
  %770 = vst [vmem:[%s3 + $0x140] sm:$0xff] %v683
  %771 = vst [vmem:[%s3 + $0x148] sm:$0xff] %v685
  %772 = vst [vmem:[%s3 + $0x150] sm:$0xff] %v687
  %773 = vst [vmem:[%s3 + $0x158] sm:$0xff] %v689
  %774 = vst [vmem:[%s3 + $0x160] sm:$0xff] %v691
  %775 = vst [vmem:[%s3 + $0x168] sm:$0xff] %v693
  %776 = vst [vmem:[%s3 + $0x170] sm:$0xff] %v695
  %777 = vst [vmem:[%s3 + $0x178] sm:$0xff] %v697
  %778 = vst [vmem:[%s3 + $0x180] sm:$0xff] %v699
  %779 = vst [vmem:[%s3 + $0x188] sm:$0xff] %v701
  %780 = vst [vmem:[%s3 + $0x190] sm:$0xff] %v703
  %781 = vst [vmem:[%s3 + $0x198] sm:$0xff] %v705
  %782 = vst [vmem:[%s3 + $0x1a0] sm:$0xff] %v707
  %783 = vst [vmem:[%s3 + $0x1a8] sm:$0xff] %v709
  %784 = vst [vmem:[%s3 + $0x1b0] sm:$0xff] %v711
  %785 = vst [vmem:[%s3 + $0x1b8] sm:$0xff] %v713
  %786 = vst [vmem:[%s3 + $0x1c0] sm:$0xff] %v715
  %787 = vst [vmem:[%s3 + $0x1c8] sm:$0xff] %v717
  %788 = vst [vmem:[%s3 + $0x1d0] sm:$0xff] %v719
  %789 = vst [vmem:[%s3 + $0x1d8] sm:$0xff] %v721
  %790 = vst [vmem:[%s3 + $0x1e0] sm:$0xff] %v723
  %791 = vst [vmem:[%s3 + $0x1e8] sm:$0xff] %v725
  %792 = vst [vmem:[%s3 + $0x1f0] sm:$0xff] %v727
  %793 = vst [vmem:[%s3 + $0x1f8] sm:$0xff] %v729
  // Predicated region
  $region14: #{_lambda_.7} parent=0 // pred_check
    _
  $region15: #{_lambda_.7} parent=0 // pred_check_branch
    %795 = sbr.rel (0) target = $region17
  $region16: #{_lambda_.7} parent=0 // pred_region
    _
  $region17: #{_lambda_.7} parent=0 // pred_fallthru
    _
  // Predicated region
  $region18: #{_lambda_.7} parent=0 // pred_check
    _
  $region19: #{_lambda_.7} parent=0 // pred_check_branch
    %797 = sbr.rel (0) target = $region21
  $region20: #{_lambda_.7} parent=0 // pred_region
    _
  $region21: #{_lambda_.7} parent=0 // pred_fallthru
    _

// kernel: _lambda_.6
$region0: #{_lambda_.6}
  #allocation0 [shape = 'u32[]', space=smem, size = 0x4, offset = 0x4, fixed_abs, tag = 'smem constant byte address 0x4 - core index']
  #allocation1 [shape = 'u32[144,128]{1,0:T(1,128)}', space=vmem, size = 0x12000, scoped, tag = 'internal scratch']
  #allocation2 [shape = 'f32[64,512]{1,0:T(8,128)}', space=vmem, size = 0x20000, scoped, tag = 'scratch operand']
  %s0 = inlined_call_operand.vmem [shape: bf16[9,2,96,512], index: 0, kind: input, shape index: {}]
  %s1 = inlined_call_operand.vmem [shape: bf16[9,3,512,512], index: 1, kind: input, shape index: {}]
  %s2 = inlined_call_operand.vmem [shape: f32[1,512], index: 2, kind: input, shape index: {}]
  %s3 = inlined_call_operand.vmem [shape: bf16[2,64,512], index: 3, kind: output, shape index: {0}]
  %s4 = inlined_call_operand.vmem [shape: f32[2,1,512], index: 4, kind: output, shape index: {1}]
  %s5 = inlined_call_operand.vmem [shape: f32[2,1,512], index: 5, kind: output, shape index: {2}]
  %6 = xla_tuple %s3, %s4, %s5
  %s7 = sld [smem:[#allocation0]]
  $region69: #{_lambda_.6} parent=0
    _
  %s9 = ssub.s32 1, %s7
  %s10 = scalar_select 0, %s9, %s7
  loop: start=0, step=1, limit=20
  $region2: #{_lambda_.6} parent=0 // loop_pre_header
    _
  $region3: #{_lambda_.6} parent=0 // loop_header
    %s12 = sphi 0, %s16
    %p13 = scmp.ge.s32.totalorder %s12, 20
    %s19 = sphi 0, %s31
    %s20 = sphi 0, %s27
    %s21 = sphi 0, %s19
    %s22 = sphi 0, %s20
    %s23 = sphi 0, %s21
    %s24 = sphi 0, %s22
    %s36 = sphi 0, %s38
    %s39 = sphi 0, %s36
    %s40 = sphi 0, %s39
    %s56 = sphi 0, %s40
    %s62 = sphi 0, %s64
    %s65 = sphi 0, %s62
    %s66 = sphi 0, %s65
    %s82 = sphi 0, %s66
    %s86 = sphi 0, %s86
    %s88 = sphi 0, %s86
    %s89 = sphi 0, %s88
    %s103 = sphi 0, %s89
    %s109 = sphi 0, %s111
    %s112 = sphi 0, %s109
    %s113 = sphi 0, %s112
    %s129 = sphi 0, %s113
    %s135 = sphi 0, %s137
    %s138 = sphi 0, %s135
    %s139 = sphi 0, %s138
    %s155 = sphi 0, %s139
    %s161 = sphi 0, %s163
    %s164 = sphi 0, %s161
    %s165 = sphi 0, %s164
    %s181 = sphi 0, %s165
  $region4: #{_lambda_.6} parent=0 // loop_header_branch
    %15 = sbr.rel (%p13) target = $region8
  $region5: #{_lambda_.6} parent=0 // loop_body
    %s17 = ssub.s32 %s12, 1
    %s18 = ssub.s32 %s12, 2
    %s25 = sadd.s32 1, %s20
    %p26 = scmp.ge.s32.totalorder %s25, 9
    %s27 = scalar_select %p26, 0, %s25
    %s28 = sadd.s32 1, %s19
    %s29 = scalar_select %p26, %s28, %s19
    %p30 = scmp.ge.s32.totalorder %s29, 2
    %s31 = scalar_select %p30, 0, %s29
    %s32 = ssub.s32 %s20, %s27
    %s33 = ssub.s32 %s19, %s31
    %s34 = sor.u32 %s32, %s33
    %p35 = scmp.eq.s32.totalorder %s34, 0
    %s37 = sadd.s32 %s36, 1
    %s38 = scalar_select %p35, %s36, %s37
    %p41 = pneg %p35
    %p42 = scmp.eq.s32.totalorder %s12, 17
    %p43 = por %p41, %p42
    %p44 = scmp.ne.s32.totalorder %s36, %s39
    %p45 = scmp.eq.s32.totalorder %s12, 0
    %p46 = por %p44, %p45
    %p47 = scmp.ne.s32.totalorder %s36, %s39
    %p48 = scmp.eq.s32.totalorder %s17, 17
    %p49 = por %p47, %p48
    %p50 = scmp.ne.s32.totalorder %s39, %s40
    %p51 = scmp.eq.s32.totalorder %s17, 0
    %p52 = por %p50, %p51
    %p53 = scmp.ne.s32.totalorder %s39, %s40
    %p54 = scmp.eq.s32.totalorder %s18, 17
    %p55 = por %p53, %p54
    %p57 = scmp.ne.s32.totalorder %s40, %s56
    %p58 = scmp.eq.s32.totalorder %s18, 0
    %p59 = por %p57, %p58
    %s60 = ssub.s32 %s20, %s27
    %p61 = scmp.eq.s32.totalorder %s60, 0
    %s63 = sadd.s32 %s62, 1
    %s64 = scalar_select %p61, %s62, %s63
    %p67 = pneg %p61
    %p68 = scmp.eq.s32.totalorder %s12, 17
    %p69 = por %p67, %p68
    %p70 = scmp.ne.s32.totalorder %s62, %s65
    %p71 = scmp.eq.s32.totalorder %s12, 0
    %p72 = por %p70, %p71
    %p73 = scmp.ne.s32.totalorder %s62, %s65
    %p74 = scmp.eq.s32.totalorder %s17, 17
    %p75 = por %p73, %p74
    %p76 = scmp.ne.s32.totalorder %s65, %s66
    %p77 = scmp.eq.s32.totalorder %s17, 0
    %p78 = por %p76, %p77
    %p79 = scmp.ne.s32.totalorder %s65, %s66
    %p80 = scmp.eq.s32.totalorder %s18, 17
    %p81 = por %p79, %p80
    %p83 = scmp.ne.s32.totalorder %s66, %s82
    %p84 = scmp.eq.s32.totalorder %s18, 0
    %p85 = por %p83, %p84
    %s87 = sadd.s32 %s86, 1
    %p90 = scmp.eq.s32.totalorder %s12, 17
    %p91 = scmp.ne.s32.totalorder %s86, %s88
    %p92 = scmp.eq.s32.totalorder %s12, 0
    %p93 = por %p91, %p92
    %p94 = scmp.ne.s32.totalorder %s86, %s88
    %p95 = scmp.eq.s32.totalorder %s17, 17
    %p96 = por %p94, %p95
    %p97 = scmp.ne.s32.totalorder %s88, %s89
    %p98 = scmp.eq.s32.totalorder %s17, 0
    %p99 = por %p97, %p98
    %p100 = scmp.ne.s32.totalorder %s88, %s89
    %p101 = scmp.eq.s32.totalorder %s18, 17
    %p102 = por %p100, %p101
    %p104 = scmp.ne.s32.totalorder %s89, %s103
    %p105 = scmp.eq.s32.totalorder %s18, 0
    %p106 = por %p104, %p105
    %s107 = ssub.s32 %s19, %s31
    %p108 = scmp.eq.s32.totalorder %s107, 0
    %s110 = sadd.s32 %s109, 1
    %s111 = scalar_select %p108, %s109, %s110
    %p114 = pneg %p108
    %p115 = scmp.eq.s32.totalorder %s12, 17
    %p116 = por %p114, %p115
    %p117 = scmp.ne.s32.totalorder %s109, %s112
    %p118 = scmp.eq.s32.totalorder %s12, 0
    %p119 = por %p117, %p118
    %p120 = scmp.ne.s32.totalorder %s109, %s112
    %p121 = scmp.eq.s32.totalorder %s17, 17
    %p122 = por %p120, %p121
    %p123 = scmp.ne.s32.totalorder %s112, %s113
    %p124 = scmp.eq.s32.totalorder %s17, 0
    %p125 = por %p123, %p124
    %p126 = scmp.ne.s32.totalorder %s112, %s113
    %p127 = scmp.eq.s32.totalorder %s18, 17
    %p128 = por %p126, %p127
    %p130 = scmp.ne.s32.totalorder %s113, %s129
    %p131 = scmp.eq.s32.totalorder %s18, 0
    %p132 = por %p130, %p131
    %s133 = ssub.s32 %s19, %s31
    %p134 = scmp.eq.s32.totalorder %s133, 0
    %s136 = sadd.s32 %s135, 1
    %s137 = scalar_select %p134, %s135, %s136
    %p140 = pneg %p134
    %p141 = scmp.eq.s32.totalorder %s12, 17
    %p142 = por %p140, %p141
    %p143 = scmp.ne.s32.totalorder %s135, %s138
    %p144 = scmp.eq.s32.totalorder %s12, 0
    %p145 = por %p143, %p144
    %p146 = scmp.ne.s32.totalorder %s135, %s138
    %p147 = scmp.eq.s32.totalorder %s17, 17
    %p148 = por %p146, %p147
    %p149 = scmp.ne.s32.totalorder %s138, %s139
    %p150 = scmp.eq.s32.totalorder %s17, 0
    %p151 = por %p149, %p150
    %p152 = scmp.ne.s32.totalorder %s138, %s139
    %p153 = scmp.eq.s32.totalorder %s18, 17
    %p154 = por %p152, %p153
    %p156 = scmp.ne.s32.totalorder %s139, %s155
    %p157 = scmp.eq.s32.totalorder %s18, 0
    %p158 = por %p156, %p157
    %s159 = ssub.s32 %s19, %s31
    %p160 = scmp.eq.s32.totalorder %s159, 0
    %s162 = sadd.s32 %s161, 1
    %s163 = scalar_select %p160, %s161, %s162
    %p166 = pneg %p160
    %p167 = scmp.eq.s32.totalorder %s12, 17
    %p168 = por %p166, %p167
    %p169 = scmp.ne.s32.totalorder %s161, %s164
    %p170 = scmp.eq.s32.totalorder %s12, 0
    %p171 = por %p169, %p170
    %p172 = scmp.ne.s32.totalorder %s161, %s164
    %p173 = scmp.eq.s32.totalorder %s17, 17
    %p174 = por %p172, %p173
    %p175 = scmp.ne.s32.totalorder %s164, %s165
    %p176 = scmp.eq.s32.totalorder %s17, 0
    %p177 = por %p175, %p176
    %p178 = scmp.ne.s32.totalorder %s164, %s165
    %p179 = scmp.eq.s32.totalorder %s18, 17
    %p180 = por %p178, %p179
    %p182 = scmp.ne.s32.totalorder %s165, %s181
    %p183 = scmp.eq.s32.totalorder %s18, 0
    %p184 = por %p182, %p183
    %p185 = scmp.le.s32.totalorder 1, %s12
    %p186 = scmp.lt.s32.totalorder %s12, 19
    %p187 = pnand %p185, %p186
    %p188 = pneg %p187
    // Predicated region
    $region9: #{_lambda_.6} parent=5 // pred_check
      _
    $region10: #{_lambda_.6} parent=5 // pred_check_branch
      %190 = sbr.rel (%p187) target = $region12
    $region11: #{_lambda_.6} parent=5 // pred_region
      %s191 = ssub.s32 %s12, 1
      // Predicated region
      $region13: #{_lambda_.6} parent=11 // pred_check
        %p192 = pneg %p99
      $region14: #{_lambda_.6} parent=11 // pred_check_branch
        %194 = sbr.rel (%p192) target = $region16
      $region15: #{_lambda_.6} parent=11 // pred_region
        _
      $region16: #{_lambda_.6} parent=11 // pred_fallthru
        _
    $region12: #{_lambda_.6} parent=5 // pred_fallthru
      _
    %p195 = scmp.lt.s32.totalorder %s12, 18
    // Predicated region
    $region17: #{_lambda_.6} parent=5 // pred_check
      %p196 = pneg %p195
    $region18: #{_lambda_.6} parent=5 // pred_check_branch
      %198 = sbr.rel (%p196) target = $region20
    $region19: #{_lambda_.6} parent=5 // pred_region
      // Predicated region
      $region21: #{_lambda_.6} parent=19 // pred_check
        %p199 = pneg %p46
      $region22: #{_lambda_.6} parent=19 // pred_check_branch
        %201 = sbr.rel (%p199) target = $region24
      $region23: #{_lambda_.6} parent=19 // pred_region
        %p202 = scmp.lt.s32.totalorder %s20, 8
        %s203 = scalar_select %p202, %s20, 8
        %p204 = scmp.lt.s32.totalorder %s19, 1
        %s205 = scalar_select %p204, %s19, 1
        %s206 = smul.addr %s205, 48
        %s207 = smul.addr %s203, 96
        %s208 = sadd.s32 %s206, %s207
        %s209 = smul.addr %s208, 4
        %s210 = scalar_lea.vmem %s0, %s209
      $region24: #{_lambda_.6} parent=19 // pred_fallthru
        _
      // Predicated region
      $region25: #{_lambda_.6} parent=19 // pred_check
        %p211 = pneg %p72
      $region26: #{_lambda_.6} parent=19 // pred_check_branch
        %213 = sbr.rel (%p211) target = $region28
      $region27: #{_lambda_.6} parent=19 // pred_region
        %p214 = scmp.lt.s32.totalorder %s20, 8
        %s215 = scalar_select %p214, %s20, 8
        %s216 = smul.addr %s215, 768
        %s217 = smul.addr %s216, 4
        %s218 = scalar_lea.vmem %s1, %s217
      $region28: #{_lambda_.6} parent=19 // pred_fallthru
        _
    $region20: #{_lambda_.6} parent=5 // pred_fallthru
      _
    %p219 = scmp.le.s32.totalorder 1, %s12
    %p220 = scmp.lt.s32.totalorder %s12, 19
    %p221 = pnand %p219, %p220
    %p222 = pneg %p221
    // Predicated region
    $region29: #{_lambda_.6} parent=5 // pred_check
      _
    $region30: #{_lambda_.6} parent=5 // pred_check_branch
      %224 = sbr.rel (%p221) target = $region32
    $region31: #{_lambda_.6} parent=5 // pred_region
      %s225 = ssub.s32 %s12, 1
      %p226 = scmp.lt.s32.totalorder %s22, 8
      %s227 = scalar_select %p226, %s22, 8
      %p228 = scmp.lt.s32.totalorder %s21, 1
      %s229 = scalar_select %p228, %s21, 1
      %s230 = smul.addr %s229, 48
      %s231 = smul.addr %s227, 96
      %s232 = sadd.s32 %s230, %s231
      %s233 = smul.addr %s232, 4
      %s234 = scalar_lea.vmem %s0, %s233
      %p235 = pneg %p52
      %p236 = pneg %p49
      %p237 = scmp.lt.s32.totalorder %s22, 8
      %s238 = scalar_select %p237, %s22, 8
      %s239 = smul.addr %s238, 768
      %s240 = smul.addr %s239, 4
      %s241 = scalar_lea.vmem %s1, %s240
      %p242 = pneg %p78
      %p243 = pneg %p75
      %p244 = pneg %p99
      %p245 = pneg %p96
      %p246 = pneg %p125
      %p247 = pneg %p122
      %p248 = scmp.lt.s32.totalorder %s21, 1
      %s249 = scalar_select %p248, %s21, 1
      %s250 = smul.addr %s249, 32
      %s251 = smul.addr %s250, 4
      %s252 = scalar_lea.vmem %s3, %s251
      %p253 = pneg %p151
      %p254 = pneg %p148
      %p255 = scmp.lt.s32.totalorder %s21, 1
      %s256 = scalar_select %p255, %s21, 1
      %s257 = smul.addr %s256, 4
      %s258 = scalar_lea.vmem %s4, %s257
      %p259 = pneg %p177
      %p260 = pneg %p174
      %p261 = scmp.lt.s32.totalorder %s21, 1
      %s262 = scalar_select %p261, %s21, 1
      %s263 = smul.addr %s262, 4
      %s264 = scalar_lea.vmem %s5, %s263
      %p265 = scmp.lt.s32.totalorder %s22, 8
      %s266 = scalar_select %p265, %s22, 8
      %p267 = scmp.lt.s32.totalorder %s21, 1
      %s268 = scalar_select %p267, %s21, 1
      %s269 = smul.addr %s268, 48
      %s270 = smul.addr %s266, 96
      %s271 = sadd.s32 %s269, %s270
      %s272 = smul.addr %s271, 4
      %s273 = scalar_lea.vmem %s0, %s272
      %p274 = scmp.lt.s32.totalorder %s22, 8
      %s275 = scalar_select %p274, %s22, 8
      %s276 = smul.addr %s275, 768
      %s277 = smul.addr %s276, 4
      %s278 = scalar_lea.vmem %s1, %s277
      %p279 = scmp.lt.s32.totalorder %s21, 1
      %s280 = scalar_select %p279, %s21, 1
      %s281 = smul.addr %s280, 32
      %s282 = smul.addr %s281, 4
      %s283 = scalar_lea.vmem %s3, %s282
      %p284 = scmp.lt.s32.totalorder %s21, 1
      %s285 = scalar_select %p284, %s21, 1
      %s286 = smul.addr %s285, 4
      %s287 = scalar_lea.vmem %s4, %s286
      %p288 = scmp.lt.s32.totalorder %s21, 1
      %s289 = scalar_select %p288, %s21, 1
      %s290 = smul.addr %s289, 4
      %s291 = scalar_lea.vmem %s5, %s290
      %p292 = scmp.eq.s32.totalorder %s22, 0
      // Predicated region
      $region33: #{_lambda_.6} parent=31 // pred_check
        %p293 = pneg %p292
      $region34: #{_lambda_.6} parent=31 // pred_check_branch
        %295 = sbr.rel (%p293) target = $region36
      $region35: #{_lambda_.6} parent=31 // pred_region
        %v296 = vld [vmem:[%s2] sm:$0xf]
        %v298 = vlaneseq
        %v299 = vshrl.u32 %v298, 7
        %v300 = vsub.s32 0, %v299
        %v301 = vrot.slane %v296, %v300
        %v302 = vlaneseq
        %v303 = vshrl.u32 %v302, 7
        %v304 = vsub.s32 1, %v303
        %v305 = vrot.slane %v296, %v304
        %v306 = vlaneseq
        %v307 = vshrl.u32 %v306, 7
        %v308 = vsub.s32 2, %v307
        %v309 = vrot.slane %v296, %v308
        %v310 = vlaneseq
        %v311 = vshrl.u32 %v310, 7
        %v312 = vsub.s32 3, %v311
        %v313 = vrot.slane %v296, %v312
        %318 = vst [vmem:[#allocation2] sm:$0xff] %v301
        %319 = vst [vmem:[#allocation2 + $0x8] sm:$0xff] %v305
        %320 = vst [vmem:[#allocation2 + $0x10] sm:$0xff] %v309
        %321 = vst [vmem:[#allocation2 + $0x18] sm:$0xff] %v313
        %322 = vst [vmem:[#allocation2 + $0x20] sm:$0xff] %v301
        %323 = vst [vmem:[#allocation2 + $0x28] sm:$0xff] %v305
        %324 = vst [vmem:[#allocation2 + $0x30] sm:$0xff] %v309
        %325 = vst [vmem:[#allocation2 + $0x38] sm:$0xff] %v313
        %326 = vst [vmem:[#allocation2 + $0x40] sm:$0xff] %v301
        %327 = vst [vmem:[#allocation2 + $0x48] sm:$0xff] %v305
        %328 = vst [vmem:[#allocation2 + $0x50] sm:$0xff] %v309
        %329 = vst [vmem:[#allocation2 + $0x58] sm:$0xff] %v313
        %330 = vst [vmem:[#allocation2 + $0x60] sm:$0xff] %v301
        %331 = vst [vmem:[#allocation2 + $0x68] sm:$0xff] %v305
        %332 = vst [vmem:[#allocation2 + $0x70] sm:$0xff] %v309
        %333 = vst [vmem:[#allocation2 + $0x78] sm:$0xff] %v313
        %334 = vst [vmem:[#allocation2 + $0x80] sm:$0xff] %v301
        %335 = vst [vmem:[#allocation2 + $0x88] sm:$0xff] %v305
        %336 = vst [vmem:[#allocation2 + $0x90] sm:$0xff] %v309
        %337 = vst [vmem:[#allocation2 + $0x98] sm:$0xff] %v313
        %338 = vst [vmem:[#allocation2 + $0xa0] sm:$0xff] %v301
        %339 = vst [vmem:[#allocation2 + $0xa8] sm:$0xff] %v305
        %340 = vst [vmem:[#allocation2 + $0xb0] sm:$0xff] %v309
        %341 = vst [vmem:[#allocation2 + $0xb8] sm:$0xff] %v313
        %342 = vst [vmem:[#allocation2 + $0xc0] sm:$0xff] %v301
        %343 = vst [vmem:[#allocation2 + $0xc8] sm:$0xff] %v305
        %344 = vst [vmem:[#allocation2 + $0xd0] sm:$0xff] %v309
        %345 = vst [vmem:[#allocation2 + $0xd8] sm:$0xff] %v313
        %346 = vst [vmem:[#allocation2 + $0xe0] sm:$0xff] %v301
        %347 = vst [vmem:[#allocation2 + $0xe8] sm:$0xff] %v305
        %348 = vst [vmem:[#allocation2 + $0xf0] sm:$0xff] %v309
        %349 = vst [vmem:[#allocation2 + $0xf8] sm:$0xff] %v313
      $region36: #{_lambda_.6} parent=31 // pred_fallthru
        _
      %v350 = vld [vmem:[#allocation2] sm:$0xff]
      %v351 = vld [vmem:[#allocation2 + $0x8] sm:$0xff]
      %v352 = vld [vmem:[#allocation2 + $0x10] sm:$0xff]
      %v353 = vld [vmem:[#allocation2 + $0x18] sm:$0xff]
      %v354 = vld [vmem:[#allocation2 + $0x20] sm:$0xff]
      %v355 = vld [vmem:[#allocation2 + $0x28] sm:$0xff]
      %v356 = vld [vmem:[#allocation2 + $0x30] sm:$0xff]
      %v357 = vld [vmem:[#allocation2 + $0x38] sm:$0xff]
      %v358 = vld [vmem:[#allocation2 + $0x40] sm:$0xff]
      %v359 = vld [vmem:[#allocation2 + $0x48] sm:$0xff]
      %v360 = vld [vmem:[#allocation2 + $0x50] sm:$0xff]
      %v361 = vld [vmem:[#allocation2 + $0x58] sm:$0xff]
      %v362 = vld [vmem:[#allocation2 + $0x60] sm:$0xff]
      %v363 = vld [vmem:[#allocation2 + $0x68] sm:$0xff]
      %v364 = vld [vmem:[#allocation2 + $0x70] sm:$0xff]
      %v365 = vld [vmem:[#allocation2 + $0x78] sm:$0xff]
      %v366 = vld [vmem:[#allocation2 + $0x80] sm:$0xff]
      %v367 = vld [vmem:[#allocation2 + $0x88] sm:$0xff]
      %v368 = vld [vmem:[#allocation2 + $0x90] sm:$0xff]
      %v369 = vld [vmem:[#allocation2 + $0x98] sm:$0xff]
      %v370 = vld [vmem:[#allocation2 + $0xa0] sm:$0xff]
      %v371 = vld [vmem:[#allocation2 + $0xa8] sm:$0xff]
      %v372 = vld [vmem:[#allocation2 + $0xb0] sm:$0xff]
      %v373 = vld [vmem:[#allocation2 + $0xb8] sm:$0xff]
      %v374 = vld [vmem:[#allocation2 + $0xc0] sm:$0xff]
      %v375 = vld [vmem:[#allocation2 + $0xc8] sm:$0xff]
      %v376 = vld [vmem:[#allocation2 + $0xd0] sm:$0xff]
      %v377 = vld [vmem:[#allocation2 + $0xd8] sm:$0xff]
      %v378 = vld [vmem:[#allocation2 + $0xe0] sm:$0xff]
      %v379 = vld [vmem:[#allocation2 + $0xe8] sm:$0xff]
      %v380 = vld [vmem:[#allocation2 + $0xf0] sm:$0xff]
      %v381 = vld [vmem:[#allocation2 + $0xf8] sm:$0xff]
      %v382 = vld [vmem:[%s273] sm:$0xff]
      %v383 = vld [vmem:[%s273 + $0x8] sm:$0xff]
      %v384 = vld [vmem:[%s273 + $0x10] sm:$0xff]
      %v385 = vld [vmem:[%s273 + $0x18] sm:$0xff]
      %v386 = vld [vmem:[%s273 + $0x20] sm:$0xff]
      %v387 = vld [vmem:[%s273 + $0x28] sm:$0xff]
      %v388 = vld [vmem:[%s273 + $0x30] sm:$0xff]
      %v389 = vld [vmem:[%s273 + $0x38] sm:$0xff]
      %v390 = vld [vmem:[%s273 + $0x40] sm:$0xff]
      %v391 = vld [vmem:[%s273 + $0x48] sm:$0xff]
      %v392 = vld [vmem:[%s273 + $0x50] sm:$0xff]
      %v393 = vld [vmem:[%s273 + $0x58] sm:$0xff]
      %v394 = vld [vmem:[%s273 + $0x60] sm:$0xff]
      %v395 = vld [vmem:[%s273 + $0x68] sm:$0xff]
      %v396 = vld [vmem:[%s273 + $0x70] sm:$0xff]
      %v397 = vld [vmem:[%s273 + $0x78] sm:$0xff]
      %v398 = vld [vmem:[%s278] sm:$0xff]
      %v399 = vld [vmem:[%s278 + $0x8] sm:$0xff]
      %v400 = vld [vmem:[%s278 + $0x10] sm:$0xff]
      %v401 = vld [vmem:[%s278 + $0x18] sm:$0xff]
      %v402 = vld [vmem:[%s278 + $0x20] sm:$0xff]
      %v403 = vld [vmem:[%s278 + $0x28] sm:$0xff]
      %v404 = vld [vmem:[%s278 + $0x30] sm:$0xff]
      %v405 = vld [vmem:[%s278 + $0x38] sm:$0xff]
      %v406 = vld [vmem:[%s278 + $0x40] sm:$0xff]
      %v407 = vld [vmem:[%s278 + $0x48] sm:$0xff]
      %v408 = vld [vmem:[%s278 + $0x50] sm:$0xff]
      %v409 = vld [vmem:[%s278 + $0x58] sm:$0xff]
      %v410 = vld [vmem:[%s278 + $0x60] sm:$0xff]
      %v411 = vld [vmem:[%s278 + $0x68] sm:$0xff]
      %v412 = vld [vmem:[%s278 + $0x70] sm:$0xff]
      %v413 = vld [vmem:[%s278 + $0x78] sm:$0xff]
      %v414 = vld [vmem:[%s278 + $0x80] sm:$0xff]
      %v415 = vld [vmem:[%s278 + $0x88] sm:$0xff]
      %v416 = vld [vmem:[%s278 + $0x90] sm:$0xff]
      %v417 = vld [vmem:[%s278 + $0x98] sm:$0xff]
      %v418 = vld [vmem:[%s278 + $0xa0] sm:$0xff]
      %v419 = vld [vmem:[%s278 + $0xa8] sm:$0xff]
      %v420 = vld [vmem:[%s278 + $0xb0] sm:$0xff]
      %v421 = vld [vmem:[%s278 + $0xb8] sm:$0xff]
      %v422 = vld [vmem:[%s278 + $0xc0] sm:$0xff]
      %v423 = vld [vmem:[%s278 + $0xc8] sm:$0xff]
      %v424 = vld [vmem:[%s278 + $0xd0] sm:$0xff]
      %v425 = vld [vmem:[%s278 + $0xd8] sm:$0xff]
      %v426 = vld [vmem:[%s278 + $0xe0] sm:$0xff]
      %v427 = vld [vmem:[%s278 + $0xe8] sm:$0xff]
      %v428 = vld [vmem:[%s278 + $0xf0] sm:$0xff]
      %v429 = vld [vmem:[%s278 + $0xf8] sm:$0xff]
      %v430 = vld [vmem:[%s278 + $0x100] sm:$0xff]
      %v431 = vld [vmem:[%s278 + $0x108] sm:$0xff]
      %v432 = vld [vmem:[%s278 + $0x110] sm:$0xff]
      %v433 = vld [vmem:[%s278 + $0x118] sm:$0xff]
      %v434 = vld [vmem:[%s278 + $0x120] sm:$0xff]
      %v435 = vld [vmem:[%s278 + $0x128] sm:$0xff]
      %v436 = vld [vmem:[%s278 + $0x130] sm:$0xff]
      %v437 = vld [vmem:[%s278 + $0x138] sm:$0xff]
      %v438 = vld [vmem:[%s278 + $0x140] sm:$0xff]
      %v439 = vld [vmem:[%s278 + $0x148] sm:$0xff]
      %v440 = vld [vmem:[%s278 + $0x150] sm:$0xff]
      %v441 = vld [vmem:[%s278 + $0x158] sm:$0xff]
      %v442 = vld [vmem:[%s278 + $0x160] sm:$0xff]
      %v443 = vld [vmem:[%s278 + $0x168] sm:$0xff]
      %v444 = vld [vmem:[%s278 + $0x170] sm:$0xff]
      %v445 = vld [vmem:[%s278 + $0x178] sm:$0xff]
      %v446 = vld [vmem:[%s278 + $0x180] sm:$0xff]
      %v447 = vld [vmem:[%s278 + $0x188] sm:$0xff]
      %v448 = vld [vmem:[%s278 + $0x190] sm:$0xff]
      %v449 = vld [vmem:[%s278 + $0x198] sm:$0xff]
      %v450 = vld [vmem:[%s278 + $0x1a0] sm:$0xff]
      %v451 = vld [vmem:[%s278 + $0x1a8] sm:$0xff]
      %v452 = vld [vmem:[%s278 + $0x1b0] sm:$0xff]
      %v453 = vld [vmem:[%s278 + $0x1b8] sm:$0xff]
      %v454 = vld [vmem:[%s278 + $0x1c0] sm:$0xff]
      %v455 = vld [vmem:[%s278 + $0x1c8] sm:$0xff]
      %v456 = vld [vmem:[%s278 + $0x1d0] sm:$0xff]
      %v457 = vld [vmem:[%s278 + $0x1d8] sm:$0xff]
      %v458 = vld [vmem:[%s278 + $0x1e0] sm:$0xff]
      %v459 = vld [vmem:[%s278 + $0x1e8] sm:$0xff]
      %v460 = vld [vmem:[%s278 + $0x1f0] sm:$0xff]
      %v461 = vld [vmem:[%s278 + $0x1f8] sm:$0xff]
      %v462 = vld [vmem:[%s278 + $0x200] sm:$0xff]
      %v463 = vld [vmem:[%s278 + $0x208] sm:$0xff]
      %v464 = vld [vmem:[%s278 + $0x210] sm:$0xff]
      %v465 = vld [vmem:[%s278 + $0x218] sm:$0xff]
      %v466 = vld [vmem:[%s278 + $0x220] sm:$0xff]
      %v467 = vld [vmem:[%s278 + $0x228] sm:$0xff]
      %v468 = vld [vmem:[%s278 + $0x230] sm:$0xff]
      %v469 = vld [vmem:[%s278 + $0x238] sm:$0xff]
      %v470 = vld [vmem:[%s278 + $0x240] sm:$0xff]
      %v471 = vld [vmem:[%s278 + $0x248] sm:$0xff]
      %v472 = vld [vmem:[%s278 + $0x250] sm:$0xff]
      %v473 = vld [vmem:[%s278 + $0x258] sm:$0xff]
      %v474 = vld [vmem:[%s278 + $0x260] sm:$0xff]
      %v475 = vld [vmem:[%s278 + $0x268] sm:$0xff]
      %v476 = vld [vmem:[%s278 + $0x270] sm:$0xff]
      %v477 = vld [vmem:[%s278 + $0x278] sm:$0xff]
      %v478 = vld [vmem:[%s278 + $0x280] sm:$0xff]
      %v479 = vld [vmem:[%s278 + $0x288] sm:$0xff]
      %v480 = vld [vmem:[%s278 + $0x290] sm:$0xff]
      %v481 = vld [vmem:[%s278 + $0x298] sm:$0xff]
      %v482 = vld [vmem:[%s278 + $0x2a0] sm:$0xff]
      %v483 = vld [vmem:[%s278 + $0x2a8] sm:$0xff]
      %v484 = vld [vmem:[%s278 + $0x2b0] sm:$0xff]
      %v485 = vld [vmem:[%s278 + $0x2b8] sm:$0xff]
      %v486 = vld [vmem:[%s278 + $0x2c0] sm:$0xff]
      %v487 = vld [vmem:[%s278 + $0x2c8] sm:$0xff]
      %v488 = vld [vmem:[%s278 + $0x2d0] sm:$0xff]
      %v489 = vld [vmem:[%s278 + $0x2d8] sm:$0xff]
      %v490 = vld [vmem:[%s278 + $0x2e0] sm:$0xff]
      %v491 = vld [vmem:[%s278 + $0x2e8] sm:$0xff]
      %v492 = vld [vmem:[%s278 + $0x2f0] sm:$0xff]
      %v493 = vld [vmem:[%s278 + $0x2f8] sm:$0xff]
      %v494 = vld [vmem:[%s278 + $0x300] sm:$0xff]
      %v495 = vld [vmem:[%s278 + $0x308] sm:$0xff]
      %v496 = vld [vmem:[%s278 + $0x310] sm:$0xff]
      %v497 = vld [vmem:[%s278 + $0x318] sm:$0xff]
      %v498 = vld [vmem:[%s278 + $0x320] sm:$0xff]
      %v499 = vld [vmem:[%s278 + $0x328] sm:$0xff]
      %v500 = vld [vmem:[%s278 + $0x330] sm:$0xff]
      %v501 = vld [vmem:[%s278 + $0x338] sm:$0xff]
      %v502 = vld [vmem:[%s278 + $0x340] sm:$0xff]
      %v503 = vld [vmem:[%s278 + $0x348] sm:$0xff]
      %v504 = vld [vmem:[%s278 + $0x350] sm:$0xff]
      %v505 = vld [vmem:[%s278 + $0x358] sm:$0xff]
      %v506 = vld [vmem:[%s278 + $0x360] sm:$0xff]
      %v507 = vld [vmem:[%s278 + $0x368] sm:$0xff]
      %v508 = vld [vmem:[%s278 + $0x370] sm:$0xff]
      %v509 = vld [vmem:[%s278 + $0x378] sm:$0xff]
      %v510 = vld [vmem:[%s278 + $0x380] sm:$0xff]
      %v511 = vld [vmem:[%s278 + $0x388] sm:$0xff]
      %v512 = vld [vmem:[%s278 + $0x390] sm:$0xff]
      %v513 = vld [vmem:[%s278 + $0x398] sm:$0xff]
      %v514 = vld [vmem:[%s278 + $0x3a0] sm:$0xff]
      %v515 = vld [vmem:[%s278 + $0x3a8] sm:$0xff]
      %v516 = vld [vmem:[%s278 + $0x3b0] sm:$0xff]
      %v517 = vld [vmem:[%s278 + $0x3b8] sm:$0xff]
      %v518 = vld [vmem:[%s278 + $0x3c0] sm:$0xff]
      %v519 = vld [vmem:[%s278 + $0x3c8] sm:$0xff]
      %v520 = vld [vmem:[%s278 + $0x3d0] sm:$0xff]
      %v521 = vld [vmem:[%s278 + $0x3d8] sm:$0xff]
      %v522 = vld [vmem:[%s278 + $0x3e0] sm:$0xff]
      %v523 = vld [vmem:[%s278 + $0x3e8] sm:$0xff]
      %v524 = vld [vmem:[%s278 + $0x3f0] sm:$0xff]
      %v525 = vld [vmem:[%s278 + $0x3f8] sm:$0xff]
      %v542 = vunpack.c.l.b16 %v382
      %v543 = vunpack.c.h.b16 %v382
      %v544 = vunpack.c.l.b16 %v383
      %v545 = vunpack.c.h.b16 %v383
      %v546 = vunpack.c.l.b16 %v384
      %v547 = vunpack.c.h.b16 %v384
      %v548 = vunpack.c.l.b16 %v385
      %v549 = vunpack.c.h.b16 %v385
      %v550 = vunpack.c.l.b16 %v386
      %v551 = vunpack.c.h.b16 %v386
      %v552 = vunpack.c.l.b16 %v387
      %v553 = vunpack.c.h.b16 %v387
      %v554 = vunpack.c.l.b16 %v388
      %v555 = vunpack.c.h.b16 %v388
      %v556 = vunpack.c.l.b16 %v389
      %v557 = vunpack.c.h.b16 %v389
      %v558 = vunpack.c.l.b16 %v390
      %v559 = vunpack.c.h.b16 %v390
      %v560 = vunpack.c.l.b16 %v391
      %v561 = vunpack.c.h.b16 %v391
      %v562 = vunpack.c.l.b16 %v392
      %v563 = vunpack.c.h.b16 %v392
      %v564 = vunpack.c.l.b16 %v393
      %v565 = vunpack.c.h.b16 %v393
      %v566 = vunpack.c.l.b16 %v394
      %v567 = vunpack.c.h.b16 %v394
      %v568 = vunpack.c.l.b16 %v395
      %v569 = vunpack.c.h.b16 %v395
      %v570 = vunpack.c.l.b16 %v396
      %v571 = vunpack.c.h.b16 %v396
      %v572 = vunpack.c.l.b16 %v397
      %v573 = vunpack.c.h.b16 %v397
      %v574 = vpack.c.b16 %v546, %v542
      %v575 = vpack.c.b16 %v547, %v543
      %v576 = vpack.c.b16 %v548, %v544
      %v577 = vpack.c.b16 %v549, %v545
      %v578 = vpack.c.b16 %v554, %v550
      %v579 = vpack.c.b16 %v555, %v551
      %v580 = vpack.c.b16 %v556, %v552
      %v581 = vpack.c.b16 %v557, %v553
      %v582 = vpack.c.b16 %v562, %v558
      %v583 = vpack.c.b16 %v563, %v559
      %v584 = vpack.c.b16 %v564, %v560
      %v585 = vpack.c.b16 %v565, %v561
      %v586 = vpack.c.b16 %v570, %v566
      %v587 = vpack.c.b16 %v571, %v567
      %v588 = vpack.c.b16 %v572, %v568
      %v589 = vpack.c.b16 %v573, %v569
      %v734 = vunpack.c.l.b16 %v398
      %v735 = vunpack.c.h.b16 %v398
      %v736 = vunpack.c.l.b16 %v399
      %v737 = vunpack.c.h.b16 %v399
      %v738 = vunpack.c.l.b16 %v400
      %v739 = vunpack.c.h.b16 %v400
      %v740 = vunpack.c.l.b16 %v401
      %v741 = vunpack.c.h.b16 %v401
      %v742 = vunpack.c.l.b16 %v402
      %v743 = vunpack.c.h.b16 %v402
      %v744 = vunpack.c.l.b16 %v403
      %v745 = vunpack.c.h.b16 %v403
      %v746 = vunpack.c.l.b16 %v404
      %v747 = vunpack.c.h.b16 %v404
      %v748 = vunpack.c.l.b16 %v405
      %v749 = vunpack.c.h.b16 %v405
      %v750 = vunpack.c.l.b16 %v406
      %v751 = vunpack.c.h.b16 %v406
      %v752 = vunpack.c.l.b16 %v407
      %v753 = vunpack.c.h.b16 %v407
      %v754 = vunpack.c.l.b16 %v408
      %v755 = vunpack.c.h.b16 %v408
      %v756 = vunpack.c.l.b16 %v409
      %v757 = vunpack.c.h.b16 %v409
      %v758 = vunpack.c.l.b16 %v410
      %v759 = vunpack.c.h.b16 %v410
      %v760 = vunpack.c.l.b16 %v411
      %v761 = vunpack.c.h.b16 %v411
      %v762 = vunpack.c.l.b16 %v412
      %v763 = vunpack.c.h.b16 %v412
      %v764 = vunpack.c.l.b16 %v413
      %v765 = vunpack.c.h.b16 %v413
      %v766 = vunpack.c.l.b16 %v414
      %v767 = vunpack.c.h.b16 %v414
      %v768 = vunpack.c.l.b16 %v415
      %v769 = vunpack.c.h.b16 %v415
      %v770 = vunpack.c.l.b16 %v416
      %v771 = vunpack.c.h.b16 %v416
      %v772 = vunpack.c.l.b16 %v417
      %v773 = vunpack.c.h.b16 %v417
      %v774 = vunpack.c.l.b16 %v418
      %v775 = vunpack.c.h.b16 %v418
      %v776 = vunpack.c.l.b16 %v419
      %v777 = vunpack.c.h.b16 %v419
      %v778 = vunpack.c.l.b16 %v420
      %v779 = vunpack.c.h.b16 %v420
      %v780 = vunpack.c.l.b16 %v421
      %v781 = vunpack.c.h.b16 %v421
      %v782 = vunpack.c.l.b16 %v422
      %v783 = vunpack.c.h.b16 %v422
      %v784 = vunpack.c.l.b16 %v423
      %v785 = vunpack.c.h.b16 %v423
      %v786 = vunpack.c.l.b16 %v424
      %v787 = vunpack.c.h.b16 %v424
      %v788 = vunpack.c.l.b16 %v425
      %v789 = vunpack.c.h.b16 %v425
      %v790 = vunpack.c.l.b16 %v426
      %v791 = vunpack.c.h.b16 %v426
      %v792 = vunpack.c.l.b16 %v427
      %v793 = vunpack.c.h.b16 %v427
      %v794 = vunpack.c.l.b16 %v428
      %v795 = vunpack.c.h.b16 %v428
      %v796 = vunpack.c.l.b16 %v429
      %v797 = vunpack.c.h.b16 %v429
      %v798 = vunpack.c.l.b16 %v430
      %v799 = vunpack.c.h.b16 %v430
      %v800 = vunpack.c.l.b16 %v431
      %v801 = vunpack.c.h.b16 %v431
      %v802 = vunpack.c.l.b16 %v432
      %v803 = vunpack.c.h.b16 %v432
      %v804 = vunpack.c.l.b16 %v433
      %v805 = vunpack.c.h.b16 %v433
      %v806 = vunpack.c.l.b16 %v434
      %v807 = vunpack.c.h.b16 %v434
      %v808 = vunpack.c.l.b16 %v435
      %v809 = vunpack.c.h.b16 %v435
      %v810 = vunpack.c.l.b16 %v436
      %v811 = vunpack.c.h.b16 %v436
      %v812 = vunpack.c.l.b16 %v437
      %v813 = vunpack.c.h.b16 %v437
      %v814 = vunpack.c.l.b16 %v438
      %v815 = vunpack.c.h.b16 %v438
      %v816 = vunpack.c.l.b16 %v439
      %v817 = vunpack.c.h.b16 %v439
      %v818 = vunpack.c.l.b16 %v440
      %v819 = vunpack.c.h.b16 %v440
      %v820 = vunpack.c.l.b16 %v441
      %v821 = vunpack.c.h.b16 %v441
      %v822 = vunpack.c.l.b16 %v442
      %v823 = vunpack.c.h.b16 %v442
      %v824 = vunpack.c.l.b16 %v443
      %v825 = vunpack.c.h.b16 %v443
      %v826 = vunpack.c.l.b16 %v444
      %v827 = vunpack.c.h.b16 %v444
      %v828 = vunpack.c.l.b16 %v445
      %v829 = vunpack.c.h.b16 %v445
      %v830 = vunpack.c.l.b16 %v446
      %v831 = vunpack.c.h.b16 %v446
      %v832 = vunpack.c.l.b16 %v447
      %v833 = vunpack.c.h.b16 %v447
      %v834 = vunpack.c.l.b16 %v448
      %v835 = vunpack.c.h.b16 %v448
      %v836 = vunpack.c.l.b16 %v449
      %v837 = vunpack.c.h.b16 %v449
      %v838 = vunpack.c.l.b16 %v450
      %v839 = vunpack.c.h.b16 %v450
      %v840 = vunpack.c.l.b16 %v451
      %v841 = vunpack.c.h.b16 %v451
      %v842 = vunpack.c.l.b16 %v452
      %v843 = vunpack.c.h.b16 %v452
      %v844 = vunpack.c.l.b16 %v453
      %v845 = vunpack.c.h.b16 %v453
      %v846 = vunpack.c.l.b16 %v454
      %v847 = vunpack.c.h.b16 %v454
      %v848 = vunpack.c.l.b16 %v455
      %v849 = vunpack.c.h.b16 %v455
      %v850 = vunpack.c.l.b16 %v456
      %v851 = vunpack.c.h.b16 %v456
      %v852 = vunpack.c.l.b16 %v457
      %v853 = vunpack.c.h.b16 %v457
      %v854 = vunpack.c.l.b16 %v458
      %v855 = vunpack.c.h.b16 %v458
      %v856 = vunpack.c.l.b16 %v459
      %v857 = vunpack.c.h.b16 %v459
      %v858 = vunpack.c.l.b16 %v460
      %v859 = vunpack.c.h.b16 %v460
      %v860 = vunpack.c.l.b16 %v461
      %v861 = vunpack.c.h.b16 %v461
      %v862 = vunpack.c.l.b16 %v462
      %v863 = vunpack.c.h.b16 %v462
      %v864 = vunpack.c.l.b16 %v463
      %v865 = vunpack.c.h.b16 %v463
      %v866 = vunpack.c.l.b16 %v464
      %v867 = vunpack.c.h.b16 %v464
      %v868 = vunpack.c.l.b16 %v465
      %v869 = vunpack.c.h.b16 %v465
      %v870 = vunpack.c.l.b16 %v466
      %v871 = vunpack.c.h.b16 %v466
      %v872 = vunpack.c.l.b16 %v467
      %v873 = vunpack.c.h.b16 %v467
      %v874 = vunpack.c.l.b16 %v468
      %v875 = vunpack.c.h.b16 %v468
      %v876 = vunpack.c.l.b16 %v469
      %v877 = vunpack.c.h.b16 %v469
      %v878 = vunpack.c.l.b16 %v470
      %v879 = vunpack.c.h.b16 %v470
      %v880 = vunpack.c.l.b16 %v471
      %v881 = vunpack.c.h.b16 %v471
      %v882 = vunpack.c.l.b16 %v472
      %v883 = vunpack.c.h.b16 %v472
      %v884 = vunpack.c.l.b16 %v473
      %v885 = vunpack.c.h.b16 %v473
      %v886 = vunpack.c.l.b16 %v474
      %v887 = vunpack.c.h.b16 %v474
      %v888 = vunpack.c.l.b16 %v475
      %v889 = vunpack.c.h.b16 %v475
      %v890 = vunpack.c.l.b16 %v476
      %v891 = vunpack.c.h.b16 %v476
      %v892 = vunpack.c.l.b16 %v477
      %v893 = vunpack.c.h.b16 %v477
      %v894 = vunpack.c.l.b16 %v478
      %v895 = vunpack.c.h.b16 %v478
      %v896 = vunpack.c.l.b16 %v479
      %v897 = vunpack.c.h.b16 %v479
      %v898 = vunpack.c.l.b16 %v480
      %v899 = vunpack.c.h.b16 %v480
      %v900 = vunpack.c.l.b16 %v481
      %v901 = vunpack.c.h.b16 %v481
      %v902 = vunpack.c.l.b16 %v482
      %v903 = vunpack.c.h.b16 %v482
      %v904 = vunpack.c.l.b16 %v483
      %v905 = vunpack.c.h.b16 %v483
      %v906 = vunpack.c.l.b16 %v484
      %v907 = vunpack.c.h.b16 %v484
      %v908 = vunpack.c.l.b16 %v485
      %v909 = vunpack.c.h.b16 %v485
      %v910 = vunpack.c.l.b16 %v486
      %v911 = vunpack.c.h.b16 %v486
      %v912 = vunpack.c.l.b16 %v487
      %v913 = vunpack.c.h.b16 %v487
      %v914 = vunpack.c.l.b16 %v488
      %v915 = vunpack.c.h.b16 %v488
      %v916 = vunpack.c.l.b16 %v489
      %v917 = vunpack.c.h.b16 %v489
      %v918 = vunpack.c.l.b16 %v490
      %v919 = vunpack.c.h.b16 %v490
      %v920 = vunpack.c.l.b16 %v491
      %v921 = vunpack.c.h.b16 %v491
      %v922 = vunpack.c.l.b16 %v492
      %v923 = vunpack.c.h.b16 %v492
      %v924 = vunpack.c.l.b16 %v493
      %v925 = vunpack.c.h.b16 %v493
      %v926 = vunpack.c.l.b16 %v494
      %v927 = vunpack.c.h.b16 %v494
      %v928 = vunpack.c.l.b16 %v495
      %v929 = vunpack.c.h.b16 %v495
      %v930 = vunpack.c.l.b16 %v496
      %v931 = vunpack.c.h.b16 %v496
      %v932 = vunpack.c.l.b16 %v497
      %v933 = vunpack.c.h.b16 %v497
      %v934 = vunpack.c.l.b16 %v498
      %v935 = vunpack.c.h.b16 %v498
      %v936 = vunpack.c.l.b16 %v499
      %v937 = vunpack.c.h.b16 %v499
      %v938 = vunpack.c.l.b16 %v500
      %v939 = vunpack.c.h.b16 %v500
      %v940 = vunpack.c.l.b16 %v501
      %v941 = vunpack.c.h.b16 %v501
      %v942 = vunpack.c.l.b16 %v502
      %v943 = vunpack.c.h.b16 %v502
      %v944 = vunpack.c.l.b16 %v503
      %v945 = vunpack.c.h.b16 %v503
      %v946 = vunpack.c.l.b16 %v504
      %v947 = vunpack.c.h.b16 %v504
      %v948 = vunpack.c.l.b16 %v505
      %v949 = vunpack.c.h.b16 %v505
      %v950 = vunpack.c.l.b16 %v506
      %v951 = vunpack.c.h.b16 %v506
      %v952 = vunpack.c.l.b16 %v507
      %v953 = vunpack.c.h.b16 %v507
      %v954 = vunpack.c.l.b16 %v508
      %v955 = vunpack.c.h.b16 %v508
      %v956 = vunpack.c.l.b16 %v509
      %v957 = vunpack.c.h.b16 %v509
      %v958 = vunpack.c.l.b16 %v510
      %v959 = vunpack.c.h.b16 %v510
      %v960 = vunpack.c.l.b16 %v511
      %v961 = vunpack.c.h.b16 %v511
      %v962 = vunpack.c.l.b16 %v512
      %v963 = vunpack.c.h.b16 %v512
      %v964 = vunpack.c.l.b16 %v513
      %v965 = vunpack.c.h.b16 %v513
      %v966 = vunpack.c.l.b16 %v514
      %v967 = vunpack.c.h.b16 %v514
      %v968 = vunpack.c.l.b16 %v515
      %v969 = vunpack.c.h.b16 %v515
      %v970 = vunpack.c.l.b16 %v516
      %v971 = vunpack.c.h.b16 %v516
      %v972 = vunpack.c.l.b16 %v517
      %v973 = vunpack.c.h.b16 %v517
      %v974 = vunpack.c.l.b16 %v518
      %v975 = vunpack.c.h.b16 %v518
      %v976 = vunpack.c.l.b16 %v519
      %v977 = vunpack.c.h.b16 %v519
      %v978 = vunpack.c.l.b16 %v520
      %v979 = vunpack.c.h.b16 %v520
      %v980 = vunpack.c.l.b16 %v521
      %v981 = vunpack.c.h.b16 %v521
      %v982 = vunpack.c.l.b16 %v522
      %v983 = vunpack.c.h.b16 %v522
      %v984 = vunpack.c.l.b16 %v523
      %v985 = vunpack.c.h.b16 %v523
      %v986 = vunpack.c.l.b16 %v524
      %v987 = vunpack.c.h.b16 %v524
      %v988 = vunpack.c.l.b16 %v525
      %v989 = vunpack.c.h.b16 %v525
      %v990 = vpack.c.b16 %v738, %v734
      %v991 = vpack.c.b16 %v739, %v735
      %v992 = vpack.c.b16 %v740, %v736
      %v993 = vpack.c.b16 %v741, %v737
      %v994 = vpack.c.b16 %v746, %v742
      %v995 = vpack.c.b16 %v747, %v743
      %v996 = vpack.c.b16 %v748, %v744
      %v997 = vpack.c.b16 %v749, %v745
      %v998 = vpack.c.b16 %v754, %v750
      %v999 = vpack.c.b16 %v755, %v751
      %v1000 = vpack.c.b16 %v756, %v752
      %v1001 = vpack.c.b16 %v757, %v753
      %v1002 = vpack.c.b16 %v762, %v758
      %v1003 = vpack.c.b16 %v763, %v759
      %v1004 = vpack.c.b16 %v764, %v760
      %v1005 = vpack.c.b16 %v765, %v761
      %v1006 = vpack.c.b16 %v770, %v766
      %v1007 = vpack.c.b16 %v771, %v767
      %v1008 = vpack.c.b16 %v772, %v768
      %v1009 = vpack.c.b16 %v773, %v769
      %v1010 = vpack.c.b16 %v778, %v774
      %v1011 = vpack.c.b16 %v779, %v775
      %v1012 = vpack.c.b16 %v780, %v776
      %v1013 = vpack.c.b16 %v781, %v777
      %v1014 = vpack.c.b16 %v786, %v782
      %v1015 = vpack.c.b16 %v787, %v783
      %v1016 = vpack.c.b16 %v788, %v784
      %v1017 = vpack.c.b16 %v789, %v785
      %v1018 = vpack.c.b16 %v794, %v790
      %v1019 = vpack.c.b16 %v795, %v791
      %v1020 = vpack.c.b16 %v796, %v792
      %v1021 = vpack.c.b16 %v797, %v793
      %v1022 = vpack.c.b16 %v802, %v798
      %v1023 = vpack.c.b16 %v803, %v799
      %v1024 = vpack.c.b16 %v804, %v800
      %v1025 = vpack.c.b16 %v805, %v801
      %v1026 = vpack.c.b16 %v810, %v806
      %v1027 = vpack.c.b16 %v811, %v807
      %v1028 = vpack.c.b16 %v812, %v808
      %v1029 = vpack.c.b16 %v813, %v809
      %v1030 = vpack.c.b16 %v818, %v814
      %v1031 = vpack.c.b16 %v819, %v815
      %v1032 = vpack.c.b16 %v820, %v816
      %v1033 = vpack.c.b16 %v821, %v817
      %v1034 = vpack.c.b16 %v826, %v822
      %v1035 = vpack.c.b16 %v827, %v823
      %v1036 = vpack.c.b16 %v828, %v824
      %v1037 = vpack.c.b16 %v829, %v825
      %v1038 = vpack.c.b16 %v834, %v830
      %v1039 = vpack.c.b16 %v835, %v831
      %v1040 = vpack.c.b16 %v836, %v832
      %v1041 = vpack.c.b16 %v837, %v833
      %v1042 = vpack.c.b16 %v842, %v838
      %v1043 = vpack.c.b16 %v843, %v839
      %v1044 = vpack.c.b16 %v844, %v840
      %v1045 = vpack.c.b16 %v845, %v841
      %v1046 = vpack.c.b16 %v850, %v846
      %v1047 = vpack.c.b16 %v851, %v847
      %v1048 = vpack.c.b16 %v852, %v848
      %v1049 = vpack.c.b16 %v853, %v849
      %v1050 = vpack.c.b16 %v858, %v854
      %v1051 = vpack.c.b16 %v859, %v855
      %v1052 = vpack.c.b16 %v860, %v856
      %v1053 = vpack.c.b16 %v861, %v857
      %v1054 = vpack.c.b16 %v866, %v862
      %v1055 = vpack.c.b16 %v867, %v863
      %v1056 = vpack.c.b16 %v868, %v864
      %v1057 = vpack.c.b16 %v869, %v865
      %v1058 = vpack.c.b16 %v874, %v870
      %v1059 = vpack.c.b16 %v875, %v871
      %v1060 = vpack.c.b16 %v876, %v872
      %v1061 = vpack.c.b16 %v877, %v873
      %v1062 = vpack.c.b16 %v882, %v878
      %v1063 = vpack.c.b16 %v883, %v879
      %v1064 = vpack.c.b16 %v884, %v880
      %v1065 = vpack.c.b16 %v885, %v881
      %v1066 = vpack.c.b16 %v890, %v886
      %v1067 = vpack.c.b16 %v891, %v887
      %v1068 = vpack.c.b16 %v892, %v888
      %v1069 = vpack.c.b16 %v893, %v889
      %v1070 = vpack.c.b16 %v898, %v894
      %v1071 = vpack.c.b16 %v899, %v895
      %v1072 = vpack.c.b16 %v900, %v896
      %v1073 = vpack.c.b16 %v901, %v897
      %v1074 = vpack.c.b16 %v906, %v902
      %v1075 = vpack.c.b16 %v907, %v903
      %v1076 = vpack.c.b16 %v908, %v904
      %v1077 = vpack.c.b16 %v909, %v905
      %v1078 = vpack.c.b16 %v914, %v910
      %v1079 = vpack.c.b16 %v915, %v911
      %v1080 = vpack.c.b16 %v916, %v912
      %v1081 = vpack.c.b16 %v917, %v913
      %v1082 = vpack.c.b16 %v922, %v918
      %v1083 = vpack.c.b16 %v923, %v919
      %v1084 = vpack.c.b16 %v924, %v920
      %v1085 = vpack.c.b16 %v925, %v921
      %v1086 = vpack.c.b16 %v930, %v926
      %v1087 = vpack.c.b16 %v931, %v927
      %v1088 = vpack.c.b16 %v932, %v928
      %v1089 = vpack.c.b16 %v933, %v929
      %v1090 = vpack.c.b16 %v938, %v934
      %v1091 = vpack.c.b16 %v939, %v935
      %v1092 = vpack.c.b16 %v940, %v936
      %v1093 = vpack.c.b16 %v941, %v937
      %v1094 = vpack.c.b16 %v946, %v942
      %v1095 = vpack.c.b16 %v947, %v943
      %v1096 = vpack.c.b16 %v948, %v944
      %v1097 = vpack.c.b16 %v949, %v945
      %v1098 = vpack.c.b16 %v954, %v950
      %v1099 = vpack.c.b16 %v955, %v951
      %v1100 = vpack.c.b16 %v956, %v952
      %v1101 = vpack.c.b16 %v957, %v953
      %v1102 = vpack.c.b16 %v962, %v958
      %v1103 = vpack.c.b16 %v963, %v959
      %v1104 = vpack.c.b16 %v964, %v960
      %v1105 = vpack.c.b16 %v965, %v961
      %v1106 = vpack.c.b16 %v970, %v966
      %v1107 = vpack.c.b16 %v971, %v967
      %v1108 = vpack.c.b16 %v972, %v968
      %v1109 = vpack.c.b16 %v973, %v969
      %v1110 = vpack.c.b16 %v978, %v974
      %v1111 = vpack.c.b16 %v979, %v975
      %v1112 = vpack.c.b16 %v980, %v976
      %v1113 = vpack.c.b16 %v981, %v977
      %v1114 = vpack.c.b16 %v986, %v982
      %v1115 = vpack.c.b16 %v987, %v983
      %v1116 = vpack.c.b16 %v988, %v984
      %v1117 = vpack.c.b16 %v989, %v985
      %1246 = vmatprep.subr.bf16.mxu0 %v1019
      %1247 = vmatpush1.bf16.msra.mxu0 %v1018
      %1248 = vmatprep.subr.bf16.mxu0 %v1015
      %1249 = vmatpush1.bf16.msra.mxu0 %v1014
      %1250 = vmatprep.subr.bf16.mxu0 %v1011
      %1251 = vmatpush1.bf16.msra.mxu0 %v1010
      %1252 = vmatprep.subr.bf16.mxu0 %v1007
      %1253 = vmatpush1.bf16.msra.mxu0 %v1006
      %1254 = vmatprep.subr.bf16.mxu0 %v1003
      %1255 = vmatpush1.bf16.msra.mxu0 %v1002
      %1256 = vmatprep.subr.bf16.mxu0 %v999
      %1257 = vmatpush1.bf16.msra.mxu0 %v998
      %1258 = vmatprep.subr.bf16.mxu0 %v995
      %1259 = vmatpush1.bf16.msra.mxu0 %v994
      %1260 = vmatprep.subr.bf16.mxu0 %v991
      %1261 = vmatpush1.bf16.msra.mxu0 %v990
      %1262 = vmatprep.subr.bf16.mxu0 %v1051
      %1263 = vmatpush2.bf16.msra.mxu0 %v1050
      %1264 = vmatprep.subr.bf16.mxu0 %v1047
      %1265 = vmatpush2.bf16.msra.mxu0 %v1046
      %1266 = vmatprep.subr.bf16.mxu0 %v1043
      %1267 = vmatpush2.bf16.msra.mxu0 %v1042
      %1268 = vmatprep.subr.bf16.mxu0 %v1039
      %1269 = vmatpush2.bf16.msra.mxu0 %v1038
      %1270 = vmatprep.subr.bf16.mxu0 %v1035
      %1271 = vmatpush2.bf16.msra.mxu0 %v1034
      %1272 = vmatprep.subr.bf16.mxu0 %v1031
      %1273 = vmatpush2.bf16.msra.mxu0 %v1030
      %1274 = vmatprep.subr.bf16.mxu0 %v1027
      %1275 = vmatpush2.bf16.msra.mxu0 %v1026
      %1276 = vmatprep.subr.bf16.mxu0 %v1023
      %1277 = vmatpush2.bf16.msra.mxu0 %v1022
      %1278 = vmatprep.mubr.bf16.mxu0 %v575
      %1279 = vmatmul.mubr.bf16.gmra.mxu0 %v574
      %v1280 = vpop.f32.mrf.mxu0
      %v1281 = vadd.f32 0.0, %v1280
      %v1282 = vpop.f32.mrf.mxu0
      %v1283 = vadd.f32 0.0, %v1282
      %v1284 = vpop.f32.mrf.mxu0
      %v1285 = vadd.f32 0.0, %v1284
      %v1286 = vpop.f32.mrf.mxu0
      %v1287 = vadd.f32 0.0, %v1286
      %1288 = vmatprep.mubr.bf16.mxu0 %v579
      %1289 = vmatmul.mubr.bf16.gmra.mxu0 %v578
      %v1290 = vpop.f32.mrf.mxu0
      %v1291 = vadd.f32 0.0, %v1290
      %v1292 = vpop.f32.mrf.mxu0
      %v1293 = vadd.f32 0.0, %v1292
      %v1294 = vpop.f32.mrf.mxu0
      %v1295 = vadd.f32 0.0, %v1294
      %v1296 = vpop.f32.mrf.mxu0
      %v1297 = vadd.f32 0.0, %v1296
      %1298 = vmatprep.mubr.bf16.mxu0 %v583
      %1299 = vmatmul.mubr.bf16.gmra.mxu0 %v582
      %v1300 = vpop.f32.mrf.mxu0
      %v1301 = vadd.f32 0.0, %v1300
      %v1302 = vpop.f32.mrf.mxu0
      %v1303 = vadd.f32 0.0, %v1302
      %v1304 = vpop.f32.mrf.mxu0
      %v1305 = vadd.f32 0.0, %v1304
      %v1306 = vpop.f32.mrf.mxu0
      %v1307 = vadd.f32 0.0, %v1306
      %1308 = vmatprep.mubr.bf16.mxu0 %v587
      %1309 = vmatmul.mubr.bf16.gmra.mxu0 %v586
      %v1310 = vpop.f32.mrf.mxu0
      %v1311 = vadd.f32 0.0, %v1310
      %v1312 = vpop.f32.mrf.mxu0
      %v1313 = vadd.f32 0.0, %v1312
      %v1314 = vpop.f32.mrf.mxu0
      %v1315 = vadd.f32 0.0, %v1314
      %v1316 = vpop.f32.mrf.mxu0
      %v1317 = vadd.f32 0.0, %v1316
      %1318 = vdwg.mxu0
      %1319 = vmatprep.subr.bf16.mxu0 %v1083
      %1320 = vmatpush1.bf16.msra.mxu0 %v1082
      %1321 = vmatprep.subr.bf16.mxu0 %v1079
      %1322 = vmatpush1.bf16.msra.mxu0 %v1078
      %1323 = vmatprep.subr.bf16.mxu0 %v1075
      %1324 = vmatpush1.bf16.msra.mxu0 %v1074
      %1325 = vmatprep.subr.bf16.mxu0 %v1071
      %1326 = vmatpush1.bf16.msra.mxu0 %v1070
      %1327 = vmatprep.subr.bf16.mxu0 %v1067
      %1328 = vmatpush1.bf16.msra.mxu0 %v1066
      %1329 = vmatprep.subr.bf16.mxu0 %v1063
      %1330 = vmatpush1.bf16.msra.mxu0 %v1062
      %1331 = vmatprep.subr.bf16.mxu0 %v1059
      %1332 = vmatpush1.bf16.msra.mxu0 %v1058
      %1333 = vmatprep.subr.bf16.mxu0 %v1055
      %1334 = vmatpush1.bf16.msra.mxu0 %v1054
      %1335 = vmatprep.subr.bf16.mxu0 %v1115
      %1336 = vmatpush2.bf16.msra.mxu0 %v1114
      %1337 = vmatprep.subr.bf16.mxu0 %v1111
      %1338 = vmatpush2.bf16.msra.mxu0 %v1110
      %1339 = vmatprep.subr.bf16.mxu0 %v1107
      %1340 = vmatpush2.bf16.msra.mxu0 %v1106
      %1341 = vmatprep.subr.bf16.mxu0 %v1103
      %1342 = vmatpush2.bf16.msra.mxu0 %v1102
      %1343 = vmatprep.subr.bf16.mxu0 %v1099
      %1344 = vmatpush2.bf16.msra.mxu0 %v1098
      %1345 = vmatprep.subr.bf16.mxu0 %v1095
      %1346 = vmatpush2.bf16.msra.mxu0 %v1094
      %1347 = vmatprep.subr.bf16.mxu0 %v1091
      %1348 = vmatpush2.bf16.msra.mxu0 %v1090
      %1349 = vmatprep.subr.bf16.mxu0 %v1087
      %1350 = vmatpush2.bf16.msra.mxu0 %v1086
      %1351 = vmatprep.mubr.bf16.mxu0 %v577
      %1352 = vmatmul.mubr.bf16.gmra.mxu0 %v576
      %v1353 = vpop.f32.mrf.mxu0
      %v1354 = vadd.f32 %v1281, %v1353
      %v1355 = vpop.f32.mrf.mxu0
      %v1356 = vadd.f32 %v1283, %v1355
      %v1357 = vpop.f32.mrf.mxu0
      %v1358 = vadd.f32 %v1285, %v1357
      %v1359 = vpop.f32.mrf.mxu0
      %v1360 = vadd.f32 %v1287, %v1359
      %1361 = vmatprep.mubr.bf16.mxu0 %v581
      %1362 = vmatmul.mubr.bf16.gmra.mxu0 %v580
      %v1363 = vpop.f32.mrf.mxu0
      %v1364 = vadd.f32 %v1291, %v1363
      %v1365 = vpop.f32.mrf.mxu0
      %v1366 = vadd.f32 %v1293, %v1365
      %v1367 = vpop.f32.mrf.mxu0
      %v1368 = vadd.f32 %v1295, %v1367
      %v1369 = vpop.f32.mrf.mxu0
      %v1370 = vadd.f32 %v1297, %v1369
      %1371 = vmatprep.mubr.bf16.mxu0 %v585
      %1372 = vmatmul.mubr.bf16.gmra.mxu0 %v584
      %v1373 = vpop.f32.mrf.mxu0
      %v1374 = vadd.f32 %v1301, %v1373
      %v1375 = vpop.f32.mrf.mxu0
      %v1376 = vadd.f32 %v1303, %v1375
      %v1377 = vpop.f32.mrf.mxu0
      %v1378 = vadd.f32 %v1305, %v1377
      %v1379 = vpop.f32.mrf.mxu0
      %v1380 = vadd.f32 %v1307, %v1379
      %1381 = vmatprep.mubr.bf16.mxu0 %v589
      %1382 = vmatmul.mubr.bf16.gmra.mxu0 %v588
      %v1383 = vpop.f32.mrf.mxu0
      %v1384 = vadd.f32 %v1311, %v1383
      %v1385 = vpop.f32.mrf.mxu0
      %v1386 = vadd.f32 %v1313, %v1385
      %v1387 = vpop.f32.mrf.mxu0
      %v1388 = vadd.f32 %v1315, %v1387
      %v1389 = vpop.f32.mrf.mxu0
      %v1390 = vadd.f32 %v1317, %v1389
      %1391 = vdwg.mxu0
      %1392 = vmatprep.subr.bf16.mxu0 %v1021
      %1393 = vmatpush1.bf16.msra.mxu0 %v1020
      %1394 = vmatprep.subr.bf16.mxu0 %v1017
      %1395 = vmatpush1.bf16.msra.mxu0 %v1016
      %1396 = vmatprep.subr.bf16.mxu0 %v1013
      %1397 = vmatpush1.bf16.msra.mxu0 %v1012
      %1398 = vmatprep.subr.bf16.mxu0 %v1009
      %1399 = vmatpush1.bf16.msra.mxu0 %v1008
      %1400 = vmatprep.subr.bf16.mxu0 %v1005
      %1401 = vmatpush1.bf16.msra.mxu0 %v1004
      %1402 = vmatprep.subr.bf16.mxu0 %v1001
      %1403 = vmatpush1.bf16.msra.mxu0 %v1000
      %1404 = vmatprep.subr.bf16.mxu0 %v997
      %1405 = vmatpush1.bf16.msra.mxu0 %v996
      %1406 = vmatprep.subr.bf16.mxu0 %v993
      %1407 = vmatpush1.bf16.msra.mxu0 %v992
      %1408 = vmatprep.subr.bf16.mxu0 %v1053
      %1409 = vmatpush2.bf16.msra.mxu0 %v1052
      %1410 = vmatprep.subr.bf16.mxu0 %v1049
      %1411 = vmatpush2.bf16.msra.mxu0 %v1048
      %1412 = vmatprep.subr.bf16.mxu0 %v1045
      %1413 = vmatpush2.bf16.msra.mxu0 %v1044
      %1414 = vmatprep.subr.bf16.mxu0 %v1041
      %1415 = vmatpush2.bf16.msra.mxu0 %v1040
      %1416 = vmatprep.subr.bf16.mxu0 %v1037
      %1417 = vmatpush2.bf16.msra.mxu0 %v1036
      %1418 = vmatprep.subr.bf16.mxu0 %v1033
      %1419 = vmatpush2.bf16.msra.mxu0 %v1032
      %1420 = vmatprep.subr.bf16.mxu0 %v1029
      %1421 = vmatpush2.bf16.msra.mxu0 %v1028
      %1422 = vmatprep.subr.bf16.mxu0 %v1025
      %1423 = vmatpush2.bf16.msra.mxu0 %v1024
      %1424 = vmatprep.mubr.bf16.mxu0 %v575
      %1425 = vmatmul.mubr.bf16.gmra.mxu0 %v574
      %v1426 = vpop.f32.mrf.mxu0
      %v1427 = vadd.f32 0.0, %v1426
      %v1428 = vpop.f32.mrf.mxu0
      %v1429 = vadd.f32 0.0, %v1428
      %v1430 = vpop.f32.mrf.mxu0
      %v1431 = vadd.f32 0.0, %v1430
      %v1432 = vpop.f32.mrf.mxu0
      %v1433 = vadd.f32 0.0, %v1432
      %1434 = vmatprep.mubr.bf16.mxu0 %v579
      %1435 = vmatmul.mubr.bf16.gmra.mxu0 %v578
      %v1436 = vpop.f32.mrf.mxu0
      %v1437 = vadd.f32 0.0, %v1436
      %v1438 = vpop.f32.mrf.mxu0
      %v1439 = vadd.f32 0.0, %v1438
      %v1440 = vpop.f32.mrf.mxu0
      %v1441 = vadd.f32 0.0, %v1440
      %v1442 = vpop.f32.mrf.mxu0
      %v1443 = vadd.f32 0.0, %v1442
      %1444 = vmatprep.mubr.bf16.mxu0 %v583
      %1445 = vmatmul.mubr.bf16.gmra.mxu0 %v582
      %v1446 = vpop.f32.mrf.mxu0
      %v1447 = vadd.f32 0.0, %v1446
      %v1448 = vpop.f32.mrf.mxu0
      %v1449 = vadd.f32 0.0, %v1448
      %v1450 = vpop.f32.mrf.mxu0
      %v1451 = vadd.f32 0.0, %v1450
      %v1452 = vpop.f32.mrf.mxu0
      %v1453 = vadd.f32 0.0, %v1452
      %1454 = vmatprep.mubr.bf16.mxu0 %v587
      %1455 = vmatmul.mubr.bf16.gmra.mxu0 %v586
      %v1456 = vpop.f32.mrf.mxu0
      %v1457 = vadd.f32 0.0, %v1456
      %v1458 = vpop.f32.mrf.mxu0
      %v1459 = vadd.f32 0.0, %v1458
      %v1460 = vpop.f32.mrf.mxu0
      %v1461 = vadd.f32 0.0, %v1460
      %v1462 = vpop.f32.mrf.mxu0
      %v1463 = vadd.f32 0.0, %v1462
      %1464 = vdwg.mxu0
      %1465 = vmatprep.subr.bf16.mxu0 %v1085
      %1466 = vmatpush1.bf16.msra.mxu0 %v1084
      %1467 = vmatprep.subr.bf16.mxu0 %v1081
      %1468 = vmatpush1.bf16.msra.mxu0 %v1080
      %1469 = vmatprep.subr.bf16.mxu0 %v1077
      %1470 = vmatpush1.bf16.msra.mxu0 %v1076
      %1471 = vmatprep.subr.bf16.mxu0 %v1073
      %1472 = vmatpush1.bf16.msra.mxu0 %v1072
      %1473 = vmatprep.subr.bf16.mxu0 %v1069
      %1474 = vmatpush1.bf16.msra.mxu0 %v1068
      %1475 = vmatprep.subr.bf16.mxu0 %v1065
      %1476 = vmatpush1.bf16.msra.mxu0 %v1064
      %1477 = vmatprep.subr.bf16.mxu0 %v1061
      %1478 = vmatpush1.bf16.msra.mxu0 %v1060
      %1479 = vmatprep.subr.bf16.mxu0 %v1057
      %1480 = vmatpush1.bf16.msra.mxu0 %v1056
      %1481 = vmatprep.subr.bf16.mxu0 %v1117
      %1482 = vmatpush2.bf16.msra.mxu0 %v1116
      %1483 = vmatprep.subr.bf16.mxu0 %v1113
      %1484 = vmatpush2.bf16.msra.mxu0 %v1112
      %1485 = vmatprep.subr.bf16.mxu0 %v1109
      %1486 = vmatpush2.bf16.msra.mxu0 %v1108
      %1487 = vmatprep.subr.bf16.mxu0 %v1105
      %1488 = vmatpush2.bf16.msra.mxu0 %v1104
      %1489 = vmatprep.subr.bf16.mxu0 %v1101
      %1490 = vmatpush2.bf16.msra.mxu0 %v1100
      %1491 = vmatprep.subr.bf16.mxu0 %v1097
      %1492 = vmatpush2.bf16.msra.mxu0 %v1096
      %1493 = vmatprep.subr.bf16.mxu0 %v1093
      %1494 = vmatpush2.bf16.msra.mxu0 %v1092
      %1495 = vmatprep.subr.bf16.mxu0 %v1089
      %1496 = vmatpush2.bf16.msra.mxu0 %v1088
      %1497 = vmatprep.mubr.bf16.mxu0 %v577
      %1498 = vmatmul.mubr.bf16.gmra.mxu0 %v576
      %v1499 = vpop.f32.mrf.mxu0
      %v1500 = vadd.f32 %v1427, %v1499
      %v1501 = vpop.f32.mrf.mxu0
      %v1502 = vadd.f32 %v1429, %v1501
      %v1503 = vpop.f32.mrf.mxu0
      %v1504 = vadd.f32 %v1431, %v1503
      %v1505 = vpop.f32.mrf.mxu0
      %v1506 = vadd.f32 %v1433, %v1505
      %1507 = vmatprep.mubr.bf16.mxu0 %v581
      %1508 = vmatmul.mubr.bf16.gmra.mxu0 %v580
      %v1509 = vpop.f32.mrf.mxu0
      %v1510 = vadd.f32 %v1437, %v1509
      %v1511 = vpop.f32.mrf.mxu0
      %v1512 = vadd.f32 %v1439, %v1511
      %v1513 = vpop.f32.mrf.mxu0
      %v1514 = vadd.f32 %v1441, %v1513
      %v1515 = vpop.f32.mrf.mxu0
      %v1516 = vadd.f32 %v1443, %v1515
      %1517 = vmatprep.mubr.bf16.mxu0 %v585
      %1518 = vmatmul.mubr.bf16.gmra.mxu0 %v584
      %v1519 = vpop.f32.mrf.mxu0
      %v1520 = vadd.f32 %v1447, %v1519
      %v1521 = vpop.f32.mrf.mxu0
      %v1522 = vadd.f32 %v1449, %v1521
      %v1523 = vpop.f32.mrf.mxu0
      %v1524 = vadd.f32 %v1451, %v1523
      %v1525 = vpop.f32.mrf.mxu0
      %v1526 = vadd.f32 %v1453, %v1525
      %1527 = vmatprep.mubr.bf16.mxu0 %v589
      %1528 = vmatmul.mubr.bf16.gmra.mxu0 %v588
      %v1529 = vpop.f32.mrf.mxu0
      %v1530 = vadd.f32 %v1457, %v1529
      %v1531 = vpop.f32.mrf.mxu0
      %v1532 = vadd.f32 %v1459, %v1531
      %v1533 = vpop.f32.mrf.mxu0
      %v1534 = vadd.f32 %v1461, %v1533
      %v1535 = vpop.f32.mrf.mxu0
      %v1536 = vadd.f32 %v1463, %v1535
      %1537 = vdwg.mxu0
      %v1538 = vadd.f32 %v350, %v1354
      %v1539 = vadd.f32 %v351, %v1356
      %v1540 = vadd.f32 %v352, %v1500
      %v1541 = vadd.f32 %v353, %v1502
      %v1542 = vadd.f32 %v354, %v1358
      %v1543 = vadd.f32 %v355, %v1360
      %v1544 = vadd.f32 %v356, %v1504
      %v1545 = vadd.f32 %v357, %v1506
      %v1546 = vadd.f32 %v358, %v1364
      %v1547 = vadd.f32 %v359, %v1366
      %v1548 = vadd.f32 %v360, %v1510
      %v1549 = vadd.f32 %v361, %v1512
      %v1550 = vadd.f32 %v362, %v1368
      %v1551 = vadd.f32 %v363, %v1370
      %v1552 = vadd.f32 %v364, %v1514
      %v1553 = vadd.f32 %v365, %v1516
      %v1554 = vadd.f32 %v366, %v1374
      %v1555 = vadd.f32 %v367, %v1376
      %v1556 = vadd.f32 %v368, %v1520
      %v1557 = vadd.f32 %v369, %v1522
      %v1558 = vadd.f32 %v370, %v1378
      %v1559 = vadd.f32 %v371, %v1380
      %v1560 = vadd.f32 %v372, %v1524
      %v1561 = vadd.f32 %v373, %v1526
      %v1562 = vadd.f32 %v374, %v1384
      %v1563 = vadd.f32 %v375, %v1386
      %v1564 = vadd.f32 %v376, %v1530
      %v1565 = vadd.f32 %v377, %v1532
      %v1566 = vadd.f32 %v378, %v1388
      %v1567 = vadd.f32 %v379, %v1390
      %v1568 = vadd.f32 %v380, %v1534
      %v1569 = vadd.f32 %v381, %v1536
      %v1570 = vld [vmem:[%s273 + $0x20] sm:$0xff]
      %v1571 = vld [vmem:[%s273 + $0x28] sm:$0xff]
      %v1572 = vld [vmem:[%s273 + $0x30] sm:$0xff]
      %v1573 = vld [vmem:[%s273 + $0x38] sm:$0xff]
      %v1574 = vld [vmem:[%s273 + $0x40] sm:$0xff]
      %v1575 = vld [vmem:[%s273 + $0x48] sm:$0xff]
      %v1576 = vld [vmem:[%s273 + $0x50] sm:$0xff]
      %v1577 = vld [vmem:[%s273 + $0x58] sm:$0xff]
      %v1578 = vld [vmem:[%s273 + $0x60] sm:$0xff]
      %v1579 = vld [vmem:[%s273 + $0x68] sm:$0xff]
      %v1580 = vld [vmem:[%s273 + $0x70] sm:$0xff]
      %v1581 = vld [vmem:[%s273 + $0x78] sm:$0xff]
      %v1582 = vld [vmem:[%s273 + $0x80] sm:$0xff]
      %v1583 = vld [vmem:[%s273 + $0x88] sm:$0xff]
      %v1584 = vld [vmem:[%s273 + $0x90] sm:$0xff]
      %v1585 = vld [vmem:[%s273 + $0x98] sm:$0xff]
      %s1586 = scalar_lea.vmem %s278, 1024
      %v1587 = vld [vmem:[%s1586] sm:$0xff]
      %v1588 = vld [vmem:[%s1586 + $0x8] sm:$0xff]
      %v1589 = vld [vmem:[%s1586 + $0x10] sm:$0xff]
      %v1590 = vld [vmem:[%s1586 + $0x18] sm:$0xff]
      %v1591 = vld [vmem:[%s1586 + $0x20] sm:$0xff]
      %v1592 = vld [vmem:[%s1586 + $0x28] sm:$0xff]
      %v1593 = vld [vmem:[%s1586 + $0x30] sm:$0xff]
      %v1594 = vld [vmem:[%s1586 + $0x38] sm:$0xff]
      %v1595 = vld [vmem:[%s1586 + $0x40] sm:$0xff]
      %v1596 = vld [vmem:[%s1586 + $0x48] sm:$0xff]
      %v1597 = vld [vmem:[%s1586 + $0x50] sm:$0xff]
      %v1598 = vld [vmem:[%s1586 + $0x58] sm:$0xff]
      %v1599 = vld [vmem:[%s1586 + $0x60] sm:$0xff]
      %v1600 = vld [vmem:[%s1586 + $0x68] sm:$0xff]
      %v1601 = vld [vmem:[%s1586 + $0x70] sm:$0xff]
      %v1602 = vld [vmem:[%s1586 + $0x78] sm:$0xff]
      %v1603 = vld [vmem:[%s1586 + $0x80] sm:$0xff]
      %v1604 = vld [vmem:[%s1586 + $0x88] sm:$0xff]
      %v1605 = vld [vmem:[%s1586 + $0x90] sm:$0xff]
      %v1606 = vld [vmem:[%s1586 + $0x98] sm:$0xff]
      %v1607 = vld [vmem:[%s1586 + $0xa0] sm:$0xff]
      %v1608 = vld [vmem:[%s1586 + $0xa8] sm:$0xff]
      %v1609 = vld [vmem:[%s1586 + $0xb0] sm:$0xff]
      %v1610 = vld [vmem:[%s1586 + $0xb8] sm:$0xff]
      %v1611 = vld [vmem:[%s1586 + $0xc0] sm:$0xff]
      %v1612 = vld [vmem:[%s1586 + $0xc8] sm:$0xff]
      %v1613 = vld [vmem:[%s1586 + $0xd0] sm:$0xff]
      %v1614 = vld [vmem:[%s1586 + $0xd8] sm:$0xff]
      %v1615 = vld [vmem:[%s1586 + $0xe0] sm:$0xff]
      %v1616 = vld [vmem:[%s1586 + $0xe8] sm:$0xff]
      %v1617 = vld [vmem:[%s1586 + $0xf0] sm:$0xff]
      %v1618 = vld [vmem:[%s1586 + $0xf8] sm:$0xff]
      %v1619 = vld [vmem:[%s1586 + $0x100] sm:$0xff]
      %v1620 = vld [vmem:[%s1586 + $0x108] sm:$0xff]
      %v1621 = vld [vmem:[%s1586 + $0x110] sm:$0xff]
      %v1622 = vld [vmem:[%s1586 + $0x118] sm:$0xff]
      %v1623 = vld [vmem:[%s1586 + $0x120] sm:$0xff]
      %v1624 = vld [vmem:[%s1586 + $0x128] sm:$0xff]
      %v1625 = vld [vmem:[%s1586 + $0x130] sm:$0xff]
      %v1626 = vld [vmem:[%s1586 + $0x138] sm:$0xff]
      %v1627 = vld [vmem:[%s1586 + $0x140] sm:$0xff]
      %v1628 = vld [vmem:[%s1586 + $0x148] sm:$0xff]
      %v1629 = vld [vmem:[%s1586 + $0x150] sm:$0xff]
      %v1630 = vld [vmem:[%s1586 + $0x158] sm:$0xff]
      %v1631 = vld [vmem:[%s1586 + $0x160] sm:$0xff]
      %v1632 = vld [vmem:[%s1586 + $0x168] sm:$0xff]
      %v1633 = vld [vmem:[%s1586 + $0x170] sm:$0xff]
      %v1634 = vld [vmem:[%s1586 + $0x178] sm:$0xff]
      %v1635 = vld [vmem:[%s1586 + $0x180] sm:$0xff]
      %v1636 = vld [vmem:[%s1586 + $0x188] sm:$0xff]
      %v1637 = vld [vmem:[%s1586 + $0x190] sm:$0xff]
      %v1638 = vld [vmem:[%s1586 + $0x198] sm:$0xff]
      %v1639 = vld [vmem:[%s1586 + $0x1a0] sm:$0xff]
      %v1640 = vld [vmem:[%s1586 + $0x1a8] sm:$0xff]
      %v1641 = vld [vmem:[%s1586 + $0x1b0] sm:$0xff]
      %v1642 = vld [vmem:[%s1586 + $0x1b8] sm:$0xff]
      %v1643 = vld [vmem:[%s1586 + $0x1c0] sm:$0xff]
      %v1644 = vld [vmem:[%s1586 + $0x1c8] sm:$0xff]
      %v1645 = vld [vmem:[%s1586 + $0x1d0] sm:$0xff]
      %v1646 = vld [vmem:[%s1586 + $0x1d8] sm:$0xff]
      %v1647 = vld [vmem:[%s1586 + $0x1e0] sm:$0xff]
      %v1648 = vld [vmem:[%s1586 + $0x1e8] sm:$0xff]
      %v1649 = vld [vmem:[%s1586 + $0x1f0] sm:$0xff]
      %v1650 = vld [vmem:[%s1586 + $0x1f8] sm:$0xff]
      %v1651 = vld [vmem:[%s1586 + $0x200] sm:$0xff]
      %v1652 = vld [vmem:[%s1586 + $0x208] sm:$0xff]
      %v1653 = vld [vmem:[%s1586 + $0x210] sm:$0xff]
      %v1654 = vld [vmem:[%s1586 + $0x218] sm:$0xff]
      %v1655 = vld [vmem:[%s1586 + $0x220] sm:$0xff]
      %v1656 = vld [vmem:[%s1586 + $0x228] sm:$0xff]
      %v1657 = vld [vmem:[%s1586 + $0x230] sm:$0xff]
      %v1658 = vld [vmem:[%s1586 + $0x238] sm:$0xff]
      %v1659 = vld [vmem:[%s1586 + $0x240] sm:$0xff]
      %v1660 = vld [vmem:[%s1586 + $0x248] sm:$0xff]
      %v1661 = vld [vmem:[%s1586 + $0x250] sm:$0xff]
      %v1662 = vld [vmem:[%s1586 + $0x258] sm:$0xff]
      %v1663 = vld [vmem:[%s1586 + $0x260] sm:$0xff]
      %v1664 = vld [vmem:[%s1586 + $0x268] sm:$0xff]
      %v1665 = vld [vmem:[%s1586 + $0x270] sm:$0xff]
      %v1666 = vld [vmem:[%s1586 + $0x278] sm:$0xff]
      %v1667 = vld [vmem:[%s1586 + $0x280] sm:$0xff]
      %v1668 = vld [vmem:[%s1586 + $0x288] sm:$0xff]
      %v1669 = vld [vmem:[%s1586 + $0x290] sm:$0xff]
      %v1670 = vld [vmem:[%s1586 + $0x298] sm:$0xff]
      %v1671 = vld [vmem:[%s1586 + $0x2a0] sm:$0xff]
      %v1672 = vld [vmem:[%s1586 + $0x2a8] sm:$0xff]
      %v1673 = vld [vmem:[%s1586 + $0x2b0] sm:$0xff]
      %v1674 = vld [vmem:[%s1586 + $0x2b8] sm:$0xff]
      %v1675 = vld [vmem:[%s1586 + $0x2c0] sm:$0xff]
      %v1676 = vld [vmem:[%s1586 + $0x2c8] sm:$0xff]
      %v1677 = vld [vmem:[%s1586 + $0x2d0] sm:$0xff]
      %v1678 = vld [vmem:[%s1586 + $0x2d8] sm:$0xff]
      %v1679 = vld [vmem:[%s1586 + $0x2e0] sm:$0xff]
      %v1680 = vld [vmem:[%s1586 + $0x2e8] sm:$0xff]
      %v1681 = vld [vmem:[%s1586 + $0x2f0] sm:$0xff]
      %v1682 = vld [vmem:[%s1586 + $0x2f8] sm:$0xff]
      %v1683 = vld [vmem:[%s1586 + $0x300] sm:$0xff]
      %v1684 = vld [vmem:[%s1586 + $0x308] sm:$0xff]
      %v1685 = vld [vmem:[%s1586 + $0x310] sm:$0xff]
      %v1686 = vld [vmem:[%s1586 + $0x318] sm:$0xff]
      %v1687 = vld [vmem:[%s1586 + $0x320] sm:$0xff]
      %v1688 = vld [vmem:[%s1586 + $0x328] sm:$0xff]
      %v1689 = vld [vmem:[%s1586 + $0x330] sm:$0xff]
      %v1690 = vld [vmem:[%s1586 + $0x338] sm:$0xff]
      %v1691 = vld [vmem:[%s1586 + $0x340] sm:$0xff]
      %v1692 = vld [vmem:[%s1586 + $0x348] sm:$0xff]
      %v1693 = vld [vmem:[%s1586 + $0x350] sm:$0xff]
      %v1694 = vld [vmem:[%s1586 + $0x358] sm:$0xff]
      %v1695 = vld [vmem:[%s1586 + $0x360] sm:$0xff]
      %v1696 = vld [vmem:[%s1586 + $0x368] sm:$0xff]
      %v1697 = vld [vmem:[%s1586 + $0x370] sm:$0xff]
      %v1698 = vld [vmem:[%s1586 + $0x378] sm:$0xff]
      %v1699 = vld [vmem:[%s1586 + $0x380] sm:$0xff]
      %v1700 = vld [vmem:[%s1586 + $0x388] sm:$0xff]
      %v1701 = vld [vmem:[%s1586 + $0x390] sm:$0xff]
      %v1702 = vld [vmem:[%s1586 + $0x398] sm:$0xff]
      %v1703 = vld [vmem:[%s1586 + $0x3a0] sm:$0xff]
      %v1704 = vld [vmem:[%s1586 + $0x3a8] sm:$0xff]
      %v1705 = vld [vmem:[%s1586 + $0x3b0] sm:$0xff]
      %v1706 = vld [vmem:[%s1586 + $0x3b8] sm:$0xff]
      %v1707 = vld [vmem:[%s1586 + $0x3c0] sm:$0xff]
      %v1708 = vld [vmem:[%s1586 + $0x3c8] sm:$0xff]
      %v1709 = vld [vmem:[%s1586 + $0x3d0] sm:$0xff]
      %v1710 = vld [vmem:[%s1586 + $0x3d8] sm:$0xff]
      %v1711 = vld [vmem:[%s1586 + $0x3e0] sm:$0xff]
      %v1712 = vld [vmem:[%s1586 + $0x3e8] sm:$0xff]
      %v1713 = vld [vmem:[%s1586 + $0x3f0] sm:$0xff]
      %v1714 = vld [vmem:[%s1586 + $0x3f8] sm:$0xff]
      %v1731 = vunpack.c.l.b16 %v1570
      %v1732 = vunpack.c.h.b16 %v1570
      %v1733 = vunpack.c.l.b16 %v1571
      %v1734 = vunpack.c.h.b16 %v1571
      %v1735 = vunpack.c.l.b16 %v1572
      %v1736 = vunpack.c.h.b16 %v1572
      %v1737 = vunpack.c.l.b16 %v1573
      %v1738 = vunpack.c.h.b16 %v1573
      %v1739 = vunpack.c.l.b16 %v1574
      %v1740 = vunpack.c.h.b16 %v1574
      %v1741 = vunpack.c.l.b16 %v1575
      %v1742 = vunpack.c.h.b16 %v1575
      %v1743 = vunpack.c.l.b16 %v1576
      %v1744 = vunpack.c.h.b16 %v1576
      %v1745 = vunpack.c.l.b16 %v1577
      %v1746 = vunpack.c.h.b16 %v1577
      %v1747 = vunpack.c.l.b16 %v1578
      %v1748 = vunpack.c.h.b16 %v1578
      %v1749 = vunpack.c.l.b16 %v1579
      %v1750 = vunpack.c.h.b16 %v1579
      %v1751 = vunpack.c.l.b16 %v1580
      %v1752 = vunpack.c.h.b16 %v1580
      %v1753 = vunpack.c.l.b16 %v1581
      %v1754 = vunpack.c.h.b16 %v1581
      %v1755 = vunpack.c.l.b16 %v1582
      %v1756 = vunpack.c.h.b16 %v1582
      %v1757 = vunpack.c.l.b16 %v1583
      %v1758 = vunpack.c.h.b16 %v1583
      %v1759 = vunpack.c.l.b16 %v1584
      %v1760 = vunpack.c.h.b16 %v1584
      %v1761 = vunpack.c.l.b16 %v1585
      %v1762 = vunpack.c.h.b16 %v1585
      %v1763 = vpack.c.b16 %v1735, %v1731
      %v1764 = vpack.c.b16 %v1736, %v1732
      %v1765 = vpack.c.b16 %v1737, %v1733
      %v1766 = vpack.c.b16 %v1738, %v1734
      %v1767 = vpack.c.b16 %v1743, %v1739
      %v1768 = vpack.c.b16 %v1744, %v1740
      %v1769 = vpack.c.b16 %v1745, %v1741
      %v1770 = vpack.c.b16 %v1746, %v1742
      %v1771 = vpack.c.b16 %v1751, %v1747
      %v1772 = vpack.c.b16 %v1752, %v1748
      %v1773 = vpack.c.b16 %v1753, %v1749
      %v1774 = vpack.c.b16 %v1754, %v1750
      %v1775 = vpack.c.b16 %v1759, %v1755
      %v1776 = vpack.c.b16 %v1760, %v1756
      %v1777 = vpack.c.b16 %v1761, %v1757
      %v1778 = vpack.c.b16 %v1762, %v1758
      %v1923 = vunpack.c.l.b16 %v1587
      %v1924 = vunpack.c.h.b16 %v1587
      %v1925 = vunpack.c.l.b16 %v1588
      %v1926 = vunpack.c.h.b16 %v1588
      %v1927 = vunpack.c.l.b16 %v1589
      %v1928 = vunpack.c.h.b16 %v1589
      %v1929 = vunpack.c.l.b16 %v1590
      %v1930 = vunpack.c.h.b16 %v1590
      %v1931 = vunpack.c.l.b16 %v1591
      %v1932 = vunpack.c.h.b16 %v1591
      %v1933 = vunpack.c.l.b16 %v1592
      %v1934 = vunpack.c.h.b16 %v1592
      %v1935 = vunpack.c.l.b16 %v1593
      %v1936 = vunpack.c.h.b16 %v1593
      %v1937 = vunpack.c.l.b16 %v1594
      %v1938 = vunpack.c.h.b16 %v1594
      %v1939 = vunpack.c.l.b16 %v1595
      %v1940 = vunpack.c.h.b16 %v1595
      %v1941 = vunpack.c.l.b16 %v1596
      %v1942 = vunpack.c.h.b16 %v1596
      %v1943 = vunpack.c.l.b16 %v1597
      %v1944 = vunpack.c.h.b16 %v1597
      %v1945 = vunpack.c.l.b16 %v1598
      %v1946 = vunpack.c.h.b16 %v1598
      %v1947 = vunpack.c.l.b16 %v1599
      %v1948 = vunpack.c.h.b16 %v1599
      %v1949 = vunpack.c.l.b16 %v1600
      %v1950 = vunpack.c.h.b16 %v1600
      %v1951 = vunpack.c.l.b16 %v1601
      %v1952 = vunpack.c.h.b16 %v1601
      %v1953 = vunpack.c.l.b16 %v1602
      %v1954 = vunpack.c.h.b16 %v1602
      %v1955 = vunpack.c.l.b16 %v1603
      %v1956 = vunpack.c.h.b16 %v1603
      %v1957 = vunpack.c.l.b16 %v1604
      %v1958 = vunpack.c.h.b16 %v1604
      %v1959 = vunpack.c.l.b16 %v1605
      %v1960 = vunpack.c.h.b16 %v1605
      %v1961 = vunpack.c.l.b16 %v1606
      %v1962 = vunpack.c.h.b16 %v1606
      %v1963 = vunpack.c.l.b16 %v1607
      %v1964 = vunpack.c.h.b16 %v1607
      %v1965 = vunpack.c.l.b16 %v1608
      %v1966 = vunpack.c.h.b16 %v1608
      %v1967 = vunpack.c.l.b16 %v1609
      %v1968 = vunpack.c.h.b16 %v1609
      %v1969 = vunpack.c.l.b16 %v1610
      %v1970 = vunpack.c.h.b16 %v1610
      %v1971 = vunpack.c.l.b16 %v1611
      %v1972 = vunpack.c.h.b16 %v1611
      %v1973 = vunpack.c.l.b16 %v1612
      %v1974 = vunpack.c.h.b16 %v1612
      %v1975 = vunpack.c.l.b16 %v1613
      %v1976 = vunpack.c.h.b16 %v1613
      %v1977 = vunpack.c.l.b16 %v1614
      %v1978 = vunpack.c.h.b16 %v1614
      %v1979 = vunpack.c.l.b16 %v1615
      %v1980 = vunpack.c.h.b16 %v1615
      %v1981 = vunpack.c.l.b16 %v1616
      %v1982 = vunpack.c.h.b16 %v1616
      %v1983 = vunpack.c.l.b16 %v1617
      %v1984 = vunpack.c.h.b16 %v1617
      %v1985 = vunpack.c.l.b16 %v1618
      %v1986 = vunpack.c.h.b16 %v1618
      %v1987 = vunpack.c.l.b16 %v1619
      %v1988 = vunpack.c.h.b16 %v1619
      %v1989 = vunpack.c.l.b16 %v1620
      %v1990 = vunpack.c.h.b16 %v1620
      %v1991 = vunpack.c.l.b16 %v1621
      %v1992 = vunpack.c.h.b16 %v1621
      %v1993 = vunpack.c.l.b16 %v1622
      %v1994 = vunpack.c.h.b16 %v1622
      %v1995 = vunpack.c.l.b16 %v1623
      %v1996 = vunpack.c.h.b16 %v1623
      %v1997 = vunpack.c.l.b16 %v1624
      %v1998 = vunpack.c.h.b16 %v1624
      %v1999 = vunpack.c.l.b16 %v1625
      %v2000 = vunpack.c.h.b16 %v1625
      %v2001 = vunpack.c.l.b16 %v1626
      %v2002 = vunpack.c.h.b16 %v1626
      %v2003 = vunpack.c.l.b16 %v1627
      %v2004 = vunpack.c.h.b16 %v1627
      %v2005 = vunpack.c.l.b16 %v1628
      %v2006 = vunpack.c.h.b16 %v1628
      %v2007 = vunpack.c.l.b16 %v1629
      %v2008 = vunpack.c.h.b16 %v1629
      %v2009 = vunpack.c.l.b16 %v1630
      %v2010 = vunpack.c.h.b16 %v1630
      %v2011 = vunpack.c.l.b16 %v1631
      %v2012 = vunpack.c.h.b16 %v1631
      %v2013 = vunpack.c.l.b16 %v1632
      %v2014 = vunpack.c.h.b16 %v1632
      %v2015 = vunpack.c.l.b16 %v1633
      %v2016 = vunpack.c.h.b16 %v1633
      %v2017 = vunpack.c.l.b16 %v1634
      %v2018 = vunpack.c.h.b16 %v1634
      %v2019 = vunpack.c.l.b16 %v1635
      %v2020 = vunpack.c.h.b16 %v1635
      %v2021 = vunpack.c.l.b16 %v1636
      %v2022 = vunpack.c.h.b16 %v1636
      %v2023 = vunpack.c.l.b16 %v1637
      %v2024 = vunpack.c.h.b16 %v1637
      %v2025 = vunpack.c.l.b16 %v1638
      %v2026 = vunpack.c.h.b16 %v1638
      %v2027 = vunpack.c.l.b16 %v1639
      %v2028 = vunpack.c.h.b16 %v1639
      %v2029 = vunpack.c.l.b16 %v1640
      %v2030 = vunpack.c.h.b16 %v1640
      %v2031 = vunpack.c.l.b16 %v1641
      %v2032 = vunpack.c.h.b16 %v1641
      %v2033 = vunpack.c.l.b16 %v1642
      %v2034 = vunpack.c.h.b16 %v1642
      %v2035 = vunpack.c.l.b16 %v1643
      %v2036 = vunpack.c.h.b16 %v1643
      %v2037 = vunpack.c.l.b16 %v1644
      %v2038 = vunpack.c.h.b16 %v1644
      %v2039 = vunpack.c.l.b16 %v1645
      %v2040 = vunpack.c.h.b16 %v1645
      %v2041 = vunpack.c.l.b16 %v1646
      %v2042 = vunpack.c.h.b16 %v1646
      %v2043 = vunpack.c.l.b16 %v1647
      %v2044 = vunpack.c.h.b16 %v1647
      %v2045 = vunpack.c.l.b16 %v1648
      %v2046 = vunpack.c.h.b16 %v1648
      %v2047 = vunpack.c.l.b16 %v1649
      %v2048 = vunpack.c.h.b16 %v1649
      %v2049 = vunpack.c.l.b16 %v1650
      %v2050 = vunpack.c.h.b16 %v1650
      %v2051 = vunpack.c.l.b16 %v1651
      %v2052 = vunpack.c.h.b16 %v1651
      %v2053 = vunpack.c.l.b16 %v1652
      %v2054 = vunpack.c.h.b16 %v1652
      %v2055 = vunpack.c.l.b16 %v1653
      %v2056 = vunpack.c.h.b16 %v1653
      %v2057 = vunpack.c.l.b16 %v1654
      %v2058 = vunpack.c.h.b16 %v1654
      %v2059 = vunpack.c.l.b16 %v1655
      %v2060 = vunpack.c.h.b16 %v1655
      %v2061 = vunpack.c.l.b16 %v1656
      %v2062 = vunpack.c.h.b16 %v1656
      %v2063 = vunpack.c.l.b16 %v1657
      %v2064 = vunpack.c.h.b16 %v1657
      %v2065 = vunpack.c.l.b16 %v1658
      %v2066 = vunpack.c.h.b16 %v1658
      %v2067 = vunpack.c.l.b16 %v1659
      %v2068 = vunpack.c.h.b16 %v1659
      %v2069 = vunpack.c.l.b16 %v1660
      %v2070 = vunpack.c.h.b16 %v1660
      %v2071 = vunpack.c.l.b16 %v1661
      %v2072 = vunpack.c.h.b16 %v1661
      %v2073 = vunpack.c.l.b16 %v1662
      %v2074 = vunpack.c.h.b16 %v1662
      %v2075 = vunpack.c.l.b16 %v1663
      %v2076 = vunpack.c.h.b16 %v1663
      %v2077 = vunpack.c.l.b16 %v1664
      %v2078 = vunpack.c.h.b16 %v1664
      %v2079 = vunpack.c.l.b16 %v1665
      %v2080 = vunpack.c.h.b16 %v1665
      %v2081 = vunpack.c.l.b16 %v1666
      %v2082 = vunpack.c.h.b16 %v1666
      %v2083 = vunpack.c.l.b16 %v1667
      %v2084 = vunpack.c.h.b16 %v1667
      %v2085 = vunpack.c.l.b16 %v1668
      %v2086 = vunpack.c.h.b16 %v1668
      %v2087 = vunpack.c.l.b16 %v1669
      %v2088 = vunpack.c.h.b16 %v1669
      %v2089 = vunpack.c.l.b16 %v1670
      %v2090 = vunpack.c.h.b16 %v1670
      %v2091 = vunpack.c.l.b16 %v1671
      %v2092 = vunpack.c.h.b16 %v1671
      %v2093 = vunpack.c.l.b16 %v1672
      %v2094 = vunpack.c.h.b16 %v1672
      %v2095 = vunpack.c.l.b16 %v1673
      %v2096 = vunpack.c.h.b16 %v1673
      %v2097 = vunpack.c.l.b16 %v1674
      %v2098 = vunpack.c.h.b16 %v1674
      %v2099 = vunpack.c.l.b16 %v1675
      %v2100 = vunpack.c.h.b16 %v1675
      %v2101 = vunpack.c.l.b16 %v1676
      %v2102 = vunpack.c.h.b16 %v1676
      %v2103 = vunpack.c.l.b16 %v1677
      %v2104 = vunpack.c.h.b16 %v1677
      %v2105 = vunpack.c.l.b16 %v1678
      %v2106 = vunpack.c.h.b16 %v1678
      %v2107 = vunpack.c.l.b16 %v1679
      %v2108 = vunpack.c.h.b16 %v1679
      %v2109 = vunpack.c.l.b16 %v1680
      %v2110 = vunpack.c.h.b16 %v1680
      %v2111 = vunpack.c.l.b16 %v1681
      %v2112 = vunpack.c.h.b16 %v1681
      %v2113 = vunpack.c.l.b16 %v1682
      %v2114 = vunpack.c.h.b16 %v1682
      %v2115 = vunpack.c.l.b16 %v1683
      %v2116 = vunpack.c.h.b16 %v1683
      %v2117 = vunpack.c.l.b16 %v1684
      %v2118 = vunpack.c.h.b16 %v1684
      %v2119 = vunpack.c.l.b16 %v1685
      %v2120 = vunpack.c.h.b16 %v1685
      %v2121 = vunpack.c.l.b16 %v1686
      %v2122 = vunpack.c.h.b16 %v1686
      %v2123 = vunpack.c.l.b16 %v1687
      %v2124 = vunpack.c.h.b16 %v1687
      %v2125 = vunpack.c.l.b16 %v1688
      %v2126 = vunpack.c.h.b16 %v1688
      %v2127 = vunpack.c.l.b16 %v1689
      %v2128 = vunpack.c.h.b16 %v1689
      %v2129 = vunpack.c.l.b16 %v1690
      %v2130 = vunpack.c.h.b16 %v1690
      %v2131 = vunpack.c.l.b16 %v1691
      %v2132 = vunpack.c.h.b16 %v1691
      %v2133 = vunpack.c.l.b16 %v1692
      %v2134 = vunpack.c.h.b16 %v1692
      %v2135 = vunpack.c.l.b16 %v1693
      %v2136 = vunpack.c.h.b16 %v1693
      %v2137 = vunpack.c.l.b16 %v1694
      %v2138 = vunpack.c.h.b16 %v1694
      %v2139 = vunpack.c.l.b16 %v1695
      %v2140 = vunpack.c.h.b16 %v1695
      %v2141 = vunpack.c.l.b16 %v1696
      %v2142 = vunpack.c.h.b16 %v1696
      %v2143 = vunpack.c.l.b16 %v1697
      %v2144 = vunpack.c.h.b16 %v1697
      %v2145 = vunpack.c.l.b16 %v1698
      %v2146 = vunpack.c.h.b16 %v1698
      %v2147 = vunpack.c.l.b16 %v1699
      %v2148 = vunpack.c.h.b16 %v1699
      %v2149 = vunpack.c.l.b16 %v1700
      %v2150 = vunpack.c.h.b16 %v1700
      %v2151 = vunpack.c.l.b16 %v1701
      %v2152 = vunpack.c.h.b16 %v1701
      %v2153 = vunpack.c.l.b16 %v1702
      %v2154 = vunpack.c.h.b16 %v1702
      %v2155 = vunpack.c.l.b16 %v1703
      %v2156 = vunpack.c.h.b16 %v1703
      %v2157 = vunpack.c.l.b16 %v1704
      %v2158 = vunpack.c.h.b16 %v1704
      %v2159 = vunpack.c.l.b16 %v1705
      %v2160 = vunpack.c.h.b16 %v1705
      %v2161 = vunpack.c.l.b16 %v1706
      %v2162 = vunpack.c.h.b16 %v1706
      %v2163 = vunpack.c.l.b16 %v1707
      %v2164 = vunpack.c.h.b16 %v1707
      %v2165 = vunpack.c.l.b16 %v1708
      %v2166 = vunpack.c.h.b16 %v1708
      %v2167 = vunpack.c.l.b16 %v1709
      %v2168 = vunpack.c.h.b16 %v1709
      %v2169 = vunpack.c.l.b16 %v1710
      %v2170 = vunpack.c.h.b16 %v1710
      %v2171 = vunpack.c.l.b16 %v1711
      %v2172 = vunpack.c.h.b16 %v1711
      %v2173 = vunpack.c.l.b16 %v1712
      %v2174 = vunpack.c.h.b16 %v1712
      %v2175 = vunpack.c.l.b16 %v1713
      %v2176 = vunpack.c.h.b16 %v1713
      %v2177 = vunpack.c.l.b16 %v1714
      %v2178 = vunpack.c.h.b16 %v1714
      %v2179 = vpack.c.b16 %v1927, %v1923
      %v2180 = vpack.c.b16 %v1928, %v1924
      %v2181 = vpack.c.b16 %v1929, %v1925
      %v2182 = vpack.c.b16 %v1930, %v1926
      %v2183 = vpack.c.b16 %v1935, %v1931
      %v2184 = vpack.c.b16 %v1936, %v1932
      %v2185 = vpack.c.b16 %v1937, %v1933
      %v2186 = vpack.c.b16 %v1938, %v1934
      %v2187 = vpack.c.b16 %v1943, %v1939
      %v2188 = vpack.c.b16 %v1944, %v1940
      %v2189 = vpack.c.b16 %v1945, %v1941
      %v2190 = vpack.c.b16 %v1946, %v1942
      %v2191 = vpack.c.b16 %v1951, %v1947
      %v2192 = vpack.c.b16 %v1952, %v1948
      %v2193 = vpack.c.b16 %v1953, %v1949
      %v2194 = vpack.c.b16 %v1954, %v1950
      %v2195 = vpack.c.b16 %v1959, %v1955
      %v2196 = vpack.c.b16 %v1960, %v1956
      %v2197 = vpack.c.b16 %v1961, %v1957
      %v2198 = vpack.c.b16 %v1962, %v1958
      %v2199 = vpack.c.b16 %v1967, %v1963
      %v2200 = vpack.c.b16 %v1968, %v1964
      %v2201 = vpack.c.b16 %v1969, %v1965
      %v2202 = vpack.c.b16 %v1970, %v1966
      %v2203 = vpack.c.b16 %v1975, %v1971
      %v2204 = vpack.c.b16 %v1976, %v1972
      %v2205 = vpack.c.b16 %v1977, %v1973
      %v2206 = vpack.c.b16 %v1978, %v1974
      %v2207 = vpack.c.b16 %v1983, %v1979
      %v2208 = vpack.c.b16 %v1984, %v1980
      %v2209 = vpack.c.b16 %v1985, %v1981
      %v2210 = vpack.c.b16 %v1986, %v1982
      %v2211 = vpack.c.b16 %v1991, %v1987
      %v2212 = vpack.c.b16 %v1992, %v1988
      %v2213 = vpack.c.b16 %v1993, %v1989
      %v2214 = vpack.c.b16 %v1994, %v1990
      %v2215 = vpack.c.b16 %v1999, %v1995
      %v2216 = vpack.c.b16 %v2000, %v1996
      %v2217 = vpack.c.b16 %v2001, %v1997
      %v2218 = vpack.c.b16 %v2002, %v1998
      %v2219 = vpack.c.b16 %v2007, %v2003
      %v2220 = vpack.c.b16 %v2008, %v2004
      %v2221 = vpack.c.b16 %v2009, %v2005
      %v2222 = vpack.c.b16 %v2010, %v2006
      %v2223 = vpack.c.b16 %v2015, %v2011
      %v2224 = vpack.c.b16 %v2016, %v2012
      %v2225 = vpack.c.b16 %v2017, %v2013
      %v2226 = vpack.c.b16 %v2018, %v2014
      %v2227 = vpack.c.b16 %v2023, %v2019
      %v2228 = vpack.c.b16 %v2024, %v2020
      %v2229 = vpack.c.b16 %v2025, %v2021
      %v2230 = vpack.c.b16 %v2026, %v2022
      %v2231 = vpack.c.b16 %v2031, %v2027
      %v2232 = vpack.c.b16 %v2032, %v2028
      %v2233 = vpack.c.b16 %v2033, %v2029
      %v2234 = vpack.c.b16 %v2034, %v2030
      %v2235 = vpack.c.b16 %v2039, %v2035
      %v2236 = vpack.c.b16 %v2040, %v2036
      %v2237 = vpack.c.b16 %v2041, %v2037
      %v2238 = vpack.c.b16 %v2042, %v2038
      %v2239 = vpack.c.b16 %v2047, %v2043
      %v2240 = vpack.c.b16 %v2048, %v2044
      %v2241 = vpack.c.b16 %v2049, %v2045
      %v2242 = vpack.c.b16 %v2050, %v2046
      %v2243 = vpack.c.b16 %v2055, %v2051
      %v2244 = vpack.c.b16 %v2056, %v2052
      %v2245 = vpack.c.b16 %v2057, %v2053
      %v2246 = vpack.c.b16 %v2058, %v2054
      %v2247 = vpack.c.b16 %v2063, %v2059
      %v2248 = vpack.c.b16 %v2064, %v2060
      %v2249 = vpack.c.b16 %v2065, %v2061
      %v2250 = vpack.c.b16 %v2066, %v2062
      %v2251 = vpack.c.b16 %v2071, %v2067
      %v2252 = vpack.c.b16 %v2072, %v2068
      %v2253 = vpack.c.b16 %v2073, %v2069
      %v2254 = vpack.c.b16 %v2074, %v2070
      %v2255 = vpack.c.b16 %v2079, %v2075
      %v2256 = vpack.c.b16 %v2080, %v2076
      %v2257 = vpack.c.b16 %v2081, %v2077
      %v2258 = vpack.c.b16 %v2082, %v2078
      %v2259 = vpack.c.b16 %v2087, %v2083
      %v2260 = vpack.c.b16 %v2088, %v2084
      %v2261 = vpack.c.b16 %v2089, %v2085
      %v2262 = vpack.c.b16 %v2090, %v2086
      %v2263 = vpack.c.b16 %v2095, %v2091
      %v2264 = vpack.c.b16 %v2096, %v2092
      %v2265 = vpack.c.b16 %v2097, %v2093
      %v2266 = vpack.c.b16 %v2098, %v2094
      %v2267 = vpack.c.b16 %v2103, %v2099
      %v2268 = vpack.c.b16 %v2104, %v2100
      %v2269 = vpack.c.b16 %v2105, %v2101
      %v2270 = vpack.c.b16 %v2106, %v2102
      %v2271 = vpack.c.b16 %v2111, %v2107
      %v2272 = vpack.c.b16 %v2112, %v2108
      %v2273 = vpack.c.b16 %v2113, %v2109
      %v2274 = vpack.c.b16 %v2114, %v2110
      %v2275 = vpack.c.b16 %v2119, %v2115
      %v2276 = vpack.c.b16 %v2120, %v2116
      %v2277 = vpack.c.b16 %v2121, %v2117
      %v2278 = vpack.c.b16 %v2122, %v2118
      %v2279 = vpack.c.b16 %v2127, %v2123
      %v2280 = vpack.c.b16 %v2128, %v2124
      %v2281 = vpack.c.b16 %v2129, %v2125
      %v2282 = vpack.c.b16 %v2130, %v2126
      %v2283 = vpack.c.b16 %v2135, %v2131
      %v2284 = vpack.c.b16 %v2136, %v2132
      %v2285 = vpack.c.b16 %v2137, %v2133
      %v2286 = vpack.c.b16 %v2138, %v2134
      %v2287 = vpack.c.b16 %v2143, %v2139
      %v2288 = vpack.c.b16 %v2144, %v2140
      %v2289 = vpack.c.b16 %v2145, %v2141
      %v2290 = vpack.c.b16 %v2146, %v2142
      %v2291 = vpack.c.b16 %v2151, %v2147
      %v2292 = vpack.c.b16 %v2152, %v2148
      %v2293 = vpack.c.b16 %v2153, %v2149
      %v2294 = vpack.c.b16 %v2154, %v2150
      %v2295 = vpack.c.b16 %v2159, %v2155
      %v2296 = vpack.c.b16 %v2160, %v2156
      %v2297 = vpack.c.b16 %v2161, %v2157
      %v2298 = vpack.c.b16 %v2162, %v2158
      %v2299 = vpack.c.b16 %v2167, %v2163
      %v2300 = vpack.c.b16 %v2168, %v2164
      %v2301 = vpack.c.b16 %v2169, %v2165
      %v2302 = vpack.c.b16 %v2170, %v2166
      %v2303 = vpack.c.b16 %v2175, %v2171
      %v2304 = vpack.c.b16 %v2176, %v2172
      %v2305 = vpack.c.b16 %v2177, %v2173
      %v2306 = vpack.c.b16 %v2178, %v2174
      %2435 = vmatprep.subr.bf16.mxu0 %v2208
      %2436 = vmatpush1.bf16.msra.mxu0 %v2207
      %2437 = vmatprep.subr.bf16.mxu0 %v2204
      %2438 = vmatpush1.bf16.msra.mxu0 %v2203
      %2439 = vmatprep.subr.bf16.mxu0 %v2200
      %2440 = vmatpush1.bf16.msra.mxu0 %v2199
      %2441 = vmatprep.subr.bf16.mxu0 %v2196
      %2442 = vmatpush1.bf16.msra.mxu0 %v2195
      %2443 = vmatprep.subr.bf16.mxu0 %v2192
      %2444 = vmatpush1.bf16.msra.mxu0 %v2191
      %2445 = vmatprep.subr.bf16.mxu0 %v2188
      %2446 = vmatpush1.bf16.msra.mxu0 %v2187
      %2447 = vmatprep.subr.bf16.mxu0 %v2184
      %2448 = vmatpush1.bf16.msra.mxu0 %v2183
      %2449 = vmatprep.subr.bf16.mxu0 %v2180
      %2450 = vmatpush1.bf16.msra.mxu0 %v2179
      %2451 = vmatprep.subr.bf16.mxu0 %v2240
      %2452 = vmatpush2.bf16.msra.mxu0 %v2239
      %2453 = vmatprep.subr.bf16.mxu0 %v2236
      %2454 = vmatpush2.bf16.msra.mxu0 %v2235
      %2455 = vmatprep.subr.bf16.mxu0 %v2232
      %2456 = vmatpush2.bf16.msra.mxu0 %v2231
      %2457 = vmatprep.subr.bf16.mxu0 %v2228
      %2458 = vmatpush2.bf16.msra.mxu0 %v2227
      %2459 = vmatprep.subr.bf16.mxu0 %v2224
      %2460 = vmatpush2.bf16.msra.mxu0 %v2223
      %2461 = vmatprep.subr.bf16.mxu0 %v2220
      %2462 = vmatpush2.bf16.msra.mxu0 %v2219
      %2463 = vmatprep.subr.bf16.mxu0 %v2216
      %2464 = vmatpush2.bf16.msra.mxu0 %v2215
      %2465 = vmatprep.subr.bf16.mxu0 %v2212
      %2466 = vmatpush2.bf16.msra.mxu0 %v2211
      %2467 = vmatprep.mubr.bf16.mxu0 %v1764
      %2468 = vmatmul.mubr.bf16.gmra.mxu0 %v1763
      %v2469 = vpop.f32.mrf.mxu0
      %v2470 = vadd.f32 0.0, %v2469
      %v2471 = vpop.f32.mrf.mxu0
      %v2472 = vadd.f32 0.0, %v2471
      %v2473 = vpop.f32.mrf.mxu0
      %v2474 = vadd.f32 0.0, %v2473
      %v2475 = vpop.f32.mrf.mxu0
      %v2476 = vadd.f32 0.0, %v2475
      %2477 = vmatprep.mubr.bf16.mxu0 %v1768
      %2478 = vmatmul.mubr.bf16.gmra.mxu0 %v1767
      %v2479 = vpop.f32.mrf.mxu0
      %v2480 = vadd.f32 0.0, %v2479
      %v2481 = vpop.f32.mrf.mxu0
      %v2482 = vadd.f32 0.0, %v2481
      %v2483 = vpop.f32.mrf.mxu0
      %v2484 = vadd.f32 0.0, %v2483
      %v2485 = vpop.f32.mrf.mxu0
      %v2486 = vadd.f32 0.0, %v2485
      %2487 = vmatprep.mubr.bf16.mxu0 %v1772
      %2488 = vmatmul.mubr.bf16.gmra.mxu0 %v1771
      %v2489 = vpop.f32.mrf.mxu0
      %v2490 = vadd.f32 0.0, %v2489
      %v2491 = vpop.f32.mrf.mxu0
      %v2492 = vadd.f32 0.0, %v2491
      %v2493 = vpop.f32.mrf.mxu0
      %v2494 = vadd.f32 0.0, %v2493
      %v2495 = vpop.f32.mrf.mxu0
      %v2496 = vadd.f32 0.0, %v2495
      %2497 = vmatprep.mubr.bf16.mxu0 %v1776
      %2498 = vmatmul.mubr.bf16.gmra.mxu0 %v1775
      %v2499 = vpop.f32.mrf.mxu0
      %v2500 = vadd.f32 0.0, %v2499
      %v2501 = vpop.f32.mrf.mxu0
      %v2502 = vadd.f32 0.0, %v2501
      %v2503 = vpop.f32.mrf.mxu0
      %v2504 = vadd.f32 0.0, %v2503
      %v2505 = vpop.f32.mrf.mxu0
      %v2506 = vadd.f32 0.0, %v2505
      %2507 = vdwg.mxu0
      %2508 = vmatprep.subr.bf16.mxu0 %v2272
      %2509 = vmatpush1.bf16.msra.mxu0 %v2271
      %2510 = vmatprep.subr.bf16.mxu0 %v2268
      %2511 = vmatpush1.bf16.msra.mxu0 %v2267
      %2512 = vmatprep.subr.bf16.mxu0 %v2264
      %2513 = vmatpush1.bf16.msra.mxu0 %v2263
      %2514 = vmatprep.subr.bf16.mxu0 %v2260
      %2515 = vmatpush1.bf16.msra.mxu0 %v2259
      %2516 = vmatprep.subr.bf16.mxu0 %v2256
      %2517 = vmatpush1.bf16.msra.mxu0 %v2255
      %2518 = vmatprep.subr.bf16.mxu0 %v2252
      %2519 = vmatpush1.bf16.msra.mxu0 %v2251
      %2520 = vmatprep.subr.bf16.mxu0 %v2248
      %2521 = vmatpush1.bf16.msra.mxu0 %v2247
      %2522 = vmatprep.subr.bf16.mxu0 %v2244
      %2523 = vmatpush1.bf16.msra.mxu0 %v2243
      %2524 = vmatprep.subr.bf16.mxu0 %v2304
      %2525 = vmatpush2.bf16.msra.mxu0 %v2303
      %2526 = vmatprep.subr.bf16.mxu0 %v2300
      %2527 = vmatpush2.bf16.msra.mxu0 %v2299
      %2528 = vmatprep.subr.bf16.mxu0 %v2296
      %2529 = vmatpush2.bf16.msra.mxu0 %v2295
      %2530 = vmatprep.subr.bf16.mxu0 %v2292
      %2531 = vmatpush2.bf16.msra.mxu0 %v2291
      %2532 = vmatprep.subr.bf16.mxu0 %v2288
      %2533 = vmatpush2.bf16.msra.mxu0 %v2287
      %2534 = vmatprep.subr.bf16.mxu0 %v2284
      %2535 = vmatpush2.bf16.msra.mxu0 %v2283
      %2536 = vmatprep.subr.bf16.mxu0 %v2280
      %2537 = vmatpush2.bf16.msra.mxu0 %v2279
      %2538 = vmatprep.subr.bf16.mxu0 %v2276
      %2539 = vmatpush2.bf16.msra.mxu0 %v2275
      %2540 = vmatprep.mubr.bf16.mxu0 %v1766
      %2541 = vmatmul.mubr.bf16.gmra.mxu0 %v1765
      %v2542 = vpop.f32.mrf.mxu0
      %v2543 = vadd.f32 %v2470, %v2542
      %v2544 = vpop.f32.mrf.mxu0
      %v2545 = vadd.f32 %v2472, %v2544
      %v2546 = vpop.f32.mrf.mxu0
      %v2547 = vadd.f32 %v2474, %v2546
      %v2548 = vpop.f32.mrf.mxu0
      %v2549 = vadd.f32 %v2476, %v2548
      %2550 = vmatprep.mubr.bf16.mxu0 %v1770
      %2551 = vmatmul.mubr.bf16.gmra.mxu0 %v1769
      %v2552 = vpop.f32.mrf.mxu0
      %v2553 = vadd.f32 %v2480, %v2552
      %v2554 = vpop.f32.mrf.mxu0
      %v2555 = vadd.f32 %v2482, %v2554
      %v2556 = vpop.f32.mrf.mxu0
      %v2557 = vadd.f32 %v2484, %v2556
      %v2558 = vpop.f32.mrf.mxu0
      %v2559 = vadd.f32 %v2486, %v2558
      %2560 = vmatprep.mubr.bf16.mxu0 %v1774
      %2561 = vmatmul.mubr.bf16.gmra.mxu0 %v1773
      %v2562 = vpop.f32.mrf.mxu0
      %v2563 = vadd.f32 %v2490, %v2562
      %v2564 = vpop.f32.mrf.mxu0
      %v2565 = vadd.f32 %v2492, %v2564
      %v2566 = vpop.f32.mrf.mxu0
      %v2567 = vadd.f32 %v2494, %v2566
      %v2568 = vpop.f32.mrf.mxu0
      %v2569 = vadd.f32 %v2496, %v2568
      %2570 = vmatprep.mubr.bf16.mxu0 %v1778
      %2571 = vmatmul.mubr.bf16.gmra.mxu0 %v1777
      %v2572 = vpop.f32.mrf.mxu0
      %v2573 = vadd.f32 %v2500, %v2572
      %v2574 = vpop.f32.mrf.mxu0
      %v2575 = vadd.f32 %v2502, %v2574
      %v2576 = vpop.f32.mrf.mxu0
      %v2577 = vadd.f32 %v2504, %v2576
      %v2578 = vpop.f32.mrf.mxu0
      %v2579 = vadd.f32 %v2506, %v2578
      %2580 = vdwg.mxu0
      %2581 = vmatprep.subr.bf16.mxu0 %v2210
      %2582 = vmatpush1.bf16.msra.mxu0 %v2209
      %2583 = vmatprep.subr.bf16.mxu0 %v2206
      %2584 = vmatpush1.bf16.msra.mxu0 %v2205
      %2585 = vmatprep.subr.bf16.mxu0 %v2202
      %2586 = vmatpush1.bf16.msra.mxu0 %v2201
      %2587 = vmatprep.subr.bf16.mxu0 %v2198
      %2588 = vmatpush1.bf16.msra.mxu0 %v2197
      %2589 = vmatprep.subr.bf16.mxu0 %v2194
      %2590 = vmatpush1.bf16.msra.mxu0 %v2193
      %2591 = vmatprep.subr.bf16.mxu0 %v2190
      %2592 = vmatpush1.bf16.msra.mxu0 %v2189
      %2593 = vmatprep.subr.bf16.mxu0 %v2186
      %2594 = vmatpush1.bf16.msra.mxu0 %v2185
      %2595 = vmatprep.subr.bf16.mxu0 %v2182
      %2596 = vmatpush1.bf16.msra.mxu0 %v2181
      %2597 = vmatprep.subr.bf16.mxu0 %v2242
      %2598 = vmatpush2.bf16.msra.mxu0 %v2241
      %2599 = vmatprep.subr.bf16.mxu0 %v2238
      %2600 = vmatpush2.bf16.msra.mxu0 %v2237
      %2601 = vmatprep.subr.bf16.mxu0 %v2234
      %2602 = vmatpush2.bf16.msra.mxu0 %v2233
      %2603 = vmatprep.subr.bf16.mxu0 %v2230
      %2604 = vmatpush2.bf16.msra.mxu0 %v2229
      %2605 = vmatprep.subr.bf16.mxu0 %v2226
      %2606 = vmatpush2.bf16.msra.mxu0 %v2225
      %2607 = vmatprep.subr.bf16.mxu0 %v2222
      %2608 = vmatpush2.bf16.msra.mxu0 %v2221
      %2609 = vmatprep.subr.bf16.mxu0 %v2218
      %2610 = vmatpush2.bf16.msra.mxu0 %v2217
      %2611 = vmatprep.subr.bf16.mxu0 %v2214
      %2612 = vmatpush2.bf16.msra.mxu0 %v2213
      %2613 = vmatprep.mubr.bf16.mxu0 %v1764
      %2614 = vmatmul.mubr.bf16.gmra.mxu0 %v1763
      %v2615 = vpop.f32.mrf.mxu0
      %v2616 = vadd.f32 0.0, %v2615
      %v2617 = vpop.f32.mrf.mxu0
      %v2618 = vadd.f32 0.0, %v2617
      %v2619 = vpop.f32.mrf.mxu0
      %v2620 = vadd.f32 0.0, %v2619
      %v2621 = vpop.f32.mrf.mxu0
      %v2622 = vadd.f32 0.0, %v2621
      %2623 = vmatprep.mubr.bf16.mxu0 %v1768
      %2624 = vmatmul.mubr.bf16.gmra.mxu0 %v1767
      %v2625 = vpop.f32.mrf.mxu0
      %v2626 = vadd.f32 0.0, %v2625
      %v2627 = vpop.f32.mrf.mxu0
      %v2628 = vadd.f32 0.0, %v2627
      %v2629 = vpop.f32.mrf.mxu0
      %v2630 = vadd.f32 0.0, %v2629
      %v2631 = vpop.f32.mrf.mxu0
      %v2632 = vadd.f32 0.0, %v2631
      %2633 = vmatprep.mubr.bf16.mxu0 %v1772
      %2634 = vmatmul.mubr.bf16.gmra.mxu0 %v1771
      %v2635 = vpop.f32.mrf.mxu0
      %v2636 = vadd.f32 0.0, %v2635
      %v2637 = vpop.f32.mrf.mxu0
      %v2638 = vadd.f32 0.0, %v2637
      %v2639 = vpop.f32.mrf.mxu0
      %v2640 = vadd.f32 0.0, %v2639
      %v2641 = vpop.f32.mrf.mxu0
      %v2642 = vadd.f32 0.0, %v2641
      %2643 = vmatprep.mubr.bf16.mxu0 %v1776
      %2644 = vmatmul.mubr.bf16.gmra.mxu0 %v1775
      %v2645 = vpop.f32.mrf.mxu0
      %v2646 = vadd.f32 0.0, %v2645
      %v2647 = vpop.f32.mrf.mxu0
      %v2648 = vadd.f32 0.0, %v2647
      %v2649 = vpop.f32.mrf.mxu0
      %v2650 = vadd.f32 0.0, %v2649
      %v2651 = vpop.f32.mrf.mxu0
      %v2652 = vadd.f32 0.0, %v2651
      %2653 = vdwg.mxu0
      %2654 = vmatprep.subr.bf16.mxu0 %v2274
      %2655 = vmatpush1.bf16.msra.mxu0 %v2273
      %2656 = vmatprep.subr.bf16.mxu0 %v2270
      %2657 = vmatpush1.bf16.msra.mxu0 %v2269
      %2658 = vmatprep.subr.bf16.mxu0 %v2266
      %2659 = vmatpush1.bf16.msra.mxu0 %v2265
      %2660 = vmatprep.subr.bf16.mxu0 %v2262
      %2661 = vmatpush1.bf16.msra.mxu0 %v2261
      %2662 = vmatprep.subr.bf16.mxu0 %v2258
      %2663 = vmatpush1.bf16.msra.mxu0 %v2257
      %2664 = vmatprep.subr.bf16.mxu0 %v2254
      %2665 = vmatpush1.bf16.msra.mxu0 %v2253
      %2666 = vmatprep.subr.bf16.mxu0 %v2250
      %2667 = vmatpush1.bf16.msra.mxu0 %v2249
      %2668 = vmatprep.subr.bf16.mxu0 %v2246
      %2669 = vmatpush1.bf16.msra.mxu0 %v2245
      %2670 = vmatprep.subr.bf16.mxu0 %v2306
      %2671 = vmatpush2.bf16.msra.mxu0 %v2305
      %2672 = vmatprep.subr.bf16.mxu0 %v2302
      %2673 = vmatpush2.bf16.msra.mxu0 %v2301
      %2674 = vmatprep.subr.bf16.mxu0 %v2298
      %2675 = vmatpush2.bf16.msra.mxu0 %v2297
      %2676 = vmatprep.subr.bf16.mxu0 %v2294
      %2677 = vmatpush2.bf16.msra.mxu0 %v2293
      %2678 = vmatprep.subr.bf16.mxu0 %v2290
      %2679 = vmatpush2.bf16.msra.mxu0 %v2289
      %2680 = vmatprep.subr.bf16.mxu0 %v2286
      %2681 = vmatpush2.bf16.msra.mxu0 %v2285
      %2682 = vmatprep.subr.bf16.mxu0 %v2282
      %2683 = vmatpush2.bf16.msra.mxu0 %v2281
      %2684 = vmatprep.subr.bf16.mxu0 %v2278
      %2685 = vmatpush2.bf16.msra.mxu0 %v2277
      %2686 = vmatprep.mubr.bf16.mxu0 %v1766
      %2687 = vmatmul.mubr.bf16.gmra.mxu0 %v1765
      %v2688 = vpop.f32.mrf.mxu0
      %v2689 = vadd.f32 %v2616, %v2688
      %v2690 = vpop.f32.mrf.mxu0
      %v2691 = vadd.f32 %v2618, %v2690
      %v2692 = vpop.f32.mrf.mxu0
      %v2693 = vadd.f32 %v2620, %v2692
      %v2694 = vpop.f32.mrf.mxu0
      %v2695 = vadd.f32 %v2622, %v2694
      %2696 = vmatprep.mubr.bf16.mxu0 %v1770
      %2697 = vmatmul.mubr.bf16.gmra.mxu0 %v1769
      %v2698 = vpop.f32.mrf.mxu0
      %v2699 = vadd.f32 %v2626, %v2698
      %v2700 = vpop.f32.mrf.mxu0
      %v2701 = vadd.f32 %v2628, %v2700
      %v2702 = vpop.f32.mrf.mxu0
      %v2703 = vadd.f32 %v2630, %v2702
      %v2704 = vpop.f32.mrf.mxu0
      %v2705 = vadd.f32 %v2632, %v2704
      %2706 = vmatprep.mubr.bf16.mxu0 %v1774
      %2707 = vmatmul.mubr.bf16.gmra.mxu0 %v1773
      %v2708 = vpop.f32.mrf.mxu0
      %v2709 = vadd.f32 %v2636, %v2708
      %v2710 = vpop.f32.mrf.mxu0
      %v2711 = vadd.f32 %v2638, %v2710
      %v2712 = vpop.f32.mrf.mxu0
      %v2713 = vadd.f32 %v2640, %v2712
      %v2714 = vpop.f32.mrf.mxu0
      %v2715 = vadd.f32 %v2642, %v2714
      %2716 = vmatprep.mubr.bf16.mxu0 %v1778
      %2717 = vmatmul.mubr.bf16.gmra.mxu0 %v1777
      %v2718 = vpop.f32.mrf.mxu0
      %v2719 = vadd.f32 %v2646, %v2718
      %v2720 = vpop.f32.mrf.mxu0
      %v2721 = vadd.f32 %v2648, %v2720
      %v2722 = vpop.f32.mrf.mxu0
      %v2723 = vadd.f32 %v2650, %v2722
      %v2724 = vpop.f32.mrf.mxu0
      %v2725 = vadd.f32 %v2652, %v2724
      %2726 = vdwg.mxu0
      %v2727 = vadd.f32 %v1538, %v2543
      %v2728 = vadd.f32 %v1539, %v2545
      %v2729 = vadd.f32 %v1540, %v2689
      %v2730 = vadd.f32 %v1541, %v2691
      %v2731 = vadd.f32 %v1542, %v2547
      %v2732 = vadd.f32 %v1543, %v2549
      %v2733 = vadd.f32 %v1544, %v2693
      %v2734 = vadd.f32 %v1545, %v2695
      %v2735 = vadd.f32 %v1546, %v2553
      %v2736 = vadd.f32 %v1547, %v2555
      %v2737 = vadd.f32 %v1548, %v2699
      %v2738 = vadd.f32 %v1549, %v2701
      %v2739 = vadd.f32 %v1550, %v2557
      %v2740 = vadd.f32 %v1551, %v2559
      %v2741 = vadd.f32 %v1552, %v2703
      %v2742 = vadd.f32 %v1553, %v2705
      %v2743 = vadd.f32 %v1554, %v2563
      %v2744 = vadd.f32 %v1555, %v2565
      %v2745 = vadd.f32 %v1556, %v2709
      %v2746 = vadd.f32 %v1557, %v2711
      %v2747 = vadd.f32 %v1558, %v2567
      %v2748 = vadd.f32 %v1559, %v2569
      %v2749 = vadd.f32 %v1560, %v2713
      %v2750 = vadd.f32 %v1561, %v2715
      %v2751 = vadd.f32 %v1562, %v2573
      %v2752 = vadd.f32 %v1563, %v2575
      %v2753 = vadd.f32 %v1564, %v2719
      %v2754 = vadd.f32 %v1565, %v2721
      %v2755 = vadd.f32 %v1566, %v2577
      %v2756 = vadd.f32 %v1567, %v2579
      %v2757 = vadd.f32 %v1568, %v2723
      %v2758 = vadd.f32 %v1569, %v2725
      %v2759 = vld [vmem:[%s273 + $0x40] sm:$0xff]
      %v2760 = vld [vmem:[%s273 + $0x48] sm:$0xff]
      %v2761 = vld [vmem:[%s273 + $0x50] sm:$0xff]
      %v2762 = vld [vmem:[%s273 + $0x58] sm:$0xff]
      %v2763 = vld [vmem:[%s273 + $0x60] sm:$0xff]
      %v2764 = vld [vmem:[%s273 + $0x68] sm:$0xff]
      %v2765 = vld [vmem:[%s273 + $0x70] sm:$0xff]
      %v2766 = vld [vmem:[%s273 + $0x78] sm:$0xff]
      %v2767 = vld [vmem:[%s273 + $0x80] sm:$0xff]
      %v2768 = vld [vmem:[%s273 + $0x88] sm:$0xff]
      %v2769 = vld [vmem:[%s273 + $0x90] sm:$0xff]
      %v2770 = vld [vmem:[%s273 + $0x98] sm:$0xff]
      %v2771 = vld [vmem:[%s273 + $0xa0] sm:$0xff]
      %v2772 = vld [vmem:[%s273 + $0xa8] sm:$0xff]
      %v2773 = vld [vmem:[%s273 + $0xb0] sm:$0xff]
      %v2774 = vld [vmem:[%s273 + $0xb8] sm:$0xff]
      %s2775 = scalar_lea.vmem %s278, 2048
      %v2776 = vld [vmem:[%s2775] sm:$0xff]
      %v2777 = vld [vmem:[%s2775 + $0x8] sm:$0xff]
      %v2778 = vld [vmem:[%s2775 + $0x10] sm:$0xff]
      %v2779 = vld [vmem:[%s2775 + $0x18] sm:$0xff]
      %v2780 = vld [vmem:[%s2775 + $0x20] sm:$0xff]
      %v2781 = vld [vmem:[%s2775 + $0x28] sm:$0xff]
      %v2782 = vld [vmem:[%s2775 + $0x30] sm:$0xff]
      %v2783 = vld [vmem:[%s2775 + $0x38] sm:$0xff]
      %v2784 = vld [vmem:[%s2775 + $0x40] sm:$0xff]
      %v2785 = vld [vmem:[%s2775 + $0x48] sm:$0xff]
      %v2786 = vld [vmem:[%s2775 + $0x50] sm:$0xff]
      %v2787 = vld [vmem:[%s2775 + $0x58] sm:$0xff]
      %v2788 = vld [vmem:[%s2775 + $0x60] sm:$0xff]
      %v2789 = vld [vmem:[%s2775 + $0x68] sm:$0xff]
      %v2790 = vld [vmem:[%s2775 + $0x70] sm:$0xff]
      %v2791 = vld [vmem:[%s2775 + $0x78] sm:$0xff]
      %v2792 = vld [vmem:[%s2775 + $0x80] sm:$0xff]
      %v2793 = vld [vmem:[%s2775 + $0x88] sm:$0xff]
      %v2794 = vld [vmem:[%s2775 + $0x90] sm:$0xff]
      %v2795 = vld [vmem:[%s2775 + $0x98] sm:$0xff]
      %v2796 = vld [vmem:[%s2775 + $0xa0] sm:$0xff]
      %v2797 = vld [vmem:[%s2775 + $0xa8] sm:$0xff]
      %v2798 = vld [vmem:[%s2775 + $0xb0] sm:$0xff]
      %v2799 = vld [vmem:[%s2775 + $0xb8] sm:$0xff]
      %v2800 = vld [vmem:[%s2775 + $0xc0] sm:$0xff]
      %v2801 = vld [vmem:[%s2775 + $0xc8] sm:$0xff]
      %v2802 = vld [vmem:[%s2775 + $0xd0] sm:$0xff]
      %v2803 = vld [vmem:[%s2775 + $0xd8] sm:$0xff]
      %v2804 = vld [vmem:[%s2775 + $0xe0] sm:$0xff]
      %v2805 = vld [vmem:[%s2775 + $0xe8] sm:$0xff]
      %v2806 = vld [vmem:[%s2775 + $0xf0] sm:$0xff]
      %v2807 = vld [vmem:[%s2775 + $0xf8] sm:$0xff]
      %v2808 = vld [vmem:[%s2775 + $0x100] sm:$0xff]
      %v2809 = vld [vmem:[%s2775 + $0x108] sm:$0xff]
      %v2810 = vld [vmem:[%s2775 + $0x110] sm:$0xff]
      %v2811 = vld [vmem:[%s2775 + $0x118] sm:$0xff]
      %v2812 = vld [vmem:[%s2775 + $0x120] sm:$0xff]
      %v2813 = vld [vmem:[%s2775 + $0x128] sm:$0xff]
      %v2814 = vld [vmem:[%s2775 + $0x130] sm:$0xff]
      %v2815 = vld [vmem:[%s2775 + $0x138] sm:$0xff]
      %v2816 = vld [vmem:[%s2775 + $0x140] sm:$0xff]
      %v2817 = vld [vmem:[%s2775 + $0x148] sm:$0xff]
      %v2818 = vld [vmem:[%s2775 + $0x150] sm:$0xff]
      %v2819 = vld [vmem:[%s2775 + $0x158] sm:$0xff]
      %v2820 = vld [vmem:[%s2775 + $0x160] sm:$0xff]
      %v2821 = vld [vmem:[%s2775 + $0x168] sm:$0xff]
      %v2822 = vld [vmem:[%s2775 + $0x170] sm:$0xff]
      %v2823 = vld [vmem:[%s2775 + $0x178] sm:$0xff]
      %v2824 = vld [vmem:[%s2775 + $0x180] sm:$0xff]
      %v2825 = vld [vmem:[%s2775 + $0x188] sm:$0xff]
      %v2826 = vld [vmem:[%s2775 + $0x190] sm:$0xff]
      %v2827 = vld [vmem:[%s2775 + $0x198] sm:$0xff]
      %v2828 = vld [vmem:[%s2775 + $0x1a0] sm:$0xff]
      %v2829 = vld [vmem:[%s2775 + $0x1a8] sm:$0xff]
      %v2830 = vld [vmem:[%s2775 + $0x1b0] sm:$0xff]
      %v2831 = vld [vmem:[%s2775 + $0x1b8] sm:$0xff]
      %v2832 = vld [vmem:[%s2775 + $0x1c0] sm:$0xff]
      %v2833 = vld [vmem:[%s2775 + $0x1c8] sm:$0xff]
      %v2834 = vld [vmem:[%s2775 + $0x1d0] sm:$0xff]
      %v2835 = vld [vmem:[%s2775 + $0x1d8] sm:$0xff]
      %v2836 = vld [vmem:[%s2775 + $0x1e0] sm:$0xff]
      %v2837 = vld [vmem:[%s2775 + $0x1e8] sm:$0xff]
      %v2838 = vld [vmem:[%s2775 + $0x1f0] sm:$0xff]
      %v2839 = vld [vmem:[%s2775 + $0x1f8] sm:$0xff]
      %v2840 = vld [vmem:[%s2775 + $0x200] sm:$0xff]
      %v2841 = vld [vmem:[%s2775 + $0x208] sm:$0xff]
      %v2842 = vld [vmem:[%s2775 + $0x210] sm:$0xff]
      %v2843 = vld [vmem:[%s2775 + $0x218] sm:$0xff]
      %v2844 = vld [vmem:[%s2775 + $0x220] sm:$0xff]
      %v2845 = vld [vmem:[%s2775 + $0x228] sm:$0xff]
      %v2846 = vld [vmem:[%s2775 + $0x230] sm:$0xff]
      %v2847 = vld [vmem:[%s2775 + $0x238] sm:$0xff]
      %v2848 = vld [vmem:[%s2775 + $0x240] sm:$0xff]
      %v2849 = vld [vmem:[%s2775 + $0x248] sm:$0xff]
      %v2850 = vld [vmem:[%s2775 + $0x250] sm:$0xff]
      %v2851 = vld [vmem:[%s2775 + $0x258] sm:$0xff]
      %v2852 = vld [vmem:[%s2775 + $0x260] sm:$0xff]
      %v2853 = vld [vmem:[%s2775 + $0x268] sm:$0xff]
      %v2854 = vld [vmem:[%s2775 + $0x270] sm:$0xff]
      %v2855 = vld [vmem:[%s2775 + $0x278] sm:$0xff]
      %v2856 = vld [vmem:[%s2775 + $0x280] sm:$0xff]
      %v2857 = vld [vmem:[%s2775 + $0x288] sm:$0xff]
      %v2858 = vld [vmem:[%s2775 + $0x290] sm:$0xff]
      %v2859 = vld [vmem:[%s2775 + $0x298] sm:$0xff]
      %v2860 = vld [vmem:[%s2775 + $0x2a0] sm:$0xff]
      %v2861 = vld [vmem:[%s2775 + $0x2a8] sm:$0xff]
      %v2862 = vld [vmem:[%s2775 + $0x2b0] sm:$0xff]
      %v2863 = vld [vmem:[%s2775 + $0x2b8] sm:$0xff]
      %v2864 = vld [vmem:[%s2775 + $0x2c0] sm:$0xff]
      %v2865 = vld [vmem:[%s2775 + $0x2c8] sm:$0xff]
      %v2866 = vld [vmem:[%s2775 + $0x2d0] sm:$0xff]
      %v2867 = vld [vmem:[%s2775 + $0x2d8] sm:$0xff]
      %v2868 = vld [vmem:[%s2775 + $0x2e0] sm:$0xff]
      %v2869 = vld [vmem:[%s2775 + $0x2e8] sm:$0xff]
      %v2870 = vld [vmem:[%s2775 + $0x2f0] sm:$0xff]
      %v2871 = vld [vmem:[%s2775 + $0x2f8] sm:$0xff]
      %v2872 = vld [vmem:[%s2775 + $0x300] sm:$0xff]
      %v2873 = vld [vmem:[%s2775 + $0x308] sm:$0xff]
      %v2874 = vld [vmem:[%s2775 + $0x310] sm:$0xff]
      %v2875 = vld [vmem:[%s2775 + $0x318] sm:$0xff]
      %v2876 = vld [vmem:[%s2775 + $0x320] sm:$0xff]
      %v2877 = vld [vmem:[%s2775 + $0x328] sm:$0xff]
      %v2878 = vld [vmem:[%s2775 + $0x330] sm:$0xff]
      %v2879 = vld [vmem:[%s2775 + $0x338] sm:$0xff]
      %v2880 = vld [vmem:[%s2775 + $0x340] sm:$0xff]
      %v2881 = vld [vmem:[%s2775 + $0x348] sm:$0xff]
      %v2882 = vld [vmem:[%s2775 + $0x350] sm:$0xff]
      %v2883 = vld [vmem:[%s2775 + $0x358] sm:$0xff]
      %v2884 = vld [vmem:[%s2775 + $0x360] sm:$0xff]
      %v2885 = vld [vmem:[%s2775 + $0x368] sm:$0xff]
      %v2886 = vld [vmem:[%s2775 + $0x370] sm:$0xff]
      %v2887 = vld [vmem:[%s2775 + $0x378] sm:$0xff]
      %v2888 = vld [vmem:[%s2775 + $0x380] sm:$0xff]
      %v2889 = vld [vmem:[%s2775 + $0x388] sm:$0xff]
      %v2890 = vld [vmem:[%s2775 + $0x390] sm:$0xff]
      %v2891 = vld [vmem:[%s2775 + $0x398] sm:$0xff]
      %v2892 = vld [vmem:[%s2775 + $0x3a0] sm:$0xff]
      %v2893 = vld [vmem:[%s2775 + $0x3a8] sm:$0xff]
      %v2894 = vld [vmem:[%s2775 + $0x3b0] sm:$0xff]
      %v2895 = vld [vmem:[%s2775 + $0x3b8] sm:$0xff]
      %v2896 = vld [vmem:[%s2775 + $0x3c0] sm:$0xff]
      %v2897 = vld [vmem:[%s2775 + $0x3c8] sm:$0xff]
      %v2898 = vld [vmem:[%s2775 + $0x3d0] sm:$0xff]
      %v2899 = vld [vmem:[%s2775 + $0x3d8] sm:$0xff]
      %v2900 = vld [vmem:[%s2775 + $0x3e0] sm:$0xff]
      %v2901 = vld [vmem:[%s2775 + $0x3e8] sm:$0xff]
      %v2902 = vld [vmem:[%s2775 + $0x3f0] sm:$0xff]
      %v2903 = vld [vmem:[%s2775 + $0x3f8] sm:$0xff]
      %v2920 = vunpack.c.l.b16 %v2759
      %v2921 = vunpack.c.h.b16 %v2759
      %v2922 = vunpack.c.l.b16 %v2760
      %v2923 = vunpack.c.h.b16 %v2760
      %v2924 = vunpack.c.l.b16 %v2761
      %v2925 = vunpack.c.h.b16 %v2761
      %v2926 = vunpack.c.l.b16 %v2762
      %v2927 = vunpack.c.h.b16 %v2762
      %v2928 = vunpack.c.l.b16 %v2763
      %v2929 = vunpack.c.h.b16 %v2763
      %v2930 = vunpack.c.l.b16 %v2764
      %v2931 = vunpack.c.h.b16 %v2764
      %v2932 = vunpack.c.l.b16 %v2765
      %v2933 = vunpack.c.h.b16 %v2765
      %v2934 = vunpack.c.l.b16 %v2766
      %v2935 = vunpack.c.h.b16 %v2766
      %v2936 = vunpack.c.l.b16 %v2767
      %v2937 = vunpack.c.h.b16 %v2767
      %v2938 = vunpack.c.l.b16 %v2768
      %v2939 = vunpack.c.h.b16 %v2768
      %v2940 = vunpack.c.l.b16 %v2769
      %v2941 = vunpack.c.h.b16 %v2769
      %v2942 = vunpack.c.l.b16 %v2770
      %v2943 = vunpack.c.h.b16 %v2770
      %v2944 = vunpack.c.l.b16 %v2771
      %v2945 = vunpack.c.h.b16 %v2771
      %v2946 = vunpack.c.l.b16 %v2772
      %v2947 = vunpack.c.h.b16 %v2772
      %v2948 = vunpack.c.l.b16 %v2773
      %v2949 = vunpack.c.h.b16 %v2773
      %v2950 = vunpack.c.l.b16 %v2774
      %v2951 = vunpack.c.h.b16 %v2774
      %v2952 = vpack.c.b16 %v2924, %v2920
      %v2953 = vpack.c.b16 %v2925, %v2921
      %v2954 = vpack.c.b16 %v2926, %v2922
      %v2955 = vpack.c.b16 %v2927, %v2923
      %v2956 = vpack.c.b16 %v2932, %v2928
      %v2957 = vpack.c.b16 %v2933, %v2929
      %v2958 = vpack.c.b16 %v2934, %v2930
      %v2959 = vpack.c.b16 %v2935, %v2931
      %v2960 = vpack.c.b16 %v2940, %v2936
      %v2961 = vpack.c.b16 %v2941, %v2937
      %v2962 = vpack.c.b16 %v2942, %v2938
      %v2963 = vpack.c.b16 %v2943, %v2939
      %v2964 = vpack.c.b16 %v2948, %v2944
      %v2965 = vpack.c.b16 %v2949, %v2945
      %v2966 = vpack.c.b16 %v2950, %v2946
      %v2967 = vpack.c.b16 %v2951, %v2947
      %v3112 = vunpack.c.l.b16 %v2776
      %v3113 = vunpack.c.h.b16 %v2776
      %v3114 = vunpack.c.l.b16 %v2777
      %v3115 = vunpack.c.h.b16 %v2777
      %v3116 = vunpack.c.l.b16 %v2778
      %v3117 = vunpack.c.h.b16 %v2778
      %v3118 = vunpack.c.l.b16 %v2779
      %v3119 = vunpack.c.h.b16 %v2779
      %v3120 = vunpack.c.l.b16 %v2780
      %v3121 = vunpack.c.h.b16 %v2780
      %v3122 = vunpack.c.l.b16 %v2781
      %v3123 = vunpack.c.h.b16 %v2781
      %v3124 = vunpack.c.l.b16 %v2782
      %v3125 = vunpack.c.h.b16 %v2782
      %v3126 = vunpack.c.l.b16 %v2783
      %v3127 = vunpack.c.h.b16 %v2783
      %v3128 = vunpack.c.l.b16 %v2784
      %v3129 = vunpack.c.h.b16 %v2784
      %v3130 = vunpack.c.l.b16 %v2785
      %v3131 = vunpack.c.h.b16 %v2785
      %v3132 = vunpack.c.l.b16 %v2786
      %v3133 = vunpack.c.h.b16 %v2786
      %v3134 = vunpack.c.l.b16 %v2787
      %v3135 = vunpack.c.h.b16 %v2787
      %v3136 = vunpack.c.l.b16 %v2788
      %v3137 = vunpack.c.h.b16 %v2788
      %v3138 = vunpack.c.l.b16 %v2789
      %v3139 = vunpack.c.h.b16 %v2789
      %v3140 = vunpack.c.l.b16 %v2790
      %v3141 = vunpack.c.h.b16 %v2790
      %v3142 = vunpack.c.l.b16 %v2791
      %v3143 = vunpack.c.h.b16 %v2791
      %v3144 = vunpack.c.l.b16 %v2792
      %v3145 = vunpack.c.h.b16 %v2792
      %v3146 = vunpack.c.l.b16 %v2793
      %v3147 = vunpack.c.h.b16 %v2793
      %v3148 = vunpack.c.l.b16 %v2794
      %v3149 = vunpack.c.h.b16 %v2794
      %v3150 = vunpack.c.l.b16 %v2795
      %v3151 = vunpack.c.h.b16 %v2795
      %v3152 = vunpack.c.l.b16 %v2796
      %v3153 = vunpack.c.h.b16 %v2796
      %v3154 = vunpack.c.l.b16 %v2797
      %v3155 = vunpack.c.h.b16 %v2797
      %v3156 = vunpack.c.l.b16 %v2798
      %v3157 = vunpack.c.h.b16 %v2798
      %v3158 = vunpack.c.l.b16 %v2799
      %v3159 = vunpack.c.h.b16 %v2799
      %v3160 = vunpack.c.l.b16 %v2800
      %v3161 = vunpack.c.h.b16 %v2800
      %v3162 = vunpack.c.l.b16 %v2801
      %v3163 = vunpack.c.h.b16 %v2801
      %v3164 = vunpack.c.l.b16 %v2802
      %v3165 = vunpack.c.h.b16 %v2802
      %v3166 = vunpack.c.l.b16 %v2803
      %v3167 = vunpack.c.h.b16 %v2803
      %v3168 = vunpack.c.l.b16 %v2804
      %v3169 = vunpack.c.h.b16 %v2804
      %v3170 = vunpack.c.l.b16 %v2805
      %v3171 = vunpack.c.h.b16 %v2805
      %v3172 = vunpack.c.l.b16 %v2806
      %v3173 = vunpack.c.h.b16 %v2806
      %v3174 = vunpack.c.l.b16 %v2807
      %v3175 = vunpack.c.h.b16 %v2807
      %v3176 = vunpack.c.l.b16 %v2808
      %v3177 = vunpack.c.h.b16 %v2808
      %v3178 = vunpack.c.l.b16 %v2809
      %v3179 = vunpack.c.h.b16 %v2809
      %v3180 = vunpack.c.l.b16 %v2810
      %v3181 = vunpack.c.h.b16 %v2810
      %v3182 = vunpack.c.l.b16 %v2811
      %v3183 = vunpack.c.h.b16 %v2811
      %v3184 = vunpack.c.l.b16 %v2812
      %v3185 = vunpack.c.h.b16 %v2812
      %v3186 = vunpack.c.l.b16 %v2813
      %v3187 = vunpack.c.h.b16 %v2813
      %v3188 = vunpack.c.l.b16 %v2814
      %v3189 = vunpack.c.h.b16 %v2814
      %v3190 = vunpack.c.l.b16 %v2815
      %v3191 = vunpack.c.h.b16 %v2815
      %v3192 = vunpack.c.l.b16 %v2816
      %v3193 = vunpack.c.h.b16 %v2816
      %v3194 = vunpack.c.l.b16 %v2817
      %v3195 = vunpack.c.h.b16 %v2817
      %v3196 = vunpack.c.l.b16 %v2818
      %v3197 = vunpack.c.h.b16 %v2818
      %v3198 = vunpack.c.l.b16 %v2819
      %v3199 = vunpack.c.h.b16 %v2819
      %v3200 = vunpack.c.l.b16 %v2820
      %v3201 = vunpack.c.h.b16 %v2820
      %v3202 = vunpack.c.l.b16 %v2821
      %v3203 = vunpack.c.h.b16 %v2821
      %v3204 = vunpack.c.l.b16 %v2822
      %v3205 = vunpack.c.h.b16 %v2822
      %v3206 = vunpack.c.l.b16 %v2823
      %v3207 = vunpack.c.h.b16 %v2823
      %v3208 = vunpack.c.l.b16 %v2824
      %v3209 = vunpack.c.h.b16 %v2824
      %v3210 = vunpack.c.l.b16 %v2825
      %v3211 = vunpack.c.h.b16 %v2825
      %v3212 = vunpack.c.l.b16 %v2826
      %v3213 = vunpack.c.h.b16 %v2826
      %v3214 = vunpack.c.l.b16 %v2827
      %v3215 = vunpack.c.h.b16 %v2827
      %v3216 = vunpack.c.l.b16 %v2828
      %v3217 = vunpack.c.h.b16 %v2828
      %v3218 = vunpack.c.l.b16 %v2829
      %v3219 = vunpack.c.h.b16 %v2829
      %v3220 = vunpack.c.l.b16 %v2830
      %v3221 = vunpack.c.h.b16 %v2830
      %v3222 = vunpack.c.l.b16 %v2831
      %v3223 = vunpack.c.h.b16 %v2831
      %v3224 = vunpack.c.l.b16 %v2832
      %v3225 = vunpack.c.h.b16 %v2832
      %v3226 = vunpack.c.l.b16 %v2833
      %v3227 = vunpack.c.h.b16 %v2833
      %v3228 = vunpack.c.l.b16 %v2834
      %v3229 = vunpack.c.h.b16 %v2834
      %v3230 = vunpack.c.l.b16 %v2835
      %v3231 = vunpack.c.h.b16 %v2835
      %v3232 = vunpack.c.l.b16 %v2836
      %v3233 = vunpack.c.h.b16 %v2836
      %v3234 = vunpack.c.l.b16 %v2837
      %v3235 = vunpack.c.h.b16 %v2837
      %v3236 = vunpack.c.l.b16 %v2838
      %v3237 = vunpack.c.h.b16 %v2838
      %v3238 = vunpack.c.l.b16 %v2839
      %v3239 = vunpack.c.h.b16 %v2839
      %v3240 = vunpack.c.l.b16 %v2840
      %v3241 = vunpack.c.h.b16 %v2840
      %v3242 = vunpack.c.l.b16 %v2841
      %v3243 = vunpack.c.h.b16 %v2841
      %v3244 = vunpack.c.l.b16 %v2842
      %v3245 = vunpack.c.h.b16 %v2842
      %v3246 = vunpack.c.l.b16 %v2843
      %v3247 = vunpack.c.h.b16 %v2843
      %v3248 = vunpack.c.l.b16 %v2844
      %v3249 = vunpack.c.h.b16 %v2844
      %v3250 = vunpack.c.l.b16 %v2845
      %v3251 = vunpack.c.h.b16 %v2845
      %v3252 = vunpack.c.l.b16 %v2846
      %v3253 = vunpack.c.h.b16 %v2846
      %v3254 = vunpack.c.l.b16 %v2847
      %v3255 = vunpack.c.h.b16 %v2847
      %v3256 = vunpack.c.l.b16 %v2848
      %v3257 = vunpack.c.h.b16 %v2848
      %v3258 = vunpack.c.l.b16 %v2849
      %v3259 = vunpack.c.h.b16 %v2849
      %v3260 = vunpack.c.l.b16 %v2850
      %v3261 = vunpack.c.h.b16 %v2850
      %v3262 = vunpack.c.l.b16 %v2851
      %v3263 = vunpack.c.h.b16 %v2851
      %v3264 = vunpack.c.l.b16 %v2852
      %v3265 = vunpack.c.h.b16 %v2852
      %v3266 = vunpack.c.l.b16 %v2853
      %v3267 = vunpack.c.h.b16 %v2853
      %v3268 = vunpack.c.l.b16 %v2854
      %v3269 = vunpack.c.h.b16 %v2854
      %v3270 = vunpack.c.l.b16 %v2855
      %v3271 = vunpack.c.h.b16 %v2855
      %v3272 = vunpack.c.l.b16 %v2856
      %v3273 = vunpack.c.h.b16 %v2856
      %v3274 = vunpack.c.l.b16 %v2857
      %v3275 = vunpack.c.h.b16 %v2857
      %v3276 = vunpack.c.l.b16 %v2858
      %v3277 = vunpack.c.h.b16 %v2858
      %v3278 = vunpack.c.l.b16 %v2859
      %v3279 = vunpack.c.h.b16 %v2859
      %v3280 = vunpack.c.l.b16 %v2860
      %v3281 = vunpack.c.h.b16 %v2860
      %v3282 = vunpack.c.l.b16 %v2861
      %v3283 = vunpack.c.h.b16 %v2861
      %v3284 = vunpack.c.l.b16 %v2862
      %v3285 = vunpack.c.h.b16 %v2862
      %v3286 = vunpack.c.l.b16 %v2863
      %v3287 = vunpack.c.h.b16 %v2863
      %v3288 = vunpack.c.l.b16 %v2864
      %v3289 = vunpack.c.h.b16 %v2864
      %v3290 = vunpack.c.l.b16 %v2865
      %v3291 = vunpack.c.h.b16 %v2865
      %v3292 = vunpack.c.l.b16 %v2866
      %v3293 = vunpack.c.h.b16 %v2866
      %v3294 = vunpack.c.l.b16 %v2867
      %v3295 = vunpack.c.h.b16 %v2867
      %v3296 = vunpack.c.l.b16 %v2868
      %v3297 = vunpack.c.h.b16 %v2868
      %v3298 = vunpack.c.l.b16 %v2869
      %v3299 = vunpack.c.h.b16 %v2869
      %v3300 = vunpack.c.l.b16 %v2870
      %v3301 = vunpack.c.h.b16 %v2870
      %v3302 = vunpack.c.l.b16 %v2871
      %v3303 = vunpack.c.h.b16 %v2871
      %v3304 = vunpack.c.l.b16 %v2872
      %v3305 = vunpack.c.h.b16 %v2872
      %v3306 = vunpack.c.l.b16 %v2873
      %v3307 = vunpack.c.h.b16 %v2873
      %v3308 = vunpack.c.l.b16 %v2874
      %v3309 = vunpack.c.h.b16 %v2874
      %v3310 = vunpack.c.l.b16 %v2875
      %v3311 = vunpack.c.h.b16 %v2875
      %v3312 = vunpack.c.l.b16 %v2876
      %v3313 = vunpack.c.h.b16 %v2876
      %v3314 = vunpack.c.l.b16 %v2877
      %v3315 = vunpack.c.h.b16 %v2877
      %v3316 = vunpack.c.l.b16 %v2878
      %v3317 = vunpack.c.h.b16 %v2878
      %v3318 = vunpack.c.l.b16 %v2879
      %v3319 = vunpack.c.h.b16 %v2879
      %v3320 = vunpack.c.l.b16 %v2880
      %v3321 = vunpack.c.h.b16 %v2880
      %v3322 = vunpack.c.l.b16 %v2881
      %v3323 = vunpack.c.h.b16 %v2881
      %v3324 = vunpack.c.l.b16 %v2882
      %v3325 = vunpack.c.h.b16 %v2882
      %v3326 = vunpack.c.l.b16 %v2883
      %v3327 = vunpack.c.h.b16 %v2883
      %v3328 = vunpack.c.l.b16 %v2884
      %v3329 = vunpack.c.h.b16 %v2884
      %v3330 = vunpack.c.l.b16 %v2885
      %v3331 = vunpack.c.h.b16 %v2885
      %v3332 = vunpack.c.l.b16 %v2886
      %v3333 = vunpack.c.h.b16 %v2886
      %v3334 = vunpack.c.l.b16 %v2887
      %v3335 = vunpack.c.h.b16 %v2887
      %v3336 = vunpack.c.l.b16 %v2888
      %v3337 = vunpack.c.h.b16 %v2888
      %v3338 = vunpack.c.l.b16 %v2889
      %v3339 = vunpack.c.h.b16 %v2889
      %v3340 = vunpack.c.l.b16 %v2890
      %v3341 = vunpack.c.h.b16 %v2890
      %v3342 = vunpack.c.l.b16 %v2891
      %v3343 = vunpack.c.h.b16 %v2891
      %v3344 = vunpack.c.l.b16 %v2892
      %v3345 = vunpack.c.h.b16 %v2892
      %v3346 = vunpack.c.l.b16 %v2893
      %v3347 = vunpack.c.h.b16 %v2893
      %v3348 = vunpack.c.l.b16 %v2894
      %v3349 = vunpack.c.h.b16 %v2894
      %v3350 = vunpack.c.l.b16 %v2895
      %v3351 = vunpack.c.h.b16 %v2895
      %v3352 = vunpack.c.l.b16 %v2896
      %v3353 = vunpack.c.h.b16 %v2896
      %v3354 = vunpack.c.l.b16 %v2897
      %v3355 = vunpack.c.h.b16 %v2897
      %v3356 = vunpack.c.l.b16 %v2898
      %v3357 = vunpack.c.h.b16 %v2898
      %v3358 = vunpack.c.l.b16 %v2899
      %v3359 = vunpack.c.h.b16 %v2899
      %v3360 = vunpack.c.l.b16 %v2900
      %v3361 = vunpack.c.h.b16 %v2900
      %v3362 = vunpack.c.l.b16 %v2901
      %v3363 = vunpack.c.h.b16 %v2901
      %v3364 = vunpack.c.l.b16 %v2902
      %v3365 = vunpack.c.h.b16 %v2902
      %v3366 = vunpack.c.l.b16 %v2903
      %v3367 = vunpack.c.h.b16 %v2903
      %v3368 = vpack.c.b16 %v3116, %v3112
      %v3369 = vpack.c.b16 %v3117, %v3113
      %v3370 = vpack.c.b16 %v3118, %v3114
      %v3371 = vpack.c.b16 %v3119, %v3115
      %v3372 = vpack.c.b16 %v3124, %v3120
      %v3373 = vpack.c.b16 %v3125, %v3121
      %v3374 = vpack.c.b16 %v3126, %v3122
      %v3375 = vpack.c.b16 %v3127, %v3123
      %v3376 = vpack.c.b16 %v3132, %v3128
      %v3377 = vpack.c.b16 %v3133, %v3129
      %v3378 = vpack.c.b16 %v3134, %v3130
      %v3379 = vpack.c.b16 %v3135, %v3131
      %v3380 = vpack.c.b16 %v3140, %v3136
      %v3381 = vpack.c.b16 %v3141, %v3137
      %v3382 = vpack.c.b16 %v3142, %v3138
      %v3383 = vpack.c.b16 %v3143, %v3139
      %v3384 = vpack.c.b16 %v3148, %v3144
      %v3385 = vpack.c.b16 %v3149, %v3145
      %v3386 = vpack.c.b16 %v3150, %v3146
      %v3387 = vpack.c.b16 %v3151, %v3147
      %v3388 = vpack.c.b16 %v3156, %v3152
      %v3389 = vpack.c.b16 %v3157, %v3153
      %v3390 = vpack.c.b16 %v3158, %v3154
      %v3391 = vpack.c.b16 %v3159, %v3155
      %v3392 = vpack.c.b16 %v3164, %v3160
      %v3393 = vpack.c.b16 %v3165, %v3161
      %v3394 = vpack.c.b16 %v3166, %v3162
      %v3395 = vpack.c.b16 %v3167, %v3163
      %v3396 = vpack.c.b16 %v3172, %v3168
      %v3397 = vpack.c.b16 %v3173, %v3169
      %v3398 = vpack.c.b16 %v3174, %v3170
      %v3399 = vpack.c.b16 %v3175, %v3171
      %v3400 = vpack.c.b16 %v3180, %v3176
      %v3401 = vpack.c.b16 %v3181, %v3177
      %v3402 = vpack.c.b16 %v3182, %v3178
      %v3403 = vpack.c.b16 %v3183, %v3179
      %v3404 = vpack.c.b16 %v3188, %v3184
      %v3405 = vpack.c.b16 %v3189, %v3185
      %v3406 = vpack.c.b16 %v3190, %v3186
      %v3407 = vpack.c.b16 %v3191, %v3187
      %v3408 = vpack.c.b16 %v3196, %v3192
      %v3409 = vpack.c.b16 %v3197, %v3193
      %v3410 = vpack.c.b16 %v3198, %v3194
      %v3411 = vpack.c.b16 %v3199, %v3195
      %v3412 = vpack.c.b16 %v3204, %v3200
      %v3413 = vpack.c.b16 %v3205, %v3201
      %v3414 = vpack.c.b16 %v3206, %v3202
      %v3415 = vpack.c.b16 %v3207, %v3203
      %v3416 = vpack.c.b16 %v3212, %v3208
      %v3417 = vpack.c.b16 %v3213, %v3209
      %v3418 = vpack.c.b16 %v3214, %v3210
      %v3419 = vpack.c.b16 %v3215, %v3211
      %v3420 = vpack.c.b16 %v3220, %v3216
      %v3421 = vpack.c.b16 %v3221, %v3217
      %v3422 = vpack.c.b16 %v3222, %v3218
      %v3423 = vpack.c.b16 %v3223, %v3219
      %v3424 = vpack.c.b16 %v3228, %v3224
      %v3425 = vpack.c.b16 %v3229, %v3225
      %v3426 = vpack.c.b16 %v3230, %v3226
      %v3427 = vpack.c.b16 %v3231, %v3227
      %v3428 = vpack.c.b16 %v3236, %v3232
      %v3429 = vpack.c.b16 %v3237, %v3233
      %v3430 = vpack.c.b16 %v3238, %v3234
      %v3431 = vpack.c.b16 %v3239, %v3235
      %v3432 = vpack.c.b16 %v3244, %v3240
      %v3433 = vpack.c.b16 %v3245, %v3241
      %v3434 = vpack.c.b16 %v3246, %v3242
      %v3435 = vpack.c.b16 %v3247, %v3243
      %v3436 = vpack.c.b16 %v3252, %v3248
      %v3437 = vpack.c.b16 %v3253, %v3249
      %v3438 = vpack.c.b16 %v3254, %v3250
      %v3439 = vpack.c.b16 %v3255, %v3251
      %v3440 = vpack.c.b16 %v3260, %v3256
      %v3441 = vpack.c.b16 %v3261, %v3257
      %v3442 = vpack.c.b16 %v3262, %v3258
      %v3443 = vpack.c.b16 %v3263, %v3259
      %v3444 = vpack.c.b16 %v3268, %v3264
      %v3445 = vpack.c.b16 %v3269, %v3265
      %v3446 = vpack.c.b16 %v3270, %v3266
      %v3447 = vpack.c.b16 %v3271, %v3267
      %v3448 = vpack.c.b16 %v3276, %v3272
      %v3449 = vpack.c.b16 %v3277, %v3273
      %v3450 = vpack.c.b16 %v3278, %v3274
      %v3451 = vpack.c.b16 %v3279, %v3275
      %v3452 = vpack.c.b16 %v3284, %v3280
      %v3453 = vpack.c.b16 %v3285, %v3281
      %v3454 = vpack.c.b16 %v3286, %v3282
      %v3455 = vpack.c.b16 %v3287, %v3283
      %v3456 = vpack.c.b16 %v3292, %v3288
      %v3457 = vpack.c.b16 %v3293, %v3289
      %v3458 = vpack.c.b16 %v3294, %v3290
      %v3459 = vpack.c.b16 %v3295, %v3291
      %v3460 = vpack.c.b16 %v3300, %v3296
      %v3461 = vpack.c.b16 %v3301, %v3297
      %v3462 = vpack.c.b16 %v3302, %v3298
      %v3463 = vpack.c.b16 %v3303, %v3299
      %v3464 = vpack.c.b16 %v3308, %v3304
      %v3465 = vpack.c.b16 %v3309, %v3305
      %v3466 = vpack.c.b16 %v3310, %v3306
      %v3467 = vpack.c.b16 %v3311, %v3307
      %v3468 = vpack.c.b16 %v3316, %v3312
      %v3469 = vpack.c.b16 %v3317, %v3313
      %v3470 = vpack.c.b16 %v3318, %v3314
      %v3471 = vpack.c.b16 %v3319, %v3315
      %v3472 = vpack.c.b16 %v3324, %v3320
      %v3473 = vpack.c.b16 %v3325, %v3321
      %v3474 = vpack.c.b16 %v3326, %v3322
      %v3475 = vpack.c.b16 %v3327, %v3323
      %v3476 = vpack.c.b16 %v3332, %v3328
      %v3477 = vpack.c.b16 %v3333, %v3329
      %v3478 = vpack.c.b16 %v3334, %v3330
      %v3479 = vpack.c.b16 %v3335, %v3331
      %v3480 = vpack.c.b16 %v3340, %v3336
      %v3481 = vpack.c.b16 %v3341, %v3337
      %v3482 = vpack.c.b16 %v3342, %v3338
      %v3483 = vpack.c.b16 %v3343, %v3339
      %v3484 = vpack.c.b16 %v3348, %v3344
      %v3485 = vpack.c.b16 %v3349, %v3345
      %v3486 = vpack.c.b16 %v3350, %v3346
      %v3487 = vpack.c.b16 %v3351, %v3347
      %v3488 = vpack.c.b16 %v3356, %v3352
      %v3489 = vpack.c.b16 %v3357, %v3353
      %v3490 = vpack.c.b16 %v3358, %v3354
      %v3491 = vpack.c.b16 %v3359, %v3355
      %v3492 = vpack.c.b16 %v3364, %v3360
      %v3493 = vpack.c.b16 %v3365, %v3361
      %v3494 = vpack.c.b16 %v3366, %v3362
      %v3495 = vpack.c.b16 %v3367, %v3363
      %3624 = vmatprep.subr.bf16.mxu0 %v3397
      %3625 = vmatpush1.bf16.msra.mxu0 %v3396
      %3626 = vmatprep.subr.bf16.mxu0 %v3393
      %3627 = vmatpush1.bf16.msra.mxu0 %v3392
      %3628 = vmatprep.subr.bf16.mxu0 %v3389
      %3629 = vmatpush1.bf16.msra.mxu0 %v3388
      %3630 = vmatprep.subr.bf16.mxu0 %v3385
      %3631 = vmatpush1.bf16.msra.mxu0 %v3384
      %3632 = vmatprep.subr.bf16.mxu0 %v3381
      %3633 = vmatpush1.bf16.msra.mxu0 %v3380
      %3634 = vmatprep.subr.bf16.mxu0 %v3377
      %3635 = vmatpush1.bf16.msra.mxu0 %v3376
      %3636 = vmatprep.subr.bf16.mxu0 %v3373
      %3637 = vmatpush1.bf16.msra.mxu0 %v3372
      %3638 = vmatprep.subr.bf16.mxu0 %v3369
      %3639 = vmatpush1.bf16.msra.mxu0 %v3368
      %3640 = vmatprep.subr.bf16.mxu0 %v3429
      %3641 = vmatpush2.bf16.msra.mxu0 %v3428
      %3642 = vmatprep.subr.bf16.mxu0 %v3425
      %3643 = vmatpush2.bf16.msra.mxu0 %v3424
      %3644 = vmatprep.subr.bf16.mxu0 %v3421
      %3645 = vmatpush2.bf16.msra.mxu0 %v3420
      %3646 = vmatprep.subr.bf16.mxu0 %v3417
      %3647 = vmatpush2.bf16.msra.mxu0 %v3416
      %3648 = vmatprep.subr.bf16.mxu0 %v3413
      %3649 = vmatpush2.bf16.msra.mxu0 %v3412
      %3650 = vmatprep.subr.bf16.mxu0 %v3409
      %3651 = vmatpush2.bf16.msra.mxu0 %v3408
      %3652 = vmatprep.subr.bf16.mxu0 %v3405
      %3653 = vmatpush2.bf16.msra.mxu0 %v3404
      %3654 = vmatprep.subr.bf16.mxu0 %v3401
      %3655 = vmatpush2.bf16.msra.mxu0 %v3400
      %3656 = vmatprep.mubr.bf16.mxu0 %v2953
      %3657 = vmatmul.mubr.bf16.gmra.mxu0 %v2952
      %v3658 = vpop.f32.mrf.mxu0
      %v3659 = vadd.f32 0.0, %v3658
      %v3660 = vpop.f32.mrf.mxu0
      %v3661 = vadd.f32 0.0, %v3660
      %v3662 = vpop.f32.mrf.mxu0
      %v3663 = vadd.f32 0.0, %v3662
      %v3664 = vpop.f32.mrf.mxu0
      %v3665 = vadd.f32 0.0, %v3664
      %3666 = vmatprep.mubr.bf16.mxu0 %v2957
      %3667 = vmatmul.mubr.bf16.gmra.mxu0 %v2956
      %v3668 = vpop.f32.mrf.mxu0
      %v3669 = vadd.f32 0.0, %v3668
      %v3670 = vpop.f32.mrf.mxu0
      %v3671 = vadd.f32 0.0, %v3670
      %v3672 = vpop.f32.mrf.mxu0
      %v3673 = vadd.f32 0.0, %v3672
      %v3674 = vpop.f32.mrf.mxu0
      %v3675 = vadd.f32 0.0, %v3674
      %3676 = vmatprep.mubr.bf16.mxu0 %v2961
      %3677 = vmatmul.mubr.bf16.gmra.mxu0 %v2960
      %v3678 = vpop.f32.mrf.mxu0
      %v3679 = vadd.f32 0.0, %v3678
      %v3680 = vpop.f32.mrf.mxu0
      %v3681 = vadd.f32 0.0, %v3680
      %v3682 = vpop.f32.mrf.mxu0
      %v3683 = vadd.f32 0.0, %v3682
      %v3684 = vpop.f32.mrf.mxu0
      %v3685 = vadd.f32 0.0, %v3684
      %3686 = vmatprep.mubr.bf16.mxu0 %v2965
      %3687 = vmatmul.mubr.bf16.gmra.mxu0 %v2964
      %v3688 = vpop.f32.mrf.mxu0
      %v3689 = vadd.f32 0.0, %v3688
      %v3690 = vpop.f32.mrf.mxu0
      %v3691 = vadd.f32 0.0, %v3690
      %v3692 = vpop.f32.mrf.mxu0
      %v3693 = vadd.f32 0.0, %v3692
      %v3694 = vpop.f32.mrf.mxu0
      %v3695 = vadd.f32 0.0, %v3694
      %3696 = vdwg.mxu0
      %3697 = vmatprep.subr.bf16.mxu0 %v3461
      %3698 = vmatpush1.bf16.msra.mxu0 %v3460
      %3699 = vmatprep.subr.bf16.mxu0 %v3457
      %3700 = vmatpush1.bf16.msra.mxu0 %v3456
      %3701 = vmatprep.subr.bf16.mxu0 %v3453
      %3702 = vmatpush1.bf16.msra.mxu0 %v3452
      %3703 = vmatprep.subr.bf16.mxu0 %v3449
      %3704 = vmatpush1.bf16.msra.mxu0 %v3448
      %3705 = vmatprep.subr.bf16.mxu0 %v3445
      %3706 = vmatpush1.bf16.msra.mxu0 %v3444
      %3707 = vmatprep.subr.bf16.mxu0 %v3441
      %3708 = vmatpush1.bf16.msra.mxu0 %v3440
      %3709 = vmatprep.subr.bf16.mxu0 %v3437
      %3710 = vmatpush1.bf16.msra.mxu0 %v3436
      %3711 = vmatprep.subr.bf16.mxu0 %v3433
      %3712 = vmatpush1.bf16.msra.mxu0 %v3432
      %3713 = vmatprep.subr.bf16.mxu0 %v3493
      %3714 = vmatpush2.bf16.msra.mxu0 %v3492
      %3715 = vmatprep.subr.bf16.mxu0 %v3489
      %3716 = vmatpush2.bf16.msra.mxu0 %v3488
      %3717 = vmatprep.subr.bf16.mxu0 %v3485
      %3718 = vmatpush2.bf16.msra.mxu0 %v3484
      %3719 = vmatprep.subr.bf16.mxu0 %v3481
      %3720 = vmatpush2.bf16.msra.mxu0 %v3480
      %3721 = vmatprep.subr.bf16.mxu0 %v3477
      %3722 = vmatpush2.bf16.msra.mxu0 %v3476
      %3723 = vmatprep.subr.bf16.mxu0 %v3473
      %3724 = vmatpush2.bf16.msra.mxu0 %v3472
      %3725 = vmatprep.subr.bf16.mxu0 %v3469
      %3726 = vmatpush2.bf16.msra.mxu0 %v3468
      %3727 = vmatprep.subr.bf16.mxu0 %v3465
      %3728 = vmatpush2.bf16.msra.mxu0 %v3464
      %3729 = vmatprep.mubr.bf16.mxu0 %v2955
      %3730 = vmatmul.mubr.bf16.gmra.mxu0 %v2954
      %v3731 = vpop.f32.mrf.mxu0
      %v3732 = vadd.f32 %v3659, %v3731
      %v3733 = vpop.f32.mrf.mxu0
      %v3734 = vadd.f32 %v3661, %v3733
      %v3735 = vpop.f32.mrf.mxu0
      %v3736 = vadd.f32 %v3663, %v3735
      %v3737 = vpop.f32.mrf.mxu0
      %v3738 = vadd.f32 %v3665, %v3737
      %3739 = vmatprep.mubr.bf16.mxu0 %v2959
      %3740 = vmatmul.mubr.bf16.gmra.mxu0 %v2958
      %v3741 = vpop.f32.mrf.mxu0
      %v3742 = vadd.f32 %v3669, %v3741
      %v3743 = vpop.f32.mrf.mxu0
      %v3744 = vadd.f32 %v3671, %v3743
      %v3745 = vpop.f32.mrf.mxu0
      %v3746 = vadd.f32 %v3673, %v3745
      %v3747 = vpop.f32.mrf.mxu0
      %v3748 = vadd.f32 %v3675, %v3747
      %3749 = vmatprep.mubr.bf16.mxu0 %v2963
      %3750 = vmatmul.mubr.bf16.gmra.mxu0 %v2962
      %v3751 = vpop.f32.mrf.mxu0
      %v3752 = vadd.f32 %v3679, %v3751
      %v3753 = vpop.f32.mrf.mxu0
      %v3754 = vadd.f32 %v3681, %v3753
      %v3755 = vpop.f32.mrf.mxu0
      %v3756 = vadd.f32 %v3683, %v3755
      %v3757 = vpop.f32.mrf.mxu0
      %v3758 = vadd.f32 %v3685, %v3757
      %3759 = vmatprep.mubr.bf16.mxu0 %v2967
      %3760 = vmatmul.mubr.bf16.gmra.mxu0 %v2966
      %v3761 = vpop.f32.mrf.mxu0
      %v3762 = vadd.f32 %v3689, %v3761
      %v3763 = vpop.f32.mrf.mxu0
      %v3764 = vadd.f32 %v3691, %v3763
      %v3765 = vpop.f32.mrf.mxu0
      %v3766 = vadd.f32 %v3693, %v3765
      %v3767 = vpop.f32.mrf.mxu0
      %v3768 = vadd.f32 %v3695, %v3767
      %3769 = vdwg.mxu0
      %3770 = vmatprep.subr.bf16.mxu0 %v3399
      %3771 = vmatpush1.bf16.msra.mxu0 %v3398
      %3772 = vmatprep.subr.bf16.mxu0 %v3395
      %3773 = vmatpush1.bf16.msra.mxu0 %v3394
      %3774 = vmatprep.subr.bf16.mxu0 %v3391
      %3775 = vmatpush1.bf16.msra.mxu0 %v3390
      %3776 = vmatprep.subr.bf16.mxu0 %v3387
      %3777 = vmatpush1.bf16.msra.mxu0 %v3386
      %3778 = vmatprep.subr.bf16.mxu0 %v3383
      %3779 = vmatpush1.bf16.msra.mxu0 %v3382
      %3780 = vmatprep.subr.bf16.mxu0 %v3379
      %3781 = vmatpush1.bf16.msra.mxu0 %v3378
      %3782 = vmatprep.subr.bf16.mxu0 %v3375
      %3783 = vmatpush1.bf16.msra.mxu0 %v3374
      %3784 = vmatprep.subr.bf16.mxu0 %v3371
      %3785 = vmatpush1.bf16.msra.mxu0 %v3370
      %3786 = vmatprep.subr.bf16.mxu0 %v3431
      %3787 = vmatpush2.bf16.msra.mxu0 %v3430
      %3788 = vmatprep.subr.bf16.mxu0 %v3427
      %3789 = vmatpush2.bf16.msra.mxu0 %v3426
      %3790 = vmatprep.subr.bf16.mxu0 %v3423
      %3791 = vmatpush2.bf16.msra.mxu0 %v3422
      %3792 = vmatprep.subr.bf16.mxu0 %v3419
      %3793 = vmatpush2.bf16.msra.mxu0 %v3418
      %3794 = vmatprep.subr.bf16.mxu0 %v3415
      %3795 = vmatpush2.bf16.msra.mxu0 %v3414
      %3796 = vmatprep.subr.bf16.mxu0 %v3411
      %3797 = vmatpush2.bf16.msra.mxu0 %v3410
      %3798 = vmatprep.subr.bf16.mxu0 %v3407
      %3799 = vmatpush2.bf16.msra.mxu0 %v3406
      %3800 = vmatprep.subr.bf16.mxu0 %v3403
      %3801 = vmatpush2.bf16.msra.mxu0 %v3402
      %3802 = vmatprep.mubr.bf16.mxu0 %v2953
      %3803 = vmatmul.mubr.bf16.gmra.mxu0 %v2952
      %v3804 = vpop.f32.mrf.mxu0
      %v3805 = vadd.f32 0.0, %v3804
      %v3806 = vpop.f32.mrf.mxu0
      %v3807 = vadd.f32 0.0, %v3806
      %v3808 = vpop.f32.mrf.mxu0
      %v3809 = vadd.f32 0.0, %v3808
      %v3810 = vpop.f32.mrf.mxu0
      %v3811 = vadd.f32 0.0, %v3810
      %3812 = vmatprep.mubr.bf16.mxu0 %v2957
      %3813 = vmatmul.mubr.bf16.gmra.mxu0 %v2956
      %v3814 = vpop.f32.mrf.mxu0
      %v3815 = vadd.f32 0.0, %v3814
      %v3816 = vpop.f32.mrf.mxu0
      %v3817 = vadd.f32 0.0, %v3816
      %v3818 = vpop.f32.mrf.mxu0
      %v3819 = vadd.f32 0.0, %v3818
      %v3820 = vpop.f32.mrf.mxu0
      %v3821 = vadd.f32 0.0, %v3820
      %3822 = vmatprep.mubr.bf16.mxu0 %v2961
      %3823 = vmatmul.mubr.bf16.gmra.mxu0 %v2960
      %v3824 = vpop.f32.mrf.mxu0
      %v3825 = vadd.f32 0.0, %v3824
      %v3826 = vpop.f32.mrf.mxu0
      %v3827 = vadd.f32 0.0, %v3826
      %v3828 = vpop.f32.mrf.mxu0
      %v3829 = vadd.f32 0.0, %v3828
      %v3830 = vpop.f32.mrf.mxu0
      %v3831 = vadd.f32 0.0, %v3830
      %3832 = vmatprep.mubr.bf16.mxu0 %v2965
      %3833 = vmatmul.mubr.bf16.gmra.mxu0 %v2964
      %v3834 = vpop.f32.mrf.mxu0
      %v3835 = vadd.f32 0.0, %v3834
      %v3836 = vpop.f32.mrf.mxu0
      %v3837 = vadd.f32 0.0, %v3836
      %v3838 = vpop.f32.mrf.mxu0
      %v3839 = vadd.f32 0.0, %v3838
      %v3840 = vpop.f32.mrf.mxu0
      %v3841 = vadd.f32 0.0, %v3840
      %3842 = vdwg.mxu0
      %3843 = vmatprep.subr.bf16.mxu0 %v3463
      %3844 = vmatpush1.bf16.msra.mxu0 %v3462
      %3845 = vmatprep.subr.bf16.mxu0 %v3459
      %3846 = vmatpush1.bf16.msra.mxu0 %v3458
      %3847 = vmatprep.subr.bf16.mxu0 %v3455
      %3848 = vmatpush1.bf16.msra.mxu0 %v3454
      %3849 = vmatprep.subr.bf16.mxu0 %v3451
      %3850 = vmatpush1.bf16.msra.mxu0 %v3450
      %3851 = vmatprep.subr.bf16.mxu0 %v3447
      %3852 = vmatpush1.bf16.msra.mxu0 %v3446
      %3853 = vmatprep.subr.bf16.mxu0 %v3443
      %3854 = vmatpush1.bf16.msra.mxu0 %v3442
      %3855 = vmatprep.subr.bf16.mxu0 %v3439
      %3856 = vmatpush1.bf16.msra.mxu0 %v3438
      %3857 = vmatprep.subr.bf16.mxu0 %v3435
      %3858 = vmatpush1.bf16.msra.mxu0 %v3434
      %3859 = vmatprep.subr.bf16.mxu0 %v3495
      %3860 = vmatpush2.bf16.msra.mxu0 %v3494
      %3861 = vmatprep.subr.bf16.mxu0 %v3491
      %3862 = vmatpush2.bf16.msra.mxu0 %v3490
      %3863 = vmatprep.subr.bf16.mxu0 %v3487
      %3864 = vmatpush2.bf16.msra.mxu0 %v3486
      %3865 = vmatprep.subr.bf16.mxu0 %v3483
      %3866 = vmatpush2.bf16.msra.mxu0 %v3482
      %3867 = vmatprep.subr.bf16.mxu0 %v3479
      %3868 = vmatpush2.bf16.msra.mxu0 %v3478
      %3869 = vmatprep.subr.bf16.mxu0 %v3475
      %3870 = vmatpush2.bf16.msra.mxu0 %v3474
      %3871 = vmatprep.subr.bf16.mxu0 %v3471
      %3872 = vmatpush2.bf16.msra.mxu0 %v3470
      %3873 = vmatprep.subr.bf16.mxu0 %v3467
      %3874 = vmatpush2.bf16.msra.mxu0 %v3466
      %3875 = vmatprep.mubr.bf16.mxu0 %v2955
      %3876 = vmatmul.mubr.bf16.gmra.mxu0 %v2954
      %v3877 = vpop.f32.mrf.mxu0
      %v3878 = vadd.f32 %v3805, %v3877
      %v3879 = vpop.f32.mrf.mxu0
      %v3880 = vadd.f32 %v3807, %v3879
      %v3881 = vpop.f32.mrf.mxu0
      %v3882 = vadd.f32 %v3809, %v3881
      %v3883 = vpop.f32.mrf.mxu0
      %v3884 = vadd.f32 %v3811, %v3883
      %3885 = vmatprep.mubr.bf16.mxu0 %v2959
      %3886 = vmatmul.mubr.bf16.gmra.mxu0 %v2958
      %v3887 = vpop.f32.mrf.mxu0
      %v3888 = vadd.f32 %v3815, %v3887
      %v3889 = vpop.f32.mrf.mxu0
      %v3890 = vadd.f32 %v3817, %v3889
      %v3891 = vpop.f32.mrf.mxu0
      %v3892 = vadd.f32 %v3819, %v3891
      %v3893 = vpop.f32.mrf.mxu0
      %v3894 = vadd.f32 %v3821, %v3893
      %3895 = vmatprep.mubr.bf16.mxu0 %v2963
      %3896 = vmatmul.mubr.bf16.gmra.mxu0 %v2962
      %v3897 = vpop.f32.mrf.mxu0
      %v3898 = vadd.f32 %v3825, %v3897
      %v3899 = vpop.f32.mrf.mxu0
      %v3900 = vadd.f32 %v3827, %v3899
      %v3901 = vpop.f32.mrf.mxu0
      %v3902 = vadd.f32 %v3829, %v3901
      %v3903 = vpop.f32.mrf.mxu0
      %v3904 = vadd.f32 %v3831, %v3903
      %3905 = vmatprep.mubr.bf16.mxu0 %v2967
      %3906 = vmatmul.mubr.bf16.gmra.mxu0 %v2966
      %v3907 = vpop.f32.mrf.mxu0
      %v3908 = vadd.f32 %v3835, %v3907
      %v3909 = vpop.f32.mrf.mxu0
      %v3910 = vadd.f32 %v3837, %v3909
      %v3911 = vpop.f32.mrf.mxu0
      %v3912 = vadd.f32 %v3839, %v3911
      %v3913 = vpop.f32.mrf.mxu0
      %v3914 = vadd.f32 %v3841, %v3913
      %3915 = vdwg.mxu0
      %v3916 = vadd.f32 %v2727, %v3732
      %v3917 = vadd.f32 %v2728, %v3734
      %v3918 = vadd.f32 %v2729, %v3878
      %v3919 = vadd.f32 %v2730, %v3880
      %v3920 = vadd.f32 %v2731, %v3736
      %v3921 = vadd.f32 %v2732, %v3738
      %v3922 = vadd.f32 %v2733, %v3882
      %v3923 = vadd.f32 %v2734, %v3884
      %v3924 = vadd.f32 %v2735, %v3742
      %v3925 = vadd.f32 %v2736, %v3744
      %v3926 = vadd.f32 %v2737, %v3888
      %v3927 = vadd.f32 %v2738, %v3890
      %v3928 = vadd.f32 %v2739, %v3746
      %v3929 = vadd.f32 %v2740, %v3748
      %v3930 = vadd.f32 %v2741, %v3892
      %v3931 = vadd.f32 %v2742, %v3894
      %v3932 = vadd.f32 %v2743, %v3752
      %v3933 = vadd.f32 %v2744, %v3754
      %v3934 = vadd.f32 %v2745, %v3898
      %v3935 = vadd.f32 %v2746, %v3900
      %v3936 = vadd.f32 %v2747, %v3756
      %v3937 = vadd.f32 %v2748, %v3758
      %v3938 = vadd.f32 %v2749, %v3902
      %v3939 = vadd.f32 %v2750, %v3904
      %v3940 = vadd.f32 %v2751, %v3762
      %v3941 = vadd.f32 %v2752, %v3764
      %v3942 = vadd.f32 %v2753, %v3908
      %v3943 = vadd.f32 %v2754, %v3910
      %v3944 = vadd.f32 %v2755, %v3766
      %v3945 = vadd.f32 %v2756, %v3768
      %v3946 = vadd.f32 %v2757, %v3912
      %v3947 = vadd.f32 %v2758, %v3914
      %3948 = vst [vmem:[#allocation2] sm:$0xff] %v3916
      %3949 = vst [vmem:[#allocation2 + $0x8] sm:$0xff] %v3917
      %3950 = vst [vmem:[#allocation2 + $0x10] sm:$0xff] %v3918
      %3951 = vst [vmem:[#allocation2 + $0x18] sm:$0xff] %v3919
      %3952 = vst [vmem:[#allocation2 + $0x20] sm:$0xff] %v3920
      %3953 = vst [vmem:[#allocation2 + $0x28] sm:$0xff] %v3921
      %3954 = vst [vmem:[#allocation2 + $0x30] sm:$0xff] %v3922
      %3955 = vst [vmem:[#allocation2 + $0x38] sm:$0xff] %v3923
      %3956 = vst [vmem:[#allocation2 + $0x40] sm:$0xff] %v3924
      %3957 = vst [vmem:[#allocation2 + $0x48] sm:$0xff] %v3925
      %3958 = vst [vmem:[#allocation2 + $0x50] sm:$0xff] %v3926
      %3959 = vst [vmem:[#allocation2 + $0x58] sm:$0xff] %v3927
      %3960 = vst [vmem:[#allocation2 + $0x60] sm:$0xff] %v3928
      %3961 = vst [vmem:[#allocation2 + $0x68] sm:$0xff] %v3929
      %3962 = vst [vmem:[#allocation2 + $0x70] sm:$0xff] %v3930
      %3963 = vst [vmem:[#allocation2 + $0x78] sm:$0xff] %v3931
      %3964 = vst [vmem:[#allocation2 + $0x80] sm:$0xff] %v3932
      %3965 = vst [vmem:[#allocation2 + $0x88] sm:$0xff] %v3933
      %3966 = vst [vmem:[#allocation2 + $0x90] sm:$0xff] %v3934
      %3967 = vst [vmem:[#allocation2 + $0x98] sm:$0xff] %v3935
      %3968 = vst [vmem:[#allocation2 + $0xa0] sm:$0xff] %v3936
      %3969 = vst [vmem:[#allocation2 + $0xa8] sm:$0xff] %v3937
      %3970 = vst [vmem:[#allocation2 + $0xb0] sm:$0xff] %v3938
      %3971 = vst [vmem:[#allocation2 + $0xb8] sm:$0xff] %v3939
      %3972 = vst [vmem:[#allocation2 + $0xc0] sm:$0xff] %v3940
      %3973 = vst [vmem:[#allocation2 + $0xc8] sm:$0xff] %v3941
      %3974 = vst [vmem:[#allocation2 + $0xd0] sm:$0xff] %v3942
      %3975 = vst [vmem:[#allocation2 + $0xd8] sm:$0xff] %v3943
      %3976 = vst [vmem:[#allocation2 + $0xe0] sm:$0xff] %v3944
      %3977 = vst [vmem:[#allocation2 + $0xe8] sm:$0xff] %v3945
      %3978 = vst [vmem:[#allocation2 + $0xf0] sm:$0xff] %v3946
      %3979 = vst [vmem:[#allocation2 + $0xf8] sm:$0xff] %v3947
      %p3980 = scmp.eq.s32.totalorder %s22, 8
      // Predicated region
      $region37: #{_lambda_.6} parent=31 // pred_check
        %p3981 = pneg %p3980
      $region38: #{_lambda_.6} parent=31 // pred_check_branch
        %3983 = sbr.rel (%p3981) target = $region40
      $region39: #{_lambda_.6} parent=31 // pred_region
        %v3984 = vpack.c.bf16 %v3920, %v3916
        %v3985 = vpack.c.bf16 %v3921, %v3917
        %v3986 = vpack.c.bf16 %v3922, %v3918
        %v3987 = vpack.c.bf16 %v3923, %v3919
        %v3988 = vpack.c.bf16 %v3928, %v3924
        %v3989 = vpack.c.bf16 %v3929, %v3925
        %v3990 = vpack.c.bf16 %v3930, %v3926
        %v3991 = vpack.c.bf16 %v3931, %v3927
        %v3992 = vpack.c.bf16 %v3936, %v3932
        %v3993 = vpack.c.bf16 %v3937, %v3933
        %v3994 = vpack.c.bf16 %v3938, %v3934
        %v3995 = vpack.c.bf16 %v3939, %v3935
        %v3996 = vpack.c.bf16 %v3944, %v3940
        %v3997 = vpack.c.bf16 %v3945, %v3941
        %v3998 = vpack.c.bf16 %v3946, %v3942
        %v3999 = vpack.c.bf16 %v3947, %v3943
        %v4016 = vunpack.c.l.b16 %v3984
        %v4017 = vunpack.c.l.b16 %v3985
        %v4018 = vunpack.c.l.b16 %v3986
        %v4019 = vunpack.c.l.b16 %v3987
        %v4020 = vunpack.c.h.b16 %v3984
        %v4021 = vunpack.c.h.b16 %v3985
        %v4022 = vunpack.c.h.b16 %v3986
        %v4023 = vunpack.c.h.b16 %v3987
        %v4024 = vunpack.c.l.b16 %v3988
        %v4025 = vunpack.c.l.b16 %v3989
        %v4026 = vunpack.c.l.b16 %v3990
        %v4027 = vunpack.c.l.b16 %v3991
        %v4028 = vunpack.c.h.b16 %v3988
        %v4029 = vunpack.c.h.b16 %v3989
        %v4030 = vunpack.c.h.b16 %v3990
        %v4031 = vunpack.c.h.b16 %v3991
        %v4032 = vunpack.c.l.b16 %v3992
        %v4033 = vunpack.c.l.b16 %v3993
        %v4034 = vunpack.c.l.b16 %v3994
        %v4035 = vunpack.c.l.b16 %v3995
        %v4036 = vunpack.c.h.b16 %v3992
        %v4037 = vunpack.c.h.b16 %v3993
        %v4038 = vunpack.c.h.b16 %v3994
        %v4039 = vunpack.c.h.b16 %v3995
        %v4040 = vunpack.c.l.b16 %v3996
        %v4041 = vunpack.c.l.b16 %v3997
        %v4042 = vunpack.c.l.b16 %v3998
        %v4043 = vunpack.c.l.b16 %v3999
        %v4044 = vunpack.c.h.b16 %v3996
        %v4045 = vunpack.c.h.b16 %v3997
        %v4046 = vunpack.c.h.b16 %v3998
        %v4047 = vunpack.c.h.b16 %v3999
        %v4048 = vpack.c.b16 %v4017, %v4016
        %v4049 = vpack.c.b16 %v4019, %v4018
        %v4050 = vpack.c.b16 %v4021, %v4020
        %v4051 = vpack.c.b16 %v4023, %v4022
        %v4052 = vpack.c.b16 %v4025, %v4024
        %v4053 = vpack.c.b16 %v4027, %v4026
        %v4054 = vpack.c.b16 %v4029, %v4028
        %v4055 = vpack.c.b16 %v4031, %v4030
        %v4056 = vpack.c.b16 %v4033, %v4032
        %v4057 = vpack.c.b16 %v4035, %v4034
        %v4058 = vpack.c.b16 %v4037, %v4036
        %v4059 = vpack.c.b16 %v4039, %v4038
        %v4060 = vpack.c.b16 %v4041, %v4040
        %v4061 = vpack.c.b16 %v4043, %v4042
        %v4062 = vpack.c.b16 %v4045, %v4044
        %v4063 = vpack.c.b16 %v4047, %v4046
        %4080 = vst [vmem:[%s283] sm:$0xff] %v4048
        %4081 = vst [vmem:[%s283 + $0x8] sm:$0xff] %v4049
        %4082 = vst [vmem:[%s283 + $0x10] sm:$0xff] %v4050
        %4083 = vst [vmem:[%s283 + $0x18] sm:$0xff] %v4051
        %4084 = vst [vmem:[%s283 + $0x20] sm:$0xff] %v4052
        %4085 = vst [vmem:[%s283 + $0x28] sm:$0xff] %v4053
        %4086 = vst [vmem:[%s283 + $0x30] sm:$0xff] %v4054
        %4087 = vst [vmem:[%s283 + $0x38] sm:$0xff] %v4055
        %4088 = vst [vmem:[%s283 + $0x40] sm:$0xff] %v4056
        %4089 = vst [vmem:[%s283 + $0x48] sm:$0xff] %v4057
        %4090 = vst [vmem:[%s283 + $0x50] sm:$0xff] %v4058
        %4091 = vst [vmem:[%s283 + $0x58] sm:$0xff] %v4059
        %4092 = vst [vmem:[%s283 + $0x60] sm:$0xff] %v4060
        %4093 = vst [vmem:[%s283 + $0x68] sm:$0xff] %v4061
        %4094 = vst [vmem:[%s283 + $0x70] sm:$0xff] %v4062
        %4095 = vst [vmem:[%s283 + $0x78] sm:$0xff] %v4063
        %v4096 = vadd.f32 %v3916, %v3920
        %v4097 = vadd.f32 %v4096, %v3924
        %v4098 = vadd.f32 %v4097, %v3928
        %v4099 = vadd.f32 %v4098, %v3932
        %v4100 = vadd.f32 %v4099, %v3936
        %v4101 = vadd.f32 %v4100, %v3940
        %v4102 = vadd.f32 %v4101, %v3944
        %v4103 = vrot.slane %v4102, 4
        %v4104 = vadd.f32 %v4102, %v4103
        %v4105 = vrot.slane %v4104, 2
        %v4106 = vadd.f32 %v4104, %v4105
        %v4107 = vrot.slane %v4106, 1
        %v4108 = vadd.f32 %v4106, %v4107
        %v4109 = vadd.f32 %v3917, %v3921
        %v4110 = vadd.f32 %v4109, %v3925
        %v4111 = vadd.f32 %v4110, %v3929
        %v4112 = vadd.f32 %v4111, %v3933
        %v4113 = vadd.f32 %v4112, %v3937
        %v4114 = vadd.f32 %v4113, %v3941
        %v4115 = vadd.f32 %v4114, %v3945
        %v4116 = vrot.slane %v4115, 4
        %v4117 = vadd.f32 %v4115, %v4116
        %v4118 = vrot.slane %v4117, 2
        %v4119 = vadd.f32 %v4117, %v4118
        %v4120 = vrot.slane %v4119, 1
        %v4121 = vadd.f32 %v4119, %v4120
        %v4122 = vadd.f32 %v3918, %v3922
        %v4123 = vadd.f32 %v4122, %v3926
        %v4124 = vadd.f32 %v4123, %v3930
        %v4125 = vadd.f32 %v4124, %v3934
        %v4126 = vadd.f32 %v4125, %v3938
        %v4127 = vadd.f32 %v4126, %v3942
        %v4128 = vadd.f32 %v4127, %v3946
        %v4129 = vrot.slane %v4128, 4
        %v4130 = vadd.f32 %v4128, %v4129
        %v4131 = vrot.slane %v4130, 2
        %v4132 = vadd.f32 %v4130, %v4131
        %v4133 = vrot.slane %v4132, 1
        %v4134 = vadd.f32 %v4132, %v4133
        %v4135 = vadd.f32 %v3919, %v3923
        %v4136 = vadd.f32 %v4135, %v3927
        %v4137 = vadd.f32 %v4136, %v3931
        %v4138 = vadd.f32 %v4137, %v3935
        %v4139 = vadd.f32 %v4138, %v3939
        %v4140 = vadd.f32 %v4139, %v3943
        %v4141 = vadd.f32 %v4140, %v3947
        %v4142 = vrot.slane %v4141, 4
        %v4143 = vadd.f32 %v4141, %v4142
        %v4144 = vrot.slane %v4143, 2
        %v4145 = vadd.f32 %v4143, %v4144
        %v4146 = vrot.slane %v4145, 1
        %v4147 = vadd.f32 %v4145, %v4146
        %v4152 = vcombine.low %v4108, %v4121
        %v4153 = vcombine.low %v4134, %v4147
        %v4155 = vunpack.c.l.s4 1966171168
        %v4156 = vunpack.c.0.s8 %v4155
        %v4157 = vlaneseq
        %v4158 = vshrl.u32 %v4157, 7
        %v4159 = vsub.s32 %v4156, %v4158
        %v4160 = vrot.slane %v4152, %v4159
        %v4162 = vunpack.c.l.s4 1966171168
        %v4163 = vunpack.c.0.s8 %v4162
        %v4164 = vlaneseq
        %v4165 = vshrl.u32 %v4164, 7
        %v4166 = vsub.s32 %v4163, %v4165
        %v4167 = vrot.slane %v4153, %v4166
        %v4168 = vcombine.low %v4160, %v4167
        %v4170 = vunpack.c.l.s4 1966171168
        %v4171 = vunpack.c.0.s8 %v4170
        %v4172 = vlaneseq
        %v4173 = vshrl.u32 %v4172, 7
        %v4174 = vsub.s32 %v4171, %v4173
        %v4175 = vrot.slane %v4168, %v4174
        %v4177 = vlaneseq
        %vm4178 = vcmp.ge.s32.totalorder %v4177, 0
        %vm4179 = vcmp.lt.s32.totalorder %v4177, 512
        %vm4180 = vmand %vm4178, %vm4179
        %4181 = vst.msk [vmem:[%s287] sm:$0xf] %vm4180, %v4175
        %v4182 = vmul.f32 %v3916, %v3916
        %v4183 = vmul.f32 %v3917, %v3917
        %v4184 = vmul.f32 %v3918, %v3918
        %v4185 = vmul.f32 %v3919, %v3919
        %v4186 = vmul.f32 %v3920, %v3920
        %v4187 = vmul.f32 %v3921, %v3921
        %v4188 = vmul.f32 %v3922, %v3922
        %v4189 = vmul.f32 %v3923, %v3923
        %v4190 = vmul.f32 %v3924, %v3924
        %v4191 = vmul.f32 %v3925, %v3925
        %v4192 = vmul.f32 %v3926, %v3926
        %v4193 = vmul.f32 %v3927, %v3927
        %v4194 = vmul.f32 %v3928, %v3928
        %v4195 = vmul.f32 %v3929, %v3929
        %v4196 = vmul.f32 %v3930, %v3930
        %v4197 = vmul.f32 %v3931, %v3931
        %v4198 = vmul.f32 %v3932, %v3932
        %v4199 = vmul.f32 %v3933, %v3933
        %v4200 = vmul.f32 %v3934, %v3934
        %v4201 = vmul.f32 %v3935, %v3935
        %v4202 = vmul.f32 %v3936, %v3936
        %v4203 = vmul.f32 %v3937, %v3937
        %v4204 = vmul.f32 %v3938, %v3938
        %v4205 = vmul.f32 %v3939, %v3939
        %v4206 = vmul.f32 %v3940, %v3940
        %v4207 = vmul.f32 %v3941, %v3941
        %v4208 = vmul.f32 %v3942, %v3942
        %v4209 = vmul.f32 %v3943, %v3943
        %v4210 = vmul.f32 %v3944, %v3944
        %v4211 = vmul.f32 %v3945, %v3945
        %v4212 = vmul.f32 %v3946, %v3946
        %v4213 = vmul.f32 %v3947, %v3947
        %v4214 = vadd.f32 %v4182, %v4186
        %v4215 = vadd.f32 %v4214, %v4190
        %v4216 = vadd.f32 %v4215, %v4194
        %v4217 = vadd.f32 %v4216, %v4198
        %v4218 = vadd.f32 %v4217, %v4202
        %v4219 = vadd.f32 %v4218, %v4206
        %v4220 = vadd.f32 %v4219, %v4210
        %v4221 = vrot.slane %v4220, 4
        %v4222 = vadd.f32 %v4220, %v4221
        %v4223 = vrot.slane %v4222, 2
        %v4224 = vadd.f32 %v4222, %v4223
        %v4225 = vrot.slane %v4224, 1
        %v4226 = vadd.f32 %v4224, %v4225
        %v4227 = vadd.f32 %v4183, %v4187
        %v4228 = vadd.f32 %v4227, %v4191
        %v4229 = vadd.f32 %v4228, %v4195
        %v4230 = vadd.f32 %v4229, %v4199
        %v4231 = vadd.f32 %v4230, %v4203
        %v4232 = vadd.f32 %v4231, %v4207
        %v4233 = vadd.f32 %v4232, %v4211
        %v4234 = vrot.slane %v4233, 4
        %v4235 = vadd.f32 %v4233, %v4234
        %v4236 = vrot.slane %v4235, 2
        %v4237 = vadd.f32 %v4235, %v4236
        %v4238 = vrot.slane %v4237, 1
        %v4239 = vadd.f32 %v4237, %v4238
        %v4240 = vadd.f32 %v4184, %v4188
        %v4241 = vadd.f32 %v4240, %v4192
        %v4242 = vadd.f32 %v4241, %v4196
        %v4243 = vadd.f32 %v4242, %v4200
        %v4244 = vadd.f32 %v4243, %v4204
        %v4245 = vadd.f32 %v4244, %v4208
        %v4246 = vadd.f32 %v4245, %v4212
        %v4247 = vrot.slane %v4246, 4
        %v4248 = vadd.f32 %v4246, %v4247
        %v4249 = vrot.slane %v4248, 2
        %v4250 = vadd.f32 %v4248, %v4249
        %v4251 = vrot.slane %v4250, 1
        %v4252 = vadd.f32 %v4250, %v4251
        %v4253 = vadd.f32 %v4185, %v4189
        %v4254 = vadd.f32 %v4253, %v4193
        %v4255 = vadd.f32 %v4254, %v4197
        %v4256 = vadd.f32 %v4255, %v4201
        %v4257 = vadd.f32 %v4256, %v4205
        %v4258 = vadd.f32 %v4257, %v4209
        %v4259 = vadd.f32 %v4258, %v4213
        %v4260 = vrot.slane %v4259, 4
        %v4261 = vadd.f32 %v4259, %v4260
        %v4262 = vrot.slane %v4261, 2
        %v4263 = vadd.f32 %v4261, %v4262
        %v4264 = vrot.slane %v4263, 1
        %v4265 = vadd.f32 %v4263, %v4264
        %v4270 = vcombine.low %v4226, %v4239
        %v4271 = vcombine.low %v4252, %v4265
        %v4273 = vunpack.c.l.s4 1966171168
        %v4274 = vunpack.c.0.s8 %v4273
        %v4275 = vlaneseq
        %v4276 = vshrl.u32 %v4275, 7
        %v4277 = vsub.s32 %v4274, %v4276
        %v4278 = vrot.slane %v4270, %v4277
        %v4280 = vunpack.c.l.s4 1966171168
        %v4281 = vunpack.c.0.s8 %v4280
        %v4282 = vlaneseq
        %v4283 = vshrl.u32 %v4282, 7
        %v4284 = vsub.s32 %v4281, %v4283
        %v4285 = vrot.slane %v4271, %v4284
        %v4286 = vcombine.low %v4278, %v4285
        %v4288 = vunpack.c.l.s4 1966171168
        %v4289 = vunpack.c.0.s8 %v4288
        %v4290 = vlaneseq
        %v4291 = vshrl.u32 %v4290, 7
        %v4292 = vsub.s32 %v4289, %v4291
        %v4293 = vrot.slane %v4286, %v4292
        %4295 = vst.msk [vmem:[%s291] sm:$0xf] %vm4180, %v4293
      $region40: #{_lambda_.6} parent=31 // pred_fallthru
        _
      %p4296 = scmp.lt.s32.totalorder %s21, 1
      %s4297 = scalar_select %p4296, %s21, 1
      %s4298 = smul.addr %s4297, 32
      %s4299 = smul.addr %s4298, 4
      %s4300 = scalar_lea.vmem %s3, %s4299
      %p4301 = scmp.lt.s32.totalorder %s21, 1
      %s4302 = scalar_select %p4301, %s21, 1
      %s4303 = smul.addr %s4302, 4
      %s4304 = scalar_lea.vmem %s4, %s4303
      %p4305 = scmp.lt.s32.totalorder %s21, 1
      %s4306 = scalar_select %p4305, %s21, 1
      %s4307 = smul.addr %s4306, 4
      %s4308 = scalar_lea.vmem %s5, %s4307
      // Predicated region
      $region41: #{_lambda_.6} parent=31 // pred_check
        %p4309 = pneg %p122
      $region42: #{_lambda_.6} parent=31 // pred_check_branch
        %4311 = sbr.rel (%p4309) target = $region44
      $region43: #{_lambda_.6} parent=31 // pred_region
        _
      $region44: #{_lambda_.6} parent=31 // pred_fallthru
        _
      // Predicated region
      $region45: #{_lambda_.6} parent=31 // pred_check
        %p4312 = pneg %p148
      $region46: #{_lambda_.6} parent=31 // pred_check_branch
        %4314 = sbr.rel (%p4312) target = $region48
      $region47: #{_lambda_.6} parent=31 // pred_region
        _
      $region48: #{_lambda_.6} parent=31 // pred_fallthru
        _
      // Predicated region
      $region49: #{_lambda_.6} parent=31 // pred_check
        %p4315 = pneg %p174
      $region50: #{_lambda_.6} parent=31 // pred_check_branch
        %4317 = sbr.rel (%p4315) target = $region52
      $region51: #{_lambda_.6} parent=31 // pred_region
        _
      $region52: #{_lambda_.6} parent=31 // pred_fallthru
        _
    $region32: #{_lambda_.6} parent=5 // pred_fallthru
      _
    %p4318 = scmp.le.s32.totalorder 2, %s12
    // Predicated region
    $region53: #{_lambda_.6} parent=5 // pred_check
      %p4319 = pneg %p4318
    $region54: #{_lambda_.6} parent=5 // pred_check_branch
      %4321 = sbr.rel (%p4319) target = $region56
    $region55: #{_lambda_.6} parent=5 // pred_region
      %s4322 = ssub.s32 %s12, 2
      // Predicated region
      $region57: #{_lambda_.6} parent=55 // pred_check
        %p4323 = pneg %p128
      $region58: #{_lambda_.6} parent=55 // pred_check_branch
        %4325 = sbr.rel (%p4323) target = $region60
      $region59: #{_lambda_.6} parent=55 // pred_region
        %p4326 = scmp.lt.s32.totalorder %s23, 1
        %s4327 = scalar_select %p4326, %s23, 1
        %s4328 = smul.addr %s4327, 32
        %s4329 = smul.addr %s4328, 4
        %s4330 = scalar_lea.vmem %s3, %s4329
      $region60: #{_lambda_.6} parent=55 // pred_fallthru
        _
      // Predicated region
      $region61: #{_lambda_.6} parent=55 // pred_check
        %p4331 = pneg %p154
      $region62: #{_lambda_.6} parent=55 // pred_check_branch
        %4333 = sbr.rel (%p4331) target = $region64
      $region63: #{_lambda_.6} parent=55 // pred_region
        %p4334 = scmp.lt.s32.totalorder %s23, 1
        %s4335 = scalar_select %p4334, %s23, 1
        %s4336 = smul.addr %s4335, 4
        %s4337 = scalar_lea.vmem %s4, %s4336
      $region64: #{_lambda_.6} parent=55 // pred_fallthru
        _
      // Predicated region
      $region65: #{_lambda_.6} parent=55 // pred_check
        %p4338 = pneg %p180
      $region66: #{_lambda_.6} parent=55 // pred_check_branch
        %4340 = sbr.rel (%p4338) target = $region68
      $region67: #{_lambda_.6} parent=55 // pred_region
        %p4341 = scmp.lt.s32.totalorder %s23, 1
        %s4342 = scalar_select %p4341, %s23, 1
        %s4343 = smul.addr %s4342, 4
        %s4344 = scalar_lea.vmem %s5, %s4343
      $region68: #{_lambda_.6} parent=55 // pred_fallthru
        _
    $region56: #{_lambda_.6} parent=5 // pred_fallthru
      _
  $region6: #{_lambda_.6} parent=0 // loop_footer
    %s16 = sadd.s32 1, %s12
  $region7: #{_lambda_.6} parent=0 // loop_footer_branch
    %11 = sbr.rel target = $region3
  $region8: #{_lambda_.6} parent=0 // loop_exit
    _

</llo_original>
